<compile_context>
chip_gen: v5e
topology: v5e:2x2
jax: 0.10.0
libtpu: 0.0.40
codegen_flags: <defaults>
</compile_context>

<pallas_src>
import functools

import jax
import jax.numpy as jnp
from jax.experimental import pallas as pl
from jax.experimental.pallas import tpu as pltpu


_VMEM_LIMIT = 32 * 1024 * 1024  # safe on v5e/v6e/v7x (re-derive tiles for v7x's 64 MiB VMEM)


def _tile(dim, pref, align):
    """Largest block <= pref that divides dim and is `align`-aligned, else full dim."""
    if dim <= pref:
        return dim
    t = pref
    while t >= align:
        if dim % t == 0:
            return t
        t //= 2
    return dim


# ----------------------------------------------------------------------------
# Kernel 1: tiled matmul with fused LN-in / bias / GELU / residual / LN-out
# ----------------------------------------------------------------------------

def _fused_matmul_kernel(*refs, nk, has_ln_in, ln_in_gelu, has_res, has_ln_out,
                         activation, eps):
    refs = list(refs)
    x_ref, w_ref, b_ref = refs[0], refs[1], refs[2]
    idx = 3
    lg_ref = lb_ref = r_ref = og_ref = ob_ref = None
    if has_ln_in:
        lg_ref, lb_ref = refs[idx], refs[idx + 1]
        idx += 2
    if has_res:
        r_ref = refs[idx]
        idx += 1
    if has_ln_out:
        og_ref, ob_ref = refs[idx], refs[idx + 1]
        idx += 2
    o_ref = refs[idx]
    acc_ref = refs[idx + 1]

    k = pl.program_id(2)

    @pl.when(k == 0)
    def _():
        acc_ref[...] = jnp.zeros_like(acc_ref)

    x = x_ref[...].astype(jnp.float32)
    if has_ln_in:
        # pre-LN fused into the matmul input (stats in f32)
        mu = jnp.mean(x, axis=-1, keepdims=True)
        var = jnp.mean(jnp.square(x - mu), axis=-1, keepdims=True)
        x = (x - mu) * jax.lax.rsqrt(var + eps)
        x = x * lg_ref[...].astype(jnp.float32) + lb_ref[...].astype(jnp.float32)
        if ln_in_gelu:
            x = jax.nn.gelu(x, approximate=True)

    # bf16 operands on the MXU, f32 accumulation
    acc_ref[...] += jnp.dot(x.astype(jnp.bfloat16), w_ref[...],
                            preferred_element_type=jnp.float32)

    @pl.when(k == nk - 1)
    def _():
        y = acc_ref[...] + b_ref[...].astype(jnp.float32)
        if activation == "gelu":
            y = jax.nn.gelu(y, approximate=True)
        if has_res:
            y = y + r_ref[...].astype(jnp.float32)
        if has_ln_out:
            mu = jnp.mean(y, axis=-1, keepdims=True)
            var = jnp.mean(jnp.square(y - mu), axis=-1, keepdims=True)
            y = (y - mu) * jax.lax.rsqrt(var + eps)
            y = y * og_ref[...].astype(jnp.float32) + ob_ref[...].astype(jnp.float32)
        o_ref[...] = y.astype(o_ref.dtype)


def fused_matmul(x, w, b, *, activation="none", residual=None, ln_in=None,
                 ln_in_gelu=False, ln_out=None, eps=1e-5,
                 tm=256, tn=256, tk=512):
    """y = [LN_out]( [res +] act( [gelu(LN_in)](x) @ w + b ) ).

    x:(M,K) f32, w:(K,N) bf16, b:(1,N) f32 -> (M,N) f32.
    LN_in requires the full K per block; LN_out requires the full N per block.
    """
    M, K = x.shape
    Kw, N = w.shape
    assert K == Kw

    has_ln_in = ln_in is not None
    has_res = residual is not None
    has_ln_out = ln_out is not None

    tm = _tile(M, tm, 8)
    tk = K if has_ln_in else _tile(K, tk, 128)
    tn = N if has_ln_out else _tile(N, tn, 128)
    gm, gn, gk = M // tm, N // tn, K // tk

    in_arrays = [x, w, b]
    in_specs = [
        pl.BlockSpec((tm, tk), lambda i, j, k: (i, k)),
        pl.BlockSpec((tk, tn), lambda i, j, k: (k, j)),
        pl.BlockSpec((1, tn), lambda i, j, k: (0, j)),
    ]
    if has_ln_in:
        in_arrays += [ln_in[0], ln_in[1]]
        in_specs += [pl.BlockSpec((1, tk), lambda i, j, k: (0, 0))] * 2
    if has_res:
        in_arrays.append(residual)
        in_specs.append(pl.BlockSpec((tm, tn), lambda i, j, k: (i, j)))
    if has_ln_out:
        in_arrays += [ln_out[0], ln_out[1]]
        in_specs += [pl.BlockSpec((1, tn), lambda i, j, k: (0, j))] * 2

    kernel = functools.partial(
        _fused_matmul_kernel, nk=gk, has_ln_in=has_ln_in, ln_in_gelu=ln_in_gelu,
        has_res=has_res, has_ln_out=has_ln_out, activation=activation, eps=eps)

    flops = 2 * M * N * K
    transcendentals = M * N if (activation == "gelu" or ln_in_gelu) else 0
    bytes_accessed = int(M * K * x.dtype.itemsize + K * N * w.dtype.itemsize
                         + M * N * 4 + N * 4)

    return pl.pallas_call(
        kernel,
        grid=(gm, gn, gk),
        out_shape=jax.ShapeDtypeStruct((M, N), jnp.float32),
        in_specs=in_specs,
        out_specs=pl.BlockSpec((tm, tn), lambda i, j, k: (i, j)),
        scratch_shapes=[pltpu.VMEM((tm, tn), jnp.float32)],
        compiler_params=pltpu.CompilerParams(
            dimension_semantics=("parallel", "parallel", "arbitrary"),
            vmem_limit_bytes=_VMEM_LIMIT),
        cost_estimate=pl.CostEstimate(flops=flops,
                                      transcendentals=transcendentals,
                                      bytes_accessed=bytes_accessed),
    )(*in_arrays)


# ----------------------------------------------------------------------------
# Kernel 2: standalone row LayerNorm (ln_pre / ln_post)
# ----------------------------------------------------------------------------

def _layernorm_kernel(x_ref, g_ref, b_ref, o_ref, *, eps):
    x = x_ref[...].astype(jnp.float32)
    mu = jnp.mean(x, axis=-1, keepdims=True)
    var = jnp.mean(jnp.square(x - mu), axis=-1, keepdims=True)
    y = (x - mu) * jax.lax.rsqrt(var + eps)
    o_ref[...] = (y * g_ref[...] + b_ref[...]).astype(o_ref.dtype)


def layernorm(x, g, b, eps=1e-5, tm=256):
    M, C = x.shape
    tm = _tile(M, tm, 8)
    return pl.pallas_call(
        functools.partial(_layernorm_kernel, eps=eps),
        grid=(M // tm,),
        out_shape=jax.ShapeDtypeStruct((M, C), jnp.float32),
        in_specs=[pl.BlockSpec((tm, C), lambda i: (i, 0)),
                  pl.BlockSpec((1, C), lambda i: (0, 0)),
                  pl.BlockSpec((1, C), lambda i: (0, 0))],
        out_specs=pl.BlockSpec((tm, C), lambda i: (i, 0)),
        compiler_params=pltpu.CompilerParams(
            dimension_semantics=("parallel",), vmem_limit_bytes=_VMEM_LIMIT),
    )(x, g, b)


# ----------------------------------------------------------------------------
# Kernel 3: multi-head attention — all heads of one batch per grid step,
#           packed QKV / KV inputs, lane-dense (Sq, heads*Dh) output
# ----------------------------------------------------------------------------

def _attn_heads(q_all, k_all, v_all, o_ref, heads, scale):
    Dh = q_all.shape[-1] // heads
    outs = []
    for h in range(heads):
        sl = slice(h * Dh, (h + 1) * Dh)
        q = q_all[:, sl].astype(jnp.bfloat16)
        k = k_all[:, sl].astype(jnp.bfloat16)
        v = v_all[:, sl].astype(jnp.bfloat16)
        # contract last dims directly (no k.T transpose through the XLU)
        s = jax.lax.dot_general(q, k, (((1,), (1,)), ((), ())),
                                preferred_element_type=jnp.float32) * scale
        s = s - jnp.max(s, axis=-1, keepdims=True)
        p = jnp.exp(s)
        inv = pl.reciprocal(jnp.sum(p, axis=-1, keepdims=True), approx=True)
        p = (p * inv).astype(jnp.bfloat16)
        outs.append(jnp.dot(p, v, preferred_element_type=jnp.float32))
    # single lane-dense store of all heads
    o_ref[0] = jnp.concatenate(outs, axis=-1).astype(o_ref.dtype)


def _mha_self_kernel(qkv_ref, o_ref, *, heads, scale):
    C = o_ref.shape[-1]
    qkv = qkv_ref[0]
    _attn_heads(qkv[:, :C], qkv[:, C:2 * C], qkv[:, 2 * C:], o_ref, heads, scale)


def _mha_cross_kernel(q_ref, kv_ref, o_ref, *, heads, scale):
    C = o_ref.shape[-1]
    kv = kv_ref[0]
    _attn_heads(q_ref[0], kv[:, :C], kv[:, C:], o_ref, heads, scale)


def attention_self(qkv, heads):
    """qkv: (B, S, 3C) packed -> (B, S, C)."""
    B, S, C3 = qkv.shape
    C = C3 // 3
    scale = 1.0 / float((C // heads) ** 0.5)
    return pl.pallas_call(
        functools.partial(_mha_self_kernel, heads=heads, scale=scale),
        grid=(B,),
        out_shape=jax.ShapeDtypeStruct((B, S, C), jnp.float32),
        in_specs=[pl.BlockSpec((1, S, C3), lambda i: (i, 0, 0))],
        out_specs=pl.BlockSpec((1, S, C), lambda i: (i, 0, 0)),
        compiler_params=pltpu.CompilerParams(
            dimension_semantics=("parallel",), vmem_limit_bytes=_VMEM_LIMIT),
    )(qkv)


def attention_cross(q, kv, heads):
    """q: (B, Sq, C), kv: (B, Sk, 2C) packed -> (B, Sq, C)."""
    B, Sq, C = q.shape
    Sk = kv.shape[1]
    scale = 1.0 / float((C // heads) ** 0.5)
    return pl.pallas_call(
        functools.partial(_mha_cross_kernel, heads=heads, scale=scale),
        grid=(B,),
        out_shape=jax.ShapeDtypeStruct((B, Sq, C), jnp.float32),
        in_specs=[pl.BlockSpec((1, Sq, C), lambda i: (i, 0, 0)),
                  pl.BlockSpec((1, Sk, 2 * C), lambda i: (i, 0, 0))],
        out_specs=pl.BlockSpec((1, Sq, C), lambda i: (i, 0, 0)),
        compiler_params=pltpu.CompilerParams(
            dimension_semantics=("parallel",), vmem_limit_bytes=_VMEM_LIMIT),
    )(q, kv)


# ----------------------------------------------------------------------------
# Kernel 4: hypernetwork dot product — consumes NHWC embedding directly,
#           lane-dense (1, HW) output per batch
# ----------------------------------------------------------------------------

def _maskdot_kernel(h_ref, e_ref, o_ref):
    h = h_ref[0].astype(jnp.bfloat16)           # (1, C4)
    e = e_ref[0].astype(jnp.bfloat16)           # (HW, C4)
    o_ref[0] = jax.lax.dot_general(
        h, e, (((1,), (1,)), ((), ())),
        preferred_element_type=jnp.float32).astype(o_ref.dtype)   # (1, HW)


def mask_dot(hyper, emb):
    """hyper:(B,1,C4), emb:(B,HW,C4) NHWC-flat -> (B,1,HW)."""
    B, _, C4 = hyper.shape
    HW = emb.shape[1]
    return pl.pallas_call(
        _maskdot_kernel,
        grid=(B,),
        out_shape=jax.ShapeDtypeStruct((B, 1, HW), jnp.float32),
        in_specs=[pl.BlockSpec((1, 1, C4), lambda i: (i, 0, 0)),
                  pl.BlockSpec((1, HW, C4), lambda i: (i, 0, 0))],
        out_specs=pl.BlockSpec((1, 1, HW), lambda i: (i, 0, 0)),
        compiler_params=pltpu.CompilerParams(
            dimension_semantics=("parallel",), vmem_limit_bytes=_VMEM_LIMIT),
    )(hyper, emb)


# ----------------------------------------------------------------------------
# CLIP-style VisionTransformer encoder (pre-LN)
# ----------------------------------------------------------------------------

def encoder_block(x, p, heads):
    B, S, C = x.shape
    xf = x.reshape(B * S, C)
    # LN1 fused into the packed QKV projection
    qkv = fused_matmul(xf, p["qkv_w"], p["qkv_b"],
                       ln_in=(p["ln1_g"], p["ln1_b"]))            # (B*S, 3C)
    a = attention_self(qkv.reshape(B, S, 3 * C), heads)           # (B, S, C)
    # output projection + residual in one kernel
    x1 = fused_matmul(a.reshape(B * S, C), p["o_w"], p["o_b"], residual=xf)
    # LN2 + fc1 + GELU fused; fc2 + residual fused
    h = fused_matmul(x1, p["fc1_w"], p["fc1_b"],
                     ln_in=(p["ln2_g"], p["ln2_b"]), activation="gelu")
    x2 = fused_matmul(h, p["fc2_w"], p["fc2_b"], residual=x1)
    return x2.reshape(B, S, C)


def vit_encoder(imgs, p, cfg):
    B = imgs.shape[0]
    P, C, g = cfg["patch"], cfg["width"], cfg["grid"]
    # patch-embed conv (kernel=stride=patch, no bias) as a matmul over patches
    patches = imgs.reshape(B, 3, g, P, g, P).transpose(0, 2, 4, 1, 3, 5)
    patches = patches.reshape(B * g * g, 3 * P * P)
    x = fused_matmul(patches, p["patch_w"], p["patch_b"]).reshape(B, g * g, C)
    cls = jnp.broadcast_to(p["cls"], (B, 1, C))
    x = jnp.concatenate([cls, x], axis=1) + p["pos"][None, :, :]   # (B, 1+N, C)
    S = x.shape[1]
    x = layernorm(x.reshape(B * S, C), p["ln_pre_g"], p["ln_pre_b"]).reshape(B, S, C)
    for blk in p["blocks"]:
        x = encoder_block(x, blk, cfg["heads"])
    x = layernorm(x.reshape(B * S, C), p["ln_post_g"], p["ln_post_b"]).reshape(B, S, C)
    # TODO(synk): original encoder may also project tokens to an output dim; we
    #             keep width == decoder_embed_dim so x feeds the decoder directly.
    return x[:, 0], x


# ----------------------------------------------------------------------------
# SAM_Decoder_Simple (two-way transformer + upscaling + hypernetwork)
# ----------------------------------------------------------------------------

def _cross_attn(xq, xkv, wq, bq, wkv, bkv, wo, bo, ln_g, ln_b, heads):
    """xq = LN(xq + MHA(q=xq, kv=xkv)) with packed KV and fused residual+LN."""
    B, Sq, C = xq.shape
    Sk = xkv.shape[1]
    qf = xq.reshape(B * Sq, C)
    q = fused_matmul(qf, wq, bq)
    kv = fused_matmul(xkv.reshape(B * Sk, C), wkv, bkv)
    a = attention_cross(q.reshape(B, Sq, C), kv.reshape(B, Sk, 2 * C), heads)
    out = fused_matmul(a.reshape(B * Sq, C), wo, bo, residual=qf,
                       ln_out=(ln_g, ln_b))
    return out.reshape(B, Sq, C)


def twoway_block(tokens, image, p, heads):
    B, T, C = tokens.shape

    # 1) token self-attention; residual + LN1 fused into the output projection
    tf = tokens.reshape(B * T, C)
    qkv = fused_matmul(tf, p["self_qkv_w"], p["self_qkv_b"])
    a = attention_self(qkv.reshape(B, T, 3 * C), heads)
    tf = fused_matmul(a.reshape(B * T, C), p["self_o_w"], p["self_o_b"],
                      residual=tf, ln_out=(p["ln1_g"], p["ln1_b"]))
    tokens = tf.reshape(B, T, C)

    # 2) tokens attend to image
    tokens = _cross_attn(tokens, image, p["t2i_q_w"], p["t2i_q_b"],
                         p["t2i_kv_w"], p["t2i_kv_b"], p["t2i_o_w"], p["t2i_o_b"],
                         p["ln2_g"], p["ln2_b"], heads)

    # 3) MLP; residual + LN3 fused into fc2
    tf = tokens.reshape(B * T, C)
    h = fused_matmul(tf, p["fc1_w"], p["fc1_b"], activation="gelu")
    tf = fused_matmul(h, p["fc2_w"], p["fc2_b"], residual=tf,
                      ln_out=(p["ln3_g"], p["ln3_b"]))
    tokens = tf.reshape(B, T, C)

    # 4) image attends to tokens
    image = _cross_attn(image, tokens, p["i2t_q_w"], p["i2t_q_b"],
                        p["i2t_kv_w"], p["i2t_kv_b"], p["i2t_o_w"], p["i2t_o_b"],
                        p["ln4_g"], p["ln4_b"], heads)
    return tokens, image


def sam_decoder(x, aff_token, p, cfg):
    B, S, C = x.shape
    g = cfg["grid"]
    heads = cfg["dec_heads"]
    C2, C4 = C // 2, C // 4

    image = x[:, 1:]                                        # (B, N, C) patch tokens
    add_tok = jnp.broadcast_to(p["add_token"], (B, 1, C))   # use_additional_token=True
    tokens = jnp.concatenate([aff_token, add_tok], axis=1)  # (B, 2, C)

    for blk in p["blocks"]:                                 # depth=2
        tokens, image = twoway_block(tokens, image, blk, heads)

    fin = p["final"]
    tokens = _cross_attn(tokens, image, fin["q_w"], fin["q_b"], fin["kv_w"],
                         fin["kv_b"], fin["o_w"], fin["o_b"],
                         p["ln_final_g"], p["ln_final_b"], heads)

    # output upscaling: two ConvTranspose2d(k=2, s=2) as matmul + pixel-shuffle
    # (use_up=2).  LayerNorm2d + GELU between them commutes with the pixel
    # shuffle, so it is fused as the input-LN of the second up-projection.
    imf = image.reshape(B * g * g, C)
    h1 = fused_matmul(imf, p["up1_w"], p["up1_b"])                  # (B*g*g, 4*C2)
    h1 = h1.reshape(B, g, g, 2, 2, C2).transpose(0, 1, 3, 2, 4, 5)
    h1 = h1.reshape(B * (2 * g) * (2 * g), C2)
    h2 = fused_matmul(h1, p["up2_w"], p["up2_b"],
                      ln_in=(p["up_ln_g"], p["up_ln_b"]), ln_in_gelu=True,
                      activation="gelu")                            # (B*(2g)^2, 4*C4)
    h2 = h2.reshape(B, 2 * g, 2 * g, 2, 2, C4).transpose(0, 1, 3, 2, 4, 5)
    emb = h2.reshape(B, (4 * g) * (4 * g), C4)                      # NHWC-flat (B, HW, C4)

    # hypernetwork MLP on the affordance token
    mask_tok = tokens[:, 0]                                         # (B, C)
    h = fused_matmul(mask_tok, p["hyp1_w"], p["hyp1_b"], activation="gelu")
    h = fused_matmul(h, p["hyp2_w"], p["hyp2_b"], activation="gelu")
    hyper = fused_matmul(h, p["hyp3_w"], p["hyp3_b"])               # (B, C4)

    masks = mask_dot(hyper.reshape(B, 1, C4), emb)                  # (B, 1, HW)
    return masks.reshape(B, 1, 4 * g, 4 * g)                        # NCHW heatmap


# ---- top-level ModelAGDsup.forward ------------------------------------------

def model_agd_sup_forward(imgs, text_feat, params, cfg):
    _, x = vit_encoder(imgs, params["encoder"], cfg)
    v = text_feat.astype(jnp.float32)[:, None, :]          # unsqueeze(1)
    aff_token = x[:, 0:1] + v
    pred_heatmap = sam_decoder(x, aff_token, params["decoder"], cfg)
    return pred_heatmap


# ----------------------------------------------------------------------------
# Deterministic parameter initialization (weights stored bf16, norms/bias f32)
# ----------------------------------------------------------------------------

def init_params(key, cfg, init_std=0.02):
    C, P = cfg["width"], cfg["patch"]
    g = cfg["grid"]
    N = g * g
    keys = iter(jax.random.split(key, 512))

    def nrm(shape, s=init_std):
        return s * jax.random.normal(next(keys), shape, jnp.float32)

    def lin(kin, kout):
        return nrm((kin, kout)).astype(jnp.bfloat16), jnp.zeros((1, kout), jnp.float32)

    def ln_p(c):
        return jnp.ones((1, c), jnp.float32), jnp.zeros((1, c), jnp.float32)

    # encoder
    enc_blocks = []
    for _ in range(cfg["layers"]):
        blk = {}
        blk["ln1_g"], blk["ln1_b"] = ln_p(C)
        blk["ln2_g"], blk["ln2_b"] = ln_p(C)
        blk["qkv_w"], blk["qkv_b"] = lin(C, 3 * C)
        blk["o_w"], blk["o_b"] = lin(C, C)
        blk["fc1_w"], blk["fc1_b"] = lin(C, 4 * C)
        blk["fc2_w"], blk["fc2_b"] = lin(4 * C, C)
        enc_blocks.append(blk)
    patch_w, patch_b = lin(3 * P * P, C)          # conv1 has no bias -> zeros
    ln_pre_g, ln_pre_b = ln_p(C)
    ln_post_g, ln_post_b = ln_p(C)
    encoder = dict(patch_w=patch_w, patch_b=patch_b, cls=nrm((1, 1, C)),
                   pos=nrm((1 + N, C)), ln_pre_g=ln_pre_g, ln_pre_b=ln_pre_b,
                   ln_post_g=ln_post_g, ln_post_b=ln_post_b, blocks=enc_blocks)

    # decoder
    C2, C4 = C // 2, C // 4
    dec_blocks = []
    for _ in range(cfg["depth"]):
        blk = {}
        blk["self_qkv_w"], blk["self_qkv_b"] = lin(C, 3 * C)
        blk["self_o_w"], blk["self_o_b"] = lin(C, C)
        blk["t2i_q_w"], blk["t2i_q_b"] = lin(C, C)
        blk["t2i_kv_w"], blk["t2i_kv_b"] = lin(C, 2 * C)
        blk["t2i_o_w"], blk["t2i_o_b"] = lin(C, C)
        blk["i2t_q_w"], blk["i2t_q_b"] = lin(C, C)
        blk["i2t_kv_w"], blk["i2t_kv_b"] = lin(C, 2 * C)
        blk["i2t_o_w"], blk["i2t_o_b"] = lin(C, C)
        for nm in ("ln1", "ln2", "ln3", "ln4"):
            blk[nm + "_g"], blk[nm + "_b"] = ln_p(C)
        blk["fc1_w"], blk["fc1_b"] = lin(C, cfg["mlp_dim"])
        blk["fc2_w"], blk["fc2_b"] = lin(cfg["mlp_dim"], C)
        dec_blocks.append(blk)
    fin = {}
    fin["q_w"], fin["q_b"] = lin(C, C)
    fin["kv_w"], fin["kv_b"] = lin(C, 2 * C)
    fin["o_w"], fin["o_b"] = lin(C, C)
    ln_final_g, ln_final_b = ln_p(C)
    up1_w, up1_b = lin(C, 4 * C2)
    up2_w, up2_b = lin(C2, 4 * C4)
    up_ln_g, up_ln_b = ln_p(C2)
    hyp1_w, hyp1_b = lin(C, C)
    hyp2_w, hyp2_b = lin(C, C)
    hyp3_w, hyp3_b = lin(C, C4)
    decoder = dict(add_token=nrm((1, 1, C)), blocks=dec_blocks, final=fin,
                   ln_final_g=ln_final_g, ln_final_b=ln_final_b,
                   up1_w=up1_w, up1_b=up1_b, up2_w=up2_w, up2_b=up2_b,
                   up_ln_g=up_ln_g, up_ln_b=up_ln_b,
                   hyp1_w=hyp1_w, hyp1_b=hyp1_b, hyp2_w=hyp2_w, hyp2_b=hyp2_b,
                   hyp3_w=hyp3_w, hyp3_b=hyp3_b)

    return dict(encoder=encoder, decoder=decoder)


# ----------------------------------------------------------------------------
# Demo
# ----------------------------------------------------------------------------

if __name__ == "__main__":
    # small, consistent shapes: img 16x16, patch 4 -> 4x4=16 patches, width 32
    cfg = dict(patch=4, grid=4, width=32, heads=4, layers=2,
               dec_heads=4, depth=2, mlp_dim=64)

    key = jax.random.PRNGKey(0)
    k_img, k_txt, k_par = jax.random.split(key, 3)
    imgs = jax.random.normal(k_img, (2, 3, 16, 16), jnp.float32)    # NCHW
    text_feat = jax.random.normal(k_txt, (2, cfg["width"]), jnp.float32)
    params = init_params(k_par, cfg)

    fwd = jax.jit(lambda im, tf, pr: model_agd_sup_forward(im, tf, pr, cfg))
    out = fwd(imgs, text_feat, params)
    jax.block_until_ready(out)

    assert out.shape == (2, 1, 16, 16), out.shape
    assert out.dtype == jnp.float32
    print("KERNEL_OK")
</pallas_src>

<mosaic_0001>
module attributes {stable_mosaic.version = 11 : i64} {
  func.func @_fused_matmul_kernel(%arg0: i32, %arg1: i32, %arg2: i32, %arg3: memref<32x48xf32, #tpu.memory_space<vmem>>, %arg4: memref<48x32xbf16, #tpu.memory_space<vmem>>, %arg5: memref<1x32xf32, #tpu.memory_space<vmem>>, %arg6: memref<32x32xf32, #tpu.memory_space<vmem>>, %arg7: memref<32x32xf32, #tpu.memory_space<vmem>>) attributes {dimension_semantics = [#tpu.dimension_semantics<parallel>, #tpu.dimension_semantics<parallel>, #tpu.dimension_semantics<arbitrary>], iteration_bounds = array<i64: 1, 1, 1>, scalar_prefetch = 0 : i64, scratch_operands = 1 : i64, tpu.core_type = #tpu.core_type<tc>, window_params = [{transform_indices = @transform_0, window_bounds = array<i64: 32, 48>}, {transform_indices = @transform_1, window_bounds = array<i64: 48, 32>}, {transform_indices = @transform_2, window_bounds = array<i64: 1, 32>}, {transform_indices = @transform_3, window_bounds = array<i64: 32, 32>}]} {
    %c0_i32 = arith.constant 0 : i32
    %0 = arith.cmpi eq, %arg2, %c0_i32 : i32
    %1 = arith.extui %0 : i1 to i32
    %c0_i32_0 = arith.constant 0 : i32
    %2 = arith.cmpi ne, %1, %c0_i32_0 : i32
    scf.if %2 {
      %cst_10 = arith.constant 0.000000e+00 : f32
      %13 = vector.broadcast %cst_10 : f32 to vector<32x32xf32>
      %c0_11 = arith.constant 0 : index
      %c0_12 = arith.constant 0 : index
      %14 = vector.load %arg7[%c0_11, %c0_12] : memref<32x32xf32, #tpu.memory_space<vmem>>, vector<32x32xf32>
      tpu.vector_store %arg7[%c0_11, %c0_12], %13 {strides = array<i32>} : memref<32x32xf32, #tpu.memory_space<vmem>>, vector<32x32xf32>,
    } else {
    }
    %c0 = arith.constant 0 : index
    %c0_1 = arith.constant 0 : index
    %3 = vector.load %arg3[%c0, %c0_1] : memref<32x48xf32, #tpu.memory_space<vmem>>, vector<32x48xf32>
    %c0_2 = arith.constant 0 : index
    %c0_3 = arith.constant 0 : index
    %4 = vector.load %arg7[%c0_2, %c0_3] : memref<32x32xf32, #tpu.memory_space<vmem>>, vector<32x32xf32>
    %5 = arith.truncf %3 : vector<32x48xf32> to vector<32x48xbf16>
    %c0_4 = arith.constant 0 : index
    %c0_5 = arith.constant 0 : index
    %6 = vector.load %arg4[%c0_4, %c0_5] : memref<48x32xbf16, #tpu.memory_space<vmem>>, vector<48x32xbf16>
    %cst = arith.constant dense<0.000000e+00> : vector<32x32xf32>
    %7 = tpu.matmul %5, %6, %cst {dimension_numbers = #tpu.dot_dimension_numbers<[1], [0], [0], [1], [0, 0, 1, 1], [], []>} : vector<32x48xbf16>, vector<48x32xbf16>, vector<32x32xf32> -> vector<32x32xf32>
    %8 = arith.addf %4, %7 : vector<32x32xf32>
    %c0_6 = arith.constant 0 : index
    %c0_7 = arith.constant 0 : index
    %9 = vector.load %arg7[%c0_6, %c0_7] : memref<32x32xf32, #tpu.memory_space<vmem>>, vector<32x32xf32>
    tpu.vector_store %arg7[%c0_6, %c0_7], %8 {strides = array<i32>} : memref<32x32xf32, #tpu.memory_space<vmem>>, vector<32x32xf32>,
    %c0_i32_8 = arith.constant 0 : i32
    %10 = arith.cmpi eq, %arg2, %c0_i32_8 : i32
    %11 = arith.extui %10 : i1 to i32
    %c0_i32_9 = arith.constant 0 : i32
    %12 = arith.cmpi ne, %11, %c0_i32_9 : i32
    scf.if %12 {
      %c0_10 = arith.constant 0 : index
      %c0_11 = arith.constant 0 : index
      %13 = vector.load %arg7[%c0_10, %c0_11] : memref<32x32xf32, #tpu.memory_space<vmem>>, vector<32x32xf32>
      %c0_12 = arith.constant 0 : index
      %c0_13 = arith.constant 0 : index
      %14 = vector.load %arg5[%c0_12, %c0_13] : memref<1x32xf32, #tpu.memory_space<vmem>>, vector<1x32xf32>
      %15 = vector.broadcast %14 : vector<1x32xf32> to vector<32x32xf32>
      %16 = arith.addf %13, %15 : vector<32x32xf32>
      %c0_14 = arith.constant 0 : index
      %c0_15 = arith.constant 0 : index
      %17 = vector.load %arg6[%c0_14, %c0_15] : memref<32x32xf32, #tpu.memory_space<vmem>>, vector<32x32xf32>
      tpu.vector_store %arg6[%c0_14, %c0_15], %16 {strides = array<i32>} : memref<32x32xf32, #tpu.memory_space<vmem>>, vector<32x32xf32>,
    } else {
    }
    return
  }
  func.func @transform_0(%arg0: i32, %arg1: i32, %arg2: i32) -> (i32, i32) {
    %c0_i32 = arith.constant 0 : i32
    return %arg0, %arg2 : i32, i32
  }
  func.func @transform_1(%arg0: i32, %arg1: i32, %arg2: i32) -> (i32, i32) {
    %c0_i32 = arith.constant 0 : i32
    return %arg2, %arg1 : i32, i32
  }
  func.func @transform_2(%arg0: i32, %arg1: i32, %arg2: i32) -> (i32, i32) {
    %c0_i32 = arith.constant 0 : i32
    %c0_i32_0 = arith.constant 0 : i32
    return %c0_i32, %arg1 : i32, i32
  }
  func.func @transform_3(%arg0: i32, %arg1: i32, %arg2: i32) -> (i32, i32) {
    %c0_i32 = arith.constant 0 : i32
    return %arg0, %arg1 : i32, i32
  }
}

module attributes {stable_mosaic.version = 11 : i64} {
  func.func @_fused_matmul_kernel(%arg0: i32, %arg1: i32, %arg2: i32, %arg3: memref<34x32xf32, #tpu.memory_space<vmem>>, %arg4: memref<32x96xbf16, #tpu.memory_space<vmem>>, %arg5: memref<1x96xf32, #tpu.memory_space<vmem>>, %arg6: memref<1x32xf32, #tpu.memory_space<vmem>>, %arg7: memref<1x32xf32, #tpu.memory_space<vmem>>, %arg8: memref<34x96xf32, #tpu.memory_space<vmem>>, %arg9: memref<34x96xf32, #tpu.memory_space<vmem>>) attributes {dimension_semantics = [#tpu.dimension_semantics<parallel>, #tpu.dimension_semantics<parallel>, #tpu.dimension_semantics<arbitrary>], iteration_bounds = array<i64: 1, 1, 1>, scalar_prefetch = 0 : i64, scratch_operands = 1 : i64, tpu.core_type = #tpu.core_type<tc>, window_params = [{transform_indices = @transform_0, window_bounds = array<i64: 34, 32>}, {transform_indices = @transform_1, window_bounds = array<i64: 32, 96>}, {transform_indices = @transform_2, window_bounds = array<i64: 1, 96>}, {pipeline_mode = #tpu.pipeline_mode<synchronous>, transform_indices = @transform_3, window_bounds = array<i64: 1, 32>}, {pipeline_mode = #tpu.pipeline_mode<synchronous>, transform_indices = @transform_4, window_bounds = array<i64: 1, 32>}, {transform_indices = @transform_5, window_bounds = array<i64: 34, 96>}]} {
    %c0_i32 = arith.constant 0 : i32
    %0 = arith.cmpi eq, %arg2, %c0_i32 : i32
    %1 = arith.extui %0 : i1 to i32
    %c0_i32_0 = arith.constant 0 : i32
    %2 = arith.cmpi ne, %1, %c0_i32_0 : i32
    scf.if %2 {
      %cst_19 = arith.constant 0.000000e+00 : f32
      %37 = vector.broadcast %cst_19 : f32 to vector<34x96xf32>
      %c0_20 = arith.constant 0 : index
      %c0_21 = arith.constant 0 : index
      %38 = vector.load %arg9[%c0_20, %c0_21] : memref<34x96xf32, #tpu.memory_space<vmem>>, vector<34x96xf32>
      tpu.vector_store %arg9[%c0_20, %c0_21], %37 {strides = array<i32>} : memref<34x96xf32, #tpu.memory_space<vmem>>, vector<34x96xf32>,
    } else {
    }
    %c0 = arith.constant 0 : index
    %c0_1 = arith.constant 0 : index
    %3 = vector.load %arg3[%c0, %c0_1] : memref<34x32xf32, #tpu.memory_space<vmem>>, vector<34x32xf32>
    %cst = arith.constant dense<0.000000e+00> : vector<34xf32>
    %4 = vector.multi_reduction <add>, %3, %cst [1] : vector<34x32xf32> to vector<34xf32>
    %5 = vector.shape_cast %4 : vector<34xf32> to vector<34x1xf32>
    %cst_2 = arith.constant 3.200000e+01 : f32
    %6 = vector.broadcast %cst_2 : f32 to vector<34x1xf32>
    %7 = arith.divf %5, %6 : vector<34x1xf32>
    %8 = vector.broadcast %7 : vector<34x1xf32> to vector<34x32xf32>
    %9 = arith.subf %3, %8 : vector<34x32xf32>
    %10 = arith.mulf %9, %9 : vector<34x32xf32>
    %cst_3 = arith.constant dense<0.000000e+00> : vector<34xf32>
    %11 = vector.multi_reduction <add>, %10, %cst_3 [1] : vector<34x32xf32> to vector<34xf32>
    %12 = vector.shape_cast %11 : vector<34xf32> to vector<34x1xf32>
    %cst_4 = arith.constant 3.200000e+01 : f32
    %13 = vector.broadcast %cst_4 : f32 to vector<34x1xf32>
    %14 = arith.divf %12, %13 : vector<34x1xf32>
    %15 = vector.broadcast %7 : vector<34x1xf32> to vector<34x32xf32>
    %16 = arith.subf %3, %15 : vector<34x32xf32>
    %cst_5 = arith.constant 9.99999974E-6 : f32
    %17 = vector.broadcast %cst_5 : f32 to vector<34x1xf32>
    %18 = arith.addf %14, %17 : vector<34x1xf32>
    %19 = math.rsqrt %18 : vector<34x1xf32>
    %20 = vector.broadcast %19 : vector<34x1xf32> to vector<34x32xf32>
    %21 = arith.mulf %16, %20 : vector<34x32xf32>
    %c0_6 = arith.constant 0 : index
    %c0_7 = arith.constant 0 : index
    %22 = vector.load %arg6[%c0_6, %c0_7] : memref<1x32xf32, #tpu.memory_space<vmem>>, vector<1x32xf32>
    %23 = vector.broadcast %22 : vector<1x32xf32> to vector<34x32xf32>
    %24 = arith.mulf %21, %23 : vector<34x32xf32>
    %c0_8 = arith.constant 0 : index
    %c0_9 = arith.constant 0 : index
    %25 = vector.load %arg7[%c0_8, %c0_9] : memref<1x32xf32, #tpu.memory_space<vmem>>, vector<1x32xf32>
    %26 = vector.broadcast %25 : vector<1x32xf32> to vector<34x32xf32>
    %27 = arith.addf %24, %26 : vector<34x32xf32>
    %c0_10 = arith.constant 0 : index
    %c0_11 = arith.constant 0 : index
    %28 = vector.load %arg9[%c0_10, %c0_11] : memref<34x96xf32, #tpu.memory_space<vmem>>, vector<34x96xf32>
    %29 = arith.truncf %27 : vector<34x32xf32> to vector<34x32xbf16>
    %c0_12 = arith.constant 0 : index
    %c0_13 = arith.constant 0 : index
    %30 = vector.load %arg4[%c0_12, %c0_13] : memref<32x96xbf16, #tpu.memory_space<vmem>>, vector<32x96xbf16>
    %cst_14 = arith.constant dense<0.000000e+00> : vector<34x96xf32>
    %31 = tpu.matmul %29, %30, %cst_14 {dimension_numbers = #tpu.dot_dimension_numbers<[1], [0], [0], [1], [0, 0, 1, 1], [], []>} : vector<34x32xbf16>, vector<32x96xbf16>, vector<34x96xf32> -> vector<34x96xf32>
    %32 = arith.addf %28, %31 : vector<34x96xf32>
    %c0_15 = arith.constant 0 : index
    %c0_16 = arith.constant 0 : index
    %33 = vector.load %arg9[%c0_15, %c0_16] : memref<34x96xf32, #tpu.memory_space<vmem>>, vector<34x96xf32>
    tpu.vector_store %arg9[%c0_15, %c0_16], %32 {strides = array<i32>} : memref<34x96xf32, #tpu.memory_space<vmem>>, vector<34x96xf32>,
    %c0_i32_17 = arith.constant 0 : i32
    %34 = arith.cmpi eq, %arg2, %c0_i32_17 : i32
    %35 = arith.extui %34 : i1 to i32
    %c0_i32_18 = arith.constant 0 : i32
    %36 = arith.cmpi ne, %35, %c0_i32_18 : i32
    scf.if %36 {
      %c0_19 = arith.constant 0 : index
      %c0_20 = arith.constant 0 : index
      %37 = vector.load %arg9[%c0_19, %c0_20] : memref<34x96xf32, #tpu.memory_space<vmem>>, vector<34x96xf32>
      %c0_21 = arith.constant 0 : index
      %c0_22 = arith.constant 0 : index
      %38 = vector.load %arg5[%c0_21, %c0_22] : memref<1x96xf32, #tpu.memory_space<vmem>>, vector<1x96xf32>
      %39 = vector.broadcast %38 : vector<1x96xf32> to vector<34x96xf32>
      %40 = arith.addf %37, %39 : vector<34x96xf32>
      %c0_23 = arith.constant 0 : index
      %c0_24 = arith.constant 0 : index
      %41 = vector.load %arg8[%c0_23, %c0_24] : memref<34x96xf32, #tpu.memory_space<vmem>>, vector<34x96xf32>
      tpu.vector_store %arg8[%c0_23, %c0_24], %40 {strides = array<i32>} : memref<34x96xf32, #tpu.memory_space<vmem>>, vector<34x96xf32>,
    } else {
    }
    return
  }
  func.func @transform_0(%arg0: i32, %arg1: i32, %arg2: i32) -> (i32, i32) {
    %c0_i32 = arith.constant 0 : i32
    return %arg0, %arg2 : i32, i32
  }
  func.func @transform_1(%arg0: i32, %arg1: i32, %arg2: i32) -> (i32, i32) {
    %c0_i32 = arith.constant 0 : i32
    return %arg2, %arg1 : i32, i32
  }
  func.func @transform_2(%arg0: i32, %arg1: i32, %arg2: i32) -> (i32, i32) {
    %c0_i32 = arith.constant 0 : i32
    %c0_i32_0 = arith.constant 0 : i32
    return %c0_i32, %arg1 : i32, i32
  }
  func.func @transform_3(%arg0: i32, %arg1: i32, %arg2: i32) -> (i32, i32) {
    %c0_i32 = arith.constant 0 : i32
    %c0_i32_0 = arith.constant 0 : i32
    %c0_i32_1 = arith.constant 0 : i32
    return %c0_i32, %c0_i32_0 : i32, i32
  }
  func.func @transform_4(%arg0: i32, %arg1: i32, %arg2: i32) -> (i32, i32) {
    %c0_i32 = arith.constant 0 : i32
    %c0_i32_0 = arith.constant 0 : i32
    %c0_i32_1 = arith.constant 0 : i32
    return %c0_i32, %c0_i32_0 : i32, i32
  }
  func.func @transform_5(%arg0: i32, %arg1: i32, %arg2: i32) -> (i32, i32) {
    %c0_i32 = arith.constant 0 : i32
    return %arg0, %arg1 : i32, i32
  }
}

module attributes {stable_mosaic.version = 11 : i64} {
  func.func @_layernorm_kernel(%arg0: i32, %arg1: memref<34x32xf32, #tpu.memory_space<vmem>>, %arg2: memref<1x32xf32, #tpu.memory_space<vmem>>, %arg3: memref<1x32xf32, #tpu.memory_space<vmem>>, %arg4: memref<34x32xf32, #tpu.memory_space<vmem>>) attributes {dimension_semantics = [#tpu.dimension_semantics<parallel>], iteration_bounds = array<i64: 1>, scalar_prefetch = 0 : i64, scratch_operands = 0 : i64, tpu.core_type = #tpu.core_type<tc>, window_params = [{transform_indices = @transform_0, window_bounds = array<i64: 34, 32>}, {pipeline_mode = #tpu.pipeline_mode<synchronous>, transform_indices = @transform_1, window_bounds = array<i64: 1, 32>}, {pipeline_mode = #tpu.pipeline_mode<synchronous>, transform_indices = @transform_2, window_bounds = array<i64: 1, 32>}, {transform_indices = @transform_3, window_bounds = array<i64: 34, 32>}]} {
    %c0 = arith.constant 0 : index
    %c0_0 = arith.constant 0 : index
    %0 = vector.load %arg1[%c0, %c0_0] : memref<34x32xf32, #tpu.memory_space<vmem>>, vector<34x32xf32>
    %cst = arith.constant dense<0.000000e+00> : vector<34xf32>
    %1 = vector.multi_reduction <add>, %0, %cst [1] : vector<34x32xf32> to vector<34xf32>
    %2 = vector.shape_cast %1 : vector<34xf32> to vector<34x1xf32>
    %cst_1 = arith.constant 3.200000e+01 : f32
    %3 = vector.broadcast %cst_1 : f32 to vector<34x1xf32>
    %4 = arith.divf %2, %3 : vector<34x1xf32>
    %5 = vector.broadcast %4 : vector<34x1xf32> to vector<34x32xf32>
    %6 = arith.subf %0, %5 : vector<34x32xf32>
    %7 = arith.mulf %6, %6 : vector<34x32xf32>
    %cst_2 = arith.constant dense<0.000000e+00> : vector<34xf32>
    %8 = vector.multi_reduction <add>, %7, %cst_2 [1] : vector<34x32xf32> to vector<34xf32>
    %9 = vector.shape_cast %8 : vector<34xf32> to vector<34x1xf32>
    %cst_3 = arith.constant 3.200000e+01 : f32
    %10 = vector.broadcast %cst_3 : f32 to vector<34x1xf32>
    %11 = arith.divf %9, %10 : vector<34x1xf32>
    %12 = vector.broadcast %4 : vector<34x1xf32> to vector<34x32xf32>
    %13 = arith.subf %0, %12 : vector<34x32xf32>
    %cst_4 = arith.constant 9.99999974E-6 : f32
    %14 = vector.broadcast %cst_4 : f32 to vector<34x1xf32>
    %15 = arith.addf %11, %14 : vector<34x1xf32>
    %16 = math.rsqrt %15 : vector<34x1xf32>
    %17 = vector.broadcast %16 : vector<34x1xf32> to vector<34x32xf32>
    %18 = arith.mulf %13, %17 : vector<34x32xf32>
    %c0_5 = arith.constant 0 : index
    %c0_6 = arith.constant 0 : index
    %19 = vector.load %arg2[%c0_5, %c0_6] : memref<1x32xf32, #tpu.memory_space<vmem>>, vector<1x32xf32>
    %20 = vector.broadcast %19 : vector<1x32xf32> to vector<34x32xf32>
    %21 = arith.mulf %18, %20 : vector<34x32xf32>
    %c0_7 = arith.constant 0 : index
    %c0_8 = arith.constant 0 : index
    %22 = vector.load %arg3[%c0_7, %c0_8] : memref<1x32xf32, #tpu.memory_space<vmem>>, vector<1x32xf32>
    %23 = vector.broadcast %22 : vector<1x32xf32> to vector<34x32xf32>
    %24 = arith.addf %21, %23 : vector<34x32xf32>
    %c0_9 = arith.constant 0 : index
    %c0_10 = arith.constant 0 : index
    %25 = vector.load %arg4[%c0_9, %c0_10] : memref<34x32xf32, #tpu.memory_space<vmem>>, vector<34x32xf32>
    tpu.vector_store %arg4[%c0_9, %c0_10], %24 {strides = array<i32>} : memref<34x32xf32, #tpu.memory_space<vmem>>, vector<34x32xf32>,
    return
  }
  func.func @transform_0(%arg0: i32) -> (i32, i32) {
    %c0_i32 = arith.constant 0 : i32
    %c0_i32_0 = arith.constant 0 : i32
    return %arg0, %c0_i32 : i32, i32
  }
  func.func @transform_1(%arg0: i32) -> (i32, i32) {
    %c0_i32 = arith.constant 0 : i32
    %c0_i32_0 = arith.constant 0 : i32
    %c0_i32_1 = arith.constant 0 : i32
    return %c0_i32, %c0_i32_0 : i32, i32
  }
  func.func @transform_2(%arg0: i32) -> (i32, i32) {
    %c0_i32 = arith.constant 0 : i32
    %c0_i32_0 = arith.constant 0 : i32
    %c0_i32_1 = arith.constant 0 : i32
    return %c0_i32, %c0_i32_0 : i32, i32
  }
  func.func @transform_3(%arg0: i32) -> (i32, i32) {
    %c0_i32 = arith.constant 0 : i32
    %c0_i32_0 = arith.constant 0 : i32
    return %arg0, %c0_i32 : i32, i32
  }
}

module attributes {stable_mosaic.version = 11 : i64} {
  func.func @_mha_self_kernel(%arg0: i32, %arg1: memref<1x17x96xf32, #tpu.memory_space<vmem>>, %arg2: memref<1x17x32xf32, #tpu.memory_space<vmem>>) attributes {dimension_semantics = [#tpu.dimension_semantics<parallel>], iteration_bounds = array<i64: 2>, scalar_prefetch = 0 : i64, scratch_operands = 0 : i64, tpu.core_type = #tpu.core_type<tc>, window_params = [{transform_indices = @transform_0, window_bounds = array<i64: 1, 17, 96>}, {transform_indices = @transform_1, window_bounds = array<i64: 1, 17, 32>}]} {
    %c0 = arith.constant 0 : index
    %c0_0 = arith.constant 0 : index
    %c0_1 = arith.constant 0 : index
    %0 = vector.load %arg1[%c0, %c0_0, %c0_1] : memref<1x17x96xf32, #tpu.memory_space<vmem>>, vector<1x17x96xf32>
    %1 = vector.shape_cast %0 : vector<1x17x96xf32> to vector<17x96xf32>
    %2 = vector.extract_strided_slice %1 {offsets = [0, 0], sizes = [17, 32], strides = [1, 1]} : vector<17x96xf32> to vector<17x32xf32>
    %3 = vector.extract_strided_slice %1 {offsets = [0, 32], sizes = [17, 32], strides = [1, 1]} : vector<17x96xf32> to vector<17x32xf32>
    %4 = vector.extract_strided_slice %1 {offsets = [0, 64], sizes = [17, 32], strides = [1, 1]} : vector<17x96xf32> to vector<17x32xf32>
    %5 = vector.extract_strided_slice %2 {offsets = [0, 0], sizes = [17, 8], strides = [1, 1]} : vector<17x32xf32> to vector<17x8xf32>
    %6 = arith.truncf %5 : vector<17x8xf32> to vector<17x8xbf16>
    %7 = vector.extract_strided_slice %3 {offsets = [0, 0], sizes = [17, 8], strides = [1, 1]} : vector<17x32xf32> to vector<17x8xf32>
    %8 = arith.truncf %7 : vector<17x8xf32> to vector<17x8xbf16>
    %9 = vector.extract_strided_slice %4 {offsets = [0, 0], sizes = [17, 8], strides = [1, 1]} : vector<17x32xf32> to vector<17x8xf32>
    %10 = arith.truncf %9 : vector<17x8xf32> to vector<17x8xbf16>
    %cst = arith.constant dense<0.000000e+00> : vector<17x17xf32>
    %11 = tpu.matmul %6, %8, %cst {dimension_numbers = #tpu.dot_dimension_numbers<[1], [1], [0], [0], [0, 0, 1, 0], [], []>} : vector<17x8xbf16>, vector<17x8xbf16>, vector<17x17xf32> -> vector<17x17xf32>
    %cst_2 = arith.constant 0.353553385 : f32
    %12 = vector.broadcast %cst_2 : f32 to vector<17x17xf32>
    %13 = arith.mulf %11, %12 : vector<17x17xf32>
    %cst_3 = arith.constant dense<0xFF800000> : vector<17xf32>
    %14 = vector.multi_reduction <maximumf>, %13, %cst_3 [1] : vector<17x17xf32> to vector<17xf32>
    %15 = vector.shape_cast %14 : vector<17xf32> to vector<17x1xf32>
    %16 = vector.broadcast %15 : vector<17x1xf32> to vector<17x17xf32>
    %17 = arith.subf %13, %16 : vector<17x17xf32>
    %18 = math.exp %17 : vector<17x17xf32>
    %cst_4 = arith.constant dense<0.000000e+00> : vector<17xf32>
    %19 = vector.multi_reduction <add>, %18, %cst_4 [1] : vector<17x17xf32> to vector<17xf32>
    %20 = vector.shape_cast %19 : vector<17xf32> to vector<17x1xf32>
    %21 = tpu.reciprocal %20 {approx = true} : vector<17x1xf32> -> vector<17x1xf32>
    %22 = vector.broadcast %21 : vector<17x1xf32> to vector<17x17xf32>
    %23 = arith.mulf %18, %22 : vector<17x17xf32>
    %24 = arith.truncf %23 : vector<17x17xf32> to vector<17x17xbf16>
    %cst_5 = arith.constant dense<0.000000e+00> : vector<17x8xf32>
    %25 = tpu.matmul %24, %10, %cst_5 {dimension_numbers = #tpu.dot_dimension_numbers<[1], [0], [0], [1], [0, 0, 1, 1], [], []>} : vector<17x17xbf16>, vector<17x8xbf16>, vector<17x8xf32> -> vector<17x8xf32>
    %26 = vector.extract_strided_slice %2 {offsets = [0, 8], sizes = [17, 8], strides = [1, 1]} : vector<17x32xf32> to vector<17x8xf32>
    %27 = arith.truncf %26 : vector<17x8xf32> to vector<17x8xbf16>
    %28 = vector.extract_strided_slice %3 {offsets = [0, 8], sizes = [17, 8], strides = [1, 1]} : vector<17x32xf32> to vector<17x8xf32>
    %29 = arith.truncf %28 : vector<17x8xf32> to vector<17x8xbf16>
    %30 = vector.extract_strided_slice %4 {offsets = [0, 8], sizes = [17, 8], strides = [1, 1]} : vector<17x32xf32> to vector<17x8xf32>
    %31 = arith.truncf %30 : vector<17x8xf32> to vector<17x8xbf16>
    %cst_6 = arith.constant dense<0.000000e+00> : vector<17x17xf32>
    %32 = tpu.matmul %27, %29, %cst_6 {dimension_numbers = #tpu.dot_dimension_numbers<[1], [1], [0], [0], [0, 0, 1, 0], [], []>} : vector<17x8xbf16>, vector<17x8xbf16>, vector<17x17xf32> -> vector<17x17xf32>
    %cst_7 = arith.constant 0.353553385 : f32
    %33 = vector.broadcast %cst_7 : f32 to vector<17x17xf32>
    %34 = arith.mulf %32, %33 : vector<17x17xf32>
    %cst_8 = arith.constant dense<0xFF800000> : vector<17xf32>
    %35 = vector.multi_reduction <maximumf>, %34, %cst_8 [1] : vector<17x17xf32> to vector<17xf32>
    %36 = vector.shape_cast %35 : vector<17xf32> to vector<17x1xf32>
    %37 = vector.broadcast %36 : vector<17x1xf32> to vector<17x17xf32>
    %38 = arith.subf %34, %37 : vector<17x17xf32>
    %39 = math.exp %38 : vector<17x17xf32>
    %cst_9 = arith.constant dense<0.000000e+00> : vector<17xf32>
    %40 = vector.multi_reduction <add>, %39, %cst_9 [1] : vector<17x17xf32> to vector<17xf32>
    %41 = vector.shape_cast %40 : vector<17xf32> to vector<17x1xf32>
    %42 = tpu.reciprocal %41 {approx = true} : vector<17x1xf32> -> vector<17x1xf32>
    %43 = vector.broadcast %42 : vector<17x1xf32> to vector<17x17xf32>
    %44 = arith.mulf %39, %43 : vector<17x17xf32>
    %45 = arith.truncf %44 : vector<17x17xf32> to vector<17x17xbf16>
    %cst_10 = arith.constant dense<0.000000e+00> : vector<17x8xf32>
    %46 = tpu.matmul %45, %31, %cst_10 {dimension_numbers = #tpu.dot_dimension_numbers<[1], [0], [0], [1], [0, 0, 1, 1], [], []>} : vector<17x17xbf16>, vector<17x8xbf16>, vector<17x8xf32> -> vector<17x8xf32>
    %47 = vector.extract_strided_slice %2 {offsets = [0, 16], sizes = [17, 8], strides = [1, 1]} : vector<17x32xf32> to vector<17x8xf32>
    %48 = arith.truncf %47 : vector<17x8xf32> to vector<17x8xbf16>
    %49 = vector.extract_strided_slice %3 {offsets = [0, 16], sizes = [17, 8], strides = [1, 1]} : vector<17x32xf32> to vector<17x8xf32>
    %50 = arith.truncf %49 : vector<17x8xf32> to vector<17x8xbf16>
    %51 = vector.extract_strided_slice %4 {offsets = [0, 16], sizes = [17, 8], strides = [1, 1]} : vector<17x32xf32> to vector<17x8xf32>
    %52 = arith.truncf %51 : vector<17x8xf32> to vector<17x8xbf16>
    %cst_11 = arith.constant dense<0.000000e+00> : vector<17x17xf32>
    %53 = tpu.matmul %48, %50, %cst_11 {dimension_numbers = #tpu.dot_dimension_numbers<[1], [1], [0], [0], [0, 0, 1, 0], [], []>} : vector<17x8xbf16>, vector<17x8xbf16>, vector<17x17xf32> -> vector<17x17xf32>
    %cst_12 = arith.constant 0.353553385 : f32
    %54 = vector.broadcast %cst_12 : f32 to vector<17x17xf32>
    %55 = arith.mulf %53, %54 : vector<17x17xf32>
    %cst_13 = arith.constant dense<0xFF800000> : vector<17xf32>
    %56 = vector.multi_reduction <maximumf>, %55, %cst_13 [1] : vector<17x17xf32> to vector<17xf32>
    %57 = vector.shape_cast %56 : vector<17xf32> to vector<17x1xf32>
    %58 = vector.broadcast %57 : vector<17x1xf32> to vector<17x17xf32>
    %59 = arith.subf %55, %58 : vector<17x17xf32>
    %60 = math.exp %59 : vector<17x17xf32>
    %cst_14 = arith.constant dense<0.000000e+00> : vector<17xf32>
    %61 = vector.multi_reduction <add>, %60, %cst_14 [1] : vector<17x17xf32> to vector<17xf32>
    %62 = vector.shape_cast %61 : vector<17xf32> to vector<17x1xf32>
    %63 = tpu.reciprocal %62 {approx = true} : vector<17x1xf32> -> vector<17x1xf32>
    %64 = vector.broadcast %63 : vector<17x1xf32> to vector<17x17xf32>
    %65 = arith.mulf %60, %64 : vector<17x17xf32>
    %66 = arith.truncf %65 : vector<17x17xf32> to vector<17x17xbf16>
    %cst_15 = arith.constant dense<0.000000e+00> : vector<17x8xf32>
    %67 = tpu.matmul %66, %52, %cst_15 {dimension_numbers = #tpu.dot_dimension_numbers<[1], [0], [0], [1], [0, 0, 1, 1], [], []>} : vector<17x17xbf16>, vector<17x8xbf16>, vector<17x8xf32> -> vector<17x8xf32>
    %68 = vector.extract_strided_slice %2 {offsets = [0, 24], sizes = [17, 8], strides = [1, 1]} : vector<17x32xf32> to vector<17x8xf32>
    %69 = arith.truncf %68 : vector<17x8xf32> to vector<17x8xbf16>
    %70 = vector.extract_strided_slice %3 {offsets = [0, 24], sizes = [17, 8], strides = [1, 1]} : vector<17x32xf32> to vector<17x8xf32>
    %71 = arith.truncf %70 : vector<17x8xf32> to vector<17x8xbf16>
    %72 = vector.extract_strided_slice %4 {offsets = [0, 24], sizes = [17, 8], strides = [1, 1]} : vector<17x32xf32> to vector<17x8xf32>
    %73 = arith.truncf %72 : vector<17x8xf32> to vector<17x8xbf16>
    %cst_16 = arith.constant dense<0.000000e+00> : vector<17x17xf32>
    %74 = tpu.matmul %69, %71, %cst_16 {dimension_numbers = #tpu.dot_dimension_numbers<[1], [1], [0], [0], [0, 0, 1, 0], [], []>} : vector<17x8xbf16>, vector<17x8xbf16>, vector<17x17xf32> -> vector<17x17xf32>
    %cst_17 = arith.constant 0.353553385 : f32
    %75 = vector.broadcast %cst_17 : f32 to vector<17x17xf32>
    %76 = arith.mulf %74, %75 : vector<17x17xf32>
    %cst_18 = arith.constant dense<0xFF800000> : vector<17xf32>
    %77 = vector.multi_reduction <maximumf>, %76, %cst_18 [1] : vector<17x17xf32> to vector<17xf32>
    %78 = vector.shape_cast %77 : vector<17xf32> to vector<17x1xf32>
    %79 = vector.broadcast %78 : vector<17x1xf32> to vector<17x17xf32>
    %80 = arith.subf %76, %79 : vector<17x17xf32>
    %81 = math.exp %80 : vector<17x17xf32>
    %cst_19 = arith.constant dense<0.000000e+00> : vector<17xf32>
    %82 = vector.multi_reduction <add>, %81, %cst_19 [1] : vector<17x17xf32> to vector<17xf32>
    %83 = vector.shape_cast %82 : vector<17xf32> to vector<17x1xf32>
    %84 = tpu.reciprocal %83 {approx = true} : vector<17x1xf32> -> vector<17x1xf32>
    %85 = vector.broadcast %84 : vector<17x1xf32> to vector<17x17xf32>
    %86 = arith.mulf %81, %85 : vector<17x17xf32>
    %87 = arith.truncf %86 : vector<17x17xf32> to vector<17x17xbf16>
    %cst_20 = arith.constant dense<0.000000e+00> : vector<17x8xf32>
    %88 = tpu.matmul %87, %73, %cst_20 {dimension_numbers = #tpu.dot_dimension_numbers<[1], [0], [0], [1], [0, 0, 1, 1], [], []>} : vector<17x17xbf16>, vector<17x8xbf16>, vector<17x8xf32> -> vector<17x8xf32>
    %89 = tpu.concatenate %25, %46, %67, %88 in 1 : vector<17x8xf32>, vector<17x8xf32>, vector<17x8xf32>, vector<17x8xf32> -> vector<17x32xf32>
    %c0_21 = arith.constant 0 : index
    %c0_22 = arith.constant 0 : index
    %c0_23 = arith.constant 0 : index
    %90 = vector.load %arg2[%c0_21, %c0_22, %c0_23] : memref<1x17x32xf32, #tpu.memory_space<vmem>>, vector<1x17x32xf32>
    %91 = vector.shape_cast %90 : vector<1x17x32xf32> to vector<17x32xf32>
    %92 = vector.shape_cast %89 : vector<17x32xf32> to vector<1x17x32xf32>
    tpu.vector_store %arg2[%c0_21, %c0_22, %c0_23], %92 {strides = array<i32>} : memref<1x17x32xf32, #tpu.memory_space<vmem>>, vector<1x17x32xf32>,
    return
  }
  func.func @transform_0(%arg0: i32) -> (i32, i32, i32) {
    %c0_i32 = arith.constant 0 : i32
    %c0_i32_0 = arith.constant 0 : i32
    %c0_i32_1 = arith.constant 0 : i32
    return %arg0, %c0_i32, %c0_i32_0 : i32, i32, i32
  }
  func.func @transform_1(%arg0: i32) -> (i32, i32, i32) {
    %c0_i32 = arith.constant 0 : i32
    %c0_i32_0 = arith.constant 0 : i32
    %c0_i32_1 = arith.constant 0 : i32
    return %arg0, %c0_i32, %c0_i32_0 : i32, i32, i32
  }
}

module attributes {stable_mosaic.version = 11 : i64} {
  func.func @_fused_matmul_kernel(%arg0: i32, %arg1: i32, %arg2: i32, %arg3: memref<34x32xf32, #tpu.memory_space<vmem>>, %arg4: memref<32x32xbf16, #tpu.memory_space<vmem>>, %arg5: memref<1x32xf32, #tpu.memory_space<vmem>>, %arg6: memref<34x32xf32, #tpu.memory_space<vmem>>, %arg7: memref<34x32xf32, #tpu.memory_space<vmem>>, %arg8: memref<34x32xf32, #tpu.memory_space<vmem>>) attributes {dimension_semantics = [#tpu.dimension_semantics<parallel>, #tpu.dimension_semantics<parallel>, #tpu.dimension_semantics<arbitrary>], iteration_bounds = array<i64: 1, 1, 1>, scalar_prefetch = 0 : i64, scratch_operands = 1 : i64, tpu.core_type = #tpu.core_type<tc>, window_params = [{transform_indices = @transform_0, window_bounds = array<i64: 34, 32>}, {transform_indices = @transform_1, window_bounds = array<i64: 32, 32>}, {transform_indices = @transform_2, window_bounds = array<i64: 1, 32>}, {transform_indices = @transform_3, window_bounds = array<i64: 34, 32>}, {transform_indices = @transform_4, window_bounds = array<i64: 34, 32>}]} {
    %c0_i32 = arith.constant 0 : i32
    %0 = arith.cmpi eq, %arg2, %c0_i32 : i32
    %1 = arith.extui %0 : i1 to i32
    %c0_i32_0 = arith.constant 0 : i32
    %2 = arith.cmpi ne, %1, %c0_i32_0 : i32
    scf.if %2 {
      %cst_10 = arith.constant 0.000000e+00 : f32
      %13 = vector.broadcast %cst_10 : f32 to vector<34x32xf32>
      %c0_11 = arith.constant 0 : index
      %c0_12 = arith.constant 0 : index
      %14 = vector.load %arg8[%c0_11, %c0_12] : memref<34x32xf32, #tpu.memory_space<vmem>>, vector<34x32xf32>
      tpu.vector_store %arg8[%c0_11, %c0_12], %13 {strides = array<i32>} : memref<34x32xf32, #tpu.memory_space<vmem>>, vector<34x32xf32>,
    } else {
    }
    %c0 = arith.constant 0 : index
    %c0_1 = arith.constant 0 : index
    %3 = vector.load %arg3[%c0, %c0_1] : memref<34x32xf32, #tpu.memory_space<vmem>>, vector<34x32xf32>
    %c0_2 = arith.constant 0 : index
    %c0_3 = arith.constant 0 : index
    %4 = vector.load %arg8[%c0_2, %c0_3] : memref<34x32xf32, #tpu.memory_space<vmem>>, vector<34x32xf32>
    %5 = arith.truncf %3 : vector<34x32xf32> to vector<34x32xbf16>
    %c0_4 = arith.constant 0 : index
    %c0_5 = arith.constant 0 : index
    %6 = vector.load %arg4[%c0_4, %c0_5] : memref<32x32xbf16, #tpu.memory_space<vmem>>, vector<32x32xbf16>
    %cst = arith.constant dense<0.000000e+00> : vector<34x32xf32>
    %7 = tpu.matmul %5, %6, %cst {dimension_numbers = #tpu.dot_dimension_numbers<[1], [0], [0], [1], [0, 0, 1, 1], [], []>} : vector<34x32xbf16>, vector<32x32xbf16>, vector<34x32xf32> -> vector<34x32xf32>
    %8 = arith.addf %4, %7 : vector<34x32xf32>
    %c0_6 = arith.constant 0 : index
    %c0_7 = arith.constant 0 : index
    %9 = vector.load %arg8[%c0_6, %c0_7] : memref<34x32xf32, #tpu.memory_space<vmem>>, vector<34x32xf32>
    tpu.vector_store %arg8[%c0_6, %c0_7], %8 {strides = array<i32>} : memref<34x32xf32, #tpu.memory_space<vmem>>, vector<34x32xf32>,
    %c0_i32_8 = arith.constant 0 : i32
    %10 = arith.cmpi eq, %arg2, %c0_i32_8 : i32
    %11 = arith.extui %10 : i1 to i32
    %c0_i32_9 = arith.constant 0 : i32
    %12 = arith.cmpi ne, %11, %c0_i32_9 : i32
    scf.if %12 {
      %c0_10 = arith.constant 0 : index
      %c0_11 = arith.constant 0 : index
      %13 = vector.load %arg8[%c0_10, %c0_11] : memref<34x32xf32, #tpu.memory_space<vmem>>, vector<34x32xf32>
      %c0_12 = arith.constant 0 : index
      %c0_13 = arith.constant 0 : index
      %14 = vector.load %arg5[%c0_12, %c0_13] : memref<1x32xf32, #tpu.memory_space<vmem>>, vector<1x32xf32>
      %15 = vector.broadcast %14 : vector<1x32xf32> to vector<34x32xf32>
      %16 = arith.addf %13, %15 : vector<34x32xf32>
      %c0_14 = arith.constant 0 : index
      %c0_15 = arith.constant 0 : index
      %17 = vector.load %arg6[%c0_14, %c0_15] : memref<34x32xf32, #tpu.memory_space<vmem>>, vector<34x32xf32>
      %18 = arith.addf %16, %17 : vector<34x32xf32>
      %c0_16 = arith.constant 0 : index
      %c0_17 = arith.constant 0 : index
      %19 = vector.load %arg7[%c0_16, %c0_17] : memref<34x32xf32, #tpu.memory_space<vmem>>, vector<34x32xf32>
      tpu.vector_store %arg7[%c0_16, %c0_17], %18 {strides = array<i32>} : memref<34x32xf32, #tpu.memory_space<vmem>>, vector<34x32xf32>,
    } else {
    }
    return
  }
  func.func @transform_0(%arg0: i32, %arg1: i32, %arg2: i32) -> (i32, i32) {
    %c0_i32 = arith.constant 0 : i32
    return %arg0, %arg2 : i32, i32
  }
  func.func @transform_1(%arg0: i32, %arg1: i32, %arg2: i32) -> (i32, i32) {
    %c0_i32 = arith.constant 0 : i32
    return %arg2, %arg1 : i32, i32
  }
  func.func @transform_2(%arg0: i32, %arg1: i32, %arg2: i32) -> (i32, i32) {
    %c0_i32 = arith.constant 0 : i32
    %c0_i32_0 = arith.constant 0 : i32
    return %c0_i32, %arg1 : i32, i32
  }
  func.func @transform_3(%arg0: i32, %arg1: i32, %arg2: i32) -> (i32, i32) {
    %c0_i32 = arith.constant 0 : i32
    return %arg0, %arg1 : i32, i32
  }
  func.func @transform_4(%arg0: i32, %arg1: i32, %arg2: i32) -> (i32, i32) {
    %c0_i32 = arith.constant 0 : i32
    return %arg0, %arg1 : i32, i32
  }
}

module attributes {stable_mosaic.version = 11 : i64} {
  func.func @_fused_matmul_kernel(%arg0: i32, %arg1: i32, %arg2: i32, %arg3: memref<34x32xf32, #tpu.memory_space<vmem>>, %arg4: memref<32x128xbf16, #tpu.memory_space<vmem>>, %arg5: memref<1x128xf32, #tpu.memory_space<vmem>>, %arg6: memref<1x32xf32, #tpu.memory_space<vmem>>, %arg7: memref<1x32xf32, #tpu.memory_space<vmem>>, %arg8: memref<34x128xf32, #tpu.memory_space<vmem>>, %arg9: memref<34x128xf32, #tpu.memory_space<vmem>>) attributes {dimension_semantics = [#tpu.dimension_semantics<parallel>, #tpu.dimension_semantics<parallel>, #tpu.dimension_semantics<arbitrary>], iteration_bounds = array<i64: 1, 1, 1>, scalar_prefetch = 0 : i64, scratch_operands = 1 : i64, tpu.core_type = #tpu.core_type<tc>, window_params = [{transform_indices = @transform_0, window_bounds = array<i64: 34, 32>}, {transform_indices = @transform_1, window_bounds = array<i64: 32, 128>}, {transform_indices = @transform_2, window_bounds = array<i64: 1, 128>}, {pipeline_mode = #tpu.pipeline_mode<synchronous>, transform_indices = @transform_3, window_bounds = array<i64: 1, 32>}, {pipeline_mode = #tpu.pipeline_mode<synchronous>, transform_indices = @transform_4, window_bounds = array<i64: 1, 32>}, {transform_indices = @transform_5, window_bounds = array<i64: 34, 128>}]} {
    %c0_i32 = arith.constant 0 : i32
    %0 = arith.cmpi eq, %arg2, %c0_i32 : i32
    %1 = arith.extui %0 : i1 to i32
    %c0_i32_0 = arith.constant 0 : i32
    %2 = arith.cmpi ne, %1, %c0_i32_0 : i32
    scf.if %2 {
      %cst_19 = arith.constant 0.000000e+00 : f32
      %37 = vector.broadcast %cst_19 : f32 to vector<34x128xf32>
      %c0_20 = arith.constant 0 : index
      %c0_21 = arith.constant 0 : index
      %38 = vector.load %arg9[%c0_20, %c0_21] : memref<34x128xf32, #tpu.memory_space<vmem>>, vector<34x128xf32>
      tpu.vector_store %arg9[%c0_20, %c0_21], %37 {strides = array<i32>} : memref<34x128xf32, #tpu.memory_space<vmem>>, vector<34x128xf32>,
    } else {
    }
    %c0 = arith.constant 0 : index
    %c0_1 = arith.constant 0 : index
    %3 = vector.load %arg3[%c0, %c0_1] : memref<34x32xf32, #tpu.memory_space<vmem>>, vector<34x32xf32>
    %cst = arith.constant dense<0.000000e+00> : vector<34xf32>
    %4 = vector.multi_reduction <add>, %3, %cst [1] : vector<34x32xf32> to vector<34xf32>
    %5 = vector.shape_cast %4 : vector<34xf32> to vector<34x1xf32>
    %cst_2 = arith.constant 3.200000e+01 : f32
    %6 = vector.broadcast %cst_2 : f32 to vector<34x1xf32>
    %7 = arith.divf %5, %6 : vector<34x1xf32>
    %8 = vector.broadcast %7 : vector<34x1xf32> to vector<34x32xf32>
    %9 = arith.subf %3, %8 : vector<34x32xf32>
    %10 = arith.mulf %9, %9 : vector<34x32xf32>
    %cst_3 = arith.constant dense<0.000000e+00> : vector<34xf32>
    %11 = vector.multi_reduction <add>, %10, %cst_3 [1] : vector<34x32xf32> to vector<34xf32>
    %12 = vector.shape_cast %11 : vector<34xf32> to vector<34x1xf32>
    %cst_4 = arith.constant 3.200000e+01 : f32
    %13 = vector.broadcast %cst_4 : f32 to vector<34x1xf32>
    %14 = arith.divf %12, %13 : vector<34x1xf32>
    %15 = vector.broadcast %7 : vector<34x1xf32> to vector<34x32xf32>
    %16 = arith.subf %3, %15 : vector<34x32xf32>
    %cst_5 = arith.constant 9.99999974E-6 : f32
    %17 = vector.broadcast %cst_5 : f32 to vector<34x1xf32>
    %18 = arith.addf %14, %17 : vector<34x1xf32>
    %19 = math.rsqrt %18 : vector<34x1xf32>
    %20 = vector.broadcast %19 : vector<34x1xf32> to vector<34x32xf32>
    %21 = arith.mulf %16, %20 : vector<34x32xf32>
    %c0_6 = arith.constant 0 : index
    %c0_7 = arith.constant 0 : index
    %22 = vector.load %arg6[%c0_6, %c0_7] : memref<1x32xf32, #tpu.memory_space<vmem>>, vector<1x32xf32>
    %23 = vector.broadcast %22 : vector<1x32xf32> to vector<34x32xf32>
    %24 = arith.mulf %21, %23 : vector<34x32xf32>
    %c0_8 = arith.constant 0 : index
    %c0_9 = arith.constant 0 : index
    %25 = vector.load %arg7[%c0_8, %c0_9] : memref<1x32xf32, #tpu.memory_space<vmem>>, vector<1x32xf32>
    %26 = vector.broadcast %25 : vector<1x32xf32> to vector<34x32xf32>
    %27 = arith.addf %24, %26 : vector<34x32xf32>
    %c0_10 = arith.constant 0 : index
    %c0_11 = arith.constant 0 : index
    %28 = vector.load %arg9[%c0_10, %c0_11] : memref<34x128xf32, #tpu.memory_space<vmem>>, vector<34x128xf32>
    %29 = arith.truncf %27 : vector<34x32xf32> to vector<34x32xbf16>
    %c0_12 = arith.constant 0 : index
    %c0_13 = arith.constant 0 : index
    %30 = vector.load %arg4[%c0_12, %c0_13] : memref<32x128xbf16, #tpu.memory_space<vmem>>, vector<32x128xbf16>
    %cst_14 = arith.constant dense<0.000000e+00> : vector<34x128xf32>
    %31 = tpu.matmul %29, %30, %cst_14 {dimension_numbers = #tpu.dot_dimension_numbers<[1], [0], [0], [1], [0, 0, 1, 1], [], []>} : vector<34x32xbf16>, vector<32x128xbf16>, vector<34x128xf32> -> vector<34x128xf32>
    %32 = arith.addf %28, %31 : vector<34x128xf32>
    %c0_15 = arith.constant 0 : index
    %c0_16 = arith.constant 0 : index
    %33 = vector.load %arg9[%c0_15, %c0_16] : memref<34x128xf32, #tpu.memory_space<vmem>>, vector<34x128xf32>
    tpu.vector_store %arg9[%c0_15, %c0_16], %32 {strides = array<i32>} : memref<34x128xf32, #tpu.memory_space<vmem>>, vector<34x128xf32>,
    %c0_i32_17 = arith.constant 0 : i32
    %34 = arith.cmpi eq, %arg2, %c0_i32_17 : i32
    %35 = arith.extui %34 : i1 to i32
    %c0_i32_18 = arith.constant 0 : i32
    %36 = arith.cmpi ne, %35, %c0_i32_18 : i32
    scf.if %36 {
      %c0_19 = arith.constant 0 : index
      %c0_20 = arith.constant 0 : index
      %37 = vector.load %arg9[%c0_19, %c0_20] : memref<34x128xf32, #tpu.memory_space<vmem>>, vector<34x128xf32>
      %c0_21 = arith.constant 0 : index
      %c0_22 = arith.constant 0 : index
      %38 = vector.load %arg5[%c0_21, %c0_22] : memref<1x128xf32, #tpu.memory_space<vmem>>, vector<1x128xf32>
      %39 = vector.broadcast %38 : vector<1x128xf32> to vector<34x128xf32>
      %40 = arith.addf %37, %39 : vector<34x128xf32>
      %41 = arith.mulf %40, %40 : vector<34x128xf32>
      %42 = arith.mulf %40, %41 : vector<34x128xf32>
      %cst_23 = arith.constant 4.471500e-02 : f32
      %43 = vector.broadcast %cst_23 : f32 to vector<34x128xf32>
      %44 = arith.mulf %43, %42 : vector<34x128xf32>
      %45 = arith.addf %40, %44 : vector<34x128xf32>
      %cst_24 = arith.constant 0.797884583 : f32
      %46 = vector.broadcast %cst_24 : f32 to vector<34x128xf32>
      %47 = arith.mulf %46, %45 : vector<34x128xf32>
      %48 = math.tanh %47 : vector<34x128xf32>
      %cst_25 = arith.constant 1.000000e+00 : f32
      %49 = vector.broadcast %cst_25 : f32 to vector<34x128xf32>
      %50 = arith.addf %49, %48 : vector<34x128xf32>
      %cst_26 = arith.constant 5.000000e-01 : f32
      %51 = vector.broadcast %cst_26 : f32 to vector<34x128xf32>
      %52 = arith.mulf %51, %50 : vector<34x128xf32>
      %53 = arith.mulf %40, %52 : vector<34x128xf32>
      %c0_27 = arith.constant 0 : index
      %c0_28 = arith.constant 0 : index
      %54 = vector.load %arg8[%c0_27, %c0_28] : memref<34x128xf32, #tpu.memory_space<vmem>>, vector<34x128xf32>
      tpu.vector_store %arg8[%c0_27, %c0_28], %53 {strides = array<i32>} : memref<34x128xf32, #tpu.memory_space<vmem>>, vector<34x128xf32>,
    } else {
    }
    return
  }
  func.func @transform_0(%arg0: i32, %arg1: i32, %arg2: i32) -> (i32, i32) {
    %c0_i32 = arith.constant 0 : i32
    return %arg0, %arg2 : i32, i32
  }
  func.func @transform_1(%arg0: i32, %arg1: i32, %arg2: i32) -> (i32, i32) {
    %c0_i32 = arith.constant 0 : i32
    return %arg2, %arg1 : i32, i32
  }
  func.func @transform_2(%arg0: i32, %arg1: i32, %arg2: i32) -> (i32, i32) {
    %c0_i32 = arith.constant 0 : i32
    %c0_i32_0 = arith.constant 0 : i32
    return %c0_i32, %arg1 : i32, i32
  }
  func.func @transform_3(%arg0: i32, %arg1: i32, %arg2: i32) -> (i32, i32) {
    %c0_i32 = arith.constant 0 : i32
    %c0_i32_0 = arith.constant 0 : i32
    %c0_i32_1 = arith.constant 0 : i32
    return %c0_i32, %c0_i32_0 : i32, i32
  }
  func.func @transform_4(%arg0: i32, %arg1: i32, %arg2: i32) -> (i32, i32) {
    %c0_i32 = arith.constant 0 : i32
    %c0_i32_0 = arith.constant 0 : i32
    %c0_i32_1 = arith.constant 0 : i32
    return %c0_i32, %c0_i32_0 : i32, i32
  }
  func.func @transform_5(%arg0: i32, %arg1: i32, %arg2: i32) -> (i32, i32) {
    %c0_i32 = arith.constant 0 : i32
    return %arg0, %arg1 : i32, i32
  }
}

module attributes {stable_mosaic.version = 11 : i64} {
  func.func @_fused_matmul_kernel(%arg0: i32, %arg1: i32, %arg2: i32, %arg3: memref<34x128xf32, #tpu.memory_space<vmem>>, %arg4: memref<128x32xbf16, #tpu.memory_space<vmem>>, %arg5: memref<1x32xf32, #tpu.memory_space<vmem>>, %arg6: memref<34x32xf32, #tpu.memory_space<vmem>>, %arg7: memref<34x32xf32, #tpu.memory_space<vmem>>, %arg8: memref<34x32xf32, #tpu.memory_space<vmem>>) attributes {dimension_semantics = [#tpu.dimension_semantics<parallel>, #tpu.dimension_semantics<parallel>, #tpu.dimension_semantics<arbitrary>], iteration_bounds = array<i64: 1, 1, 1>, scalar_prefetch = 0 : i64, scratch_operands = 1 : i64, tpu.core_type = #tpu.core_type<tc>, window_params = [{transform_indices = @transform_0, window_bounds = array<i64: 34, 128>}, {transform_indices = @transform_1, window_bounds = array<i64: 128, 32>}, {transform_indices = @transform_2, window_bounds = array<i64: 1, 32>}, {transform_indices = @transform_3, window_bounds = array<i64: 34, 32>}, {transform_indices = @transform_4, window_bounds = array<i64: 34, 32>}]} {
    %c0_i32 = arith.constant 0 : i32
    %0 = arith.cmpi eq, %arg2, %c0_i32 : i32
    %1 = arith.extui %0 : i1 to i32
    %c0_i32_0 = arith.constant 0 : i32
    %2 = arith.cmpi ne, %1, %c0_i32_0 : i32
    scf.if %2 {
      %cst_10 = arith.constant 0.000000e+00 : f32
      %13 = vector.broadcast %cst_10 : f32 to vector<34x32xf32>
      %c0_11 = arith.constant 0 : index
      %c0_12 = arith.constant 0 : index
      %14 = vector.load %arg8[%c0_11, %c0_12] : memref<34x32xf32, #tpu.memory_space<vmem>>, vector<34x32xf32>
      tpu.vector_store %arg8[%c0_11, %c0_12], %13 {strides = array<i32>} : memref<34x32xf32, #tpu.memory_space<vmem>>, vector<34x32xf32>,
    } else {
    }
    %c0 = arith.constant 0 : index
    %c0_1 = arith.constant 0 : index
    %3 = vector.load %arg3[%c0, %c0_1] : memref<34x128xf32, #tpu.memory_space<vmem>>, vector<34x128xf32>
    %c0_2 = arith.constant 0 : index
    %c0_3 = arith.constant 0 : index
    %4 = vector.load %arg8[%c0_2, %c0_3] : memref<34x32xf32, #tpu.memory_space<vmem>>, vector<34x32xf32>
    %5 = arith.truncf %3 : vector<34x128xf32> to vector<34x128xbf16>
    %c0_4 = arith.constant 0 : index
    %c0_5 = arith.constant 0 : index
    %6 = vector.load %arg4[%c0_4, %c0_5] : memref<128x32xbf16, #tpu.memory_space<vmem>>, vector<128x32xbf16>
    %cst = arith.constant dense<0.000000e+00> : vector<34x32xf32>
    %7 = tpu.matmul %5, %6, %cst {dimension_numbers = #tpu.dot_dimension_numbers<[1], [0], [0], [1], [0, 0, 1, 1], [], []>} : vector<34x128xbf16>, vector<128x32xbf16>, vector<34x32xf32> -> vector<34x32xf32>
    %8 = arith.addf %4, %7 : vector<34x32xf32>
    %c0_6 = arith.constant 0 : index
    %c0_7 = arith.constant 0 : index
    %9 = vector.load %arg8[%c0_6, %c0_7] : memref<34x32xf32, #tpu.memory_space<vmem>>, vector<34x32xf32>
    tpu.vector_store %arg8[%c0_6, %c0_7], %8 {strides = array<i32>} : memref<34x32xf32, #tpu.memory_space<vmem>>, vector<34x32xf32>,
    %c0_i32_8 = arith.constant 0 : i32
    %10 = arith.cmpi eq, %arg2, %c0_i32_8 : i32
    %11 = arith.extui %10 : i1 to i32
    %c0_i32_9 = arith.constant 0 : i32
    %12 = arith.cmpi ne, %11, %c0_i32_9 : i32
    scf.if %12 {
      %c0_10 = arith.constant 0 : index
      %c0_11 = arith.constant 0 : index
      %13 = vector.load %arg8[%c0_10, %c0_11] : memref<34x32xf32, #tpu.memory_space<vmem>>, vector<34x32xf32>
      %c0_12 = arith.constant 0 : index
      %c0_13 = arith.constant 0 : index
      %14 = vector.load %arg5[%c0_12, %c0_13] : memref<1x32xf32, #tpu.memory_space<vmem>>, vector<1x32xf32>
      %15 = vector.broadcast %14 : vector<1x32xf32> to vector<34x32xf32>
      %16 = arith.addf %13, %15 : vector<34x32xf32>
      %c0_14 = arith.constant 0 : index
      %c0_15 = arith.constant 0 : index
      %17 = vector.load %arg6[%c0_14, %c0_15] : memref<34x32xf32, #tpu.memory_space<vmem>>, vector<34x32xf32>
      %18 = arith.addf %16, %17 : vector<34x32xf32>
      %c0_16 = arith.constant 0 : index
      %c0_17 = arith.constant 0 : index
      %19 = vector.load %arg7[%c0_16, %c0_17] : memref<34x32xf32, #tpu.memory_space<vmem>>, vector<34x32xf32>
      tpu.vector_store %arg7[%c0_16, %c0_17], %18 {strides = array<i32>} : memref<34x32xf32, #tpu.memory_space<vmem>>, vector<34x32xf32>,
    } else {
    }
    return
  }
  func.func @transform_0(%arg0: i32, %arg1: i32, %arg2: i32) -> (i32, i32) {
    %c0_i32 = arith.constant 0 : i32
    return %arg0, %arg2 : i32, i32
  }
  func.func @transform_1(%arg0: i32, %arg1: i32, %arg2: i32) -> (i32, i32) {
    %c0_i32 = arith.constant 0 : i32
    return %arg2, %arg1 : i32, i32
  }
  func.func @transform_2(%arg0: i32, %arg1: i32, %arg2: i32) -> (i32, i32) {
    %c0_i32 = arith.constant 0 : i32
    %c0_i32_0 = arith.constant 0 : i32
    return %c0_i32, %arg1 : i32, i32
  }
  func.func @transform_3(%arg0: i32, %arg1: i32, %arg2: i32) -> (i32, i32) {
    %c0_i32 = arith.constant 0 : i32
    return %arg0, %arg1 : i32, i32
  }
  func.func @transform_4(%arg0: i32, %arg1: i32, %arg2: i32) -> (i32, i32) {
    %c0_i32 = arith.constant 0 : i32
    return %arg0, %arg1 : i32, i32
  }
}

module attributes {stable_mosaic.version = 11 : i64} {
  func.func @_fused_matmul_kernel(%arg0: i32, %arg1: i32, %arg2: i32, %arg3: memref<4x32xf32, #tpu.memory_space<vmem>>, %arg4: memref<32x96xbf16, #tpu.memory_space<vmem>>, %arg5: memref<1x96xf32, #tpu.memory_space<vmem>>, %arg6: memref<4x96xf32, #tpu.memory_space<vmem>>, %arg7: memref<4x96xf32, #tpu.memory_space<vmem>>) attributes {dimension_semantics = [#tpu.dimension_semantics<parallel>, #tpu.dimension_semantics<parallel>, #tpu.dimension_semantics<arbitrary>], iteration_bounds = array<i64: 1, 1, 1>, scalar_prefetch = 0 : i64, scratch_operands = 1 : i64, tpu.core_type = #tpu.core_type<tc>, window_params = [{transform_indices = @transform_0, window_bounds = array<i64: 4, 32>}, {transform_indices = @transform_1, window_bounds = array<i64: 32, 96>}, {transform_indices = @transform_2, window_bounds = array<i64: 1, 96>}, {transform_indices = @transform_3, window_bounds = array<i64: 4, 96>}]} {
    %c0_i32 = arith.constant 0 : i32
    %0 = arith.cmpi eq, %arg2, %c0_i32 : i32
    %1 = arith.extui %0 : i1 to i32
    %c0_i32_0 = arith.constant 0 : i32
    %2 = arith.cmpi ne, %1, %c0_i32_0 : i32
    scf.if %2 {
      %cst_10 = arith.constant 0.000000e+00 : f32
      %13 = vector.broadcast %cst_10 : f32 to vector<4x96xf32>
      %c0_11 = arith.constant 0 : index
      %c0_12 = arith.constant 0 : index
      %14 = vector.load %arg7[%c0_11, %c0_12] : memref<4x96xf32, #tpu.memory_space<vmem>>, vector<4x96xf32>
      tpu.vector_store %arg7[%c0_11, %c0_12], %13 {strides = array<i32>} : memref<4x96xf32, #tpu.memory_space<vmem>>, vector<4x96xf32>,
    } else {
    }
    %c0 = arith.constant 0 : index
    %c0_1 = arith.constant 0 : index
    %3 = vector.load %arg3[%c0, %c0_1] : memref<4x32xf32, #tpu.memory_space<vmem>>, vector<4x32xf32>
    %c0_2 = arith.constant 0 : index
    %c0_3 = arith.constant 0 : index
    %4 = vector.load %arg7[%c0_2, %c0_3] : memref<4x96xf32, #tpu.memory_space<vmem>>, vector<4x96xf32>
    %5 = arith.truncf %3 : vector<4x32xf32> to vector<4x32xbf16>
    %c0_4 = arith.constant 0 : index
    %c0_5 = arith.constant 0 : index
    %6 = vector.load %arg4[%c0_4, %c0_5] : memref<32x96xbf16, #tpu.memory_space<vmem>>, vector<32x96xbf16>
    %cst = arith.constant dense<0.000000e+00> : vector<4x96xf32>
    %7 = tpu.matmul %5, %6, %cst {dimension_numbers = #tpu.dot_dimension_numbers<[1], [0], [0], [1], [0, 0, 1, 1], [], []>} : vector<4x32xbf16>, vector<32x96xbf16>, vector<4x96xf32> -> vector<4x96xf32>
    %8 = arith.addf %4, %7 : vector<4x96xf32>
    %c0_6 = arith.constant 0 : index
    %c0_7 = arith.constant 0 : index
    %9 = vector.load %arg7[%c0_6, %c0_7] : memref<4x96xf32, #tpu.memory_space<vmem>>, vector<4x96xf32>
    tpu.vector_store %arg7[%c0_6, %c0_7], %8 {strides = array<i32>} : memref<4x96xf32, #tpu.memory_space<vmem>>, vector<4x96xf32>,
    %c0_i32_8 = arith.constant 0 : i32
    %10 = arith.cmpi eq, %arg2, %c0_i32_8 : i32
    %11 = arith.extui %10 : i1 to i32
    %c0_i32_9 = arith.constant 0 : i32
    %12 = arith.cmpi ne, %11, %c0_i32_9 : i32
    scf.if %12 {
      %c0_10 = arith.constant 0 : index
      %c0_11 = arith.constant 0 : index
      %13 = vector.load %arg7[%c0_10, %c0_11] : memref<4x96xf32, #tpu.memory_space<vmem>>, vector<4x96xf32>
      %c0_12 = arith.constant 0 : index
      %c0_13 = arith.constant 0 : index
      %14 = vector.load %arg5[%c0_12, %c0_13] : memref<1x96xf32, #tpu.memory_space<vmem>>, vector<1x96xf32>
      %15 = vector.broadcast %14 : vector<1x96xf32> to vector<4x96xf32>
      %16 = arith.addf %13, %15 : vector<4x96xf32>
      %c0_14 = arith.constant 0 : index
      %c0_15 = arith.constant 0 : index
      %17 = vector.load %arg6[%c0_14, %c0_15] : memref<4x96xf32, #tpu.memory_space<vmem>>, vector<4x96xf32>
      tpu.vector_store %arg6[%c0_14, %c0_15], %16 {strides = array<i32>} : memref<4x96xf32, #tpu.memory_space<vmem>>, vector<4x96xf32>,
    } else {
    }
    return
  }
  func.func @transform_0(%arg0: i32, %arg1: i32, %arg2: i32) -> (i32, i32) {
    %c0_i32 = arith.constant 0 : i32
    return %arg0, %arg2 : i32, i32
  }
  func.func @transform_1(%arg0: i32, %arg1: i32, %arg2: i32) -> (i32, i32) {
    %c0_i32 = arith.constant 0 : i32
    return %arg2, %arg1 : i32, i32
  }
  func.func @transform_2(%arg0: i32, %arg1: i32, %arg2: i32) -> (i32, i32) {
    %c0_i32 = arith.constant 0 : i32
    %c0_i32_0 = arith.constant 0 : i32
    return %c0_i32, %arg1 : i32, i32
  }
  func.func @transform_3(%arg0: i32, %arg1: i32, %arg2: i32) -> (i32, i32) {
    %c0_i32 = arith.constant 0 : i32
    return %arg0, %arg1 : i32, i32
  }
}

module attributes {stable_mosaic.version = 11 : i64} {
  func.func @_mha_self_kernel(%arg0: i32, %arg1: memref<1x2x96xf32, #tpu.memory_space<vmem>>, %arg2: memref<1x2x32xf32, #tpu.memory_space<vmem>>) attributes {dimension_semantics = [#tpu.dimension_semantics<parallel>], iteration_bounds = array<i64: 2>, scalar_prefetch = 0 : i64, scratch_operands = 0 : i64, tpu.core_type = #tpu.core_type<tc>, window_params = [{transform_indices = @transform_0, window_bounds = array<i64: 1, 2, 96>}, {transform_indices = @transform_1, window_bounds = array<i64: 1, 2, 32>}]} {
    %c0 = arith.constant 0 : index
    %c0_0 = arith.constant 0 : index
    %c0_1 = arith.constant 0 : index
    %0 = vector.load %arg1[%c0, %c0_0, %c0_1] : memref<1x2x96xf32, #tpu.memory_space<vmem>>, vector<1x2x96xf32>
    %1 = vector.shape_cast %0 : vector<1x2x96xf32> to vector<2x96xf32>
    %2 = vector.extract_strided_slice %1 {offsets = [0, 0], sizes = [2, 32], strides = [1, 1]} : vector<2x96xf32> to vector<2x32xf32>
    %3 = vector.extract_strided_slice %1 {offsets = [0, 32], sizes = [2, 32], strides = [1, 1]} : vector<2x96xf32> to vector<2x32xf32>
    %4 = vector.extract_strided_slice %1 {offsets = [0, 64], sizes = [2, 32], strides = [1, 1]} : vector<2x96xf32> to vector<2x32xf32>
    %5 = vector.extract_strided_slice %2 {offsets = [0, 0], sizes = [2, 8], strides = [1, 1]} : vector<2x32xf32> to vector<2x8xf32>
    %6 = arith.truncf %5 : vector<2x8xf32> to vector<2x8xbf16>
    %7 = vector.extract_strided_slice %3 {offsets = [0, 0], sizes = [2, 8], strides = [1, 1]} : vector<2x32xf32> to vector<2x8xf32>
    %8 = arith.truncf %7 : vector<2x8xf32> to vector<2x8xbf16>
    %9 = vector.extract_strided_slice %4 {offsets = [0, 0], sizes = [2, 8], strides = [1, 1]} : vector<2x32xf32> to vector<2x8xf32>
    %10 = arith.truncf %9 : vector<2x8xf32> to vector<2x8xbf16>
    %cst = arith.constant dense<0.000000e+00> : vector<2x2xf32>
    %11 = tpu.matmul %6, %8, %cst {dimension_numbers = #tpu.dot_dimension_numbers<[1], [1], [0], [0], [0, 0, 1, 0], [], []>} : vector<2x8xbf16>, vector<2x8xbf16>, vector<2x2xf32> -> vector<2x2xf32>
    %cst_2 = arith.constant 0.353553385 : f32
    %12 = vector.broadcast %cst_2 : f32 to vector<2x2xf32>
    %13 = arith.mulf %11, %12 : vector<2x2xf32>
    %cst_3 = arith.constant dense<0xFF800000> : vector<2xf32>
    %14 = vector.multi_reduction <maximumf>, %13, %cst_3 [1] : vector<2x2xf32> to vector<2xf32>
    %15 = vector.shape_cast %14 : vector<2xf32> to vector<2x1xf32>
    %16 = vector.broadcast %15 : vector<2x1xf32> to vector<2x2xf32>
    %17 = arith.subf %13, %16 : vector<2x2xf32>
    %18 = math.exp %17 : vector<2x2xf32>
    %cst_4 = arith.constant dense<0.000000e+00> : vector<2xf32>
    %19 = vector.multi_reduction <add>, %18, %cst_4 [1] : vector<2x2xf32> to vector<2xf32>
    %20 = vector.shape_cast %19 : vector<2xf32> to vector<2x1xf32>
    %21 = tpu.reciprocal %20 {approx = true} : vector<2x1xf32> -> vector<2x1xf32>
    %22 = vector.broadcast %21 : vector<2x1xf32> to vector<2x2xf32>
    %23 = arith.mulf %18, %22 : vector<2x2xf32>
    %24 = arith.truncf %23 : vector<2x2xf32> to vector<2x2xbf16>
    %cst_5 = arith.constant dense<0.000000e+00> : vector<2x8xf32>
    %25 = tpu.matmul %24, %10, %cst_5 {dimension_numbers = #tpu.dot_dimension_numbers<[1], [0], [0], [1], [0, 0, 1, 1], [], []>} : vector<2x2xbf16>, vector<2x8xbf16>, vector<2x8xf32> -> vector<2x8xf32>
    %26 = vector.extract_strided_slice %2 {offsets = [0, 8], sizes = [2, 8], strides = [1, 1]} : vector<2x32xf32> to vector<2x8xf32>
    %27 = arith.truncf %26 : vector<2x8xf32> to vector<2x8xbf16>
    %28 = vector.extract_strided_slice %3 {offsets = [0, 8], sizes = [2, 8], strides = [1, 1]} : vector<2x32xf32> to vector<2x8xf32>
    %29 = arith.truncf %28 : vector<2x8xf32> to vector<2x8xbf16>
    %30 = vector.extract_strided_slice %4 {offsets = [0, 8], sizes = [2, 8], strides = [1, 1]} : vector<2x32xf32> to vector<2x8xf32>
    %31 = arith.truncf %30 : vector<2x8xf32> to vector<2x8xbf16>
    %cst_6 = arith.constant dense<0.000000e+00> : vector<2x2xf32>
    %32 = tpu.matmul %27, %29, %cst_6 {dimension_numbers = #tpu.dot_dimension_numbers<[1], [1], [0], [0], [0, 0, 1, 0], [], []>} : vector<2x8xbf16>, vector<2x8xbf16>, vector<2x2xf32> -> vector<2x2xf32>
    %cst_7 = arith.constant 0.353553385 : f32
    %33 = vector.broadcast %cst_7 : f32 to vector<2x2xf32>
    %34 = arith.mulf %32, %33 : vector<2x2xf32>
    %cst_8 = arith.constant dense<0xFF800000> : vector<2xf32>
    %35 = vector.multi_reduction <maximumf>, %34, %cst_8 [1] : vector<2x2xf32> to vector<2xf32>
    %36 = vector.shape_cast %35 : vector<2xf32> to vector<2x1xf32>
    %37 = vector.broadcast %36 : vector<2x1xf32> to vector<2x2xf32>
    %38 = arith.subf %34, %37 : vector<2x2xf32>
    %39 = math.exp %38 : vector<2x2xf32>
    %cst_9 = arith.constant dense<0.000000e+00> : vector<2xf32>
    %40 = vector.multi_reduction <add>, %39, %cst_9 [1] : vector<2x2xf32> to vector<2xf32>
    %41 = vector.shape_cast %40 : vector<2xf32> to vector<2x1xf32>
    %42 = tpu.reciprocal %41 {approx = true} : vector<2x1xf32> -> vector<2x1xf32>
    %43 = vector.broadcast %42 : vector<2x1xf32> to vector<2x2xf32>
    %44 = arith.mulf %39, %43 : vector<2x2xf32>
    %45 = arith.truncf %44 : vector<2x2xf32> to vector<2x2xbf16>
    %cst_10 = arith.constant dense<0.000000e+00> : vector<2x8xf32>
    %46 = tpu.matmul %45, %31, %cst_10 {dimension_numbers = #tpu.dot_dimension_numbers<[1], [0], [0], [1], [0, 0, 1, 1], [], []>} : vector<2x2xbf16>, vector<2x8xbf16>, vector<2x8xf32> -> vector<2x8xf32>
    %47 = vector.extract_strided_slice %2 {offsets = [0, 16], sizes = [2, 8], strides = [1, 1]} : vector<2x32xf32> to vector<2x8xf32>
    %48 = arith.truncf %47 : vector<2x8xf32> to vector<2x8xbf16>
    %49 = vector.extract_strided_slice %3 {offsets = [0, 16], sizes = [2, 8], strides = [1, 1]} : vector<2x32xf32> to vector<2x8xf32>
    %50 = arith.truncf %49 : vector<2x8xf32> to vector<2x8xbf16>
    %51 = vector.extract_strided_slice %4 {offsets = [0, 16], sizes = [2, 8], strides = [1, 1]} : vector<2x32xf32> to vector<2x8xf32>
    %52 = arith.truncf %51 : vector<2x8xf32> to vector<2x8xbf16>
    %cst_11 = arith.constant dense<0.000000e+00> : vector<2x2xf32>
    %53 = tpu.matmul %48, %50, %cst_11 {dimension_numbers = #tpu.dot_dimension_numbers<[1], [1], [0], [0], [0, 0, 1, 0], [], []>} : vector<2x8xbf16>, vector<2x8xbf16>, vector<2x2xf32> -> vector<2x2xf32>
    %cst_12 = arith.constant 0.353553385 : f32
    %54 = vector.broadcast %cst_12 : f32 to vector<2x2xf32>
    %55 = arith.mulf %53, %54 : vector<2x2xf32>
    %cst_13 = arith.constant dense<0xFF800000> : vector<2xf32>
    %56 = vector.multi_reduction <maximumf>, %55, %cst_13 [1] : vector<2x2xf32> to vector<2xf32>
    %57 = vector.shape_cast %56 : vector<2xf32> to vector<2x1xf32>
    %58 = vector.broadcast %57 : vector<2x1xf32> to vector<2x2xf32>
    %59 = arith.subf %55, %58 : vector<2x2xf32>
    %60 = math.exp %59 : vector<2x2xf32>
    %cst_14 = arith.constant dense<0.000000e+00> : vector<2xf32>
    %61 = vector.multi_reduction <add>, %60, %cst_14 [1] : vector<2x2xf32> to vector<2xf32>
    %62 = vector.shape_cast %61 : vector<2xf32> to vector<2x1xf32>
    %63 = tpu.reciprocal %62 {approx = true} : vector<2x1xf32> -> vector<2x1xf32>
    %64 = vector.broadcast %63 : vector<2x1xf32> to vector<2x2xf32>
    %65 = arith.mulf %60, %64 : vector<2x2xf32>
    %66 = arith.truncf %65 : vector<2x2xf32> to vector<2x2xbf16>
    %cst_15 = arith.constant dense<0.000000e+00> : vector<2x8xf32>
    %67 = tpu.matmul %66, %52, %cst_15 {dimension_numbers = #tpu.dot_dimension_numbers<[1], [0], [0], [1], [0, 0, 1, 1], [], []>} : vector<2x2xbf16>, vector<2x8xbf16>, vector<2x8xf32> -> vector<2x8xf32>
    %68 = vector.extract_strided_slice %2 {offsets = [0, 24], sizes = [2, 8], strides = [1, 1]} : vector<2x32xf32> to vector<2x8xf32>
    %69 = arith.truncf %68 : vector<2x8xf32> to vector<2x8xbf16>
    %70 = vector.extract_strided_slice %3 {offsets = [0, 24], sizes = [2, 8], strides = [1, 1]} : vector<2x32xf32> to vector<2x8xf32>
    %71 = arith.truncf %70 : vector<2x8xf32> to vector<2x8xbf16>
    %72 = vector.extract_strided_slice %4 {offsets = [0, 24], sizes = [2, 8], strides = [1, 1]} : vector<2x32xf32> to vector<2x8xf32>
    %73 = arith.truncf %72 : vector<2x8xf32> to vector<2x8xbf16>
    %cst_16 = arith.constant dense<0.000000e+00> : vector<2x2xf32>
    %74 = tpu.matmul %69, %71, %cst_16 {dimension_numbers = #tpu.dot_dimension_numbers<[1], [1], [0], [0], [0, 0, 1, 0], [], []>} : vector<2x8xbf16>, vector<2x8xbf16>, vector<2x2xf32> -> vector<2x2xf32>
    %cst_17 = arith.constant 0.353553385 : f32
    %75 = vector.broadcast %cst_17 : f32 to vector<2x2xf32>
    %76 = arith.mulf %74, %75 : vector<2x2xf32>
    %cst_18 = arith.constant dense<0xFF800000> : vector<2xf32>
    %77 = vector.multi_reduction <maximumf>, %76, %cst_18 [1] : vector<2x2xf32> to vector<2xf32>
    %78 = vector.shape_cast %77 : vector<2xf32> to vector<2x1xf32>
    %79 = vector.broadcast %78 : vector<2x1xf32> to vector<2x2xf32>
    %80 = arith.subf %76, %79 : vector<2x2xf32>
    %81 = math.exp %80 : vector<2x2xf32>
    %cst_19 = arith.constant dense<0.000000e+00> : vector<2xf32>
    %82 = vector.multi_reduction <add>, %81, %cst_19 [1] : vector<2x2xf32> to vector<2xf32>
    %83 = vector.shape_cast %82 : vector<2xf32> to vector<2x1xf32>
    %84 = tpu.reciprocal %83 {approx = true} : vector<2x1xf32> -> vector<2x1xf32>
    %85 = vector.broadcast %84 : vector<2x1xf32> to vector<2x2xf32>
    %86 = arith.mulf %81, %85 : vector<2x2xf32>
    %87 = arith.truncf %86 : vector<2x2xf32> to vector<2x2xbf16>
    %cst_20 = arith.constant dense<0.000000e+00> : vector<2x8xf32>
    %88 = tpu.matmul %87, %73, %cst_20 {dimension_numbers = #tpu.dot_dimension_numbers<[1], [0], [0], [1], [0, 0, 1, 1], [], []>} : vector<2x2xbf16>, vector<2x8xbf16>, vector<2x8xf32> -> vector<2x8xf32>
    %89 = tpu.concatenate %25, %46, %67, %88 in 1 : vector<2x8xf32>, vector<2x8xf32>, vector<2x8xf32>, vector<2x8xf32> -> vector<2x32xf32>
    %c0_21 = arith.constant 0 : index
    %c0_22 = arith.constant 0 : index
    %c0_23 = arith.constant 0 : index
    %90 = vector.load %arg2[%c0_21, %c0_22, %c0_23] : memref<1x2x32xf32, #tpu.memory_space<vmem>>, vector<1x2x32xf32>
    %91 = vector.shape_cast %90 : vector<1x2x32xf32> to vector<2x32xf32>
    %92 = vector.shape_cast %89 : vector<2x32xf32> to vector<1x2x32xf32>
    tpu.vector_store %arg2[%c0_21, %c0_22, %c0_23], %92 {strides = array<i32>} : memref<1x2x32xf32, #tpu.memory_space<vmem>>, vector<1x2x32xf32>,
    return
  }
  func.func @transform_0(%arg0: i32) -> (i32, i32, i32) {
    %c0_i32 = arith.constant 0 : i32
    %c0_i32_0 = arith.constant 0 : i32
    %c0_i32_1 = arith.constant 0 : i32
    return %arg0, %c0_i32, %c0_i32_0 : i32, i32, i32
  }
  func.func @transform_1(%arg0: i32) -> (i32, i32, i32) {
    %c0_i32 = arith.constant 0 : i32
    %c0_i32_0 = arith.constant 0 : i32
    %c0_i32_1 = arith.constant 0 : i32
    return %arg0, %c0_i32, %c0_i32_0 : i32, i32, i32
  }
}

module attributes {stable_mosaic.version = 11 : i64} {
  func.func @_fused_matmul_kernel(%arg0: i32, %arg1: i32, %arg2: i32, %arg3: memref<4x32xf32, #tpu.memory_space<vmem>>, %arg4: memref<32x32xbf16, #tpu.memory_space<vmem>>, %arg5: memref<1x32xf32, #tpu.memory_space<vmem>>, %arg6: memref<4x32xf32, #tpu.memory_space<vmem>>, %arg7: memref<4x32xf32, #tpu.memory_space<vmem>>) attributes {dimension_semantics = [#tpu.dimension_semantics<parallel>, #tpu.dimension_semantics<parallel>, #tpu.dimension_semantics<arbitrary>], iteration_bounds = array<i64: 1, 1, 1>, scalar_prefetch = 0 : i64, scratch_operands = 1 : i64, tpu.core_type = #tpu.core_type<tc>, window_params = [{transform_indices = @transform_0, window_bounds = array<i64: 4, 32>}, {transform_indices = @transform_1, window_bounds = array<i64: 32, 32>}, {transform_indices = @transform_2, window_bounds = array<i64: 1, 32>}, {transform_indices = @transform_3, window_bounds = array<i64: 4, 32>}]} {
    %c0_i32 = arith.constant 0 : i32
    %0 = arith.cmpi eq, %arg2, %c0_i32 : i32
    %1 = arith.extui %0 : i1 to i32
    %c0_i32_0 = arith.constant 0 : i32
    %2 = arith.cmpi ne, %1, %c0_i32_0 : i32
    scf.if %2 {
      %cst_10 = arith.constant 0.000000e+00 : f32
      %13 = vector.broadcast %cst_10 : f32 to vector<4x32xf32>
      %c0_11 = arith.constant 0 : index
      %c0_12 = arith.constant 0 : index
      %14 = vector.load %arg7[%c0_11, %c0_12] : memref<4x32xf32, #tpu.memory_space<vmem>>, vector<4x32xf32>
      tpu.vector_store %arg7[%c0_11, %c0_12], %13 {strides = array<i32>} : memref<4x32xf32, #tpu.memory_space<vmem>>, vector<4x32xf32>,
    } else {
    }
    %c0 = arith.constant 0 : index
    %c0_1 = arith.constant 0 : index
    %3 = vector.load %arg3[%c0, %c0_1] : memref<4x32xf32, #tpu.memory_space<vmem>>, vector<4x32xf32>
    %c0_2 = arith.constant 0 : index
    %c0_3 = arith.constant 0 : index
    %4 = vector.load %arg7[%c0_2, %c0_3] : memref<4x32xf32, #tpu.memory_space<vmem>>, vector<4x32xf32>
    %5 = arith.truncf %3 : vector<4x32xf32> to vector<4x32xbf16>
    %c0_4 = arith.constant 0 : index
    %c0_5 = arith.constant 0 : index
    %6 = vector.load %arg4[%c0_4, %c0_5] : memref<32x32xbf16, #tpu.memory_space<vmem>>, vector<32x32xbf16>
    %cst = arith.constant dense<0.000000e+00> : vector<4x32xf32>
    %7 = tpu.matmul %5, %6, %cst {dimension_numbers = #tpu.dot_dimension_numbers<[1], [0], [0], [1], [0, 0, 1, 1], [], []>} : vector<4x32xbf16>, vector<32x32xbf16>, vector<4x32xf32> -> vector<4x32xf32>
    %8 = arith.addf %4, %7 : vector<4x32xf32>
    %c0_6 = arith.constant 0 : index
    %c0_7 = arith.constant 0 : index
    %9 = vector.load %arg7[%c0_6, %c0_7] : memref<4x32xf32, #tpu.memory_space<vmem>>, vector<4x32xf32>
    tpu.vector_store %arg7[%c0_6, %c0_7], %8 {strides = array<i32>} : memref<4x32xf32, #tpu.memory_space<vmem>>, vector<4x32xf32>,
    %c0_i32_8 = arith.constant 0 : i32
    %10 = arith.cmpi eq, %arg2, %c0_i32_8 : i32
    %11 = arith.extui %10 : i1 to i32
    %c0_i32_9 = arith.constant 0 : i32
    %12 = arith.cmpi ne, %11, %c0_i32_9 : i32
    scf.if %12 {
      %c0_10 = arith.constant 0 : index
      %c0_11 = arith.constant 0 : index
      %13 = vector.load %arg7[%c0_10, %c0_11] : memref<4x32xf32, #tpu.memory_space<vmem>>, vector<4x32xf32>
      %c0_12 = arith.constant 0 : index
      %c0_13 = arith.constant 0 : index
      %14 = vector.load %arg5[%c0_12, %c0_13] : memref<1x32xf32, #tpu.memory_space<vmem>>, vector<1x32xf32>
      %15 = vector.broadcast %14 : vector<1x32xf32> to vector<4x32xf32>
      %16 = arith.addf %13, %15 : vector<4x32xf32>
      %c0_14 = arith.constant 0 : index
      %c0_15 = arith.constant 0 : index
      %17 = vector.load %arg6[%c0_14, %c0_15] : memref<4x32xf32, #tpu.memory_space<vmem>>, vector<4x32xf32>
      tpu.vector_store %arg6[%c0_14, %c0_15], %16 {strides = array<i32>} : memref<4x32xf32, #tpu.memory_space<vmem>>, vector<4x32xf32>,
    } else {
    }
    return
  }
  func.func @transform_0(%arg0: i32, %arg1: i32, %arg2: i32) -> (i32, i32) {
    %c0_i32 = arith.constant 0 : i32
    return %arg0, %arg2 : i32, i32
  }
  func.func @transform_1(%arg0: i32, %arg1: i32, %arg2: i32) -> (i32, i32) {
    %c0_i32 = arith.constant 0 : i32
    return %arg2, %arg1 : i32, i32
  }
  func.func @transform_2(%arg0: i32, %arg1: i32, %arg2: i32) -> (i32, i32) {
    %c0_i32 = arith.constant 0 : i32
    %c0_i32_0 = arith.constant 0 : i32
    return %c0_i32, %arg1 : i32, i32
  }
  func.func @transform_3(%arg0: i32, %arg1: i32, %arg2: i32) -> (i32, i32) {
    %c0_i32 = arith.constant 0 : i32
    return %arg0, %arg1 : i32, i32
  }
}

module attributes {stable_mosaic.version = 11 : i64} {
  func.func @_fused_matmul_kernel(%arg0: i32, %arg1: i32, %arg2: i32, %arg3: memref<4x32xf32, #tpu.memory_space<vmem>>, %arg4: memref<32x32xbf16, #tpu.memory_space<vmem>>, %arg5: memref<1x32xf32, #tpu.memory_space<vmem>>, %arg6: memref<4x32xf32, #tpu.memory_space<vmem>>, %arg7: memref<1x32xf32, #tpu.memory_space<vmem>>, %arg8: memref<1x32xf32, #tpu.memory_space<vmem>>, %arg9: memref<4x32xf32, #tpu.memory_space<vmem>>, %arg10: memref<4x32xf32, #tpu.memory_space<vmem>>) attributes {dimension_semantics = [#tpu.dimension_semantics<parallel>, #tpu.dimension_semantics<parallel>, #tpu.dimension_semantics<arbitrary>], iteration_bounds = array<i64: 1, 1, 1>, scalar_prefetch = 0 : i64, scratch_operands = 1 : i64, tpu.core_type = #tpu.core_type<tc>, window_params = [{transform_indices = @transform_0, window_bounds = array<i64: 4, 32>}, {transform_indices = @transform_1, window_bounds = array<i64: 32, 32>}, {transform_indices = @transform_2, window_bounds = array<i64: 1, 32>}, {transform_indices = @transform_3, window_bounds = array<i64: 4, 32>}, {transform_indices = @transform_4, window_bounds = array<i64: 1, 32>}, {transform_indices = @transform_5, window_bounds = array<i64: 1, 32>}, {transform_indices = @transform_6, window_bounds = array<i64: 4, 32>}]} {
    %c0_i32 = arith.constant 0 : i32
    %0 = arith.cmpi eq, %arg2, %c0_i32 : i32
    %1 = arith.extui %0 : i1 to i32
    %c0_i32_0 = arith.constant 0 : i32
    %2 = arith.cmpi ne, %1, %c0_i32_0 : i32
    scf.if %2 {
      %cst_10 = arith.constant 0.000000e+00 : f32
      %13 = vector.broadcast %cst_10 : f32 to vector<4x32xf32>
      %c0_11 = arith.constant 0 : index
      %c0_12 = arith.constant 0 : index
      %14 = vector.load %arg10[%c0_11, %c0_12] : memref<4x32xf32, #tpu.memory_space<vmem>>, vector<4x32xf32>
      tpu.vector_store %arg10[%c0_11, %c0_12], %13 {strides = array<i32>} : memref<4x32xf32, #tpu.memory_space<vmem>>, vector<4x32xf32>,
    } else {
    }
    %c0 = arith.constant 0 : index
    %c0_1 = arith.constant 0 : index
    %3 = vector.load %arg3[%c0, %c0_1] : memref<4x32xf32, #tpu.memory_space<vmem>>, vector<4x32xf32>
    %c0_2 = arith.constant 0 : index
    %c0_3 = arith.constant 0 : index
    %4 = vector.load %arg10[%c0_2, %c0_3] : memref<4x32xf32, #tpu.memory_space<vmem>>, vector<4x32xf32>
    %5 = arith.truncf %3 : vector<4x32xf32> to vector<4x32xbf16>
    %c0_4 = arith.constant 0 : index
    %c0_5 = arith.constant 0 : index
    %6 = vector.load %arg4[%c0_4, %c0_5] : memref<32x32xbf16, #tpu.memory_space<vmem>>, vector<32x32xbf16>
    %cst = arith.constant dense<0.000000e+00> : vector<4x32xf32>
    %7 = tpu.matmul %5, %6, %cst {dimension_numbers = #tpu.dot_dimension_numbers<[1], [0], [0], [1], [0, 0, 1, 1], [], []>} : vector<4x32xbf16>, vector<32x32xbf16>, vector<4x32xf32> -> vector<4x32xf32>
    %8 = arith.addf %4, %7 : vector<4x32xf32>
    %c0_6 = arith.constant 0 : index
    %c0_7 = arith.constant 0 : index
    %9 = vector.load %arg10[%c0_6, %c0_7] : memref<4x32xf32, #tpu.memory_space<vmem>>, vector<4x32xf32>
    tpu.vector_store %arg10[%c0_6, %c0_7], %8 {strides = array<i32>} : memref<4x32xf32, #tpu.memory_space<vmem>>, vector<4x32xf32>,
    %c0_i32_8 = arith.constant 0 : i32
    %10 = arith.cmpi eq, %arg2, %c0_i32_8 : i32
    %11 = arith.extui %10 : i1 to i32
    %c0_i32_9 = arith.constant 0 : i32
    %12 = arith.cmpi ne, %11, %c0_i32_9 : i32
    scf.if %12 {
      %c0_10 = arith.constant 0 : index
      %c0_11 = arith.constant 0 : index
      %13 = vector.load %arg10[%c0_10, %c0_11] : memref<4x32xf32, #tpu.memory_space<vmem>>, vector<4x32xf32>
      %c0_12 = arith.constant 0 : index
      %c0_13 = arith.constant 0 : index
      %14 = vector.load %arg5[%c0_12, %c0_13] : memref<1x32xf32, #tpu.memory_space<vmem>>, vector<1x32xf32>
      %15 = vector.broadcast %14 : vector<1x32xf32> to vector<4x32xf32>
      %16 = arith.addf %13, %15 : vector<4x32xf32>
      %c0_14 = arith.constant 0 : index
      %c0_15 = arith.constant 0 : index
      %17 = vector.load %arg6[%c0_14, %c0_15] : memref<4x32xf32, #tpu.memory_space<vmem>>, vector<4x32xf32>
      %18 = arith.addf %16, %17 : vector<4x32xf32>
      %cst_16 = arith.constant dense<0.000000e+00> : vector<4xf32>
      %19 = vector.multi_reduction <add>, %18, %cst_16 [1] : vector<4x32xf32> to vector<4xf32>
      %20 = vector.shape_cast %19 : vector<4xf32> to vector<4x1xf32>
      %cst_17 = arith.constant 3.200000e+01 : f32
      %21 = vector.broadcast %cst_17 : f32 to vector<4x1xf32>
      %22 = arith.divf %20, %21 : vector<4x1xf32>
      %23 = vector.broadcast %22 : vector<4x1xf32> to vector<4x32xf32>
      %24 = arith.subf %18, %23 : vector<4x32xf32>
      %25 = arith.mulf %24, %24 : vector<4x32xf32>
      %cst_18 = arith.constant dense<0.000000e+00> : vector<4xf32>
      %26 = vector.multi_reduction <add>, %25, %cst_18 [1] : vector<4x32xf32> to vector<4xf32>
      %27 = vector.shape_cast %26 : vector<4xf32> to vector<4x1xf32>
      %cst_19 = arith.constant 3.200000e+01 : f32
      %28 = vector.broadcast %cst_19 : f32 to vector<4x1xf32>
      %29 = arith.divf %27, %28 : vector<4x1xf32>
      %30 = vector.broadcast %22 : vector<4x1xf32> to vector<4x32xf32>
      %31 = arith.subf %18, %30 : vector<4x32xf32>
      %cst_20 = arith.constant 9.99999974E-6 : f32
      %32 = vector.broadcast %cst_20 : f32 to vector<4x1xf32>
      %33 = arith.addf %29, %32 : vector<4x1xf32>
      %34 = math.rsqrt %33 : vector<4x1xf32>
      %35 = vector.broadcast %34 : vector<4x1xf32> to vector<4x32xf32>
      %36 = arith.mulf %31, %35 : vector<4x32xf32>
      %c0_21 = arith.constant 0 : index
      %c0_22 = arith.constant 0 : index
      %37 = vector.load %arg7[%c0_21, %c0_22] : memref<1x32xf32, #tpu.memory_space<vmem>>, vector<1x32xf32>
      %38 = vector.broadcast %37 : vector<1x32xf32> to vector<4x32xf32>
      %39 = arith.mulf %36, %38 : vector<4x32xf32>
      %c0_23 = arith.constant 0 : index
      %c0_24 = arith.constant 0 : index
      %40 = vector.load %arg8[%c0_23, %c0_24] : memref<1x32xf32, #tpu.memory_space<vmem>>, vector<1x32xf32>
      %41 = vector.broadcast %40 : vector<1x32xf32> to vector<4x32xf32>
      %42 = arith.addf %39, %41 : vector<4x32xf32>
      %c0_25 = arith.constant 0 : index
      %c0_26 = arith.constant 0 : index
      %43 = vector.load %arg9[%c0_25, %c0_26] : memref<4x32xf32, #tpu.memory_space<vmem>>, vector<4x32xf32>
      tpu.vector_store %arg9[%c0_25, %c0_26], %42 {strides = array<i32>} : memref<4x32xf32, #tpu.memory_space<vmem>>, vector<4x32xf32>,
    } else {
    }
    return
  }
  func.func @transform_0(%arg0: i32, %arg1: i32, %arg2: i32) -> (i32, i32) {
    %c0_i32 = arith.constant 0 : i32
    return %arg0, %arg2 : i32, i32
  }
  func.func @transform_1(%arg0: i32, %arg1: i32, %arg2: i32) -> (i32, i32) {
    %c0_i32 = arith.constant 0 : i32
    return %arg2, %arg1 : i32, i32
  }
  func.func @transform_2(%arg0: i32, %arg1: i32, %arg2: i32) -> (i32, i32) {
    %c0_i32 = arith.constant 0 : i32
    %c0_i32_0 = arith.constant 0 : i32
    return %c0_i32, %arg1 : i32, i32
  }
  func.func @transform_3(%arg0: i32, %arg1: i32, %arg2: i32) -> (i32, i32) {
    %c0_i32 = arith.constant 0 : i32
    return %arg0, %arg1 : i32, i32
  }
  func.func @transform_4(%arg0: i32, %arg1: i32, %arg2: i32) -> (i32, i32) {
    %c0_i32 = arith.constant 0 : i32
    %c0_i32_0 = arith.constant 0 : i32
    return %c0_i32, %arg1 : i32, i32
  }
  func.func @transform_5(%arg0: i32, %arg1: i32, %arg2: i32) -> (i32, i32) {
    %c0_i32 = arith.constant 0 : i32
    %c0_i32_0 = arith.constant 0 : i32
    return %c0_i32, %arg1 : i32, i32
  }
  func.func @transform_6(%arg0: i32, %arg1: i32, %arg2: i32) -> (i32, i32) {
    %c0_i32 = arith.constant 0 : i32
    return %arg0, %arg1 : i32, i32
  }
}

module attributes {stable_mosaic.version = 11 : i64} {
  func.func @_fused_matmul_kernel(%arg0: i32, %arg1: i32, %arg2: i32, %arg3: memref<32x32xf32, #tpu.memory_space<vmem>>, %arg4: memref<32x32xbf16, #tpu.memory_space<vmem>>, %arg5: memref<1x32xf32, #tpu.memory_space<vmem>>, %arg6: memref<32x32xf32, #tpu.memory_space<vmem>>, %arg7: memref<32x32xf32, #tpu.memory_space<vmem>>) attributes {dimension_semantics = [#tpu.dimension_semantics<parallel>, #tpu.dimension_semantics<parallel>, #tpu.dimension_semantics<arbitrary>], iteration_bounds = array<i64: 1, 1, 1>, scalar_prefetch = 0 : i64, scratch_operands = 1 : i64, tpu.core_type = #tpu.core_type<tc>, window_params = [{transform_indices = @transform_0, window_bounds = array<i64: 32, 32>}, {transform_indices = @transform_1, window_bounds = array<i64: 32, 32>}, {transform_indices = @transform_2, window_bounds = array<i64: 1, 32>}, {transform_indices = @transform_3, window_bounds = array<i64: 32, 32>}]} {
    %c0_i32 = arith.constant 0 : i32
    %0 = arith.cmpi eq, %arg2, %c0_i32 : i32
    %1 = arith.extui %0 : i1 to i32
    %c0_i32_0 = arith.constant 0 : i32
    %2 = arith.cmpi ne, %1, %c0_i32_0 : i32
    scf.if %2 {
      %cst_10 = arith.constant 0.000000e+00 : f32
      %13 = vector.broadcast %cst_10 : f32 to vector<32x32xf32>
      %c0_11 = arith.constant 0 : index
      %c0_12 = arith.constant 0 : index
      %14 = vector.load %arg7[%c0_11, %c0_12] : memref<32x32xf32, #tpu.memory_space<vmem>>, vector<32x32xf32>
      tpu.vector_store %arg7[%c0_11, %c0_12], %13 {strides = array<i32>} : memref<32x32xf32, #tpu.memory_space<vmem>>, vector<32x32xf32>,
    } else {
    }
    %c0 = arith.constant 0 : index
    %c0_1 = arith.constant 0 : index
    %3 = vector.load %arg3[%c0, %c0_1] : memref<32x32xf32, #tpu.memory_space<vmem>>, vector<32x32xf32>
    %c0_2 = arith.constant 0 : index
    %c0_3 = arith.constant 0 : index
    %4 = vector.load %arg7[%c0_2, %c0_3] : memref<32x32xf32, #tpu.memory_space<vmem>>, vector<32x32xf32>
    %5 = arith.truncf %3 : vector<32x32xf32> to vector<32x32xbf16>
    %c0_4 = arith.constant 0 : index
    %c0_5 = arith.constant 0 : index
    %6 = vector.load %arg4[%c0_4, %c0_5] : memref<32x32xbf16, #tpu.memory_space<vmem>>, vector<32x32xbf16>
    %cst = arith.constant dense<0.000000e+00> : vector<32x32xf32>
    %7 = tpu.matmul %5, %6, %cst {dimension_numbers = #tpu.dot_dimension_numbers<[1], [0], [0], [1], [0, 0, 1, 1], [], []>} : vector<32x32xbf16>, vector<32x32xbf16>, vector<32x32xf32> -> vector<32x32xf32>
    %8 = arith.addf %4, %7 : vector<32x32xf32>
    %c0_6 = arith.constant 0 : index
    %c0_7 = arith.constant 0 : index
    %9 = vector.load %arg7[%c0_6, %c0_7] : memref<32x32xf32, #tpu.memory_space<vmem>>, vector<32x32xf32>
    tpu.vector_store %arg7[%c0_6, %c0_7], %8 {strides = array<i32>} : memref<32x32xf32, #tpu.memory_space<vmem>>, vector<32x32xf32>,
    %c0_i32_8 = arith.constant 0 : i32
    %10 = arith.cmpi eq, %arg2, %c0_i32_8 : i32
    %11 = arith.extui %10 : i1 to i32
    %c0_i32_9 = arith.constant 0 : i32
    %12 = arith.cmpi ne, %11, %c0_i32_9 : i32
    scf.if %12 {
      %c0_10 = arith.constant 0 : index
      %c0_11 = arith.constant 0 : index
      %13 = vector.load %arg7[%c0_10, %c0_11] : memref<32x32xf32, #tpu.memory_space<vmem>>, vector<32x32xf32>
      %c0_12 = arith.constant 0 : index
      %c0_13 = arith.constant 0 : index
      %14 = vector.load %arg5[%c0_12, %c0_13] : memref<1x32xf32, #tpu.memory_space<vmem>>, vector<1x32xf32>
      %15 = vector.broadcast %14 : vector<1x32xf32> to vector<32x32xf32>
      %16 = arith.addf %13, %15 : vector<32x32xf32>
      %c0_14 = arith.constant 0 : index
      %c0_15 = arith.constant 0 : index
      %17 = vector.load %arg6[%c0_14, %c0_15] : memref<32x32xf32, #tpu.memory_space<vmem>>, vector<32x32xf32>
      tpu.vector_store %arg6[%c0_14, %c0_15], %16 {strides = array<i32>} : memref<32x32xf32, #tpu.memory_space<vmem>>, vector<32x32xf32>,
    } else {
    }
    return
  }
  func.func @transform_0(%arg0: i32, %arg1: i32, %arg2: i32) -> (i32, i32) {
    %c0_i32 = arith.constant 0 : i32
    return %arg0, %arg2 : i32, i32
  }
  func.func @transform_1(%arg0: i32, %arg1: i32, %arg2: i32) -> (i32, i32) {
    %c0_i32 = arith.constant 0 : i32
    return %arg2, %arg1 : i32, i32
  }
  func.func @transform_2(%arg0: i32, %arg1: i32, %arg2: i32) -> (i32, i32) {
    %c0_i32 = arith.constant 0 : i32
    %c0_i32_0 = arith.constant 0 : i32
    return %c0_i32, %arg1 : i32, i32
  }
  func.func @transform_3(%arg0: i32, %arg1: i32, %arg2: i32) -> (i32, i32) {
    %c0_i32 = arith.constant 0 : i32
    return %arg0, %arg1 : i32, i32
  }
}

module attributes {stable_mosaic.version = 11 : i64} {
  func.func @_fused_matmul_kernel(%arg0: i32, %arg1: i32, %arg2: i32, %arg3: memref<32x32xf32, #tpu.memory_space<vmem>>, %arg4: memref<32x64xbf16, #tpu.memory_space<vmem>>, %arg5: memref<1x64xf32, #tpu.memory_space<vmem>>, %arg6: memref<32x64xf32, #tpu.memory_space<vmem>>, %arg7: memref<32x64xf32, #tpu.memory_space<vmem>>) attributes {dimension_semantics = [#tpu.dimension_semantics<parallel>, #tpu.dimension_semantics<parallel>, #tpu.dimension_semantics<arbitrary>], iteration_bounds = array<i64: 1, 1, 1>, scalar_prefetch = 0 : i64, scratch_operands = 1 : i64, tpu.core_type = #tpu.core_type<tc>, window_params = [{transform_indices = @transform_0, window_bounds = array<i64: 32, 32>}, {transform_indices = @transform_1, window_bounds = array<i64: 32, 64>}, {transform_indices = @transform_2, window_bounds = array<i64: 1, 64>}, {transform_indices = @transform_3, window_bounds = array<i64: 32, 64>}]} {
    %c0_i32 = arith.constant 0 : i32
    %0 = arith.cmpi eq, %arg2, %c0_i32 : i32
    %1 = arith.extui %0 : i1 to i32
    %c0_i32_0 = arith.constant 0 : i32
    %2 = arith.cmpi ne, %1, %c0_i32_0 : i32
    scf.if %2 {
      %cst_10 = arith.constant 0.000000e+00 : f32
      %13 = vector.broadcast %cst_10 : f32 to vector<32x64xf32>
      %c0_11 = arith.constant 0 : index
      %c0_12 = arith.constant 0 : index
      %14 = vector.load %arg7[%c0_11, %c0_12] : memref<32x64xf32, #tpu.memory_space<vmem>>, vector<32x64xf32>
      tpu.vector_store %arg7[%c0_11, %c0_12], %13 {strides = array<i32>} : memref<32x64xf32, #tpu.memory_space<vmem>>, vector<32x64xf32>,
    } else {
    }
    %c0 = arith.constant 0 : index
    %c0_1 = arith.constant 0 : index
    %3 = vector.load %arg3[%c0, %c0_1] : memref<32x32xf32, #tpu.memory_space<vmem>>, vector<32x32xf32>
    %c0_2 = arith.constant 0 : index
    %c0_3 = arith.constant 0 : index
    %4 = vector.load %arg7[%c0_2, %c0_3] : memref<32x64xf32, #tpu.memory_space<vmem>>, vector<32x64xf32>
    %5 = arith.truncf %3 : vector<32x32xf32> to vector<32x32xbf16>
    %c0_4 = arith.constant 0 : index
    %c0_5 = arith.constant 0 : index
    %6 = vector.load %arg4[%c0_4, %c0_5] : memref<32x64xbf16, #tpu.memory_space<vmem>>, vector<32x64xbf16>
    %cst = arith.constant dense<0.000000e+00> : vector<32x64xf32>
    %7 = tpu.matmul %5, %6, %cst {dimension_numbers = #tpu.dot_dimension_numbers<[1], [0], [0], [1], [0, 0, 1, 1], [], []>} : vector<32x32xbf16>, vector<32x64xbf16>, vector<32x64xf32> -> vector<32x64xf32>
    %8 = arith.addf %4, %7 : vector<32x64xf32>
    %c0_6 = arith.constant 0 : index
    %c0_7 = arith.constant 0 : index
    %9 = vector.load %arg7[%c0_6, %c0_7] : memref<32x64xf32, #tpu.memory_space<vmem>>, vector<32x64xf32>
    tpu.vector_store %arg7[%c0_6, %c0_7], %8 {strides = array<i32>} : memref<32x64xf32, #tpu.memory_space<vmem>>, vector<32x64xf32>,
    %c0_i32_8 = arith.constant 0 : i32
    %10 = arith.cmpi eq, %arg2, %c0_i32_8 : i32
    %11 = arith.extui %10 : i1 to i32
    %c0_i32_9 = arith.constant 0 : i32
    %12 = arith.cmpi ne, %11, %c0_i32_9 : i32
    scf.if %12 {
      %c0_10 = arith.constant 0 : index
      %c0_11 = arith.constant 0 : index
      %13 = vector.load %arg7[%c0_10, %c0_11] : memref<32x64xf32, #tpu.memory_space<vmem>>, vector<32x64xf32>
      %c0_12 = arith.constant 0 : index
      %c0_13 = arith.constant 0 : index
      %14 = vector.load %arg5[%c0_12, %c0_13] : memref<1x64xf32, #tpu.memory_space<vmem>>, vector<1x64xf32>
      %15 = vector.broadcast %14 : vector<1x64xf32> to vector<32x64xf32>
      %16 = arith.addf %13, %15 : vector<32x64xf32>
      %c0_14 = arith.constant 0 : index
      %c0_15 = arith.constant 0 : index
      %17 = vector.load %arg6[%c0_14, %c0_15] : memref<32x64xf32, #tpu.memory_space<vmem>>, vector<32x64xf32>
      tpu.vector_store %arg6[%c0_14, %c0_15], %16 {strides = array<i32>} : memref<32x64xf32, #tpu.memory_space<vmem>>, vector<32x64xf32>,
    } else {
    }
    return
  }
  func.func @transform_0(%arg0: i32, %arg1: i32, %arg2: i32) -> (i32, i32) {
    %c0_i32 = arith.constant 0 : i32
    return %arg0, %arg2 : i32, i32
  }
  func.func @transform_1(%arg0: i32, %arg1: i32, %arg2: i32) -> (i32, i32) {
    %c0_i32 = arith.constant 0 : i32
    return %arg2, %arg1 : i32, i32
  }
  func.func @transform_2(%arg0: i32, %arg1: i32, %arg2: i32) -> (i32, i32) {
    %c0_i32 = arith.constant 0 : i32
    %c0_i32_0 = arith.constant 0 : i32
    return %c0_i32, %arg1 : i32, i32
  }
  func.func @transform_3(%arg0: i32, %arg1: i32, %arg2: i32) -> (i32, i32) {
    %c0_i32 = arith.constant 0 : i32
    return %arg0, %arg1 : i32, i32
  }
}

module attributes {stable_mosaic.version = 11 : i64} {
  func.func @_mha_cross_kernel(%arg0: i32, %arg1: memref<1x2x32xf32, #tpu.memory_space<vmem>>, %arg2: memref<1x16x64xf32, #tpu.memory_space<vmem>>, %arg3: memref<1x2x32xf32, #tpu.memory_space<vmem>>) attributes {dimension_semantics = [#tpu.dimension_semantics<parallel>], iteration_bounds = array<i64: 2>, scalar_prefetch = 0 : i64, scratch_operands = 0 : i64, tpu.core_type = #tpu.core_type<tc>, window_params = [{transform_indices = @transform_0, window_bounds = array<i64: 1, 2, 32>}, {transform_indices = @transform_1, window_bounds = array<i64: 1, 16, 64>}, {transform_indices = @transform_2, window_bounds = array<i64: 1, 2, 32>}]} {
    %c0 = arith.constant 0 : index
    %c0_0 = arith.constant 0 : index
    %c0_1 = arith.constant 0 : index
    %0 = vector.load %arg2[%c0, %c0_0, %c0_1] : memref<1x16x64xf32, #tpu.memory_space<vmem>>, vector<1x16x64xf32>
    %1 = vector.shape_cast %0 : vector<1x16x64xf32> to vector<16x64xf32>
    %c0_2 = arith.constant 0 : index
    %c0_3 = arith.constant 0 : index
    %c0_4 = arith.constant 0 : index
    %2 = vector.load %arg1[%c0_2, %c0_3, %c0_4] : memref<1x2x32xf32, #tpu.memory_space<vmem>>, vector<1x2x32xf32>
    %3 = vector.shape_cast %2 : vector<1x2x32xf32> to vector<2x32xf32>
    %4 = vector.extract_strided_slice %1 {offsets = [0, 0], sizes = [16, 32], strides = [1, 1]} : vector<16x64xf32> to vector<16x32xf32>
    %5 = vector.extract_strided_slice %1 {offsets = [0, 32], sizes = [16, 32], strides = [1, 1]} : vector<16x64xf32> to vector<16x32xf32>
    %6 = vector.extract_strided_slice %3 {offsets = [0, 0], sizes = [2, 8], strides = [1, 1]} : vector<2x32xf32> to vector<2x8xf32>
    %7 = arith.truncf %6 : vector<2x8xf32> to vector<2x8xbf16>
    %8 = vector.extract_strided_slice %4 {offsets = [0, 0], sizes = [16, 8], strides = [1, 1]} : vector<16x32xf32> to vector<16x8xf32>
    %9 = arith.truncf %8 : vector<16x8xf32> to vector<16x8xbf16>
    %10 = vector.extract_strided_slice %5 {offsets = [0, 0], sizes = [16, 8], strides = [1, 1]} : vector<16x32xf32> to vector<16x8xf32>
    %11 = arith.truncf %10 : vector<16x8xf32> to vector<16x8xbf16>
    %cst = arith.constant dense<0.000000e+00> : vector<2x16xf32>
    %12 = tpu.matmul %7, %9, %cst {dimension_numbers = #tpu.dot_dimension_numbers<[1], [1], [0], [0], [0, 0, 1, 0], [], []>} : vector<2x8xbf16>, vector<16x8xbf16>, vector<2x16xf32> -> vector<2x16xf32>
    %cst_5 = arith.constant 0.353553385 : f32
    %13 = vector.broadcast %cst_5 : f32 to vector<2x16xf32>
    %14 = arith.mulf %12, %13 : vector<2x16xf32>
    %cst_6 = arith.constant dense<0xFF800000> : vector<2xf32>
    %15 = vector.multi_reduction <maximumf>, %14, %cst_6 [1] : vector<2x16xf32> to vector<2xf32>
    %16 = vector.shape_cast %15 : vector<2xf32> to vector<2x1xf32>
    %17 = vector.broadcast %16 : vector<2x1xf32> to vector<2x16xf32>
    %18 = arith.subf %14, %17 : vector<2x16xf32>
    %19 = math.exp %18 : vector<2x16xf32>
    %cst_7 = arith.constant dense<0.000000e+00> : vector<2xf32>
    %20 = vector.multi_reduction <add>, %19, %cst_7 [1] : vector<2x16xf32> to vector<2xf32>
    %21 = vector.shape_cast %20 : vector<2xf32> to vector<2x1xf32>
    %22 = tpu.reciprocal %21 {approx = true} : vector<2x1xf32> -> vector<2x1xf32>
    %23 = vector.broadcast %22 : vector<2x1xf32> to vector<2x16xf32>
    %24 = arith.mulf %19, %23 : vector<2x16xf32>
    %25 = arith.truncf %24 : vector<2x16xf32> to vector<2x16xbf16>
    %cst_8 = arith.constant dense<0.000000e+00> : vector<2x8xf32>
    %26 = tpu.matmul %25, %11, %cst_8 {dimension_numbers = #tpu.dot_dimension_numbers<[1], [0], [0], [1], [0, 0, 1, 1], [], []>} : vector<2x16xbf16>, vector<16x8xbf16>, vector<2x8xf32> -> vector<2x8xf32>
    %27 = vector.extract_strided_slice %3 {offsets = [0, 8], sizes = [2, 8], strides = [1, 1]} : vector<2x32xf32> to vector<2x8xf32>
    %28 = arith.truncf %27 : vector<2x8xf32> to vector<2x8xbf16>
    %29 = vector.extract_strided_slice %4 {offsets = [0, 8], sizes = [16, 8], strides = [1, 1]} : vector<16x32xf32> to vector<16x8xf32>
    %30 = arith.truncf %29 : vector<16x8xf32> to vector<16x8xbf16>
    %31 = vector.extract_strided_slice %5 {offsets = [0, 8], sizes = [16, 8], strides = [1, 1]} : vector<16x32xf32> to vector<16x8xf32>
    %32 = arith.truncf %31 : vector<16x8xf32> to vector<16x8xbf16>
    %cst_9 = arith.constant dense<0.000000e+00> : vector<2x16xf32>
    %33 = tpu.matmul %28, %30, %cst_9 {dimension_numbers = #tpu.dot_dimension_numbers<[1], [1], [0], [0], [0, 0, 1, 0], [], []>} : vector<2x8xbf16>, vector<16x8xbf16>, vector<2x16xf32> -> vector<2x16xf32>
    %cst_10 = arith.constant 0.353553385 : f32
    %34 = vector.broadcast %cst_10 : f32 to vector<2x16xf32>
    %35 = arith.mulf %33, %34 : vector<2x16xf32>
    %cst_11 = arith.constant dense<0xFF800000> : vector<2xf32>
    %36 = vector.multi_reduction <maximumf>, %35, %cst_11 [1] : vector<2x16xf32> to vector<2xf32>
    %37 = vector.shape_cast %36 : vector<2xf32> to vector<2x1xf32>
    %38 = vector.broadcast %37 : vector<2x1xf32> to vector<2x16xf32>
    %39 = arith.subf %35, %38 : vector<2x16xf32>
    %40 = math.exp %39 : vector<2x16xf32>
    %cst_12 = arith.constant dense<0.000000e+00> : vector<2xf32>
    %41 = vector.multi_reduction <add>, %40, %cst_12 [1] : vector<2x16xf32> to vector<2xf32>
    %42 = vector.shape_cast %41 : vector<2xf32> to vector<2x1xf32>
    %43 = tpu.reciprocal %42 {approx = true} : vector<2x1xf32> -> vector<2x1xf32>
    %44 = vector.broadcast %43 : vector<2x1xf32> to vector<2x16xf32>
    %45 = arith.mulf %40, %44 : vector<2x16xf32>
    %46 = arith.truncf %45 : vector<2x16xf32> to vector<2x16xbf16>
    %cst_13 = arith.constant dense<0.000000e+00> : vector<2x8xf32>
    %47 = tpu.matmul %46, %32, %cst_13 {dimension_numbers = #tpu.dot_dimension_numbers<[1], [0], [0], [1], [0, 0, 1, 1], [], []>} : vector<2x16xbf16>, vector<16x8xbf16>, vector<2x8xf32> -> vector<2x8xf32>
    %48 = vector.extract_strided_slice %3 {offsets = [0, 16], sizes = [2, 8], strides = [1, 1]} : vector<2x32xf32> to vector<2x8xf32>
    %49 = arith.truncf %48 : vector<2x8xf32> to vector<2x8xbf16>
    %50 = vector.extract_strided_slice %4 {offsets = [0, 16], sizes = [16, 8], strides = [1, 1]} : vector<16x32xf32> to vector<16x8xf32>
    %51 = arith.truncf %50 : vector<16x8xf32> to vector<16x8xbf16>
    %52 = vector.extract_strided_slice %5 {offsets = [0, 16], sizes = [16, 8], strides = [1, 1]} : vector<16x32xf32> to vector<16x8xf32>
    %53 = arith.truncf %52 : vector<16x8xf32> to vector<16x8xbf16>
    %cst_14 = arith.constant dense<0.000000e+00> : vector<2x16xf32>
    %54 = tpu.matmul %49, %51, %cst_14 {dimension_numbers = #tpu.dot_dimension_numbers<[1], [1], [0], [0], [0, 0, 1, 0], [], []>} : vector<2x8xbf16>, vector<16x8xbf16>, vector<2x16xf32> -> vector<2x16xf32>
    %cst_15 = arith.constant 0.353553385 : f32
    %55 = vector.broadcast %cst_15 : f32 to vector<2x16xf32>
    %56 = arith.mulf %54, %55 : vector<2x16xf32>
    %cst_16 = arith.constant dense<0xFF800000> : vector<2xf32>
    %57 = vector.multi_reduction <maximumf>, %56, %cst_16 [1] : vector<2x16xf32> to vector<2xf32>
    %58 = vector.shape_cast %57 : vector<2xf32> to vector<2x1xf32>
    %59 = vector.broadcast %58 : vector<2x1xf32> to vector<2x16xf32>
    %60 = arith.subf %56, %59 : vector<2x16xf32>
    %61 = math.exp %60 : vector<2x16xf32>
    %cst_17 = arith.constant dense<0.000000e+00> : vector<2xf32>
    %62 = vector.multi_reduction <add>, %61, %cst_17 [1] : vector<2x16xf32> to vector<2xf32>
    %63 = vector.shape_cast %62 : vector<2xf32> to vector<2x1xf32>
    %64 = tpu.reciprocal %63 {approx = true} : vector<2x1xf32> -> vector<2x1xf32>
    %65 = vector.broadcast %64 : vector<2x1xf32> to vector<2x16xf32>
    %66 = arith.mulf %61, %65 : vector<2x16xf32>
    %67 = arith.truncf %66 : vector<2x16xf32> to vector<2x16xbf16>
    %cst_18 = arith.constant dense<0.000000e+00> : vector<2x8xf32>
    %68 = tpu.matmul %67, %53, %cst_18 {dimension_numbers = #tpu.dot_dimension_numbers<[1], [0], [0], [1], [0, 0, 1, 1], [], []>} : vector<2x16xbf16>, vector<16x8xbf16>, vector<2x8xf32> -> vector<2x8xf32>
    %69 = vector.extract_strided_slice %3 {offsets = [0, 24], sizes = [2, 8], strides = [1, 1]} : vector<2x32xf32> to vector<2x8xf32>
    %70 = arith.truncf %69 : vector<2x8xf32> to vector<2x8xbf16>
    %71 = vector.extract_strided_slice %4 {offsets = [0, 24], sizes = [16, 8], strides = [1, 1]} : vector<16x32xf32> to vector<16x8xf32>
    %72 = arith.truncf %71 : vector<16x8xf32> to vector<16x8xbf16>
    %73 = vector.extract_strided_slice %5 {offsets = [0, 24], sizes = [16, 8], strides = [1, 1]} : vector<16x32xf32> to vector<16x8xf32>
    %74 = arith.truncf %73 : vector<16x8xf32> to vector<16x8xbf16>
    %cst_19 = arith.constant dense<0.000000e+00> : vector<2x16xf32>
    %75 = tpu.matmul %70, %72, %cst_19 {dimension_numbers = #tpu.dot_dimension_numbers<[1], [1], [0], [0], [0, 0, 1, 0], [], []>} : vector<2x8xbf16>, vector<16x8xbf16>, vector<2x16xf32> -> vector<2x16xf32>
    %cst_20 = arith.constant 0.353553385 : f32
    %76 = vector.broadcast %cst_20 : f32 to vector<2x16xf32>
    %77 = arith.mulf %75, %76 : vector<2x16xf32>
    %cst_21 = arith.constant dense<0xFF800000> : vector<2xf32>
    %78 = vector.multi_reduction <maximumf>, %77, %cst_21 [1] : vector<2x16xf32> to vector<2xf32>
    %79 = vector.shape_cast %78 : vector<2xf32> to vector<2x1xf32>
    %80 = vector.broadcast %79 : vector<2x1xf32> to vector<2x16xf32>
    %81 = arith.subf %77, %80 : vector<2x16xf32>
    %82 = math.exp %81 : vector<2x16xf32>
    %cst_22 = arith.constant dense<0.000000e+00> : vector<2xf32>
    %83 = vector.multi_reduction <add>, %82, %cst_22 [1] : vector<2x16xf32> to vector<2xf32>
    %84 = vector.shape_cast %83 : vector<2xf32> to vector<2x1xf32>
    %85 = tpu.reciprocal %84 {approx = true} : vector<2x1xf32> -> vector<2x1xf32>
    %86 = vector.broadcast %85 : vector<2x1xf32> to vector<2x16xf32>
    %87 = arith.mulf %82, %86 : vector<2x16xf32>
    %88 = arith.truncf %87 : vector<2x16xf32> to vector<2x16xbf16>
    %cst_23 = arith.constant dense<0.000000e+00> : vector<2x8xf32>
    %89 = tpu.matmul %88, %74, %cst_23 {dimension_numbers = #tpu.dot_dimension_numbers<[1], [0], [0], [1], [0, 0, 1, 1], [], []>} : vector<2x16xbf16>, vector<16x8xbf16>, vector<2x8xf32> -> vector<2x8xf32>
    %90 = tpu.concatenate %26, %47, %68, %89 in 1 : vector<2x8xf32>, vector<2x8xf32>, vector<2x8xf32>, vector<2x8xf32> -> vector<2x32xf32>
    %c0_24 = arith.constant 0 : index
    %c0_25 = arith.constant 0 : index
    %c0_26 = arith.constant 0 : index
    %91 = vector.load %arg3[%c0_24, %c0_25, %c0_26] : memref<1x2x32xf32, #tpu.memory_space<vmem>>, vector<1x2x32xf32>
    %92 = vector.shape_cast %91 : vector<1x2x32xf32> to vector<2x32xf32>
    %93 = vector.shape_cast %90 : vector<2x32xf32> to vector<1x2x32xf32>
    tpu.vector_store %arg3[%c0_24, %c0_25, %c0_26], %93 {strides = array<i32>} : memref<1x2x32xf32, #tpu.memory_space<vmem>>, vector<1x2x32xf32>,
    return
  }
  func.func @transform_0(%arg0: i32) -> (i32, i32, i32) {
    %c0_i32 = arith.constant 0 : i32
    %c0_i32_0 = arith.constant 0 : i32
    %c0_i32_1 = arith.constant 0 : i32
    return %arg0, %c0_i32, %c0_i32_0 : i32, i32, i32
  }
  func.func @transform_1(%arg0: i32) -> (i32, i32, i32) {
    %c0_i32 = arith.constant 0 : i32
    %c0_i32_0 = arith.constant 0 : i32
    %c0_i32_1 = arith.constant 0 : i32
    return %arg0, %c0_i32, %c0_i32_0 : i32, i32, i32
  }
  func.func @transform_2(%arg0: i32) -> (i32, i32, i32) {
    %c0_i32 = arith.constant 0 : i32
    %c0_i32_0 = arith.constant 0 : i32
    %c0_i32_1 = arith.constant 0 : i32
    return %arg0, %c0_i32, %c0_i32_0 : i32, i32, i32
  }
}

module attributes {stable_mosaic.version = 11 : i64} {
  func.func @_fused_matmul_kernel(%arg0: i32, %arg1: i32, %arg2: i32, %arg3: memref<4x32xf32, #tpu.memory_space<vmem>>, %arg4: memref<32x64xbf16, #tpu.memory_space<vmem>>, %arg5: memref<1x64xf32, #tpu.memory_space<vmem>>, %arg6: memref<4x64xf32, #tpu.memory_space<vmem>>, %arg7: memref<4x64xf32, #tpu.memory_space<vmem>>) attributes {dimension_semantics = [#tpu.dimension_semantics<parallel>, #tpu.dimension_semantics<parallel>, #tpu.dimension_semantics<arbitrary>], iteration_bounds = array<i64: 1, 1, 1>, scalar_prefetch = 0 : i64, scratch_operands = 1 : i64, tpu.core_type = #tpu.core_type<tc>, window_params = [{transform_indices = @transform_0, window_bounds = array<i64: 4, 32>}, {transform_indices = @transform_1, window_bounds = array<i64: 32, 64>}, {transform_indices = @transform_2, window_bounds = array<i64: 1, 64>}, {transform_indices = @transform_3, window_bounds = array<i64: 4, 64>}]} {
    %c0_i32 = arith.constant 0 : i32
    %0 = arith.cmpi eq, %arg2, %c0_i32 : i32
    %1 = arith.extui %0 : i1 to i32
    %c0_i32_0 = arith.constant 0 : i32
    %2 = arith.cmpi ne, %1, %c0_i32_0 : i32
    scf.if %2 {
      %cst_10 = arith.constant 0.000000e+00 : f32
      %13 = vector.broadcast %cst_10 : f32 to vector<4x64xf32>
      %c0_11 = arith.constant 0 : index
      %c0_12 = arith.constant 0 : index
      %14 = vector.load %arg7[%c0_11, %c0_12] : memref<4x64xf32, #tpu.memory_space<vmem>>, vector<4x64xf32>
      tpu.vector_store %arg7[%c0_11, %c0_12], %13 {strides = array<i32>} : memref<4x64xf32, #tpu.memory_space<vmem>>, vector<4x64xf32>,
    } else {
    }
    %c0 = arith.constant 0 : index
    %c0_1 = arith.constant 0 : index
    %3 = vector.load %arg3[%c0, %c0_1] : memref<4x32xf32, #tpu.memory_space<vmem>>, vector<4x32xf32>
    %c0_2 = arith.constant 0 : index
    %c0_3 = arith.constant 0 : index
    %4 = vector.load %arg7[%c0_2, %c0_3] : memref<4x64xf32, #tpu.memory_space<vmem>>, vector<4x64xf32>
    %5 = arith.truncf %3 : vector<4x32xf32> to vector<4x32xbf16>
    %c0_4 = arith.constant 0 : index
    %c0_5 = arith.constant 0 : index
    %6 = vector.load %arg4[%c0_4, %c0_5] : memref<32x64xbf16, #tpu.memory_space<vmem>>, vector<32x64xbf16>
    %cst = arith.constant dense<0.000000e+00> : vector<4x64xf32>
    %7 = tpu.matmul %5, %6, %cst {dimension_numbers = #tpu.dot_dimension_numbers<[1], [0], [0], [1], [0, 0, 1, 1], [], []>} : vector<4x32xbf16>, vector<32x64xbf16>, vector<4x64xf32> -> vector<4x64xf32>
    %8 = arith.addf %4, %7 : vector<4x64xf32>
    %c0_6 = arith.constant 0 : index
    %c0_7 = arith.constant 0 : index
    %9 = vector.load %arg7[%c0_6, %c0_7] : memref<4x64xf32, #tpu.memory_space<vmem>>, vector<4x64xf32>
    tpu.vector_store %arg7[%c0_6, %c0_7], %8 {strides = array<i32>} : memref<4x64xf32, #tpu.memory_space<vmem>>, vector<4x64xf32>,
    %c0_i32_8 = arith.constant 0 : i32
    %10 = arith.cmpi eq, %arg2, %c0_i32_8 : i32
    %11 = arith.extui %10 : i1 to i32
    %c0_i32_9 = arith.constant 0 : i32
    %12 = arith.cmpi ne, %11, %c0_i32_9 : i32
    scf.if %12 {
      %c0_10 = arith.constant 0 : index
      %c0_11 = arith.constant 0 : index
      %13 = vector.load %arg7[%c0_10, %c0_11] : memref<4x64xf32, #tpu.memory_space<vmem>>, vector<4x64xf32>
      %c0_12 = arith.constant 0 : index
      %c0_13 = arith.constant 0 : index
      %14 = vector.load %arg5[%c0_12, %c0_13] : memref<1x64xf32, #tpu.memory_space<vmem>>, vector<1x64xf32>
      %15 = vector.broadcast %14 : vector<1x64xf32> to vector<4x64xf32>
      %16 = arith.addf %13, %15 : vector<4x64xf32>
      %17 = arith.mulf %16, %16 : vector<4x64xf32>
      %18 = arith.mulf %16, %17 : vector<4x64xf32>
      %cst_14 = arith.constant 4.471500e-02 : f32
      %19 = vector.broadcast %cst_14 : f32 to vector<4x64xf32>
      %20 = arith.mulf %19, %18 : vector<4x64xf32>
      %21 = arith.addf %16, %20 : vector<4x64xf32>
      %cst_15 = arith.constant 0.797884583 : f32
      %22 = vector.broadcast %cst_15 : f32 to vector<4x64xf32>
      %23 = arith.mulf %22, %21 : vector<4x64xf32>
      %24 = math.tanh %23 : vector<4x64xf32>
      %cst_16 = arith.constant 1.000000e+00 : f32
      %25 = vector.broadcast %cst_16 : f32 to vector<4x64xf32>
      %26 = arith.addf %25, %24 : vector<4x64xf32>
      %cst_17 = arith.constant 5.000000e-01 : f32
      %27 = vector.broadcast %cst_17 : f32 to vector<4x64xf32>
      %28 = arith.mulf %27, %26 : vector<4x64xf32>
      %29 = arith.mulf %16, %28 : vector<4x64xf32>
      %c0_18 = arith.constant 0 : index
      %c0_19 = arith.constant 0 : index
      %30 = vector.load %arg6[%c0_18, %c0_19] : memref<4x64xf32, #tpu.memory_space<vmem>>, vector<4x64xf32>
      tpu.vector_store %arg6[%c0_18, %c0_19], %29 {strides = array<i32>} : memref<4x64xf32, #tpu.memory_space<vmem>>, vector<4x64xf32>,
    } else {
    }
    return
  }
  func.func @transform_0(%arg0: i32, %arg1: i32, %arg2: i32) -> (i32, i32) {
    %c0_i32 = arith.constant 0 : i32
    return %arg0, %arg2 : i32, i32
  }
  func.func @transform_1(%arg0: i32, %arg1: i32, %arg2: i32) -> (i32, i32) {
    %c0_i32 = arith.constant 0 : i32
    return %arg2, %arg1 : i32, i32
  }
  func.func @transform_2(%arg0: i32, %arg1: i32, %arg2: i32) -> (i32, i32) {
    %c0_i32 = arith.constant 0 : i32
    %c0_i32_0 = arith.constant 0 : i32
    return %c0_i32, %arg1 : i32, i32
  }
  func.func @transform_3(%arg0: i32, %arg1: i32, %arg2: i32) -> (i32, i32) {
    %c0_i32 = arith.constant 0 : i32
    return %arg0, %arg1 : i32, i32
  }
}

module attributes {stable_mosaic.version = 11 : i64} {
  func.func @_fused_matmul_kernel(%arg0: i32, %arg1: i32, %arg2: i32, %arg3: memref<4x64xf32, #tpu.memory_space<vmem>>, %arg4: memref<64x32xbf16, #tpu.memory_space<vmem>>, %arg5: memref<1x32xf32, #tpu.memory_space<vmem>>, %arg6: memref<4x32xf32, #tpu.memory_space<vmem>>, %arg7: memref<1x32xf32, #tpu.memory_space<vmem>>, %arg8: memref<1x32xf32, #tpu.memory_space<vmem>>, %arg9: memref<4x32xf32, #tpu.memory_space<vmem>>, %arg10: memref<4x32xf32, #tpu.memory_space<vmem>>) attributes {dimension_semantics = [#tpu.dimension_semantics<parallel>, #tpu.dimension_semantics<parallel>, #tpu.dimension_semantics<arbitrary>], iteration_bounds = array<i64: 1, 1, 1>, scalar_prefetch = 0 : i64, scratch_operands = 1 : i64, tpu.core_type = #tpu.core_type<tc>, window_params = [{transform_indices = @transform_0, window_bounds = array<i64: 4, 64>}, {transform_indices = @transform_1, window_bounds = array<i64: 64, 32>}, {transform_indices = @transform_2, window_bounds = array<i64: 1, 32>}, {transform_indices = @transform_3, window_bounds = array<i64: 4, 32>}, {transform_indices = @transform_4, window_bounds = array<i64: 1, 32>}, {transform_indices = @transform_5, window_bounds = array<i64: 1, 32>}, {transform_indices = @transform_6, window_bounds = array<i64: 4, 32>}]} {
    %c0_i32 = arith.constant 0 : i32
    %0 = arith.cmpi eq, %arg2, %c0_i32 : i32
    %1 = arith.extui %0 : i1 to i32
    %c0_i32_0 = arith.constant 0 : i32
    %2 = arith.cmpi ne, %1, %c0_i32_0 : i32
    scf.if %2 {
      %cst_10 = arith.constant 0.000000e+00 : f32
      %13 = vector.broadcast %cst_10 : f32 to vector<4x32xf32>
      %c0_11 = arith.constant 0 : index
      %c0_12 = arith.constant 0 : index
      %14 = vector.load %arg10[%c0_11, %c0_12] : memref<4x32xf32, #tpu.memory_space<vmem>>, vector<4x32xf32>
      tpu.vector_store %arg10[%c0_11, %c0_12], %13 {strides = array<i32>} : memref<4x32xf32, #tpu.memory_space<vmem>>, vector<4x32xf32>,
    } else {
    }
    %c0 = arith.constant 0 : index
    %c0_1 = arith.constant 0 : index
    %3 = vector.load %arg3[%c0, %c0_1] : memref<4x64xf32, #tpu.memory_space<vmem>>, vector<4x64xf32>
    %c0_2 = arith.constant 0 : index
    %c0_3 = arith.constant 0 : index
    %4 = vector.load %arg10[%c0_2, %c0_3] : memref<4x32xf32, #tpu.memory_space<vmem>>, vector<4x32xf32>
    %5 = arith.truncf %3 : vector<4x64xf32> to vector<4x64xbf16>
    %c0_4 = arith.constant 0 : index
    %c0_5 = arith.constant 0 : index
    %6 = vector.load %arg4[%c0_4, %c0_5] : memref<64x32xbf16, #tpu.memory_space<vmem>>, vector<64x32xbf16>
    %cst = arith.constant dense<0.000000e+00> : vector<4x32xf32>
    %7 = tpu.matmul %5, %6, %cst {dimension_numbers = #tpu.dot_dimension_numbers<[1], [0], [0], [1], [0, 0, 1, 1], [], []>} : vector<4x64xbf16>, vector<64x32xbf16>, vector<4x32xf32> -> vector<4x32xf32>
    %8 = arith.addf %4, %7 : vector<4x32xf32>
    %c0_6 = arith.constant 0 : index
    %c0_7 = arith.constant 0 : index
    %9 = vector.load %arg10[%c0_6, %c0_7] : memref<4x32xf32, #tpu.memory_space<vmem>>, vector<4x32xf32>
    tpu.vector_store %arg10[%c0_6, %c0_7], %8 {strides = array<i32>} : memref<4x32xf32, #tpu.memory_space<vmem>>, vector<4x32xf32>,
    %c0_i32_8 = arith.constant 0 : i32
    %10 = arith.cmpi eq, %arg2, %c0_i32_8 : i32
    %11 = arith.extui %10 : i1 to i32
    %c0_i32_9 = arith.constant 0 : i32
    %12 = arith.cmpi ne, %11, %c0_i32_9 : i32
    scf.if %12 {
      %c0_10 = arith.constant 0 : index
      %c0_11 = arith.constant 0 : index
      %13 = vector.load %arg10[%c0_10, %c0_11] : memref<4x32xf32, #tpu.memory_space<vmem>>, vector<4x32xf32>
      %c0_12 = arith.constant 0 : index
      %c0_13 = arith.constant 0 : index
      %14 = vector.load %arg5[%c0_12, %c0_13] : memref<1x32xf32, #tpu.memory_space<vmem>>, vector<1x32xf32>
      %15 = vector.broadcast %14 : vector<1x32xf32> to vector<4x32xf32>
      %16 = arith.addf %13, %15 : vector<4x32xf32>
      %c0_14 = arith.constant 0 : index
      %c0_15 = arith.constant 0 : index
      %17 = vector.load %arg6[%c0_14, %c0_15] : memref<4x32xf32, #tpu.memory_space<vmem>>, vector<4x32xf32>
      %18 = arith.addf %16, %17 : vector<4x32xf32>
      %cst_16 = arith.constant dense<0.000000e+00> : vector<4xf32>
      %19 = vector.multi_reduction <add>, %18, %cst_16 [1] : vector<4x32xf32> to vector<4xf32>
      %20 = vector.shape_cast %19 : vector<4xf32> to vector<4x1xf32>
      %cst_17 = arith.constant 3.200000e+01 : f32
      %21 = vector.broadcast %cst_17 : f32 to vector<4x1xf32>
      %22 = arith.divf %20, %21 : vector<4x1xf32>
      %23 = vector.broadcast %22 : vector<4x1xf32> to vector<4x32xf32>
      %24 = arith.subf %18, %23 : vector<4x32xf32>
      %25 = arith.mulf %24, %24 : vector<4x32xf32>
      %cst_18 = arith.constant dense<0.000000e+00> : vector<4xf32>
      %26 = vector.multi_reduction <add>, %25, %cst_18 [1] : vector<4x32xf32> to vector<4xf32>
      %27 = vector.shape_cast %26 : vector<4xf32> to vector<4x1xf32>
      %cst_19 = arith.constant 3.200000e+01 : f32
      %28 = vector.broadcast %cst_19 : f32 to vector<4x1xf32>
      %29 = arith.divf %27, %28 : vector<4x1xf32>
      %30 = vector.broadcast %22 : vector<4x1xf32> to vector<4x32xf32>
      %31 = arith.subf %18, %30 : vector<4x32xf32>
      %cst_20 = arith.constant 9.99999974E-6 : f32
      %32 = vector.broadcast %cst_20 : f32 to vector<4x1xf32>
      %33 = arith.addf %29, %32 : vector<4x1xf32>
      %34 = math.rsqrt %33 : vector<4x1xf32>
      %35 = vector.broadcast %34 : vector<4x1xf32> to vector<4x32xf32>
      %36 = arith.mulf %31, %35 : vector<4x32xf32>
      %c0_21 = arith.constant 0 : index
      %c0_22 = arith.constant 0 : index
      %37 = vector.load %arg7[%c0_21, %c0_22] : memref<1x32xf32, #tpu.memory_space<vmem>>, vector<1x32xf32>
      %38 = vector.broadcast %37 : vector<1x32xf32> to vector<4x32xf32>
      %39 = arith.mulf %36, %38 : vector<4x32xf32>
      %c0_23 = arith.constant 0 : index
      %c0_24 = arith.constant 0 : index
      %40 = vector.load %arg8[%c0_23, %c0_24] : memref<1x32xf32, #tpu.memory_space<vmem>>, vector<1x32xf32>
      %41 = vector.broadcast %40 : vector<1x32xf32> to vector<4x32xf32>
      %42 = arith.addf %39, %41 : vector<4x32xf32>
      %c0_25 = arith.constant 0 : index
      %c0_26 = arith.constant 0 : index
      %43 = vector.load %arg9[%c0_25, %c0_26] : memref<4x32xf32, #tpu.memory_space<vmem>>, vector<4x32xf32>
      tpu.vector_store %arg9[%c0_25, %c0_26], %42 {strides = array<i32>} : memref<4x32xf32, #tpu.memory_space<vmem>>, vector<4x32xf32>,
    } else {
    }
    return
  }
  func.func @transform_0(%arg0: i32, %arg1: i32, %arg2: i32) -> (i32, i32) {
    %c0_i32 = arith.constant 0 : i32
    return %arg0, %arg2 : i32, i32
  }
  func.func @transform_1(%arg0: i32, %arg1: i32, %arg2: i32) -> (i32, i32) {
    %c0_i32 = arith.constant 0 : i32
    return %arg2, %arg1 : i32, i32
  }
  func.func @transform_2(%arg0: i32, %arg1: i32, %arg2: i32) -> (i32, i32) {
    %c0_i32 = arith.constant 0 : i32
    %c0_i32_0 = arith.constant 0 : i32
    return %c0_i32, %arg1 : i32, i32
  }
  func.func @transform_3(%arg0: i32, %arg1: i32, %arg2: i32) -> (i32, i32) {
    %c0_i32 = arith.constant 0 : i32
    return %arg0, %arg1 : i32, i32
  }
  func.func @transform_4(%arg0: i32, %arg1: i32, %arg2: i32) -> (i32, i32) {
    %c0_i32 = arith.constant 0 : i32
    %c0_i32_0 = arith.constant 0 : i32
    return %c0_i32, %arg1 : i32, i32
  }
  func.func @transform_5(%arg0: i32, %arg1: i32, %arg2: i32) -> (i32, i32) {
    %c0_i32 = arith.constant 0 : i32
    %c0_i32_0 = arith.constant 0 : i32
    return %c0_i32, %arg1 : i32, i32
  }
  func.func @transform_6(%arg0: i32, %arg1: i32, %arg2: i32) -> (i32, i32) {
    %c0_i32 = arith.constant 0 : i32
    return %arg0, %arg1 : i32, i32
  }
}

module attributes {stable_mosaic.version = 11 : i64} {
  func.func @_fused_matmul_kernel(%arg0: i32, %arg1: i32, %arg2: i32, %arg3: memref<4x32xf32, #tpu.memory_space<vmem>>, %arg4: memref<32x64xbf16, #tpu.memory_space<vmem>>, %arg5: memref<1x64xf32, #tpu.memory_space<vmem>>, %arg6: memref<4x64xf32, #tpu.memory_space<vmem>>, %arg7: memref<4x64xf32, #tpu.memory_space<vmem>>) attributes {dimension_semantics = [#tpu.dimension_semantics<parallel>, #tpu.dimension_semantics<parallel>, #tpu.dimension_semantics<arbitrary>], iteration_bounds = array<i64: 1, 1, 1>, scalar_prefetch = 0 : i64, scratch_operands = 1 : i64, tpu.core_type = #tpu.core_type<tc>, window_params = [{transform_indices = @transform_0, window_bounds = array<i64: 4, 32>}, {transform_indices = @transform_1, window_bounds = array<i64: 32, 64>}, {transform_indices = @transform_2, window_bounds = array<i64: 1, 64>}, {transform_indices = @transform_3, window_bounds = array<i64: 4, 64>}]} {
    %c0_i32 = arith.constant 0 : i32
    %0 = arith.cmpi eq, %arg2, %c0_i32 : i32
    %1 = arith.extui %0 : i1 to i32
    %c0_i32_0 = arith.constant 0 : i32
    %2 = arith.cmpi ne, %1, %c0_i32_0 : i32
    scf.if %2 {
      %cst_10 = arith.constant 0.000000e+00 : f32
      %13 = vector.broadcast %cst_10 : f32 to vector<4x64xf32>
      %c0_11 = arith.constant 0 : index
      %c0_12 = arith.constant 0 : index
      %14 = vector.load %arg7[%c0_11, %c0_12] : memref<4x64xf32, #tpu.memory_space<vmem>>, vector<4x64xf32>
      tpu.vector_store %arg7[%c0_11, %c0_12], %13 {strides = array<i32>} : memref<4x64xf32, #tpu.memory_space<vmem>>, vector<4x64xf32>,
    } else {
    }
    %c0 = arith.constant 0 : index
    %c0_1 = arith.constant 0 : index
    %3 = vector.load %arg3[%c0, %c0_1] : memref<4x32xf32, #tpu.memory_space<vmem>>, vector<4x32xf32>
    %c0_2 = arith.constant 0 : index
    %c0_3 = arith.constant 0 : index
    %4 = vector.load %arg7[%c0_2, %c0_3] : memref<4x64xf32, #tpu.memory_space<vmem>>, vector<4x64xf32>
    %5 = arith.truncf %3 : vector<4x32xf32> to vector<4x32xbf16>
    %c0_4 = arith.constant 0 : index
    %c0_5 = arith.constant 0 : index
    %6 = vector.load %arg4[%c0_4, %c0_5] : memref<32x64xbf16, #tpu.memory_space<vmem>>, vector<32x64xbf16>
    %cst = arith.constant dense<0.000000e+00> : vector<4x64xf32>
    %7 = tpu.matmul %5, %6, %cst {dimension_numbers = #tpu.dot_dimension_numbers<[1], [0], [0], [1], [0, 0, 1, 1], [], []>} : vector<4x32xbf16>, vector<32x64xbf16>, vector<4x64xf32> -> vector<4x64xf32>
    %8 = arith.addf %4, %7 : vector<4x64xf32>
    %c0_6 = arith.constant 0 : index
    %c0_7 = arith.constant 0 : index
    %9 = vector.load %arg7[%c0_6, %c0_7] : memref<4x64xf32, #tpu.memory_space<vmem>>, vector<4x64xf32>
    tpu.vector_store %arg7[%c0_6, %c0_7], %8 {strides = array<i32>} : memref<4x64xf32, #tpu.memory_space<vmem>>, vector<4x64xf32>,
    %c0_i32_8 = arith.constant 0 : i32
    %10 = arith.cmpi eq, %arg2, %c0_i32_8 : i32
    %11 = arith.extui %10 : i1 to i32
    %c0_i32_9 = arith.constant 0 : i32
    %12 = arith.cmpi ne, %11, %c0_i32_9 : i32
    scf.if %12 {
      %c0_10 = arith.constant 0 : index
      %c0_11 = arith.constant 0 : index
      %13 = vector.load %arg7[%c0_10, %c0_11] : memref<4x64xf32, #tpu.memory_space<vmem>>, vector<4x64xf32>
      %c0_12 = arith.constant 0 : index
      %c0_13 = arith.constant 0 : index
      %14 = vector.load %arg5[%c0_12, %c0_13] : memref<1x64xf32, #tpu.memory_space<vmem>>, vector<1x64xf32>
      %15 = vector.broadcast %14 : vector<1x64xf32> to vector<4x64xf32>
      %16 = arith.addf %13, %15 : vector<4x64xf32>
      %c0_14 = arith.constant 0 : index
      %c0_15 = arith.constant 0 : index
      %17 = vector.load %arg6[%c0_14, %c0_15] : memref<4x64xf32, #tpu.memory_space<vmem>>, vector<4x64xf32>
      tpu.vector_store %arg6[%c0_14, %c0_15], %16 {strides = array<i32>} : memref<4x64xf32, #tpu.memory_space<vmem>>, vector<4x64xf32>,
    } else {
    }
    return
  }
  func.func @transform_0(%arg0: i32, %arg1: i32, %arg2: i32) -> (i32, i32) {
    %c0_i32 = arith.constant 0 : i32
    return %arg0, %arg2 : i32, i32
  }
  func.func @transform_1(%arg0: i32, %arg1: i32, %arg2: i32) -> (i32, i32) {
    %c0_i32 = arith.constant 0 : i32
    return %arg2, %arg1 : i32, i32
  }
  func.func @transform_2(%arg0: i32, %arg1: i32, %arg2: i32) -> (i32, i32) {
    %c0_i32 = arith.constant 0 : i32
    %c0_i32_0 = arith.constant 0 : i32
    return %c0_i32, %arg1 : i32, i32
  }
  func.func @transform_3(%arg0: i32, %arg1: i32, %arg2: i32) -> (i32, i32) {
    %c0_i32 = arith.constant 0 : i32
    return %arg0, %arg1 : i32, i32
  }
}

module attributes {stable_mosaic.version = 11 : i64} {
  func.func @_mha_cross_kernel(%arg0: i32, %arg1: memref<1x16x32xf32, #tpu.memory_space<vmem>>, %arg2: memref<1x2x64xf32, #tpu.memory_space<vmem>>, %arg3: memref<1x16x32xf32, #tpu.memory_space<vmem>>) attributes {dimension_semantics = [#tpu.dimension_semantics<parallel>], iteration_bounds = array<i64: 2>, scalar_prefetch = 0 : i64, scratch_operands = 0 : i64, tpu.core_type = #tpu.core_type<tc>, window_params = [{transform_indices = @transform_0, window_bounds = array<i64: 1, 16, 32>}, {transform_indices = @transform_1, window_bounds = array<i64: 1, 2, 64>}, {transform_indices = @transform_2, window_bounds = array<i64: 1, 16, 32>}]} {
    %c0 = arith.constant 0 : index
    %c0_0 = arith.constant 0 : index
    %c0_1 = arith.constant 0 : index
    %0 = vector.load %arg2[%c0, %c0_0, %c0_1] : memref<1x2x64xf32, #tpu.memory_space<vmem>>, vector<1x2x64xf32>
    %1 = vector.shape_cast %0 : vector<1x2x64xf32> to vector<2x64xf32>
    %c0_2 = arith.constant 0 : index
    %c0_3 = arith.constant 0 : index
    %c0_4 = arith.constant 0 : index
    %2 = vector.load %arg1[%c0_2, %c0_3, %c0_4] : memref<1x16x32xf32, #tpu.memory_space<vmem>>, vector<1x16x32xf32>
    %3 = vector.shape_cast %2 : vector<1x16x32xf32> to vector<16x32xf32>
    %4 = vector.extract_strided_slice %1 {offsets = [0, 0], sizes = [2, 32], strides = [1, 1]} : vector<2x64xf32> to vector<2x32xf32>
    %5 = vector.extract_strided_slice %1 {offsets = [0, 32], sizes = [2, 32], strides = [1, 1]} : vector<2x64xf32> to vector<2x32xf32>
    %6 = vector.extract_strided_slice %3 {offsets = [0, 0], sizes = [16, 8], strides = [1, 1]} : vector<16x32xf32> to vector<16x8xf32>
    %7 = arith.truncf %6 : vector<16x8xf32> to vector<16x8xbf16>
    %8 = vector.extract_strided_slice %4 {offsets = [0, 0], sizes = [2, 8], strides = [1, 1]} : vector<2x32xf32> to vector<2x8xf32>
    %9 = arith.truncf %8 : vector<2x8xf32> to vector<2x8xbf16>
    %10 = vector.extract_strided_slice %5 {offsets = [0, 0], sizes = [2, 8], strides = [1, 1]} : vector<2x32xf32> to vector<2x8xf32>
    %11 = arith.truncf %10 : vector<2x8xf32> to vector<2x8xbf16>
    %cst = arith.constant dense<0.000000e+00> : vector<16x2xf32>
    %12 = tpu.matmul %7, %9, %cst {dimension_numbers = #tpu.dot_dimension_numbers<[1], [1], [0], [0], [0, 0, 1, 0], [], []>} : vector<16x8xbf16>, vector<2x8xbf16>, vector<16x2xf32> -> vector<16x2xf32>
    %cst_5 = arith.constant 0.353553385 : f32
    %13 = vector.broadcast %cst_5 : f32 to vector<16x2xf32>
    %14 = arith.mulf %12, %13 : vector<16x2xf32>
    %cst_6 = arith.constant dense<0xFF800000> : vector<16xf32>
    %15 = vector.multi_reduction <maximumf>, %14, %cst_6 [1] : vector<16x2xf32> to vector<16xf32>
    %16 = vector.shape_cast %15 : vector<16xf32> to vector<16x1xf32>
    %17 = vector.broadcast %16 : vector<16x1xf32> to vector<16x2xf32>
    %18 = arith.subf %14, %17 : vector<16x2xf32>
    %19 = math.exp %18 : vector<16x2xf32>
    %cst_7 = arith.constant dense<0.000000e+00> : vector<16xf32>
    %20 = vector.multi_reduction <add>, %19, %cst_7 [1] : vector<16x2xf32> to vector<16xf32>
    %21 = vector.shape_cast %20 : vector<16xf32> to vector<16x1xf32>
    %22 = tpu.reciprocal %21 {approx = true} : vector<16x1xf32> -> vector<16x1xf32>
    %23 = vector.broadcast %22 : vector<16x1xf32> to vector<16x2xf32>
    %24 = arith.mulf %19, %23 : vector<16x2xf32>
    %25 = arith.truncf %24 : vector<16x2xf32> to vector<16x2xbf16>
    %cst_8 = arith.constant dense<0.000000e+00> : vector<16x8xf32>
    %26 = tpu.matmul %25, %11, %cst_8 {dimension_numbers = #tpu.dot_dimension_numbers<[1], [0], [0], [1], [0, 0, 1, 1], [], []>} : vector<16x2xbf16>, vector<2x8xbf16>, vector<16x8xf32> -> vector<16x8xf32>
    %27 = vector.extract_strided_slice %3 {offsets = [0, 8], sizes = [16, 8], strides = [1, 1]} : vector<16x32xf32> to vector<16x8xf32>
    %28 = arith.truncf %27 : vector<16x8xf32> to vector<16x8xbf16>
    %29 = vector.extract_strided_slice %4 {offsets = [0, 8], sizes = [2, 8], strides = [1, 1]} : vector<2x32xf32> to vector<2x8xf32>
    %30 = arith.truncf %29 : vector<2x8xf32> to vector<2x8xbf16>
    %31 = vector.extract_strided_slice %5 {offsets = [0, 8], sizes = [2, 8], strides = [1, 1]} : vector<2x32xf32> to vector<2x8xf32>
    %32 = arith.truncf %31 : vector<2x8xf32> to vector<2x8xbf16>
    %cst_9 = arith.constant dense<0.000000e+00> : vector<16x2xf32>
    %33 = tpu.matmul %28, %30, %cst_9 {dimension_numbers = #tpu.dot_dimension_numbers<[1], [1], [0], [0], [0, 0, 1, 0], [], []>} : vector<16x8xbf16>, vector<2x8xbf16>, vector<16x2xf32> -> vector<16x2xf32>
    %cst_10 = arith.constant 0.353553385 : f32
    %34 = vector.broadcast %cst_10 : f32 to vector<16x2xf32>
    %35 = arith.mulf %33, %34 : vector<16x2xf32>
    %cst_11 = arith.constant dense<0xFF800000> : vector<16xf32>
    %36 = vector.multi_reduction <maximumf>, %35, %cst_11 [1] : vector<16x2xf32> to vector<16xf32>
    %37 = vector.shape_cast %36 : vector<16xf32> to vector<16x1xf32>
    %38 = vector.broadcast %37 : vector<16x1xf32> to vector<16x2xf32>
    %39 = arith.subf %35, %38 : vector<16x2xf32>
    %40 = math.exp %39 : vector<16x2xf32>
    %cst_12 = arith.constant dense<0.000000e+00> : vector<16xf32>
    %41 = vector.multi_reduction <add>, %40, %cst_12 [1] : vector<16x2xf32> to vector<16xf32>
    %42 = vector.shape_cast %41 : vector<16xf32> to vector<16x1xf32>
    %43 = tpu.reciprocal %42 {approx = true} : vector<16x1xf32> -> vector<16x1xf32>
    %44 = vector.broadcast %43 : vector<16x1xf32> to vector<16x2xf32>
    %45 = arith.mulf %40, %44 : vector<16x2xf32>
    %46 = arith.truncf %45 : vector<16x2xf32> to vector<16x2xbf16>
    %cst_13 = arith.constant dense<0.000000e+00> : vector<16x8xf32>
    %47 = tpu.matmul %46, %32, %cst_13 {dimension_numbers = #tpu.dot_dimension_numbers<[1], [0], [0], [1], [0, 0, 1, 1], [], []>} : vector<16x2xbf16>, vector<2x8xbf16>, vector<16x8xf32> -> vector<16x8xf32>
    %48 = vector.extract_strided_slice %3 {offsets = [0, 16], sizes = [16, 8], strides = [1, 1]} : vector<16x32xf32> to vector<16x8xf32>
    %49 = arith.truncf %48 : vector<16x8xf32> to vector<16x8xbf16>
    %50 = vector.extract_strided_slice %4 {offsets = [0, 16], sizes = [2, 8], strides = [1, 1]} : vector<2x32xf32> to vector<2x8xf32>
    %51 = arith.truncf %50 : vector<2x8xf32> to vector<2x8xbf16>
    %52 = vector.extract_strided_slice %5 {offsets = [0, 16], sizes = [2, 8], strides = [1, 1]} : vector<2x32xf32> to vector<2x8xf32>
    %53 = arith.truncf %52 : vector<2x8xf32> to vector<2x8xbf16>
    %cst_14 = arith.constant dense<0.000000e+00> : vector<16x2xf32>
    %54 = tpu.matmul %49, %51, %cst_14 {dimension_numbers = #tpu.dot_dimension_numbers<[1], [1], [0], [0], [0, 0, 1, 0], [], []>} : vector<16x8xbf16>, vector<2x8xbf16>, vector<16x2xf32> -> vector<16x2xf32>
    %cst_15 = arith.constant 0.353553385 : f32
    %55 = vector.broadcast %cst_15 : f32 to vector<16x2xf32>
    %56 = arith.mulf %54, %55 : vector<16x2xf32>
    %cst_16 = arith.constant dense<0xFF800000> : vector<16xf32>
    %57 = vector.multi_reduction <maximumf>, %56, %cst_16 [1] : vector<16x2xf32> to vector<16xf32>
    %58 = vector.shape_cast %57 : vector<16xf32> to vector<16x1xf32>
    %59 = vector.broadcast %58 : vector<16x1xf32> to vector<16x2xf32>
    %60 = arith.subf %56, %59 : vector<16x2xf32>
    %61 = math.exp %60 : vector<16x2xf32>
    %cst_17 = arith.constant dense<0.000000e+00> : vector<16xf32>
    %62 = vector.multi_reduction <add>, %61, %cst_17 [1] : vector<16x2xf32> to vector<16xf32>
    %63 = vector.shape_cast %62 : vector<16xf32> to vector<16x1xf32>
    %64 = tpu.reciprocal %63 {approx = true} : vector<16x1xf32> -> vector<16x1xf32>
    %65 = vector.broadcast %64 : vector<16x1xf32> to vector<16x2xf32>
    %66 = arith.mulf %61, %65 : vector<16x2xf32>
    %67 = arith.truncf %66 : vector<16x2xf32> to vector<16x2xbf16>
    %cst_18 = arith.constant dense<0.000000e+00> : vector<16x8xf32>
    %68 = tpu.matmul %67, %53, %cst_18 {dimension_numbers = #tpu.dot_dimension_numbers<[1], [0], [0], [1], [0, 0, 1, 1], [], []>} : vector<16x2xbf16>, vector<2x8xbf16>, vector<16x8xf32> -> vector<16x8xf32>
    %69 = vector.extract_strided_slice %3 {offsets = [0, 24], sizes = [16, 8], strides = [1, 1]} : vector<16x32xf32> to vector<16x8xf32>
    %70 = arith.truncf %69 : vector<16x8xf32> to vector<16x8xbf16>
    %71 = vector.extract_strided_slice %4 {offsets = [0, 24], sizes = [2, 8], strides = [1, 1]} : vector<2x32xf32> to vector<2x8xf32>
    %72 = arith.truncf %71 : vector<2x8xf32> to vector<2x8xbf16>
    %73 = vector.extract_strided_slice %5 {offsets = [0, 24], sizes = [2, 8], strides = [1, 1]} : vector<2x32xf32> to vector<2x8xf32>
    %74 = arith.truncf %73 : vector<2x8xf32> to vector<2x8xbf16>
    %cst_19 = arith.constant dense<0.000000e+00> : vector<16x2xf32>
    %75 = tpu.matmul %70, %72, %cst_19 {dimension_numbers = #tpu.dot_dimension_numbers<[1], [1], [0], [0], [0, 0, 1, 0], [], []>} : vector<16x8xbf16>, vector<2x8xbf16>, vector<16x2xf32> -> vector<16x2xf32>
    %cst_20 = arith.constant 0.353553385 : f32
    %76 = vector.broadcast %cst_20 : f32 to vector<16x2xf32>
    %77 = arith.mulf %75, %76 : vector<16x2xf32>
    %cst_21 = arith.constant dense<0xFF800000> : vector<16xf32>
    %78 = vector.multi_reduction <maximumf>, %77, %cst_21 [1] : vector<16x2xf32> to vector<16xf32>
    %79 = vector.shape_cast %78 : vector<16xf32> to vector<16x1xf32>
    %80 = vector.broadcast %79 : vector<16x1xf32> to vector<16x2xf32>
    %81 = arith.subf %77, %80 : vector<16x2xf32>
    %82 = math.exp %81 : vector<16x2xf32>
    %cst_22 = arith.constant dense<0.000000e+00> : vector<16xf32>
    %83 = vector.multi_reduction <add>, %82, %cst_22 [1] : vector<16x2xf32> to vector<16xf32>
    %84 = vector.shape_cast %83 : vector<16xf32> to vector<16x1xf32>
    %85 = tpu.reciprocal %84 {approx = true} : vector<16x1xf32> -> vector<16x1xf32>
    %86 = vector.broadcast %85 : vector<16x1xf32> to vector<16x2xf32>
    %87 = arith.mulf %82, %86 : vector<16x2xf32>
    %88 = arith.truncf %87 : vector<16x2xf32> to vector<16x2xbf16>
    %cst_23 = arith.constant dense<0.000000e+00> : vector<16x8xf32>
    %89 = tpu.matmul %88, %74, %cst_23 {dimension_numbers = #tpu.dot_dimension_numbers<[1], [0], [0], [1], [0, 0, 1, 1], [], []>} : vector<16x2xbf16>, vector<2x8xbf16>, vector<16x8xf32> -> vector<16x8xf32>
    %90 = tpu.concatenate %26, %47, %68, %89 in 1 : vector<16x8xf32>, vector<16x8xf32>, vector<16x8xf32>, vector<16x8xf32> -> vector<16x32xf32>
    %c0_24 = arith.constant 0 : index
    %c0_25 = arith.constant 0 : index
    %c0_26 = arith.constant 0 : index
    %91 = vector.load %arg3[%c0_24, %c0_25, %c0_26] : memref<1x16x32xf32, #tpu.memory_space<vmem>>, vector<1x16x32xf32>
    %92 = vector.shape_cast %91 : vector<1x16x32xf32> to vector<16x32xf32>
    %93 = vector.shape_cast %90 : vector<16x32xf32> to vector<1x16x32xf32>
    tpu.vector_store %arg3[%c0_24, %c0_25, %c0_26], %93 {strides = array<i32>} : memref<1x16x32xf32, #tpu.memory_space<vmem>>, vector<1x16x32xf32>,
    return
  }
  func.func @transform_0(%arg0: i32) -> (i32, i32, i32) {
    %c0_i32 = arith.constant 0 : i32
    %c0_i32_0 = arith.constant 0 : i32
    %c0_i32_1 = arith.constant 0 : i32
    return %arg0, %c0_i32, %c0_i32_0 : i32, i32, i32
  }
  func.func @transform_1(%arg0: i32) -> (i32, i32, i32) {
    %c0_i32 = arith.constant 0 : i32
    %c0_i32_0 = arith.constant 0 : i32
    %c0_i32_1 = arith.constant 0 : i32
    return %arg0, %c0_i32, %c0_i32_0 : i32, i32, i32
  }
  func.func @transform_2(%arg0: i32) -> (i32, i32, i32) {
    %c0_i32 = arith.constant 0 : i32
    %c0_i32_0 = arith.constant 0 : i32
    %c0_i32_1 = arith.constant 0 : i32
    return %arg0, %c0_i32, %c0_i32_0 : i32, i32, i32
  }
}

module attributes {stable_mosaic.version = 11 : i64} {
  func.func @_fused_matmul_kernel(%arg0: i32, %arg1: i32, %arg2: i32, %arg3: memref<32x32xf32, #tpu.memory_space<vmem>>, %arg4: memref<32x32xbf16, #tpu.memory_space<vmem>>, %arg5: memref<1x32xf32, #tpu.memory_space<vmem>>, %arg6: memref<32x32xf32, #tpu.memory_space<vmem>>, %arg7: memref<1x32xf32, #tpu.memory_space<vmem>>, %arg8: memref<1x32xf32, #tpu.memory_space<vmem>>, %arg9: memref<32x32xf32, #tpu.memory_space<vmem>>, %arg10: memref<32x32xf32, #tpu.memory_space<vmem>>) attributes {dimension_semantics = [#tpu.dimension_semantics<parallel>, #tpu.dimension_semantics<parallel>, #tpu.dimension_semantics<arbitrary>], iteration_bounds = array<i64: 1, 1, 1>, scalar_prefetch = 0 : i64, scratch_operands = 1 : i64, tpu.core_type = #tpu.core_type<tc>, window_params = [{transform_indices = @transform_0, window_bounds = array<i64: 32, 32>}, {transform_indices = @transform_1, window_bounds = array<i64: 32, 32>}, {transform_indices = @transform_2, window_bounds = array<i64: 1, 32>}, {transform_indices = @transform_3, window_bounds = array<i64: 32, 32>}, {transform_indices = @transform_4, window_bounds = array<i64: 1, 32>}, {transform_indices = @transform_5, window_bounds = array<i64: 1, 32>}, {transform_indices = @transform_6, window_bounds = array<i64: 32, 32>}]} {
    %c0_i32 = arith.constant 0 : i32
    %0 = arith.cmpi eq, %arg2, %c0_i32 : i32
    %1 = arith.extui %0 : i1 to i32
    %c0_i32_0 = arith.constant 0 : i32
    %2 = arith.cmpi ne, %1, %c0_i32_0 : i32
    scf.if %2 {
      %cst_10 = arith.constant 0.000000e+00 : f32
      %13 = vector.broadcast %cst_10 : f32 to vector<32x32xf32>
      %c0_11 = arith.constant 0 : index
      %c0_12 = arith.constant 0 : index
      %14 = vector.load %arg10[%c0_11, %c0_12] : memref<32x32xf32, #tpu.memory_space<vmem>>, vector<32x32xf32>
      tpu.vector_store %arg10[%c0_11, %c0_12], %13 {strides = array<i32>} : memref<32x32xf32, #tpu.memory_space<vmem>>, vector<32x32xf32>,
    } else {
    }
    %c0 = arith.constant 0 : index
    %c0_1 = arith.constant 0 : index
    %3 = vector.load %arg3[%c0, %c0_1] : memref<32x32xf32, #tpu.memory_space<vmem>>, vector<32x32xf32>
    %c0_2 = arith.constant 0 : index
    %c0_3 = arith.constant 0 : index
    %4 = vector.load %arg10[%c0_2, %c0_3] : memref<32x32xf32, #tpu.memory_space<vmem>>, vector<32x32xf32>
    %5 = arith.truncf %3 : vector<32x32xf32> to vector<32x32xbf16>
    %c0_4 = arith.constant 0 : index
    %c0_5 = arith.constant 0 : index
    %6 = vector.load %arg4[%c0_4, %c0_5] : memref<32x32xbf16, #tpu.memory_space<vmem>>, vector<32x32xbf16>
    %cst = arith.constant dense<0.000000e+00> : vector<32x32xf32>
    %7 = tpu.matmul %5, %6, %cst {dimension_numbers = #tpu.dot_dimension_numbers<[1], [0], [0], [1], [0, 0, 1, 1], [], []>} : vector<32x32xbf16>, vector<32x32xbf16>, vector<32x32xf32> -> vector<32x32xf32>
    %8 = arith.addf %4, %7 : vector<32x32xf32>
    %c0_6 = arith.constant 0 : index
    %c0_7 = arith.constant 0 : index
    %9 = vector.load %arg10[%c0_6, %c0_7] : memref<32x32xf32, #tpu.memory_space<vmem>>, vector<32x32xf32>
    tpu.vector_store %arg10[%c0_6, %c0_7], %8 {strides = array<i32>} : memref<32x32xf32, #tpu.memory_space<vmem>>, vector<32x32xf32>,
    %c0_i32_8 = arith.constant 0 : i32
    %10 = arith.cmpi eq, %arg2, %c0_i32_8 : i32
    %11 = arith.extui %10 : i1 to i32
    %c0_i32_9 = arith.constant 0 : i32
    %12 = arith.cmpi ne, %11, %c0_i32_9 : i32
    scf.if %12 {
      %c0_10 = arith.constant 0 : index
      %c0_11 = arith.constant 0 : index
      %13 = vector.load %arg10[%c0_10, %c0_11] : memref<32x32xf32, #tpu.memory_space<vmem>>, vector<32x32xf32>
      %c0_12 = arith.constant 0 : index
      %c0_13 = arith.constant 0 : index
      %14 = vector.load %arg5[%c0_12, %c0_13] : memref<1x32xf32, #tpu.memory_space<vmem>>, vector<1x32xf32>
      %15 = vector.broadcast %14 : vector<1x32xf32> to vector<32x32xf32>
      %16 = arith.addf %13, %15 : vector<32x32xf32>
      %c0_14 = arith.constant 0 : index
      %c0_15 = arith.constant 0 : index
      %17 = vector.load %arg6[%c0_14, %c0_15] : memref<32x32xf32, #tpu.memory_space<vmem>>, vector<32x32xf32>
      %18 = arith.addf %16, %17 : vector<32x32xf32>
      %cst_16 = arith.constant dense<0.000000e+00> : vector<32xf32>
      %19 = vector.multi_reduction <add>, %18, %cst_16 [1] : vector<32x32xf32> to vector<32xf32>
      %20 = vector.shape_cast %19 : vector<32xf32> to vector<32x1xf32>
      %cst_17 = arith.constant 3.200000e+01 : f32
      %21 = vector.broadcast %cst_17 : f32 to vector<32x1xf32>
      %22 = arith.divf %20, %21 : vector<32x1xf32>
      %23 = vector.broadcast %22 : vector<32x1xf32> to vector<32x32xf32>
      %24 = arith.subf %18, %23 : vector<32x32xf32>
      %25 = arith.mulf %24, %24 : vector<32x32xf32>
      %cst_18 = arith.constant dense<0.000000e+00> : vector<32xf32>
      %26 = vector.multi_reduction <add>, %25, %cst_18 [1] : vector<32x32xf32> to vector<32xf32>
      %27 = vector.shape_cast %26 : vector<32xf32> to vector<32x1xf32>
      %cst_19 = arith.constant 3.200000e+01 : f32
      %28 = vector.broadcast %cst_19 : f32 to vector<32x1xf32>
      %29 = arith.divf %27, %28 : vector<32x1xf32>
      %30 = vector.broadcast %22 : vector<32x1xf32> to vector<32x32xf32>
      %31 = arith.subf %18, %30 : vector<32x32xf32>
      %cst_20 = arith.constant 9.99999974E-6 : f32
      %32 = vector.broadcast %cst_20 : f32 to vector<32x1xf32>
      %33 = arith.addf %29, %32 : vector<32x1xf32>
      %34 = math.rsqrt %33 : vector<32x1xf32>
      %35 = vector.broadcast %34 : vector<32x1xf32> to vector<32x32xf32>
      %36 = arith.mulf %31, %35 : vector<32x32xf32>
      %c0_21 = arith.constant 0 : index
      %c0_22 = arith.constant 0 : index
      %37 = vector.load %arg7[%c0_21, %c0_22] : memref<1x32xf32, #tpu.memory_space<vmem>>, vector<1x32xf32>
      %38 = vector.broadcast %37 : vector<1x32xf32> to vector<32x32xf32>
      %39 = arith.mulf %36, %38 : vector<32x32xf32>
      %c0_23 = arith.constant 0 : index
      %c0_24 = arith.constant 0 : index
      %40 = vector.load %arg8[%c0_23, %c0_24] : memref<1x32xf32, #tpu.memory_space<vmem>>, vector<1x32xf32>
      %41 = vector.broadcast %40 : vector<1x32xf32> to vector<32x32xf32>
      %42 = arith.addf %39, %41 : vector<32x32xf32>
      %c0_25 = arith.constant 0 : index
      %c0_26 = arith.constant 0 : index
      %43 = vector.load %arg9[%c0_25, %c0_26] : memref<32x32xf32, #tpu.memory_space<vmem>>, vector<32x32xf32>
      tpu.vector_store %arg9[%c0_25, %c0_26], %42 {strides = array<i32>} : memref<32x32xf32, #tpu.memory_space<vmem>>, vector<32x32xf32>,
    } else {
    }
    return
  }
  func.func @transform_0(%arg0: i32, %arg1: i32, %arg2: i32) -> (i32, i32) {
    %c0_i32 = arith.constant 0 : i32
    return %arg0, %arg2 : i32, i32
  }
  func.func @transform_1(%arg0: i32, %arg1: i32, %arg2: i32) -> (i32, i32) {
    %c0_i32 = arith.constant 0 : i32
    return %arg2, %arg1 : i32, i32
  }
  func.func @transform_2(%arg0: i32, %arg1: i32, %arg2: i32) -> (i32, i32) {
    %c0_i32 = arith.constant 0 : i32
    %c0_i32_0 = arith.constant 0 : i32
    return %c0_i32, %arg1 : i32, i32
  }
  func.func @transform_3(%arg0: i32, %arg1: i32, %arg2: i32) -> (i32, i32) {
    %c0_i32 = arith.constant 0 : i32
    return %arg0, %arg1 : i32, i32
  }
  func.func @transform_4(%arg0: i32, %arg1: i32, %arg2: i32) -> (i32, i32) {
    %c0_i32 = arith.constant 0 : i32
    %c0_i32_0 = arith.constant 0 : i32
    return %c0_i32, %arg1 : i32, i32
  }
  func.func @transform_5(%arg0: i32, %arg1: i32, %arg2: i32) -> (i32, i32) {
    %c0_i32 = arith.constant 0 : i32
    %c0_i32_0 = arith.constant 0 : i32
    return %c0_i32, %arg1 : i32, i32
  }
  func.func @transform_6(%arg0: i32, %arg1: i32, %arg2: i32) -> (i32, i32) {
    %c0_i32 = arith.constant 0 : i32
    return %arg0, %arg1 : i32, i32
  }
}

module attributes {stable_mosaic.version = 11 : i64} {
  func.func @_fused_matmul_kernel(%arg0: i32, %arg1: i32, %arg2: i32, %arg3: memref<2x32xf32, #tpu.memory_space<vmem>>, %arg4: memref<32x32xbf16, #tpu.memory_space<vmem>>, %arg5: memref<1x32xf32, #tpu.memory_space<vmem>>, %arg6: memref<2x32xf32, #tpu.memory_space<vmem>>, %arg7: memref<2x32xf32, #tpu.memory_space<vmem>>) attributes {dimension_semantics = [#tpu.dimension_semantics<parallel>, #tpu.dimension_semantics<parallel>, #tpu.dimension_semantics<arbitrary>], iteration_bounds = array<i64: 1, 1, 1>, scalar_prefetch = 0 : i64, scratch_operands = 1 : i64, tpu.core_type = #tpu.core_type<tc>, window_params = [{transform_indices = @transform_0, window_bounds = array<i64: 2, 32>}, {transform_indices = @transform_1, window_bounds = array<i64: 32, 32>}, {transform_indices = @transform_2, window_bounds = array<i64: 1, 32>}, {transform_indices = @transform_3, window_bounds = array<i64: 2, 32>}]} {
    %c0_i32 = arith.constant 0 : i32
    %0 = arith.cmpi eq, %arg2, %c0_i32 : i32
    %1 = arith.extui %0 : i1 to i32
    %c0_i32_0 = arith.constant 0 : i32
    %2 = arith.cmpi ne, %1, %c0_i32_0 : i32
    scf.if %2 {
      %cst_10 = arith.constant 0.000000e+00 : f32
      %13 = vector.broadcast %cst_10 : f32 to vector<2x32xf32>
      %c0_11 = arith.constant 0 : index
      %c0_12 = arith.constant 0 : index
      %14 = vector.load %arg7[%c0_11, %c0_12] : memref<2x32xf32, #tpu.memory_space<vmem>>, vector<2x32xf32>
      tpu.vector_store %arg7[%c0_11, %c0_12], %13 {strides = array<i32>} : memref<2x32xf32, #tpu.memory_space<vmem>>, vector<2x32xf32>,
    } else {
    }
    %c0 = arith.constant 0 : index
    %c0_1 = arith.constant 0 : index
    %3 = vector.load %arg3[%c0, %c0_1] : memref<2x32xf32, #tpu.memory_space<vmem>>, vector<2x32xf32>
    %c0_2 = arith.constant 0 : index
    %c0_3 = arith.constant 0 : index
    %4 = vector.load %arg7[%c0_2, %c0_3] : memref<2x32xf32, #tpu.memory_space<vmem>>, vector<2x32xf32>
    %5 = arith.truncf %3 : vector<2x32xf32> to vector<2x32xbf16>
    %c0_4 = arith.constant 0 : index
    %c0_5 = arith.constant 0 : index
    %6 = vector.load %arg4[%c0_4, %c0_5] : memref<32x32xbf16, #tpu.memory_space<vmem>>, vector<32x32xbf16>
    %cst = arith.constant dense<0.000000e+00> : vector<2x32xf32>
    %7 = tpu.matmul %5, %6, %cst {dimension_numbers = #tpu.dot_dimension_numbers<[1], [0], [0], [1], [0, 0, 1, 1], [], []>} : vector<2x32xbf16>, vector<32x32xbf16>, vector<2x32xf32> -> vector<2x32xf32>
    %8 = arith.addf %4, %7 : vector<2x32xf32>
    %c0_6 = arith.constant 0 : index
    %c0_7 = arith.constant 0 : index
    %9 = vector.load %arg7[%c0_6, %c0_7] : memref<2x32xf32, #tpu.memory_space<vmem>>, vector<2x32xf32>
    tpu.vector_store %arg7[%c0_6, %c0_7], %8 {strides = array<i32>} : memref<2x32xf32, #tpu.memory_space<vmem>>, vector<2x32xf32>,
    %c0_i32_8 = arith.constant 0 : i32
    %10 = arith.cmpi eq, %arg2, %c0_i32_8 : i32
    %11 = arith.extui %10 : i1 to i32
    %c0_i32_9 = arith.constant 0 : i32
    %12 = arith.cmpi ne, %11, %c0_i32_9 : i32
    scf.if %12 {
      %c0_10 = arith.constant 0 : index
      %c0_11 = arith.constant 0 : index
      %13 = vector.load %arg7[%c0_10, %c0_11] : memref<2x32xf32, #tpu.memory_space<vmem>>, vector<2x32xf32>
      %c0_12 = arith.constant 0 : index
      %c0_13 = arith.constant 0 : index
      %14 = vector.load %arg5[%c0_12, %c0_13] : memref<1x32xf32, #tpu.memory_space<vmem>>, vector<1x32xf32>
      %15 = vector.broadcast %14 : vector<1x32xf32> to vector<2x32xf32>
      %16 = arith.addf %13, %15 : vector<2x32xf32>
      %17 = arith.mulf %16, %16 : vector<2x32xf32>
      %18 = arith.mulf %16, %17 : vector<2x32xf32>
      %cst_14 = arith.constant 4.471500e-02 : f32
      %19 = vector.broadcast %cst_14 : f32 to vector<2x32xf32>
      %20 = arith.mulf %19, %18 : vector<2x32xf32>
      %21 = arith.addf %16, %20 : vector<2x32xf32>
      %cst_15 = arith.constant 0.797884583 : f32
      %22 = vector.broadcast %cst_15 : f32 to vector<2x32xf32>
      %23 = arith.mulf %22, %21 : vector<2x32xf32>
      %24 = math.tanh %23 : vector<2x32xf32>
      %cst_16 = arith.constant 1.000000e+00 : f32
      %25 = vector.broadcast %cst_16 : f32 to vector<2x32xf32>
      %26 = arith.addf %25, %24 : vector<2x32xf32>
      %cst_17 = arith.constant 5.000000e-01 : f32
      %27 = vector.broadcast %cst_17 : f32 to vector<2x32xf32>
      %28 = arith.mulf %27, %26 : vector<2x32xf32>
      %29 = arith.mulf %16, %28 : vector<2x32xf32>
      %c0_18 = arith.constant 0 : index
      %c0_19 = arith.constant 0 : index
      %30 = vector.load %arg6[%c0_18, %c0_19] : memref<2x32xf32, #tpu.memory_space<vmem>>, vector<2x32xf32>
      tpu.vector_store %arg6[%c0_18, %c0_19], %29 {strides = array<i32>} : memref<2x32xf32, #tpu.memory_space<vmem>>, vector<2x32xf32>,
    } else {
    }
    return
  }
  func.func @transform_0(%arg0: i32, %arg1: i32, %arg2: i32) -> (i32, i32) {
    %c0_i32 = arith.constant 0 : i32
    return %arg0, %arg2 : i32, i32
  }
  func.func @transform_1(%arg0: i32, %arg1: i32, %arg2: i32) -> (i32, i32) {
    %c0_i32 = arith.constant 0 : i32
    return %arg2, %arg1 : i32, i32
  }
  func.func @transform_2(%arg0: i32, %arg1: i32, %arg2: i32) -> (i32, i32) {
    %c0_i32 = arith.constant 0 : i32
    %c0_i32_0 = arith.constant 0 : i32
    return %c0_i32, %arg1 : i32, i32
  }
  func.func @transform_3(%arg0: i32, %arg1: i32, %arg2: i32) -> (i32, i32) {
    %c0_i32 = arith.constant 0 : i32
    return %arg0, %arg1 : i32, i32
  }
}

module attributes {stable_mosaic.version = 11 : i64} {
  func.func @_fused_matmul_kernel(%arg0: i32, %arg1: i32, %arg2: i32, %arg3: memref<2x32xf32, #tpu.memory_space<vmem>>, %arg4: memref<32x8xbf16, #tpu.memory_space<vmem>>, %arg5: memref<1x8xf32, #tpu.memory_space<vmem>>, %arg6: memref<2x8xf32, #tpu.memory_space<vmem>>, %arg7: memref<2x8xf32, #tpu.memory_space<vmem>>) attributes {dimension_semantics = [#tpu.dimension_semantics<parallel>, #tpu.dimension_semantics<parallel>, #tpu.dimension_semantics<arbitrary>], iteration_bounds = array<i64: 1, 1, 1>, scalar_prefetch = 0 : i64, scratch_operands = 1 : i64, tpu.core_type = #tpu.core_type<tc>, window_params = [{transform_indices = @transform_0, window_bounds = array<i64: 2, 32>}, {transform_indices = @transform_1, window_bounds = array<i64: 32, 8>}, {transform_indices = @transform_2, window_bounds = array<i64: 1, 8>}, {transform_indices = @transform_3, window_bounds = array<i64: 2, 8>}]} {
    %c0_i32 = arith.constant 0 : i32
    %0 = arith.cmpi eq, %arg2, %c0_i32 : i32
    %1 = arith.extui %0 : i1 to i32
    %c0_i32_0 = arith.constant 0 : i32
    %2 = arith.cmpi ne, %1, %c0_i32_0 : i32
    scf.if %2 {
      %cst_10 = arith.constant 0.000000e+00 : f32
      %13 = vector.broadcast %cst_10 : f32 to vector<2x8xf32>
      %c0_11 = arith.constant 0 : index
      %c0_12 = arith.constant 0 : index
      %14 = vector.load %arg7[%c0_11, %c0_12] : memref<2x8xf32, #tpu.memory_space<vmem>>, vector<2x8xf32>
      tpu.vector_store %arg7[%c0_11, %c0_12], %13 {strides = array<i32>} : memref<2x8xf32, #tpu.memory_space<vmem>>, vector<2x8xf32>,
    } else {
    }
    %c0 = arith.constant 0 : index
    %c0_1 = arith.constant 0 : index
    %3 = vector.load %arg3[%c0, %c0_1] : memref<2x32xf32, #tpu.memory_space<vmem>>, vector<2x32xf32>
    %c0_2 = arith.constant 0 : index
    %c0_3 = arith.constant 0 : index
    %4 = vector.load %arg7[%c0_2, %c0_3] : memref<2x8xf32, #tpu.memory_space<vmem>>, vector<2x8xf32>
    %5 = arith.truncf %3 : vector<2x32xf32> to vector<2x32xbf16>
    %c0_4 = arith.constant 0 : index
    %c0_5 = arith.constant 0 : index
    %6 = vector.load %arg4[%c0_4, %c0_5] : memref<32x8xbf16, #tpu.memory_space<vmem>>, vector<32x8xbf16>
    %cst = arith.constant dense<0.000000e+00> : vector<2x8xf32>
    %7 = tpu.matmul %5, %6, %cst {dimension_numbers = #tpu.dot_dimension_numbers<[1], [0], [0], [1], [0, 0, 1, 1], [], []>} : vector<2x32xbf16>, vector<32x8xbf16>, vector<2x8xf32> -> vector<2x8xf32>
    %8 = arith.addf %4, %7 : vector<2x8xf32>
    %c0_6 = arith.constant 0 : index
    %c0_7 = arith.constant 0 : index
    %9 = vector.load %arg7[%c0_6, %c0_7] : memref<2x8xf32, #tpu.memory_space<vmem>>, vector<2x8xf32>
    tpu.vector_store %arg7[%c0_6, %c0_7], %8 {strides = array<i32>} : memref<2x8xf32, #tpu.memory_space<vmem>>, vector<2x8xf32>,
    %c0_i32_8 = arith.constant 0 : i32
    %10 = arith.cmpi eq, %arg2, %c0_i32_8 : i32
    %11 = arith.extui %10 : i1 to i32
    %c0_i32_9 = arith.constant 0 : i32
    %12 = arith.cmpi ne, %11, %c0_i32_9 : i32
    scf.if %12 {
      %c0_10 = arith.constant 0 : index
      %c0_11 = arith.constant 0 : index
      %13 = vector.load %arg7[%c0_10, %c0_11] : memref<2x8xf32, #tpu.memory_space<vmem>>, vector<2x8xf32>
      %c0_12 = arith.constant 0 : index
      %c0_13 = arith.constant 0 : index
      %14 = vector.load %arg5[%c0_12, %c0_13] : memref<1x8xf32, #tpu.memory_space<vmem>>, vector<1x8xf32>
      %15 = vector.broadcast %14 : vector<1x8xf32> to vector<2x8xf32>
      %16 = arith.addf %13, %15 : vector<2x8xf32>
      %c0_14 = arith.constant 0 : index
      %c0_15 = arith.constant 0 : index
      %17 = vector.load %arg6[%c0_14, %c0_15] : memref<2x8xf32, #tpu.memory_space<vmem>>, vector<2x8xf32>
      tpu.vector_store %arg6[%c0_14, %c0_15], %16 {strides = array<i32>} : memref<2x8xf32, #tpu.memory_space<vmem>>, vector<2x8xf32>,
    } else {
    }
    return
  }
  func.func @transform_0(%arg0: i32, %arg1: i32, %arg2: i32) -> (i32, i32) {
    %c0_i32 = arith.constant 0 : i32
    return %arg0, %arg2 : i32, i32
  }
  func.func @transform_1(%arg0: i32, %arg1: i32, %arg2: i32) -> (i32, i32) {
    %c0_i32 = arith.constant 0 : i32
    return %arg2, %arg1 : i32, i32
  }
  func.func @transform_2(%arg0: i32, %arg1: i32, %arg2: i32) -> (i32, i32) {
    %c0_i32 = arith.constant 0 : i32
    %c0_i32_0 = arith.constant 0 : i32
    return %c0_i32, %arg1 : i32, i32
  }
  func.func @transform_3(%arg0: i32, %arg1: i32, %arg2: i32) -> (i32, i32) {
    %c0_i32 = arith.constant 0 : i32
    return %arg0, %arg1 : i32, i32
  }
}

module attributes {stable_mosaic.version = 11 : i64} {
  func.func @_fused_matmul_kernel(%arg0: i32, %arg1: i32, %arg2: i32, %arg3: memref<128x16xf32, #tpu.memory_space<vmem>>, %arg4: memref<16x32xbf16, #tpu.memory_space<vmem>>, %arg5: memref<1x32xf32, #tpu.memory_space<vmem>>, %arg6: memref<1x16xf32, #tpu.memory_space<vmem>>, %arg7: memref<1x16xf32, #tpu.memory_space<vmem>>, %arg8: memref<128x32xf32, #tpu.memory_space<vmem>>, %arg9: memref<128x32xf32, #tpu.memory_space<vmem>>) attributes {dimension_semantics = [#tpu.dimension_semantics<parallel>, #tpu.dimension_semantics<parallel>, #tpu.dimension_semantics<arbitrary>], iteration_bounds = array<i64: 1, 1, 1>, scalar_prefetch = 0 : i64, scratch_operands = 1 : i64, tpu.core_type = #tpu.core_type<tc>, window_params = [{transform_indices = @transform_0, window_bounds = array<i64: 128, 16>}, {transform_indices = @transform_1, window_bounds = array<i64: 16, 32>}, {transform_indices = @transform_2, window_bounds = array<i64: 1, 32>}, {pipeline_mode = #tpu.pipeline_mode<synchronous>, transform_indices = @transform_3, window_bounds = array<i64: 1, 16>}, {pipeline_mode = #tpu.pipeline_mode<synchronous>, transform_indices = @transform_4, window_bounds = array<i64: 1, 16>}, {transform_indices = @transform_5, window_bounds = array<i64: 128, 32>}]} {
    %c0_i32 = arith.constant 0 : i32
    %0 = arith.cmpi eq, %arg2, %c0_i32 : i32
    %1 = arith.extui %0 : i1 to i32
    %c0_i32_0 = arith.constant 0 : i32
    %2 = arith.cmpi ne, %1, %c0_i32_0 : i32
    scf.if %2 {
      %cst_23 = arith.constant 0.000000e+00 : f32
      %50 = vector.broadcast %cst_23 : f32 to vector<128x32xf32>
      %c0_24 = arith.constant 0 : index
      %c0_25 = arith.constant 0 : index
      %51 = vector.load %arg9[%c0_24, %c0_25] : memref<128x32xf32, #tpu.memory_space<vmem>>, vector<128x32xf32>
      tpu.vector_store %arg9[%c0_24, %c0_25], %50 {strides = array<i32>} : memref<128x32xf32, #tpu.memory_space<vmem>>, vector<128x32xf32>,
    } else {
    }
    %c0 = arith.constant 0 : index
    %c0_1 = arith.constant 0 : index
    %3 = vector.load %arg3[%c0, %c0_1] : memref<128x16xf32, #tpu.memory_space<vmem>>, vector<128x16xf32>
    %cst = arith.constant dense<0.000000e+00> : vector<128xf32>
    %4 = vector.multi_reduction <add>, %3, %cst [1] : vector<128x16xf32> to vector<128xf32>
    %5 = vector.shape_cast %4 : vector<128xf32> to vector<128x1xf32>
    %cst_2 = arith.constant 1.600000e+01 : f32
    %6 = vector.broadcast %cst_2 : f32 to vector<128x1xf32>
    %7 = arith.divf %5, %6 : vector<128x1xf32>
    %8 = vector.broadcast %7 : vector<128x1xf32> to vector<128x16xf32>
    %9 = arith.subf %3, %8 : vector<128x16xf32>
    %10 = arith.mulf %9, %9 : vector<128x16xf32>
    %cst_3 = arith.constant dense<0.000000e+00> : vector<128xf32>
    %11 = vector.multi_reduction <add>, %10, %cst_3 [1] : vector<128x16xf32> to vector<128xf32>
    %12 = vector.shape_cast %11 : vector<128xf32> to vector<128x1xf32>
    %cst_4 = arith.constant 1.600000e+01 : f32
    %13 = vector.broadcast %cst_4 : f32 to vector<128x1xf32>
    %14 = arith.divf %12, %13 : vector<128x1xf32>
    %15 = vector.broadcast %7 : vector<128x1xf32> to vector<128x16xf32>
    %16 = arith.subf %3, %15 : vector<128x16xf32>
    %cst_5 = arith.constant 9.99999974E-6 : f32
    %17 = vector.broadcast %cst_5 : f32 to vector<128x1xf32>
    %18 = arith.addf %14, %17 : vector<128x1xf32>
    %19 = math.rsqrt %18 : vector<128x1xf32>
    %20 = vector.broadcast %19 : vector<128x1xf32> to vector<128x16xf32>
    %21 = arith.mulf %16, %20 : vector<128x16xf32>
    %c0_6 = arith.constant 0 : index
    %c0_7 = arith.constant 0 : index
    %22 = vector.load %arg6[%c0_6, %c0_7] : memref<1x16xf32, #tpu.memory_space<vmem>>, vector<1x16xf32>
    %23 = vector.broadcast %22 : vector<1x16xf32> to vector<128x16xf32>
    %24 = arith.mulf %21, %23 : vector<128x16xf32>
    %c0_8 = arith.constant 0 : index
    %c0_9 = arith.constant 0 : index
    %25 = vector.load %arg7[%c0_8, %c0_9] : memref<1x16xf32, #tpu.memory_space<vmem>>, vector<1x16xf32>
    %26 = vector.broadcast %25 : vector<1x16xf32> to vector<128x16xf32>
    %27 = arith.addf %24, %26 : vector<128x16xf32>
    %28 = arith.mulf %27, %27 : vector<128x16xf32>
    %29 = arith.mulf %27, %28 : vector<128x16xf32>
    %cst_10 = arith.constant 4.471500e-02 : f32
    %30 = vector.broadcast %cst_10 : f32 to vector<128x16xf32>
    %31 = arith.mulf %30, %29 : vector<128x16xf32>
    %32 = arith.addf %27, %31 : vector<128x16xf32>
    %cst_11 = arith.constant 0.797884583 : f32
    %33 = vector.broadcast %cst_11 : f32 to vector<128x16xf32>
    %34 = arith.mulf %33, %32 : vector<128x16xf32>
    %35 = math.tanh %34 : vector<128x16xf32>
    %cst_12 = arith.constant 1.000000e+00 : f32
    %36 = vector.broadcast %cst_12 : f32 to vector<128x16xf32>
    %37 = arith.addf %36, %35 : vector<128x16xf32>
    %cst_13 = arith.constant 5.000000e-01 : f32
    %38 = vector.broadcast %cst_13 : f32 to vector<128x16xf32>
    %39 = arith.mulf %38, %37 : vector<128x16xf32>
    %40 = arith.mulf %27, %39 : vector<128x16xf32>
    %c0_14 = arith.constant 0 : index
    %c0_15 = arith.constant 0 : index
    %41 = vector.load %arg9[%c0_14, %c0_15] : memref<128x32xf32, #tpu.memory_space<vmem>>, vector<128x32xf32>
    %42 = arith.truncf %40 : vector<128x16xf32> to vector<128x16xbf16>
    %c0_16 = arith.constant 0 : index
    %c0_17 = arith.constant 0 : index
    %43 = vector.load %arg4[%c0_16, %c0_17] : memref<16x32xbf16, #tpu.memory_space<vmem>>, vector<16x32xbf16>
    %cst_18 = arith.constant dense<0.000000e+00> : vector<128x32xf32>
    %44 = tpu.matmul %42, %43, %cst_18 {dimension_numbers = #tpu.dot_dimension_numbers<[1], [0], [0], [1], [0, 0, 1, 1], [], []>} : vector<128x16xbf16>, vector<16x32xbf16>, vector<128x32xf32> -> vector<128x32xf32>
    %45 = arith.addf %41, %44 : vector<128x32xf32>
    %c0_19 = arith.constant 0 : index
    %c0_20 = arith.constant 0 : index
    %46 = vector.load %arg9[%c0_19, %c0_20] : memref<128x32xf32, #tpu.memory_space<vmem>>, vector<128x32xf32>
    tpu.vector_store %arg9[%c0_19, %c0_20], %45 {strides = array<i32>} : memref<128x32xf32, #tpu.memory_space<vmem>>, vector<128x32xf32>,
    %c0_i32_21 = arith.constant 0 : i32
    %47 = arith.cmpi eq, %arg2, %c0_i32_21 : i32
    %48 = arith.extui %47 : i1 to i32
    %c0_i32_22 = arith.constant 0 : i32
    %49 = arith.cmpi ne, %48, %c0_i32_22 : i32
    scf.if %49 {
      %c0_23 = arith.constant 0 : index
      %c0_24 = arith.constant 0 : index
      %50 = vector.load %arg9[%c0_23, %c0_24] : memref<128x32xf32, #tpu.memory_space<vmem>>, vector<128x32xf32>
      %c0_25 = arith.constant 0 : index
      %c0_26 = arith.constant 0 : index
      %51 = vector.load %arg5[%c0_25, %c0_26] : memref<1x32xf32, #tpu.memory_space<vmem>>, vector<1x32xf32>
      %52 = vector.broadcast %51 : vector<1x32xf32> to vector<128x32xf32>
      %53 = arith.addf %50, %52 : vector<128x32xf32>
      %54 = arith.mulf %53, %53 : vector<128x32xf32>
      %55 = arith.mulf %53, %54 : vector<128x32xf32>
      %cst_27 = arith.constant 4.471500e-02 : f32
      %56 = vector.broadcast %cst_27 : f32 to vector<128x32xf32>
      %57 = arith.mulf %56, %55 : vector<128x32xf32>
      %58 = arith.addf %53, %57 : vector<128x32xf32>
      %cst_28 = arith.constant 0.797884583 : f32
      %59 = vector.broadcast %cst_28 : f32 to vector<128x32xf32>
      %60 = arith.mulf %59, %58 : vector<128x32xf32>
      %61 = math.tanh %60 : vector<128x32xf32>
      %cst_29 = arith.constant 1.000000e+00 : f32
      %62 = vector.broadcast %cst_29 : f32 to vector<128x32xf32>
      %63 = arith.addf %62, %61 : vector<128x32xf32>
      %cst_30 = arith.constant 5.000000e-01 : f32
      %64 = vector.broadcast %cst_30 : f32 to vector<128x32xf32>
      %65 = arith.mulf %64, %63 : vector<128x32xf32>
      %66 = arith.mulf %53, %65 : vector<128x32xf32>
      %c0_31 = arith.constant 0 : index
      %c0_32 = arith.constant 0 : index
      %67 = vector.load %arg8[%c0_31, %c0_32] : memref<128x32xf32, #tpu.memory_space<vmem>>, vector<128x32xf32>
      tpu.vector_store %arg8[%c0_31, %c0_32], %66 {strides = array<i32>} : memref<128x32xf32, #tpu.memory_space<vmem>>, vector<128x32xf32>,
    } else {
    }
    return
  }
  func.func @transform_0(%arg0: i32, %arg1: i32, %arg2: i32) -> (i32, i32) {
    %c0_i32 = arith.constant 0 : i32
    return %arg0, %arg2 : i32, i32
  }
  func.func @transform_1(%arg0: i32, %arg1: i32, %arg2: i32) -> (i32, i32) {
    %c0_i32 = arith.constant 0 : i32
    return %arg2, %arg1 : i32, i32
  }
  func.func @transform_2(%arg0: i32, %arg1: i32, %arg2: i32) -> (i32, i32) {
    %c0_i32 = arith.constant 0 : i32
    %c0_i32_0 = arith.constant 0 : i32
    return %c0_i32, %arg1 : i32, i32
  }
  func.func @transform_3(%arg0: i32, %arg1: i32, %arg2: i32) -> (i32, i32) {
    %c0_i32 = arith.constant 0 : i32
    %c0_i32_0 = arith.constant 0 : i32
    %c0_i32_1 = arith.constant 0 : i32
    return %c0_i32, %c0_i32_0 : i32, i32
  }
  func.func @transform_4(%arg0: i32, %arg1: i32, %arg2: i32) -> (i32, i32) {
    %c0_i32 = arith.constant 0 : i32
    %c0_i32_0 = arith.constant 0 : i32
    %c0_i32_1 = arith.constant 0 : i32
    return %c0_i32, %c0_i32_0 : i32, i32
  }
  func.func @transform_5(%arg0: i32, %arg1: i32, %arg2: i32) -> (i32, i32) {
    %c0_i32 = arith.constant 0 : i32
    return %arg0, %arg1 : i32, i32
  }
}

module attributes {stable_mosaic.version = 11 : i64} {
  func.func @_maskdot_kernel(%arg0: i32, %arg1: memref<1x1x8xf32, #tpu.memory_space<vmem>>, %arg2: memref<1x256x8xf32, #tpu.memory_space<vmem>>, %arg3: memref<1x1x256xf32, #tpu.memory_space<vmem>>) attributes {dimension_semantics = [#tpu.dimension_semantics<parallel>], iteration_bounds = array<i64: 2>, scalar_prefetch = 0 : i64, scratch_operands = 0 : i64, tpu.core_type = #tpu.core_type<tc>, window_params = [{transform_indices = @transform_0, window_bounds = array<i64: 1, 1, 8>}, {transform_indices = @transform_1, window_bounds = array<i64: 1, 256, 8>}, {transform_indices = @transform_2, window_bounds = array<i64: 1, 1, 256>}]} {
    %c0 = arith.constant 0 : index
    %c0_0 = arith.constant 0 : index
    %c0_1 = arith.constant 0 : index
    %0 = vector.load %arg1[%c0, %c0_0, %c0_1] : memref<1x1x8xf32, #tpu.memory_space<vmem>>, vector<1x1x8xf32>
    %1 = vector.shape_cast %0 : vector<1x1x8xf32> to vector<1x8xf32>
    %2 = arith.truncf %1 : vector<1x8xf32> to vector<1x8xbf16>
    %c0_2 = arith.constant 0 : index
    %c0_3 = arith.constant 0 : index
    %c0_4 = arith.constant 0 : index
    %3 = vector.load %arg2[%c0_2, %c0_3, %c0_4] : memref<1x256x8xf32, #tpu.memory_space<vmem>>, vector<1x256x8xf32>
    %4 = vector.shape_cast %3 : vector<1x256x8xf32> to vector<256x8xf32>
    %5 = arith.truncf %4 : vector<256x8xf32> to vector<256x8xbf16>
    %cst = arith.constant dense<0.000000e+00> : vector<1x256xf32>
    %6 = tpu.matmul %2, %5, %cst {dimension_numbers = #tpu.dot_dimension_numbers<[1], [1], [0], [0], [0, 0, 1, 0], [], []>} : vector<1x8xbf16>, vector<256x8xbf16>, vector<1x256xf32> -> vector<1x256xf32>
    %c0_5 = arith.constant 0 : index
    %c0_6 = arith.constant 0 : index
    %c0_7 = arith.constant 0 : index
    %7 = vector.load %arg3[%c0_5, %c0_6, %c0_7] : memref<1x1x256xf32, #tpu.memory_space<vmem>>, vector<1x1x256xf32>
    %8 = vector.shape_cast %7 : vector<1x1x256xf32> to vector<1x256xf32>
    %9 = vector.shape_cast %6 : vector<1x256xf32> to vector<1x1x256xf32>
    tpu.vector_store %arg3[%c0_5, %c0_6, %c0_7], %9 {strides = array<i32>} : memref<1x1x256xf32, #tpu.memory_space<vmem>>, vector<1x1x256xf32>,
    return
  }
  func.func @transform_0(%arg0: i32) -> (i32, i32, i32) {
    %c0_i32 = arith.constant 0 : i32
    %c0_i32_0 = arith.constant 0 : i32
    %c0_i32_1 = arith.constant 0 : i32
    return %arg0, %c0_i32, %c0_i32_0 : i32, i32, i32
  }
  func.func @transform_1(%arg0: i32) -> (i32, i32, i32) {
    %c0_i32 = arith.constant 0 : i32
    %c0_i32_0 = arith.constant 0 : i32
    %c0_i32_1 = arith.constant 0 : i32
    return %arg0, %c0_i32, %c0_i32_0 : i32, i32, i32
  }
  func.func @transform_2(%arg0: i32) -> (i32, i32, i32) {
    %c0_i32 = arith.constant 0 : i32
    %c0_i32_0 = arith.constant 0 : i32
    %c0_i32_1 = arith.constant 0 : i32
    return %arg0, %c0_i32, %c0_i32_0 : i32, i32, i32
  }
}

</mosaic_0001>

<llo_original>
// kernel: _lambda_.49
$region0: #{_lambda_.49}
  #allocation0 [shape = 'u32[]', space=smem, size = 0x4, offset = 0x4, fixed_abs, tag = 'smem constant byte address 0x4 - core index']
  #allocation1 [shape = 'u32[72,128]{1,0:T(1,128)}', space=vmem, size = 0x9000, scoped, tag = 'internal scratch']
  #allocation2 [shape = 'f32[32,32]{1,0:T(8,128)}', space=vmem, size = 0x4000, scoped, tag = 'scratch operand']
  %s0 = inlined_call_operand.vmem [shape: f32[32,48], index: 0, kind: input, shape index: {}]
  %s1 = inlined_call_operand.vmem [shape: bf16[48,32], index: 1, kind: input, shape index: {}]
  %s2 = inlined_call_operand.vmem [shape: f32[1,32], index: 2, kind: input, shape index: {}]
  %s3 = inlined_call_operand.vmem [shape: f32[32,32], index: 3, kind: output, shape index: {}]
  %s4 = sld [smem:[#allocation0]]
  $region30: #{_lambda_.49} parent=0
    _
  %s6 = ssub.s32 1, %s4
  %s7 = scalar_select 0, %s6, %s4
  // Predicated region
  $region2: #{_lambda_.49} parent=0 // pred_check
    _
  $region3: #{_lambda_.49} parent=0 // pred_check_branch
    %9 = sbr.rel (0) target = $region5
  $region4: #{_lambda_.49} parent=0 // pred_region
    _
  $region5: #{_lambda_.49} parent=0 // pred_fallthru
    _
  // Predicated region
  $region6: #{_lambda_.49} parent=0 // pred_check
    _
  $region7: #{_lambda_.49} parent=0 // pred_check_branch
    %11 = sbr.rel (0) target = $region9
  $region8: #{_lambda_.49} parent=0 // pred_region
    _
  $region9: #{_lambda_.49} parent=0 // pred_fallthru
    _
  // Predicated region
  $region10: #{_lambda_.49} parent=0 // pred_check
    _
  $region11: #{_lambda_.49} parent=0 // pred_check_branch
    %13 = sbr.rel (0) target = $region13
  $region12: #{_lambda_.49} parent=0 // pred_region
    _
  $region13: #{_lambda_.49} parent=0 // pred_fallthru
    _
  %p15 = scmp.eq.s32.totalorder 0, 0
  // Predicated region
  $region14: #{_lambda_.49} parent=0 // pred_check
    %p16 = pneg %p15
  $region15: #{_lambda_.49} parent=0 // pred_check_branch
    %18 = sbr.rel (%p16) target = $region17
  $region16: #{_lambda_.49} parent=0 // pred_region
    %vm19 = vcmask 261120
    %20 = vst.msk [vmem:[#allocation2] sm:$0xff] %vm19, 0.0
    %21 = vst.msk [vmem:[#allocation2 + $0x8] sm:$0xff] %vm19, 0.0
    %22 = vst.msk [vmem:[#allocation2 + $0x10] sm:$0xff] %vm19, 0.0
    %23 = vst.msk [vmem:[#allocation2 + $0x18] sm:$0xff] %vm19, 0.0
  $region17: #{_lambda_.49} parent=0 // pred_fallthru
    _
  %v24 = vld [vmem:[%s0] sm:$0xff]
  %v25 = vld [vmem:[%s0 + $0x8] sm:$0xff]
  %v26 = vld [vmem:[%s0 + $0x10] sm:$0xff]
  %v27 = vld [vmem:[%s0 + $0x18] sm:$0xff]
  %v28 = vld [vmem:[#allocation2] sm:$0xff]
  %v29 = vld [vmem:[#allocation2 + $0x8] sm:$0xff]
  %v30 = vld [vmem:[#allocation2 + $0x10] sm:$0xff]
  %v31 = vld [vmem:[#allocation2 + $0x18] sm:$0xff]
  %v32 = vpack.c.bf16 %v25, %v24
  %v33 = vpack.c.bf16 %v27, %v26
  %v34 = vld [vmem:[%s1] sm:$0xf]
  %v35 = vld [vmem:[%s1 + $0x4] sm:$0xf]
  %v36 = vld [vmem:[%s1 + $0x8] sm:$0xf]
  %v37 = vld [vmem:[%s1 + $0xc] sm:$0xf]
  %v38 = vld [vmem:[%s1 + $0x10] sm:$0xf]
  %v39 = vld [vmem:[%s1 + $0x14] sm:$0xf]
  %v46 = vunpack.c.l.b16 %v34
  %v47 = vunpack.c.l.b16 %v35
  %v48 = vunpack.c.l.b16 %v36
  %v49 = vunpack.c.l.b16 %v37
  %v50 = vunpack.c.l.b16 %v38
  %v51 = vunpack.c.l.b16 %v39
  %v52 = vpack.c.b16 %v47, %v46
  %v53 = vpack.c.b16 %v49, %v48
  %v54 = vpack.c.b16 %v51, %v50
  %vm58 = vcmask 392192
  %v60 = vsel %vm58, %v32, 0
  %v63 = vsel %vm58, %v33, 0
  %65 = vmatpush.bf16.msra.mxu0 0
  %66 = vmatpush.bf16.msra.mxu0 0
  %67 = vmatpush.bf16.msra.mxu0 0
  %68 = vmatpush.bf16.msra.mxu0 0
  %69 = vmatpush.bf16.msra.mxu0 0
  %70 = vmatpush.bf16.msra.mxu0 %v54
  %71 = vmatpush.bf16.msra.mxu0 %v53
  %72 = vmatpush.bf16.msra.mxu0 %v52
  %73 = vmatmul.bf16.gmra.mxu0 %v60
  %v74 = vpop.f32.mrf.mxu0
  %v75 = vadd.f32 0.0, %v74
  %v76 = vpop.f32.mrf.mxu0
  %v77 = vadd.f32 0.0, %v76
  %78 = vmatmul.bf16.gmra.mxu0 %v63
  %v79 = vpop.f32.mrf.mxu0
  %v80 = vadd.f32 0.0, %v79
  %v81 = vpop.f32.mrf.mxu0
  %v82 = vadd.f32 0.0, %v81
  %83 = vdwg.mxu0
  %v84 = vadd.f32 %v28, %v75
  %v85 = vadd.f32 %v29, %v77
  %v86 = vadd.f32 %v30, %v80
  %v87 = vadd.f32 %v31, %v82
  %vm88 = vcmask 261120
  %89 = vst.msk [vmem:[#allocation2] sm:$0xff] %vm88, %v84
  %90 = vst.msk [vmem:[#allocation2 + $0x8] sm:$0xff] %vm88, %v85
  %91 = vst.msk [vmem:[#allocation2 + $0x10] sm:$0xff] %vm88, %v86
  %92 = vst.msk [vmem:[#allocation2 + $0x18] sm:$0xff] %vm88, %v87
  // Predicated region
  $region18: #{_lambda_.49} parent=0 // pred_check
    %p93 = pneg %p15
  $region19: #{_lambda_.49} parent=0 // pred_check_branch
    %95 = sbr.rel (%p93) target = $region21
  $region20: #{_lambda_.49} parent=0 // pred_region
    %v96 = vld [vmem:[#allocation2] sm:$0xff]
    %v97 = vld [vmem:[#allocation2 + $0x8] sm:$0xff]
    %v98 = vld [vmem:[#allocation2 + $0x10] sm:$0xff]
    %v99 = vld [vmem:[#allocation2 + $0x18] sm:$0xff]
    %v100 = vld [vmem:[%s2] sm:$0x1]
    %v102 = vperm.slane %v100, 0
    %v104 = vadd.f32 %v96, %v102
    %v105 = vadd.f32 %v97, %v102
    %v106 = vadd.f32 %v98, %v102
    %v107 = vadd.f32 %v99, %v102
    %108 = vst.msk [vmem:[%s3] sm:$0xff] %vm88, %v104
    %109 = vst.msk [vmem:[%s3 + $0x8] sm:$0xff] %vm88, %v105
    %110 = vst.msk [vmem:[%s3 + $0x10] sm:$0xff] %vm88, %v106
    %111 = vst.msk [vmem:[%s3 + $0x18] sm:$0xff] %vm88, %v107
  $region21: #{_lambda_.49} parent=0 // pred_fallthru
    _
  // Predicated region
  $region22: #{_lambda_.49} parent=0 // pred_check
    _
  $region23: #{_lambda_.49} parent=0 // pred_check_branch
    %113 = sbr.rel (0) target = $region25
  $region24: #{_lambda_.49} parent=0 // pred_region
    _
  $region25: #{_lambda_.49} parent=0 // pred_fallthru
    _
  // Predicated region
  $region26: #{_lambda_.49} parent=0 // pred_check
    _
  $region27: #{_lambda_.49} parent=0 // pred_check_branch
    %115 = sbr.rel (0) target = $region29
  $region28: #{_lambda_.49} parent=0 // pred_region
    _
  $region29: #{_lambda_.49} parent=0 // pred_fallthru
    _

// kernel: _lambda_.51
$region0: #{_lambda_.51}
  #allocation0 [shape = 'u32[]', space=smem, size = 0x4, offset = 0x4, fixed_abs, tag = 'smem constant byte address 0x4 - core index']
  #allocation1 [shape = 'u32[72,128]{1,0:T(1,128)}', space=vmem, size = 0x9000, scoped, tag = 'internal scratch']
  #allocation2 [shape = 'f32[34,96]{1,0:T(8,128)}', space=vmem, size = 0x5000, scoped, tag = 'scratch operand']
  %s0 = inlined_call_operand.vmem [shape: f32[34,32], index: 0, kind: input, shape index: {}]
  %s1 = inlined_call_operand.vmem [shape: bf16[32,96], index: 1, kind: input, shape index: {}]
  %s2 = inlined_call_operand.vmem [shape: f32[1,96], index: 2, kind: input, shape index: {}]
  %s3 = inlined_call_operand.vmem [shape: f32[1,32], index: 3, kind: input, shape index: {}]
  %s4 = inlined_call_operand.vmem [shape: f32[1,32], index: 4, kind: input, shape index: {}]
  %s5 = inlined_call_operand.vmem [shape: f32[34,96], index: 5, kind: output, shape index: {}]
  %s6 = sld [smem:[#allocation0]]
  $region38: #{_lambda_.51} parent=0
    _
  %s8 = ssub.s32 1, %s6
  %s9 = scalar_select 0, %s8, %s6
  // Predicated region
  $region2: #{_lambda_.51} parent=0 // pred_check
    _
  $region3: #{_lambda_.51} parent=0 // pred_check_branch
    %11 = sbr.rel (0) target = $region5
  $region4: #{_lambda_.51} parent=0 // pred_region
    _
  $region5: #{_lambda_.51} parent=0 // pred_fallthru
    _
  // Predicated region
  $region6: #{_lambda_.51} parent=0 // pred_check
    _
  $region7: #{_lambda_.51} parent=0 // pred_check_branch
    %13 = sbr.rel (0) target = $region9
  $region8: #{_lambda_.51} parent=0 // pred_region
    _
  $region9: #{_lambda_.51} parent=0 // pred_fallthru
    _
  // Predicated region
  $region10: #{_lambda_.51} parent=0 // pred_check
    _
  $region11: #{_lambda_.51} parent=0 // pred_check_branch
    %15 = sbr.rel (0) target = $region13
  $region12: #{_lambda_.51} parent=0 // pred_region
    _
  $region13: #{_lambda_.51} parent=0 // pred_fallthru
    _
  // Predicated region
  $region14: #{_lambda_.51} parent=0 // pred_check
    _
  $region15: #{_lambda_.51} parent=0 // pred_check_branch
    %17 = sbr.rel (0) target = $region17
  $region16: #{_lambda_.51} parent=0 // pred_region
    _
  $region17: #{_lambda_.51} parent=0 // pred_fallthru
    _
  // Predicated region
  $region18: #{_lambda_.51} parent=0 // pred_check
    _
  $region19: #{_lambda_.51} parent=0 // pred_check_branch
    %19 = sbr.rel (0) target = $region21
  $region20: #{_lambda_.51} parent=0 // pred_region
    _
  $region21: #{_lambda_.51} parent=0 // pred_fallthru
    _
  %p21 = scmp.eq.s32.totalorder 0, 0
  // Predicated region
  $region22: #{_lambda_.51} parent=0 // pred_check
    %p22 = pneg %p21
  $region23: #{_lambda_.51} parent=0 // pred_check_branch
    %24 = sbr.rel (%p22) target = $region25
  $region24: #{_lambda_.51} parent=0 // pred_region
    %vm25 = vcmask 785408
    %26 = vst.msk [vmem:[#allocation2] sm:$0xff] %vm25, 0.0
    %27 = vst.msk [vmem:[#allocation2 + $0x8] sm:$0xff] %vm25, 0.0
    %28 = vst.msk [vmem:[#allocation2 + $0x10] sm:$0xff] %vm25, 0.0
    %29 = vst.msk [vmem:[#allocation2 + $0x18] sm:$0xff] %vm25, 0.0
    %vm30 = vcmask 779264
    %31 = vst.msk [vmem:[#allocation2 + $0x20] sm:$0x3] %vm30, 0.0
  $region25: #{_lambda_.51} parent=0 // pred_fallthru
    _
  %v32 = vld [vmem:[%s0] sm:$0xff]
  %v33 = vld [vmem:[%s0 + $0x8] sm:$0xff]
  %v34 = vld [vmem:[%s0 + $0x10] sm:$0xff]
  %v35 = vld [vmem:[%s0 + $0x18] sm:$0xff]
  %v36 = vld [vmem:[%s0 + $0x20] sm:$0x3]
  %vm37 = vcmask 261120
  %v38 = vsel %vm37, %v32, 0.0
  %39 = vadd.xlane.f32.xlu0 %v38
  %v40 = vpop.xlane.xlu0 %39
  %v41 = vsel %vm37, %v33, 0.0
  %42 = vadd.xlane.f32.xlu0 %v41
  %v43 = vpop.xlane.xlu0 %42
  %v44 = vsel %vm37, %v34, 0.0
  %45 = vadd.xlane.f32.xlu0 %v44
  %v46 = vpop.xlane.xlu0 %45
  %v47 = vsel %vm37, %v35, 0.0
  %48 = vadd.xlane.f32.xlu0 %v47
  %v49 = vpop.xlane.xlu0 %48
  %vm50 = vcmask 254976
  %v51 = vsel %vm50, %v36, 0.0
  %52 = vadd.xlane.f32.xlu0 %v51
  %v53 = vpop.xlane.xlu0 %52
  %v54 = vrcp.pop 32.0
  %v55 = vmul.f32 32.0, %v54
  %v56 = vsub.f32 1.0, %v55
  %v57 = vmul.f32 %v54, %v56
  %v58 = vadd.f32 %v54, %v57
  %vm59 = vweird.f32 %v54
  %v60 = vsel %vm59, %v54, %v58
  %v61 = vmul.f32 %v40, %v60
  %v62 = vmul.f32 %v43, %v60
  %v63 = vmul.f32 %v46, %v60
  %v64 = vmul.f32 %v49, %v60
  %v65 = vmul.f32 %v53, %v60
  %v66 = vsub.f32 %v32, %v61
  %v67 = vsub.f32 %v33, %v62
  %v68 = vsub.f32 %v34, %v63
  %v69 = vsub.f32 %v35, %v64
  %v70 = vsub.f32 %v36, %v65
  %v71 = vmul.f32 %v66, %v66
  %v72 = vmul.f32 %v67, %v67
  %v73 = vmul.f32 %v68, %v68
  %v74 = vmul.f32 %v69, %v69
  %v75 = vmul.f32 %v70, %v70
  %v76 = vsel %vm37, %v71, 0.0
  %77 = vadd.xlane.f32.xlu0 %v76
  %v78 = vpop.xlane.xlu0 %77
  %v79 = vsel %vm37, %v72, 0.0
  %80 = vadd.xlane.f32.xlu0 %v79
  %v81 = vpop.xlane.xlu0 %80
  %v82 = vsel %vm37, %v73, 0.0
  %83 = vadd.xlane.f32.xlu0 %v82
  %v84 = vpop.xlane.xlu0 %83
  %v85 = vsel %vm37, %v74, 0.0
  %86 = vadd.xlane.f32.xlu0 %v85
  %v87 = vpop.xlane.xlu0 %86
  %v88 = vsel %vm50, %v75, 0.0
  %89 = vadd.xlane.f32.xlu0 %v88
  %v90 = vpop.xlane.xlu0 %89
  %v91 = vmul.f32 %v78, %v60
  %v92 = vmul.f32 %v81, %v60
  %v93 = vmul.f32 %v84, %v60
  %v94 = vmul.f32 %v87, %v60
  %v95 = vmul.f32 %v90, %v60
  %v96 = vadd.f32 %v91, 1e-05
  %v97 = vadd.f32 %v92, 1e-05
  %v98 = vadd.f32 %v93, 1e-05
  %v99 = vadd.f32 %v94, 1e-05
  %v100 = vadd.f32 %v95, 1e-05
  %v101 = vrsqrt.pop %v96
  %v102 = vmul.f32 %v101, %v96
  %v103 = vmul.f32 %v102, %v101
  %v104 = vmul.f32 0.5, %v103
  %v105 = vsub.f32 1.5, %v104
  %v106 = vmul.f32 %v101, %v105
  %vm107 = vweird.f32 %v96
  %vm108 = vweird.f32 %v101
  %vm109 = vmor %vm107, %vm108
  %v110 = vsel %vm109, %v101, %v106
  %v111 = vrsqrt.pop %v97
  %v112 = vmul.f32 %v111, %v97
  %v113 = vmul.f32 %v112, %v111
  %v114 = vmul.f32 0.5, %v113
  %v115 = vsub.f32 1.5, %v114
  %v116 = vmul.f32 %v111, %v115
  %vm117 = vweird.f32 %v97
  %vm118 = vweird.f32 %v111
  %vm119 = vmor %vm117, %vm118
  %v120 = vsel %vm119, %v111, %v116
  %v121 = vrsqrt.pop %v98
  %v122 = vmul.f32 %v121, %v98
  %v123 = vmul.f32 %v122, %v121
  %v124 = vmul.f32 0.5, %v123
  %v125 = vsub.f32 1.5, %v124
  %v126 = vmul.f32 %v121, %v125
  %vm127 = vweird.f32 %v98
  %vm128 = vweird.f32 %v121
  %vm129 = vmor %vm127, %vm128
  %v130 = vsel %vm129, %v121, %v126
  %v131 = vrsqrt.pop %v99
  %v132 = vmul.f32 %v131, %v99
  %v133 = vmul.f32 %v132, %v131
  %v134 = vmul.f32 0.5, %v133
  %v135 = vsub.f32 1.5, %v134
  %v136 = vmul.f32 %v131, %v135
  %vm137 = vweird.f32 %v99
  %vm138 = vweird.f32 %v131
  %vm139 = vmor %vm137, %vm138
  %v140 = vsel %vm139, %v131, %v136
  %v141 = vrsqrt.pop %v100
  %v142 = vmul.f32 %v141, %v100
  %v143 = vmul.f32 %v142, %v141
  %v144 = vmul.f32 0.5, %v143
  %v145 = vsub.f32 1.5, %v144
  %v146 = vmul.f32 %v141, %v145
  %vm147 = vweird.f32 %v100
  %vm148 = vweird.f32 %v141
  %vm149 = vmor %vm147, %vm148
  %v150 = vsel %vm149, %v141, %v146
  %v151 = vmul.f32 %v66, %v110
  %v152 = vmul.f32 %v67, %v120
  %v153 = vmul.f32 %v68, %v130
  %v154 = vmul.f32 %v69, %v140
  %v155 = vmul.f32 %v70, %v150
  %v156 = vld [vmem:[%s3] sm:$0x1]
  %v158 = vperm.slane %v156, 0
  %v160 = vmul.f32 %v151, %v158
  %v161 = vmul.f32 %v152, %v158
  %v162 = vmul.f32 %v153, %v158
  %v163 = vmul.f32 %v154, %v158
  %v164 = vmul.f32 %v155, %v158
  %v165 = vld [vmem:[%s4] sm:$0x1]
  %v167 = vperm.slane %v165, 0
  %v169 = vadd.f32 %v160, %v167
  %v170 = vadd.f32 %v161, %v167
  %v171 = vadd.f32 %v162, %v167
  %v172 = vadd.f32 %v163, %v167
  %v173 = vadd.f32 %v164, %v167
  %v174 = vld [vmem:[#allocation2] sm:$0xff]
  %v175 = vld [vmem:[#allocation2 + $0x8] sm:$0xff]
  %v176 = vld [vmem:[#allocation2 + $0x10] sm:$0xff]
  %v177 = vld [vmem:[#allocation2 + $0x18] sm:$0xff]
  %v178 = vld [vmem:[#allocation2 + $0x20] sm:$0x3]
  %v179 = vpack.c.bf16 %v170, %v169
  %v180 = vpack.c.bf16 %v172, %v171
  %v181 = vpack.c.bf16 %v173, %v173
  %v182 = vld [vmem:[%s1] sm:$0xf]
  %v183 = vld [vmem:[%s1 + $0x4] sm:$0xf]
  %v184 = vld [vmem:[%s1 + $0x8] sm:$0xf]
  %v185 = vld [vmem:[%s1 + $0xc] sm:$0xf]
  %v190 = vunpack.c.l.b16 %v182
  %v191 = vunpack.c.l.b16 %v183
  %v192 = vunpack.c.l.b16 %v184
  %v193 = vunpack.c.l.b16 %v185
  %v194 = vpack.c.b16 %v191, %v190
  %v195 = vpack.c.b16 %v193, %v192
  %v199 = vsel %vm37, %v179, 0
  %v202 = vsel %vm37, %v180, 0
  %v205 = vsel %vm37, %v181, 0
  %207 = vmatpush.bf16.msra.mxu0 0
  %208 = vmatpush.bf16.msra.mxu0 0
  %209 = vmatpush.bf16.msra.mxu0 0
  %210 = vmatpush.bf16.msra.mxu0 0
  %211 = vmatpush.bf16.msra.mxu0 0
  %212 = vmatpush.bf16.msra.mxu0 0
  %213 = vmatpush.bf16.msra.mxu0 %v195
  %214 = vmatpush.bf16.msra.mxu0 %v194
  %215 = vmatmul.bf16.gmra.mxu0 %v199
  %v216 = vpop.f32.mrf.mxu0
  %v217 = vadd.f32 0.0, %v216
  %v218 = vpop.f32.mrf.mxu0
  %v219 = vadd.f32 0.0, %v218
  %220 = vmatmul.bf16.gmra.mxu0 %v202
  %v221 = vpop.f32.mrf.mxu0
  %v222 = vadd.f32 0.0, %v221
  %v223 = vpop.f32.mrf.mxu0
  %v224 = vadd.f32 0.0, %v223
  %225 = vmatmul.bf16.gmra.mxu0 %v205
  %v226 = vpop.f32.mrf.mxu0
  %v227 = vadd.f32 0.0, %v226
  %v228 = vpop.f32.mrf.mxu0
  %229 = vdwg.mxu0
  %v230 = vadd.f32 %v174, %v217
  %v231 = vadd.f32 %v175, %v219
  %v232 = vadd.f32 %v176, %v222
  %v233 = vadd.f32 %v177, %v224
  %v234 = vadd.f32 %v178, %v227
  %vm235 = vcmask 785408
  %236 = vst.msk [vmem:[#allocation2] sm:$0xff] %vm235, %v230
  %237 = vst.msk [vmem:[#allocation2 + $0x8] sm:$0xff] %vm235, %v231
  %238 = vst.msk [vmem:[#allocation2 + $0x10] sm:$0xff] %vm235, %v232
  %239 = vst.msk [vmem:[#allocation2 + $0x18] sm:$0xff] %vm235, %v233
  %vm240 = vcmask 779264
  %241 = vst.msk [vmem:[#allocation2 + $0x20] sm:$0x3] %vm240, %v234
  // Predicated region
  $region26: #{_lambda_.51} parent=0 // pred_check
    %p242 = pneg %p21
  $region27: #{_lambda_.51} parent=0 // pred_check_branch
    %244 = sbr.rel (%p242) target = $region29
  $region28: #{_lambda_.51} parent=0 // pred_region
    %v245 = vld [vmem:[#allocation2] sm:$0xff]
    %v246 = vld [vmem:[#allocation2 + $0x8] sm:$0xff]
    %v247 = vld [vmem:[#allocation2 + $0x10] sm:$0xff]
    %v248 = vld [vmem:[#allocation2 + $0x18] sm:$0xff]
    %v249 = vld [vmem:[#allocation2 + $0x20] sm:$0x3]
    %v250 = vld [vmem:[%s2] sm:$0x1]
    %v252 = vperm.slane %v250, 0
    %v254 = vadd.f32 %v245, %v252
    %v255 = vadd.f32 %v246, %v252
    %v256 = vadd.f32 %v247, %v252
    %v257 = vadd.f32 %v248, %v252
    %v258 = vadd.f32 %v249, %v252
    %259 = vst.msk [vmem:[%s5] sm:$0xff] %vm235, %v254
    %260 = vst.msk [vmem:[%s5 + $0x8] sm:$0xff] %vm235, %v255
    %261 = vst.msk [vmem:[%s5 + $0x10] sm:$0xff] %vm235, %v256
    %262 = vst.msk [vmem:[%s5 + $0x18] sm:$0xff] %vm235, %v257
    %263 = vst.msk [vmem:[%s5 + $0x20] sm:$0x3] %vm240, %v258
  $region29: #{_lambda_.51} parent=0 // pred_fallthru
    _
  // Predicated region
  $region30: #{_lambda_.51} parent=0 // pred_check
    _
  $region31: #{_lambda_.51} parent=0 // pred_check_branch
    %265 = sbr.rel (0) target = $region33
  $region32: #{_lambda_.51} parent=0 // pred_region
    _
  $region33: #{_lambda_.51} parent=0 // pred_fallthru
    _
  // Predicated region
  $region34: #{_lambda_.51} parent=0 // pred_check
    _
  $region35: #{_lambda_.51} parent=0 // pred_check_branch
    %267 = sbr.rel (0) target = $region37
  $region36: #{_lambda_.51} parent=0 // pred_region
    _
  $region37: #{_lambda_.51} parent=0 // pred_fallthru
    _

// kernel: _lambda_.50
$region0: #{_lambda_.50}
  #allocation0 [shape = 'u32[]', space=smem, size = 0x4, offset = 0x4, fixed_abs, tag = 'smem constant byte address 0x4 - core index']
  #allocation1 [shape = 'u32[72,128]{1,0:T(1,128)}', space=vmem, size = 0x9000, scoped, tag = 'internal scratch']
  %s0 = inlined_call_operand.vmem [shape: f32[34,32], index: 0, kind: input, shape index: {}]
  %s1 = inlined_call_operand.vmem [shape: f32[1,32], index: 1, kind: input, shape index: {}]
  %s2 = inlined_call_operand.vmem [shape: f32[1,32], index: 2, kind: input, shape index: {}]
  %s3 = inlined_call_operand.vmem [shape: f32[34,32], index: 3, kind: output, shape index: {}]
  %s4 = sld [smem:[#allocation0]]
  $region22: #{_lambda_.50} parent=0
    _
  %s6 = ssub.s32 1, %s4
  %s7 = scalar_select 0, %s6, %s4
  // Predicated region
  $region2: #{_lambda_.50} parent=0 // pred_check
    _
  $region3: #{_lambda_.50} parent=0 // pred_check_branch
    %9 = sbr.rel (0) target = $region5
  $region4: #{_lambda_.50} parent=0 // pred_region
    _
  $region5: #{_lambda_.50} parent=0 // pred_fallthru
    _
  // Predicated region
  $region6: #{_lambda_.50} parent=0 // pred_check
    _
  $region7: #{_lambda_.50} parent=0 // pred_check_branch
    %11 = sbr.rel (0) target = $region9
  $region8: #{_lambda_.50} parent=0 // pred_region
    _
  $region9: #{_lambda_.50} parent=0 // pred_fallthru
    _
  // Predicated region
  $region10: #{_lambda_.50} parent=0 // pred_check
    _
  $region11: #{_lambda_.50} parent=0 // pred_check_branch
    %13 = sbr.rel (0) target = $region13
  $region12: #{_lambda_.50} parent=0 // pred_region
    _
  $region13: #{_lambda_.50} parent=0 // pred_fallthru
    _
  %v14 = vld [vmem:[%s0] sm:$0xff]
  %v15 = vld [vmem:[%s0 + $0x8] sm:$0xff]
  %v16 = vld [vmem:[%s0 + $0x10] sm:$0xff]
  %v17 = vld [vmem:[%s0 + $0x18] sm:$0xff]
  %v18 = vld [vmem:[%s0 + $0x20] sm:$0x3]
  %vm19 = vcmask 261120
  %v20 = vsel %vm19, %v14, 0.0
  %21 = vadd.xlane.f32.xlu0 %v20
  %v22 = vpop.xlane.xlu0 %21
  %v23 = vsel %vm19, %v15, 0.0
  %24 = vadd.xlane.f32.xlu0 %v23
  %v25 = vpop.xlane.xlu0 %24
  %v26 = vsel %vm19, %v16, 0.0
  %27 = vadd.xlane.f32.xlu0 %v26
  %v28 = vpop.xlane.xlu0 %27
  %v29 = vsel %vm19, %v17, 0.0
  %30 = vadd.xlane.f32.xlu0 %v29
  %v31 = vpop.xlane.xlu0 %30
  %vm32 = vcmask 254976
  %v33 = vsel %vm32, %v18, 0.0
  %34 = vadd.xlane.f32.xlu0 %v33
  %v35 = vpop.xlane.xlu0 %34
  %v36 = vrcp.pop 32.0
  %v37 = vmul.f32 32.0, %v36
  %v38 = vsub.f32 1.0, %v37
  %v39 = vmul.f32 %v36, %v38
  %v40 = vadd.f32 %v36, %v39
  %vm41 = vweird.f32 %v36
  %v42 = vsel %vm41, %v36, %v40
  %v43 = vmul.f32 %v22, %v42
  %v44 = vmul.f32 %v25, %v42
  %v45 = vmul.f32 %v28, %v42
  %v46 = vmul.f32 %v31, %v42
  %v47 = vmul.f32 %v35, %v42
  %v48 = vsub.f32 %v14, %v43
  %v49 = vsub.f32 %v15, %v44
  %v50 = vsub.f32 %v16, %v45
  %v51 = vsub.f32 %v17, %v46
  %v52 = vsub.f32 %v18, %v47
  %v53 = vmul.f32 %v48, %v48
  %v54 = vmul.f32 %v49, %v49
  %v55 = vmul.f32 %v50, %v50
  %v56 = vmul.f32 %v51, %v51
  %v57 = vmul.f32 %v52, %v52
  %v58 = vsel %vm19, %v53, 0.0
  %59 = vadd.xlane.f32.xlu0 %v58
  %v60 = vpop.xlane.xlu0 %59
  %v61 = vsel %vm19, %v54, 0.0
  %62 = vadd.xlane.f32.xlu0 %v61
  %v63 = vpop.xlane.xlu0 %62
  %v64 = vsel %vm19, %v55, 0.0
  %65 = vadd.xlane.f32.xlu0 %v64
  %v66 = vpop.xlane.xlu0 %65
  %v67 = vsel %vm19, %v56, 0.0
  %68 = vadd.xlane.f32.xlu0 %v67
  %v69 = vpop.xlane.xlu0 %68
  %v70 = vsel %vm32, %v57, 0.0
  %71 = vadd.xlane.f32.xlu0 %v70
  %v72 = vpop.xlane.xlu0 %71
  %v73 = vmul.f32 %v60, %v42
  %v74 = vmul.f32 %v63, %v42
  %v75 = vmul.f32 %v66, %v42
  %v76 = vmul.f32 %v69, %v42
  %v77 = vmul.f32 %v72, %v42
  %v78 = vadd.f32 %v73, 1e-05
  %v79 = vadd.f32 %v74, 1e-05
  %v80 = vadd.f32 %v75, 1e-05
  %v81 = vadd.f32 %v76, 1e-05
  %v82 = vadd.f32 %v77, 1e-05
  %v83 = vrsqrt.pop %v78
  %v84 = vmul.f32 %v83, %v78
  %v85 = vmul.f32 %v84, %v83
  %v86 = vmul.f32 0.5, %v85
  %v87 = vsub.f32 1.5, %v86
  %v88 = vmul.f32 %v83, %v87
  %vm89 = vweird.f32 %v78
  %vm90 = vweird.f32 %v83
  %vm91 = vmor %vm89, %vm90
  %v92 = vsel %vm91, %v83, %v88
  %v93 = vrsqrt.pop %v79
  %v94 = vmul.f32 %v93, %v79
  %v95 = vmul.f32 %v94, %v93
  %v96 = vmul.f32 0.5, %v95
  %v97 = vsub.f32 1.5, %v96
  %v98 = vmul.f32 %v93, %v97
  %vm99 = vweird.f32 %v79
  %vm100 = vweird.f32 %v93
  %vm101 = vmor %vm99, %vm100
  %v102 = vsel %vm101, %v93, %v98
  %v103 = vrsqrt.pop %v80
  %v104 = vmul.f32 %v103, %v80
  %v105 = vmul.f32 %v104, %v103
  %v106 = vmul.f32 0.5, %v105
  %v107 = vsub.f32 1.5, %v106
  %v108 = vmul.f32 %v103, %v107
  %vm109 = vweird.f32 %v80
  %vm110 = vweird.f32 %v103
  %vm111 = vmor %vm109, %vm110
  %v112 = vsel %vm111, %v103, %v108
  %v113 = vrsqrt.pop %v81
  %v114 = vmul.f32 %v113, %v81
  %v115 = vmul.f32 %v114, %v113
  %v116 = vmul.f32 0.5, %v115
  %v117 = vsub.f32 1.5, %v116
  %v118 = vmul.f32 %v113, %v117
  %vm119 = vweird.f32 %v81
  %vm120 = vweird.f32 %v113
  %vm121 = vmor %vm119, %vm120
  %v122 = vsel %vm121, %v113, %v118
  %v123 = vrsqrt.pop %v82
  %v124 = vmul.f32 %v123, %v82
  %v125 = vmul.f32 %v124, %v123
  %v126 = vmul.f32 0.5, %v125
  %v127 = vsub.f32 1.5, %v126
  %v128 = vmul.f32 %v123, %v127
  %vm129 = vweird.f32 %v82
  %vm130 = vweird.f32 %v123
  %vm131 = vmor %vm129, %vm130
  %v132 = vsel %vm131, %v123, %v128
  %v133 = vmul.f32 %v48, %v92
  %v134 = vmul.f32 %v49, %v102
  %v135 = vmul.f32 %v50, %v112
  %v136 = vmul.f32 %v51, %v122
  %v137 = vmul.f32 %v52, %v132
  %v138 = vld [vmem:[%s1] sm:$0x1]
  %v140 = vperm.slane %v138, 0
  %v142 = vmul.f32 %v133, %v140
  %v143 = vmul.f32 %v134, %v140
  %v144 = vmul.f32 %v135, %v140
  %v145 = vmul.f32 %v136, %v140
  %v146 = vmul.f32 %v137, %v140
  %v147 = vld [vmem:[%s2] sm:$0x1]
  %v149 = vperm.slane %v147, 0
  %v151 = vadd.f32 %v142, %v149
  %v152 = vadd.f32 %v143, %v149
  %v153 = vadd.f32 %v144, %v149
  %v154 = vadd.f32 %v145, %v149
  %v155 = vadd.f32 %v146, %v149
  %156 = vst.msk [vmem:[%s3] sm:$0xff] %vm19, %v151
  %157 = vst.msk [vmem:[%s3 + $0x8] sm:$0xff] %vm19, %v152
  %158 = vst.msk [vmem:[%s3 + $0x10] sm:$0xff] %vm19, %v153
  %159 = vst.msk [vmem:[%s3 + $0x18] sm:$0xff] %vm19, %v154
  %160 = vst.msk [vmem:[%s3 + $0x20] sm:$0x3] %vm32, %v155
  // Predicated region
  $region14: #{_lambda_.50} parent=0 // pred_check
    _
  $region15: #{_lambda_.50} parent=0 // pred_check_branch
    %162 = sbr.rel (0) target = $region17
  $region16: #{_lambda_.50} parent=0 // pred_region
    _
  $region17: #{_lambda_.50} parent=0 // pred_fallthru
    _
  // Predicated region
  $region18: #{_lambda_.50} parent=0 // pred_check
    _
  $region19: #{_lambda_.50} parent=0 // pred_check_branch
    %164 = sbr.rel (0) target = $region21
  $region20: #{_lambda_.50} parent=0 // pred_region
    _
  $region21: #{_lambda_.50} parent=0 // pred_fallthru
    _

// kernel: _lambda_.52
$region0: #{_lambda_.52}
  #allocation0 [shape = 'u32[]', space=smem, size = 0x4, offset = 0x4, fixed_abs, tag = 'smem constant byte address 0x4 - core index']
  #allocation1 [shape = 'u32[72,128]{1,0:T(1,128)}', space=vmem, size = 0x9000, scoped, tag = 'internal scratch']
  %s0 = inlined_call_operand.vmem [shape: f32[2,17,96], index: 0, kind: input, shape index: {}]
  %s1 = inlined_call_operand.vmem [shape: f32[2,17,32], index: 1, kind: output, shape index: {}]
  %s2 = sld [smem:[#allocation0]]
  $region37: #{_lambda_.52} parent=0
    _
  %s4 = ssub.s32 1, %s2
  %s5 = scalar_select 0, %s4, %s2
  loop: start=0, step=1, limit=4
  $region2: #{_lambda_.52} parent=0 // loop_pre_header
    _
  $region3: #{_lambda_.52} parent=0 // loop_header
    %s7 = sphi 0, %s11
    %p8 = scmp.ge.s32.totalorder %s7, 4
    %s17 = sphi 0, %s19
    %s20 = sphi 0, %s17
    %s21 = sphi 0, %s20
    %s37 = sphi 0, %s21
    %s43 = sphi 0, %s45
    %s46 = sphi 0, %s43
    %s47 = sphi 0, %s46
    %s63 = sphi 0, %s47
  $region4: #{_lambda_.52} parent=0 // loop_header_branch
    %10 = sbr.rel (%p8) target = $region8
  $region5: #{_lambda_.52} parent=0 // loop_body
    %s12 = ssub.s32 %s7, 1
    %s13 = ssub.s32 %s7, 2
    %s14 = sadd.s32 %s7, 1
    %s15 = ssub.s32 %s7, %s14
    %p16 = scmp.eq.s32.totalorder %s15, 0
    %s18 = sadd.s32 %s17, 1
    %s19 = scalar_select %p16, %s17, %s18
    %p22 = pneg %p16
    %p23 = scmp.eq.s32.totalorder %s7, 1
    %p24 = por %p22, %p23
    %p25 = scmp.ne.s32.totalorder %s17, %s20
    %p26 = scmp.eq.s32.totalorder %s7, 0
    %p27 = por %p25, %p26
    %p28 = scmp.ne.s32.totalorder %s17, %s20
    %p29 = scmp.eq.s32.totalorder %s12, 1
    %p30 = por %p28, %p29
    %p31 = scmp.ne.s32.totalorder %s20, %s21
    %p32 = scmp.eq.s32.totalorder %s12, 0
    %p33 = por %p31, %p32
    %p34 = scmp.ne.s32.totalorder %s20, %s21
    %p35 = scmp.eq.s32.totalorder %s13, 1
    %p36 = por %p34, %p35
    %p38 = scmp.ne.s32.totalorder %s21, %s37
    %p39 = scmp.eq.s32.totalorder %s13, 0
    %p40 = por %p38, %p39
    %s41 = ssub.s32 %s7, %s14
    %p42 = scmp.eq.s32.totalorder %s41, 0
    %s44 = sadd.s32 %s43, 1
    %s45 = scalar_select %p42, %s43, %s44
    %p48 = pneg %p42
    %p49 = scmp.eq.s32.totalorder %s7, 1
    %p50 = por %p48, %p49
    %p51 = scmp.ne.s32.totalorder %s43, %s46
    %p52 = scmp.eq.s32.totalorder %s7, 0
    %p53 = por %p51, %p52
    %p54 = scmp.ne.s32.totalorder %s43, %s46
    %p55 = scmp.eq.s32.totalorder %s12, 1
    %p56 = por %p54, %p55
    %p57 = scmp.ne.s32.totalorder %s46, %s47
    %p58 = scmp.eq.s32.totalorder %s12, 0
    %p59 = por %p57, %p58
    %p60 = scmp.ne.s32.totalorder %s46, %s47
    %p61 = scmp.eq.s32.totalorder %s13, 1
    %p62 = por %p60, %p61
    %p64 = scmp.ne.s32.totalorder %s47, %s63
    %p65 = scmp.eq.s32.totalorder %s13, 0
    %p66 = por %p64, %p65
    %p67 = scmp.le.s32.totalorder 1, %s7
    %p68 = scmp.lt.s32.totalorder %s7, 3
    %p69 = pnand %p67, %p68
    %p70 = pneg %p69
    // Predicated region
    $region9: #{_lambda_.52} parent=5 // pred_check
      _
    $region10: #{_lambda_.52} parent=5 // pred_check_branch
      %72 = sbr.rel (%p69) target = $region12
    $region11: #{_lambda_.52} parent=5 // pred_region
      %s73 = ssub.s32 %s7, 1
    $region12: #{_lambda_.52} parent=5 // pred_fallthru
      _
    %p74 = scmp.lt.s32.totalorder %s7, 2
    // Predicated region
    $region13: #{_lambda_.52} parent=5 // pred_check
      %p75 = pneg %p74
    $region14: #{_lambda_.52} parent=5 // pred_check_branch
      %77 = sbr.rel (%p75) target = $region16
    $region15: #{_lambda_.52} parent=5 // pred_region
      // Predicated region
      $region17: #{_lambda_.52} parent=15 // pred_check
        %p78 = pneg %p27
      $region18: #{_lambda_.52} parent=15 // pred_check_branch
        %80 = sbr.rel (%p78) target = $region20
      $region19: #{_lambda_.52} parent=15 // pred_region
        %p81 = scmp.lt.s32.totalorder %s7, 1
        %s82 = scalar_select %p81, %s7, 1
        %s83 = smul.addr %s82, 3
        %s84 = smul.addr %s83, 8
        %s85 = scalar_lea.vmem %s0, %s84
      $region20: #{_lambda_.52} parent=15 // pred_fallthru
        _
    $region16: #{_lambda_.52} parent=5 // pred_fallthru
      _
    %p86 = scmp.le.s32.totalorder 1, %s7
    %p87 = scmp.lt.s32.totalorder %s7, 3
    %p88 = pnand %p86, %p87
    %p89 = pneg %p88
    // Predicated region
    $region21: #{_lambda_.52} parent=5 // pred_check
      _
    $region22: #{_lambda_.52} parent=5 // pred_check_branch
      %91 = sbr.rel (%p88) target = $region24
    $region23: #{_lambda_.52} parent=5 // pred_region
      %s92 = ssub.s32 %s7, 1
      %p93 = scmp.lt.s32.totalorder %s12, 1
      %s94 = scalar_select %p93, %s12, 1
      %s95 = smul.addr %s94, 3
      %s96 = smul.addr %s95, 8
      %s97 = scalar_lea.vmem %s0, %s96
      %p98 = pneg %p33
      %p99 = pneg %p30
      %p100 = pneg %p59
      %p101 = pneg %p56
      %p102 = scmp.lt.s32.totalorder %s12, 1
      %s103 = scalar_select %p102, %s12, 1
      %s104 = smul.addr %s103, 3
      %s105 = smul.addr %s104, 8
      %s106 = scalar_lea.vmem %s1, %s105
      %p107 = scmp.lt.s32.totalorder %s12, 1
      %s108 = scalar_select %p107, %s12, 1
      %s109 = smul.addr %s108, 3
      %s110 = smul.addr %s109, 8
      %s111 = scalar_lea.vmem %s0, %s110
      %p112 = scmp.lt.s32.totalorder %s12, 1
      %s113 = scalar_select %p112, %s12, 1
      %s114 = smul.addr %s113, 3
      %s115 = smul.addr %s114, 8
      %s116 = scalar_lea.vmem %s1, %s115
      %v118 = vld [vmem:[%s111] sm:$0xff]
      %v119 = vld [vmem:[%s111 + $0x8] sm:$0xff]
      %v120 = vld [vmem:[%s111 + $0x10] sm:$0x1]
      %v121 = vpack.c.bf16 %v119, %v118
      %v122 = vpack.c.bf16 %v120, %v120
      %125 = vrot.lane.b32.xlu0 %v121, 96
      %v126 = vpop.permute.xlu0 %125
      %127 = vrot.lane.b32.xlu0 %v122, 96
      %v128 = vpop.permute.xlu0 %127
      %vm129 = vcmask 64512
      %v131 = vsel %vm129, %v121, 0
      %v134 = vsel %vm129, %v122, 0
      %v137 = vsel %vm129, %v126, 0
      %v140 = vsel %vm129, %v128, 0
      %142 = vmatpush.bf16.xpose.msra.mxu0 0
      %143 = vmatpush.bf16.xpose.msra.mxu0 0
      %144 = vmatpush.bf16.xpose.msra.mxu0 0
      %145 = vmatpush.bf16.xpose.msra.mxu0 0
      %146 = vmatpush.bf16.xpose.msra.mxu0 0
      %147 = vmatpush.bf16.xpose.msra.mxu0 0
      %148 = vmatpush.bf16.xpose.msra.mxu0 %v140
      %149 = vmatpush.bf16.xpose.msra.mxu0 %v137
      %150 = vmatmul.bf16.gmra.mxu0 %v131
      %v151 = vpop.f32.mrf.mxu0
      %v152 = vadd.f32 0.0, %v151
      %v153 = vpop.f32.mrf.mxu0
      %v154 = vadd.f32 0.0, %v153
      %155 = vmatmul.bf16.gmra.mxu0 %v134
      %v156 = vpop.f32.mrf.mxu0
      %v157 = vadd.f32 0.0, %v156
      %v158 = vpop.f32.mrf.mxu0
      %159 = vdwg.mxu0
      %v160 = vmul.f32 %v152, 0.35355338
      %v161 = vmul.f32 %v154, 0.35355338
      %v162 = vmul.f32 %v157, 0.35355338
      %vm163 = vcmask 138240
      %v164 = vsel %vm163, %v160, -inf
      %165 = vmax.xlane.f32.xlu0 %v164
      %v166 = vpop.xlane.xlu0 %165
      %v167 = vsel %vm163, %v161, -inf
      %168 = vmax.xlane.f32.xlu0 %v167
      %v169 = vpop.xlane.xlu0 %168
      %vm170 = vcmask 131072
      %v171 = vsel %vm170, %v162, -inf
      %172 = vmax.xlane.f32.xlu0 %v171
      %v173 = vpop.xlane.xlu0 %172
      %v174 = vsub.f32 %v160, %v166
      %v175 = vsub.f32 %v161, %v169
      %v176 = vsub.f32 %v162, %v173
      %v177 = vmul.f32 %v174, 1.442695
      %v178 = vpow.pop %v177
      %v179 = vmul.f32 %v175, 1.442695
      %v180 = vpow.pop %v179
      %v181 = vmul.f32 %v176, 1.442695
      %v182 = vpow.pop %v181
      %v183 = vsel %vm163, %v178, 0.0
      %184 = vadd.xlane.f32.xlu0 %v183
      %v185 = vpop.xlane.xlu0 %184
      %v186 = vsel %vm163, %v180, 0.0
      %187 = vadd.xlane.f32.xlu0 %v186
      %v188 = vpop.xlane.xlu0 %187
      %v189 = vsel %vm170, %v182, 0.0
      %190 = vadd.xlane.f32.xlu0 %v189
      %v191 = vpop.xlane.xlu0 %190
      %v192 = vrcp.pop %v185
      %v193 = vrcp.pop %v188
      %v194 = vrcp.pop %v191
      %v195 = vmul.f32 %v178, %v192
      %v196 = vmul.f32 %v180, %v193
      %v197 = vmul.f32 %v182, %v194
      %v198 = vpack.c.bf16 %v196, %v195
      %v199 = vpack.c.bf16 %v197, %v197
      %200 = vrot.lane.b32.xlu0 %v121, 64
      %v201 = vpop.permute.xlu0 %200
      %202 = vrot.lane.b32.xlu0 %v122, 64
      %v203 = vpop.permute.xlu0 %202
      %v206 = vsel %vm163, %v198, 0
      %v209 = vsel %vm163, %v199, 0
      %vm211 = vcmask 1040384
      %v212 = vsel 0, 4294967295, 65535
      %v213 = vsel %vm211, %v212, 0
      %v215 = vand.u32 %v203, %v213
      %217 = vmatpush.bf16.msra.mxu0 0
      %218 = vmatpush.bf16.msra.mxu0 0
      %219 = vmatpush.bf16.msra.mxu0 0
      %220 = vmatpush.bf16.msra.mxu0 0
      %221 = vmatpush.bf16.msra.mxu0 0
      %222 = vmatpush.bf16.msra.mxu0 0
      %223 = vmatpush.bf16.msra.mxu0 %v215
      %224 = vmatpush.bf16.msra.mxu0 %v201
      %225 = vmatmul.bf16.gmra.mxu0 %v206
      %v226 = vpop.f32.mrf.mxu0
      %v227 = vadd.f32 0.0, %v226
      %v228 = vpop.f32.mrf.mxu0
      %v229 = vadd.f32 0.0, %v228
      %230 = vmatmul.bf16.gmra.mxu0 %v209
      %v231 = vpop.f32.mrf.mxu0
      %v232 = vadd.f32 0.0, %v231
      %v233 = vpop.f32.mrf.mxu0
      %234 = vdwg.mxu0
      %235 = vrot.lane.b32.xlu0 %v121, 120
      %v236 = vpop.permute.xlu0 %235
      %237 = vrot.lane.b32.xlu0 %v122, 120
      %v238 = vpop.permute.xlu0 %237
      %239 = vrot.lane.b32.xlu0 %v121, 88
      %v240 = vpop.permute.xlu0 %239
      %241 = vrot.lane.b32.xlu0 %v122, 88
      %v242 = vpop.permute.xlu0 %241
      %v244 = vsel %vm129, %v236, 0
      %v247 = vsel %vm129, %v238, 0
      %v250 = vsel %vm129, %v240, 0
      %v253 = vsel %vm129, %v242, 0
      %255 = vmatpush.bf16.xpose.msra.mxu0 0
      %256 = vmatpush.bf16.xpose.msra.mxu0 0
      %257 = vmatpush.bf16.xpose.msra.mxu0 0
      %258 = vmatpush.bf16.xpose.msra.mxu0 0
      %259 = vmatpush.bf16.xpose.msra.mxu0 0
      %260 = vmatpush.bf16.xpose.msra.mxu0 0
      %261 = vmatpush.bf16.xpose.msra.mxu0 %v253
      %262 = vmatpush.bf16.xpose.msra.mxu0 %v250
      %263 = vmatmul.bf16.gmra.mxu0 %v244
      %v264 = vpop.f32.mrf.mxu0
      %v265 = vadd.f32 0.0, %v264
      %v266 = vpop.f32.mrf.mxu0
      %v267 = vadd.f32 0.0, %v266
      %268 = vmatmul.bf16.gmra.mxu0 %v247
      %v269 = vpop.f32.mrf.mxu0
      %v270 = vadd.f32 0.0, %v269
      %v271 = vpop.f32.mrf.mxu0
      %272 = vdwg.mxu0
      %v273 = vmul.f32 %v265, 0.35355338
      %v274 = vmul.f32 %v267, 0.35355338
      %v275 = vmul.f32 %v270, 0.35355338
      %v276 = vsel %vm163, %v273, -inf
      %277 = vmax.xlane.f32.xlu0 %v276
      %v278 = vpop.xlane.xlu0 %277
      %v279 = vsel %vm163, %v274, -inf
      %280 = vmax.xlane.f32.xlu0 %v279
      %v281 = vpop.xlane.xlu0 %280
      %v282 = vsel %vm170, %v275, -inf
      %283 = vmax.xlane.f32.xlu0 %v282
      %v284 = vpop.xlane.xlu0 %283
      %v285 = vsub.f32 %v273, %v278
      %v286 = vsub.f32 %v274, %v281
      %v287 = vsub.f32 %v275, %v284
      %v288 = vmul.f32 %v285, 1.442695
      %v289 = vpow.pop %v288
      %v290 = vmul.f32 %v286, 1.442695
      %v291 = vpow.pop %v290
      %v292 = vmul.f32 %v287, 1.442695
      %v293 = vpow.pop %v292
      %v294 = vsel %vm163, %v289, 0.0
      %295 = vadd.xlane.f32.xlu0 %v294
      %v296 = vpop.xlane.xlu0 %295
      %v297 = vsel %vm163, %v291, 0.0
      %298 = vadd.xlane.f32.xlu0 %v297
      %v299 = vpop.xlane.xlu0 %298
      %v300 = vsel %vm170, %v293, 0.0
      %301 = vadd.xlane.f32.xlu0 %v300
      %v302 = vpop.xlane.xlu0 %301
      %v303 = vrcp.pop %v296
      %v304 = vrcp.pop %v299
      %v305 = vrcp.pop %v302
      %v306 = vmul.f32 %v289, %v303
      %v307 = vmul.f32 %v291, %v304
      %v308 = vmul.f32 %v293, %v305
      %v309 = vpack.c.bf16 %v307, %v306
      %v310 = vpack.c.bf16 %v308, %v308
      %311 = vrot.lane.b32.xlu0 %v121, 56
      %v312 = vpop.permute.xlu0 %311
      %313 = vrot.lane.b32.xlu0 %v122, 56
      %v314 = vpop.permute.xlu0 %313
      %v317 = vsel %vm163, %v309, 0
      %v320 = vsel %vm163, %v310, 0
      %v323 = vand.u32 %v314, %v213
      %325 = vmatpush.bf16.msra.mxu0 0
      %326 = vmatpush.bf16.msra.mxu0 0
      %327 = vmatpush.bf16.msra.mxu0 0
      %328 = vmatpush.bf16.msra.mxu0 0
      %329 = vmatpush.bf16.msra.mxu0 0
      %330 = vmatpush.bf16.msra.mxu0 0
      %331 = vmatpush.bf16.msra.mxu0 %v323
      %332 = vmatpush.bf16.msra.mxu0 %v312
      %333 = vmatmul.bf16.gmra.mxu0 %v317
      %v334 = vpop.f32.mrf.mxu0
      %v335 = vadd.f32 0.0, %v334
      %v336 = vpop.f32.mrf.mxu0
      %v337 = vadd.f32 0.0, %v336
      %338 = vmatmul.bf16.gmra.mxu0 %v320
      %v339 = vpop.f32.mrf.mxu0
      %v340 = vadd.f32 0.0, %v339
      %v341 = vpop.f32.mrf.mxu0
      %342 = vdwg.mxu0
      %343 = vrot.lane.b32.xlu0 %v121, 112
      %v344 = vpop.permute.xlu0 %343
      %345 = vrot.lane.b32.xlu0 %v122, 112
      %v346 = vpop.permute.xlu0 %345
      %347 = vrot.lane.b32.xlu0 %v121, 80
      %v348 = vpop.permute.xlu0 %347
      %349 = vrot.lane.b32.xlu0 %v122, 80
      %v350 = vpop.permute.xlu0 %349
      %v352 = vsel %vm129, %v344, 0
      %v355 = vsel %vm129, %v346, 0
      %v358 = vsel %vm129, %v348, 0
      %v361 = vsel %vm129, %v350, 0
      %363 = vmatpush.bf16.xpose.msra.mxu0 0
      %364 = vmatpush.bf16.xpose.msra.mxu0 0
      %365 = vmatpush.bf16.xpose.msra.mxu0 0
      %366 = vmatpush.bf16.xpose.msra.mxu0 0
      %367 = vmatpush.bf16.xpose.msra.mxu0 0
      %368 = vmatpush.bf16.xpose.msra.mxu0 0
      %369 = vmatpush.bf16.xpose.msra.mxu0 %v361
      %370 = vmatpush.bf16.xpose.msra.mxu0 %v358
      %371 = vmatmul.bf16.gmra.mxu0 %v352
      %v372 = vpop.f32.mrf.mxu0
      %v373 = vadd.f32 0.0, %v372
      %v374 = vpop.f32.mrf.mxu0
      %v375 = vadd.f32 0.0, %v374
      %376 = vmatmul.bf16.gmra.mxu0 %v355
      %v377 = vpop.f32.mrf.mxu0
      %v378 = vadd.f32 0.0, %v377
      %v379 = vpop.f32.mrf.mxu0
      %380 = vdwg.mxu0
      %v381 = vmul.f32 %v373, 0.35355338
      %v382 = vmul.f32 %v375, 0.35355338
      %v383 = vmul.f32 %v378, 0.35355338
      %v384 = vsel %vm163, %v381, -inf
      %385 = vmax.xlane.f32.xlu0 %v384
      %v386 = vpop.xlane.xlu0 %385
      %v387 = vsel %vm163, %v382, -inf
      %388 = vmax.xlane.f32.xlu0 %v387
      %v389 = vpop.xlane.xlu0 %388
      %v390 = vsel %vm170, %v383, -inf
      %391 = vmax.xlane.f32.xlu0 %v390
      %v392 = vpop.xlane.xlu0 %391
      %v393 = vsub.f32 %v381, %v386
      %v394 = vsub.f32 %v382, %v389
      %v395 = vsub.f32 %v383, %v392
      %v396 = vmul.f32 %v393, 1.442695
      %v397 = vpow.pop %v396
      %v398 = vmul.f32 %v394, 1.442695
      %v399 = vpow.pop %v398
      %v400 = vmul.f32 %v395, 1.442695
      %v401 = vpow.pop %v400
      %v402 = vsel %vm163, %v397, 0.0
      %403 = vadd.xlane.f32.xlu0 %v402
      %v404 = vpop.xlane.xlu0 %403
      %v405 = vsel %vm163, %v399, 0.0
      %406 = vadd.xlane.f32.xlu0 %v405
      %v407 = vpop.xlane.xlu0 %406
      %v408 = vsel %vm170, %v401, 0.0
      %409 = vadd.xlane.f32.xlu0 %v408
      %v410 = vpop.xlane.xlu0 %409
      %v411 = vrcp.pop %v404
      %v412 = vrcp.pop %v407
      %v413 = vrcp.pop %v410
      %v414 = vmul.f32 %v397, %v411
      %v415 = vmul.f32 %v399, %v412
      %v416 = vmul.f32 %v401, %v413
      %v417 = vpack.c.bf16 %v415, %v414
      %v418 = vpack.c.bf16 %v416, %v416
      %419 = vrot.lane.b32.xlu0 %v121, 48
      %v420 = vpop.permute.xlu0 %419
      %421 = vrot.lane.b32.xlu0 %v122, 48
      %v422 = vpop.permute.xlu0 %421
      %v425 = vsel %vm163, %v417, 0
      %v428 = vsel %vm163, %v418, 0
      %v431 = vand.u32 %v422, %v213
      %433 = vmatpush.bf16.msra.mxu0 0
      %434 = vmatpush.bf16.msra.mxu0 0
      %435 = vmatpush.bf16.msra.mxu0 0
      %436 = vmatpush.bf16.msra.mxu0 0
      %437 = vmatpush.bf16.msra.mxu0 0
      %438 = vmatpush.bf16.msra.mxu0 0
      %439 = vmatpush.bf16.msra.mxu0 %v431
      %440 = vmatpush.bf16.msra.mxu0 %v420
      %441 = vmatmul.bf16.gmra.mxu0 %v425
      %v442 = vpop.f32.mrf.mxu0
      %v443 = vadd.f32 0.0, %v442
      %v444 = vpop.f32.mrf.mxu0
      %v445 = vadd.f32 0.0, %v444
      %446 = vmatmul.bf16.gmra.mxu0 %v428
      %v447 = vpop.f32.mrf.mxu0
      %v448 = vadd.f32 0.0, %v447
      %v449 = vpop.f32.mrf.mxu0
      %450 = vdwg.mxu0
      %451 = vrot.lane.b32.xlu0 %v121, 104
      %v452 = vpop.permute.xlu0 %451
      %453 = vrot.lane.b32.xlu0 %v122, 104
      %v454 = vpop.permute.xlu0 %453
      %455 = vrot.lane.b32.xlu0 %v121, 72
      %v456 = vpop.permute.xlu0 %455
      %457 = vrot.lane.b32.xlu0 %v122, 72
      %v458 = vpop.permute.xlu0 %457
      %v460 = vsel %vm129, %v452, 0
      %v463 = vsel %vm129, %v454, 0
      %v466 = vsel %vm129, %v456, 0
      %v469 = vsel %vm129, %v458, 0
      %471 = vmatpush.bf16.xpose.msra.mxu0 0
      %472 = vmatpush.bf16.xpose.msra.mxu0 0
      %473 = vmatpush.bf16.xpose.msra.mxu0 0
      %474 = vmatpush.bf16.xpose.msra.mxu0 0
      %475 = vmatpush.bf16.xpose.msra.mxu0 0
      %476 = vmatpush.bf16.xpose.msra.mxu0 0
      %477 = vmatpush.bf16.xpose.msra.mxu0 %v469
      %478 = vmatpush.bf16.xpose.msra.mxu0 %v466
      %479 = vmatmul.bf16.gmra.mxu0 %v460
      %v480 = vpop.f32.mrf.mxu0
      %v481 = vadd.f32 0.0, %v480
      %v482 = vpop.f32.mrf.mxu0
      %v483 = vadd.f32 0.0, %v482
      %484 = vmatmul.bf16.gmra.mxu0 %v463
      %v485 = vpop.f32.mrf.mxu0
      %v486 = vadd.f32 0.0, %v485
      %v487 = vpop.f32.mrf.mxu0
      %488 = vdwg.mxu0
      %v489 = vmul.f32 %v481, 0.35355338
      %v490 = vmul.f32 %v483, 0.35355338
      %v491 = vmul.f32 %v486, 0.35355338
      %v492 = vsel %vm163, %v489, -inf
      %493 = vmax.xlane.f32.xlu0 %v492
      %v494 = vpop.xlane.xlu0 %493
      %v495 = vsel %vm163, %v490, -inf
      %496 = vmax.xlane.f32.xlu0 %v495
      %v497 = vpop.xlane.xlu0 %496
      %v498 = vsel %vm170, %v491, -inf
      %499 = vmax.xlane.f32.xlu0 %v498
      %v500 = vpop.xlane.xlu0 %499
      %v501 = vsub.f32 %v489, %v494
      %v502 = vsub.f32 %v490, %v497
      %v503 = vsub.f32 %v491, %v500
      %v504 = vmul.f32 %v501, 1.442695
      %v505 = vpow.pop %v504
      %v506 = vmul.f32 %v502, 1.442695
      %v507 = vpow.pop %v506
      %v508 = vmul.f32 %v503, 1.442695
      %v509 = vpow.pop %v508
      %v510 = vsel %vm163, %v505, 0.0
      %511 = vadd.xlane.f32.xlu0 %v510
      %v512 = vpop.xlane.xlu0 %511
      %v513 = vsel %vm163, %v507, 0.0
      %514 = vadd.xlane.f32.xlu0 %v513
      %v515 = vpop.xlane.xlu0 %514
      %v516 = vsel %vm170, %v509, 0.0
      %517 = vadd.xlane.f32.xlu0 %v516
      %v518 = vpop.xlane.xlu0 %517
      %v519 = vrcp.pop %v512
      %v520 = vrcp.pop %v515
      %v521 = vrcp.pop %v518
      %v522 = vmul.f32 %v505, %v519
      %v523 = vmul.f32 %v507, %v520
      %v524 = vmul.f32 %v509, %v521
      %v525 = vpack.c.bf16 %v523, %v522
      %v526 = vpack.c.bf16 %v524, %v524
      %527 = vrot.lane.b32.xlu0 %v121, 40
      %v528 = vpop.permute.xlu0 %527
      %529 = vrot.lane.b32.xlu0 %v122, 40
      %v530 = vpop.permute.xlu0 %529
      %v533 = vsel %vm163, %v525, 0
      %v536 = vsel %vm163, %v526, 0
      %v539 = vand.u32 %v530, %v213
      %541 = vmatpush.bf16.msra.mxu0 0
      %542 = vmatpush.bf16.msra.mxu0 0
      %543 = vmatpush.bf16.msra.mxu0 0
      %544 = vmatpush.bf16.msra.mxu0 0
      %545 = vmatpush.bf16.msra.mxu0 0
      %546 = vmatpush.bf16.msra.mxu0 0
      %547 = vmatpush.bf16.msra.mxu0 %v539
      %548 = vmatpush.bf16.msra.mxu0 %v528
      %549 = vmatmul.bf16.gmra.mxu0 %v533
      %v550 = vpop.f32.mrf.mxu0
      %v551 = vadd.f32 0.0, %v550
      %v552 = vpop.f32.mrf.mxu0
      %v553 = vadd.f32 0.0, %v552
      %554 = vmatmul.bf16.gmra.mxu0 %v536
      %v555 = vpop.f32.mrf.mxu0
      %v556 = vadd.f32 0.0, %v555
      %v557 = vpop.f32.mrf.mxu0
      %558 = vdwg.mxu0
      %562 = vrot.lane.b32.xlu0 %v335, 8
      %v563 = vpop.permute.xlu0 %562
      %564 = vrot.lane.b32.xlu0 %v337, 8
      %v565 = vpop.permute.xlu0 %564
      %566 = vrot.lane.b32.xlu0 %v340, 8
      %v567 = vpop.permute.xlu0 %566
      %574 = vrot.lane.b32.xlu0 %v443, 16
      %v575 = vpop.permute.xlu0 %574
      %576 = vrot.lane.b32.xlu0 %v445, 16
      %v577 = vpop.permute.xlu0 %576
      %578 = vrot.lane.b32.xlu0 %v448, 16
      %v579 = vpop.permute.xlu0 %578
      %586 = vrot.lane.b32.xlu0 %v551, 24
      %v587 = vpop.permute.xlu0 %586
      %588 = vrot.lane.b32.xlu0 %v553, 24
      %v589 = vpop.permute.xlu0 %588
      %590 = vrot.lane.b32.xlu0 %v556, 24
      %v591 = vpop.permute.xlu0 %590
      %v595 = vsel %vm129, %v227, %v563
      %v596 = vsel %vm129, %v229, %v565
      %v597 = vsel %vm129, %v232, %v567
      %vm598 = vcmask 130048
      %v599 = vsel %vm598, %v595, %v575
      %v600 = vsel %vm598, %v596, %v577
      %v601 = vsel %vm598, %v597, %v579
      %vm602 = vcmask 195584
      %v603 = vsel %vm602, %v599, %v587
      %v604 = vsel %vm602, %v600, %v589
      %v605 = vsel %vm602, %v601, %v591
      %vm606 = vcmask 261120
      %607 = vst.msk [vmem:[%s116] sm:$0xff] %vm606, %v603
      %608 = vst.msk [vmem:[%s116 + $0x8] sm:$0xff] %vm606, %v604
      %vm609 = vcmask 253952
      %610 = vst.msk [vmem:[%s116 + $0x10] sm:$0x1] %vm609, %v605
      %p611 = scmp.lt.s32.totalorder %s12, 1
      %s612 = scalar_select %p611, %s12, 1
      %s613 = smul.addr %s612, 3
      %s614 = smul.addr %s613, 8
      %s615 = scalar_lea.vmem %s1, %s614
      // Predicated region
      $region25: #{_lambda_.52} parent=23 // pred_check
        %p616 = pneg %p56
      $region26: #{_lambda_.52} parent=23 // pred_check_branch
        %618 = sbr.rel (%p616) target = $region28
      $region27: #{_lambda_.52} parent=23 // pred_region
        _
      $region28: #{_lambda_.52} parent=23 // pred_fallthru
        _
    $region24: #{_lambda_.52} parent=5 // pred_fallthru
      _
    %p619 = scmp.le.s32.totalorder 2, %s7
    // Predicated region
    $region29: #{_lambda_.52} parent=5 // pred_check
      %p620 = pneg %p619
    $region30: #{_lambda_.52} parent=5 // pred_check_branch
      %622 = sbr.rel (%p620) target = $region32
    $region31: #{_lambda_.52} parent=5 // pred_region
      %s623 = ssub.s32 %s7, 2
      // Predicated region
      $region33: #{_lambda_.52} parent=31 // pred_check
        %p624 = pneg %p62
      $region34: #{_lambda_.52} parent=31 // pred_check_branch
        %626 = sbr.rel (%p624) target = $region36
      $region35: #{_lambda_.52} parent=31 // pred_region
        %p627 = scmp.lt.s32.totalorder %s13, 1
        %s628 = scalar_select %p627, %s13, 1
        %s629 = smul.addr %s628, 3
        %s630 = smul.addr %s629, 8
        %s631 = scalar_lea.vmem %s1, %s630
      $region36: #{_lambda_.52} parent=31 // pred_fallthru
        _
    $region32: #{_lambda_.52} parent=5 // pred_fallthru
      _
  $region6: #{_lambda_.52} parent=0 // loop_footer
    %s11 = sadd.s32 1, %s7
  $region7: #{_lambda_.52} parent=0 // loop_footer_branch
    %6 = sbr.rel target = $region3
  $region8: #{_lambda_.52} parent=0 // loop_exit
    _

// kernel: _lambda_.53
$region0: #{_lambda_.53}
  #allocation0 [shape = 'u32[]', space=smem, size = 0x4, offset = 0x4, fixed_abs, tag = 'smem constant byte address 0x4 - core index']
  #allocation1 [shape = 'u32[72,128]{1,0:T(1,128)}', space=vmem, size = 0x9000, scoped, tag = 'internal scratch']
  #allocation2 [shape = 'f32[34,32]{1,0:T(8,128)}', space=vmem, size = 0x5000, scoped, tag = 'scratch operand']
  %s0 = inlined_call_operand.vmem [shape: f32[34,32], index: 0, kind: input, shape index: {}]
  %s1 = inlined_call_operand.vmem [shape: bf16[32,32], index: 1, kind: input, shape index: {}]
  %s2 = inlined_call_operand.vmem [shape: f32[1,32], index: 2, kind: input, shape index: {}]
  %s3 = inlined_call_operand.vmem [shape: f32[34,32], index: 3, kind: input, shape index: {}]
  %s4 = inlined_call_operand.vmem [shape: f32[34,32], index: 4, kind: output, shape index: {}]
  %s5 = sld [smem:[#allocation0]]
  $region34: #{_lambda_.53} parent=0
    _
  %s7 = ssub.s32 1, %s5
  %s8 = scalar_select 0, %s7, %s5
  // Predicated region
  $region2: #{_lambda_.53} parent=0 // pred_check
    _
  $region3: #{_lambda_.53} parent=0 // pred_check_branch
    %10 = sbr.rel (0) target = $region5
  $region4: #{_lambda_.53} parent=0 // pred_region
    _
  $region5: #{_lambda_.53} parent=0 // pred_fallthru
    _
  // Predicated region
  $region6: #{_lambda_.53} parent=0 // pred_check
    _
  $region7: #{_lambda_.53} parent=0 // pred_check_branch
    %12 = sbr.rel (0) target = $region9
  $region8: #{_lambda_.53} parent=0 // pred_region
    _
  $region9: #{_lambda_.53} parent=0 // pred_fallthru
    _
  // Predicated region
  $region10: #{_lambda_.53} parent=0 // pred_check
    _
  $region11: #{_lambda_.53} parent=0 // pred_check_branch
    %14 = sbr.rel (0) target = $region13
  $region12: #{_lambda_.53} parent=0 // pred_region
    _
  $region13: #{_lambda_.53} parent=0 // pred_fallthru
    _
  // Predicated region
  $region14: #{_lambda_.53} parent=0 // pred_check
    _
  $region15: #{_lambda_.53} parent=0 // pred_check_branch
    %16 = sbr.rel (0) target = $region17
  $region16: #{_lambda_.53} parent=0 // pred_region
    _
  $region17: #{_lambda_.53} parent=0 // pred_fallthru
    _
  %p18 = scmp.eq.s32.totalorder 0, 0
  // Predicated region
  $region18: #{_lambda_.53} parent=0 // pred_check
    %p19 = pneg %p18
  $region19: #{_lambda_.53} parent=0 // pred_check_branch
    %21 = sbr.rel (%p19) target = $region21
  $region20: #{_lambda_.53} parent=0 // pred_region
    %vm22 = vcmask 261120
    %23 = vst.msk [vmem:[#allocation2] sm:$0xff] %vm22, 0.0
    %24 = vst.msk [vmem:[#allocation2 + $0x8] sm:$0xff] %vm22, 0.0
    %25 = vst.msk [vmem:[#allocation2 + $0x10] sm:$0xff] %vm22, 0.0
    %26 = vst.msk [vmem:[#allocation2 + $0x18] sm:$0xff] %vm22, 0.0
    %vm27 = vcmask 254976
    %28 = vst.msk [vmem:[#allocation2 + $0x20] sm:$0x3] %vm27, 0.0
  $region21: #{_lambda_.53} parent=0 // pred_fallthru
    _
  %v29 = vld [vmem:[%s0] sm:$0xff]
  %v30 = vld [vmem:[%s0 + $0x8] sm:$0xff]
  %v31 = vld [vmem:[%s0 + $0x10] sm:$0xff]
  %v32 = vld [vmem:[%s0 + $0x18] sm:$0xff]
  %v33 = vld [vmem:[%s0 + $0x20] sm:$0x3]
  %v34 = vld [vmem:[#allocation2] sm:$0xff]
  %v35 = vld [vmem:[#allocation2 + $0x8] sm:$0xff]
  %v36 = vld [vmem:[#allocation2 + $0x10] sm:$0xff]
  %v37 = vld [vmem:[#allocation2 + $0x18] sm:$0xff]
  %v38 = vld [vmem:[#allocation2 + $0x20] sm:$0x3]
  %v39 = vpack.c.bf16 %v30, %v29
  %v40 = vpack.c.bf16 %v32, %v31
  %v41 = vpack.c.bf16 %v33, %v33
  %v42 = vld [vmem:[%s1] sm:$0xf]
  %v43 = vld [vmem:[%s1 + $0x4] sm:$0xf]
  %v44 = vld [vmem:[%s1 + $0x8] sm:$0xf]
  %v45 = vld [vmem:[%s1 + $0xc] sm:$0xf]
  %v50 = vunpack.c.l.b16 %v42
  %v51 = vunpack.c.l.b16 %v43
  %v52 = vunpack.c.l.b16 %v44
  %v53 = vunpack.c.l.b16 %v45
  %v54 = vpack.c.b16 %v51, %v50
  %v55 = vpack.c.b16 %v53, %v52
  %vm58 = vcmask 261120
  %v60 = vsel %vm58, %v39, 0
  %v63 = vsel %vm58, %v40, 0
  %v66 = vsel %vm58, %v41, 0
  %68 = vmatpush.bf16.msra.mxu0 0
  %69 = vmatpush.bf16.msra.mxu0 0
  %70 = vmatpush.bf16.msra.mxu0 0
  %71 = vmatpush.bf16.msra.mxu0 0
  %72 = vmatpush.bf16.msra.mxu0 0
  %73 = vmatpush.bf16.msra.mxu0 0
  %74 = vmatpush.bf16.msra.mxu0 %v55
  %75 = vmatpush.bf16.msra.mxu0 %v54
  %76 = vmatmul.bf16.gmra.mxu0 %v60
  %v77 = vpop.f32.mrf.mxu0
  %v78 = vadd.f32 0.0, %v77
  %v79 = vpop.f32.mrf.mxu0
  %v80 = vadd.f32 0.0, %v79
  %81 = vmatmul.bf16.gmra.mxu0 %v63
  %v82 = vpop.f32.mrf.mxu0
  %v83 = vadd.f32 0.0, %v82
  %v84 = vpop.f32.mrf.mxu0
  %v85 = vadd.f32 0.0, %v84
  %86 = vmatmul.bf16.gmra.mxu0 %v66
  %v87 = vpop.f32.mrf.mxu0
  %v88 = vadd.f32 0.0, %v87
  %v89 = vpop.f32.mrf.mxu0
  %90 = vdwg.mxu0
  %v91 = vadd.f32 %v34, %v78
  %v92 = vadd.f32 %v35, %v80
  %v93 = vadd.f32 %v36, %v83
  %v94 = vadd.f32 %v37, %v85
  %v95 = vadd.f32 %v38, %v88
  %96 = vst.msk [vmem:[#allocation2] sm:$0xff] %vm58, %v91
  %97 = vst.msk [vmem:[#allocation2 + $0x8] sm:$0xff] %vm58, %v92
  %98 = vst.msk [vmem:[#allocation2 + $0x10] sm:$0xff] %vm58, %v93
  %99 = vst.msk [vmem:[#allocation2 + $0x18] sm:$0xff] %vm58, %v94
  %vm100 = vcmask 254976
  %101 = vst.msk [vmem:[#allocation2 + $0x20] sm:$0x3] %vm100, %v95
  // Predicated region
  $region22: #{_lambda_.53} parent=0 // pred_check
    %p102 = pneg %p18
  $region23: #{_lambda_.53} parent=0 // pred_check_branch
    %104 = sbr.rel (%p102) target = $region25
  $region24: #{_lambda_.53} parent=0 // pred_region
    %v105 = vld [vmem:[#allocation2] sm:$0xff]
    %v106 = vld [vmem:[#allocation2 + $0x8] sm:$0xff]
    %v107 = vld [vmem:[#allocation2 + $0x10] sm:$0xff]
    %v108 = vld [vmem:[#allocation2 + $0x18] sm:$0xff]
    %v109 = vld [vmem:[#allocation2 + $0x20] sm:$0x3]
    %v110 = vld [vmem:[%s2] sm:$0x1]
    %v112 = vperm.slane %v110, 0
    %v114 = vadd.f32 %v105, %v112
    %v115 = vadd.f32 %v106, %v112
    %v116 = vadd.f32 %v107, %v112
    %v117 = vadd.f32 %v108, %v112
    %v118 = vadd.f32 %v109, %v112
    %v119 = vld [vmem:[%s3] sm:$0xff]
    %v120 = vld [vmem:[%s3 + $0x8] sm:$0xff]
    %v121 = vld [vmem:[%s3 + $0x10] sm:$0xff]
    %v122 = vld [vmem:[%s3 + $0x18] sm:$0xff]
    %v123 = vld [vmem:[%s3 + $0x20] sm:$0x3]
    %v124 = vadd.f32 %v114, %v119
    %v125 = vadd.f32 %v115, %v120
    %v126 = vadd.f32 %v116, %v121
    %v127 = vadd.f32 %v117, %v122
    %v128 = vadd.f32 %v118, %v123
    %129 = vst.msk [vmem:[%s4] sm:$0xff] %vm58, %v124
    %130 = vst.msk [vmem:[%s4 + $0x8] sm:$0xff] %vm58, %v125
    %131 = vst.msk [vmem:[%s4 + $0x10] sm:$0xff] %vm58, %v126
    %132 = vst.msk [vmem:[%s4 + $0x18] sm:$0xff] %vm58, %v127
    %133 = vst.msk [vmem:[%s4 + $0x20] sm:$0x3] %vm100, %v128
  $region25: #{_lambda_.53} parent=0 // pred_fallthru
    _
  // Predicated region
  $region26: #{_lambda_.53} parent=0 // pred_check
    _
  $region27: #{_lambda_.53} parent=0 // pred_check_branch
    %135 = sbr.rel (0) target = $region29
  $region28: #{_lambda_.53} parent=0 // pred_region
    _
  $region29: #{_lambda_.53} parent=0 // pred_fallthru
    _
  // Predicated region
  $region30: #{_lambda_.53} parent=0 // pred_check
    _
  $region31: #{_lambda_.53} parent=0 // pred_check_branch
    %137 = sbr.rel (0) target = $region33
  $region32: #{_lambda_.53} parent=0 // pred_region
    _
  $region33: #{_lambda_.53} parent=0 // pred_fallthru
    _

// kernel: _lambda_.54
$region0: #{_lambda_.54}
  #allocation0 [shape = 'u32[]', space=smem, size = 0x4, offset = 0x4, fixed_abs, tag = 'smem constant byte address 0x4 - core index']
  #allocation1 [shape = 'u32[72,128]{1,0:T(1,128)}', space=vmem, size = 0x9000, scoped, tag = 'internal scratch']
  #allocation2 [shape = 'f32[34,128]{1,0:T(8,128)}', space=vmem, size = 0x5000, scoped, tag = 'scratch operand']
  %s0 = inlined_call_operand.vmem [shape: f32[34,32], index: 0, kind: input, shape index: {}]
  %s1 = inlined_call_operand.vmem [shape: bf16[32,128], index: 1, kind: input, shape index: {}]
  %s2 = inlined_call_operand.vmem [shape: f32[1,128], index: 2, kind: input, shape index: {}]
  %s3 = inlined_call_operand.vmem [shape: f32[1,32], index: 3, kind: input, shape index: {}]
  %s4 = inlined_call_operand.vmem [shape: f32[1,32], index: 4, kind: input, shape index: {}]
  %s5 = inlined_call_operand.vmem [shape: f32[34,128], index: 5, kind: output, shape index: {}]
  %s6 = sld [smem:[#allocation0]]
  $region38: #{_lambda_.54} parent=0
    _
  %s8 = ssub.s32 1, %s6
  %s9 = scalar_select 0, %s8, %s6
  // Predicated region
  $region2: #{_lambda_.54} parent=0 // pred_check
    _
  $region3: #{_lambda_.54} parent=0 // pred_check_branch
    %11 = sbr.rel (0) target = $region5
  $region4: #{_lambda_.54} parent=0 // pred_region
    _
  $region5: #{_lambda_.54} parent=0 // pred_fallthru
    _
  // Predicated region
  $region6: #{_lambda_.54} parent=0 // pred_check
    _
  $region7: #{_lambda_.54} parent=0 // pred_check_branch
    %13 = sbr.rel (0) target = $region9
  $region8: #{_lambda_.54} parent=0 // pred_region
    _
  $region9: #{_lambda_.54} parent=0 // pred_fallthru
    _
  // Predicated region
  $region10: #{_lambda_.54} parent=0 // pred_check
    _
  $region11: #{_lambda_.54} parent=0 // pred_check_branch
    %15 = sbr.rel (0) target = $region13
  $region12: #{_lambda_.54} parent=0 // pred_region
    _
  $region13: #{_lambda_.54} parent=0 // pred_fallthru
    _
  // Predicated region
  $region14: #{_lambda_.54} parent=0 // pred_check
    _
  $region15: #{_lambda_.54} parent=0 // pred_check_branch
    %17 = sbr.rel (0) target = $region17
  $region16: #{_lambda_.54} parent=0 // pred_region
    _
  $region17: #{_lambda_.54} parent=0 // pred_fallthru
    _
  // Predicated region
  $region18: #{_lambda_.54} parent=0 // pred_check
    _
  $region19: #{_lambda_.54} parent=0 // pred_check_branch
    %19 = sbr.rel (0) target = $region21
  $region20: #{_lambda_.54} parent=0 // pred_region
    _
  $region21: #{_lambda_.54} parent=0 // pred_fallthru
    _
  %p21 = scmp.eq.s32.totalorder 0, 0
  // Predicated region
  $region22: #{_lambda_.54} parent=0 // pred_check
    %p22 = pneg %p21
  $region23: #{_lambda_.54} parent=0 // pred_check_branch
    %24 = sbr.rel (%p22) target = $region25
  $region24: #{_lambda_.54} parent=0 // pred_region
    %25 = vst [vmem:[#allocation2] sm:$0xff] 0.0
    %26 = vst [vmem:[#allocation2 + $0x8] sm:$0xff] 0.0
    %27 = vst [vmem:[#allocation2 + $0x10] sm:$0xff] 0.0
    %28 = vst [vmem:[#allocation2 + $0x18] sm:$0xff] 0.0
    %29 = vst [vmem:[#allocation2 + $0x20] sm:$0x3] 0.0
  $region25: #{_lambda_.54} parent=0 // pred_fallthru
    _
  %v30 = vld [vmem:[%s0] sm:$0xff]
  %v31 = vld [vmem:[%s0 + $0x8] sm:$0xff]
  %v32 = vld [vmem:[%s0 + $0x10] sm:$0xff]
  %v33 = vld [vmem:[%s0 + $0x18] sm:$0xff]
  %v34 = vld [vmem:[%s0 + $0x20] sm:$0x3]
  %vm35 = vcmask 261120
  %v36 = vsel %vm35, %v30, 0.0
  %37 = vadd.xlane.f32.xlu0 %v36
  %v38 = vpop.xlane.xlu0 %37
  %v39 = vsel %vm35, %v31, 0.0
  %40 = vadd.xlane.f32.xlu0 %v39
  %v41 = vpop.xlane.xlu0 %40
  %v42 = vsel %vm35, %v32, 0.0
  %43 = vadd.xlane.f32.xlu0 %v42
  %v44 = vpop.xlane.xlu0 %43
  %v45 = vsel %vm35, %v33, 0.0
  %46 = vadd.xlane.f32.xlu0 %v45
  %v47 = vpop.xlane.xlu0 %46
  %vm48 = vcmask 254976
  %v49 = vsel %vm48, %v34, 0.0
  %50 = vadd.xlane.f32.xlu0 %v49
  %v51 = vpop.xlane.xlu0 %50
  %v52 = vrcp.pop 32.0
  %v53 = vmul.f32 32.0, %v52
  %v54 = vsub.f32 1.0, %v53
  %v55 = vmul.f32 %v52, %v54
  %v56 = vadd.f32 %v52, %v55
  %vm57 = vweird.f32 %v52
  %v58 = vsel %vm57, %v52, %v56
  %v59 = vmul.f32 %v38, %v58
  %v60 = vmul.f32 %v41, %v58
  %v61 = vmul.f32 %v44, %v58
  %v62 = vmul.f32 %v47, %v58
  %v63 = vmul.f32 %v51, %v58
  %v64 = vsub.f32 %v30, %v59
  %v65 = vsub.f32 %v31, %v60
  %v66 = vsub.f32 %v32, %v61
  %v67 = vsub.f32 %v33, %v62
  %v68 = vsub.f32 %v34, %v63
  %v69 = vmul.f32 %v64, %v64
  %v70 = vmul.f32 %v65, %v65
  %v71 = vmul.f32 %v66, %v66
  %v72 = vmul.f32 %v67, %v67
  %v73 = vmul.f32 %v68, %v68
  %v74 = vsel %vm35, %v69, 0.0
  %75 = vadd.xlane.f32.xlu0 %v74
  %v76 = vpop.xlane.xlu0 %75
  %v77 = vsel %vm35, %v70, 0.0
  %78 = vadd.xlane.f32.xlu0 %v77
  %v79 = vpop.xlane.xlu0 %78
  %v80 = vsel %vm35, %v71, 0.0
  %81 = vadd.xlane.f32.xlu0 %v80
  %v82 = vpop.xlane.xlu0 %81
  %v83 = vsel %vm35, %v72, 0.0
  %84 = vadd.xlane.f32.xlu0 %v83
  %v85 = vpop.xlane.xlu0 %84
  %v86 = vsel %vm48, %v73, 0.0
  %87 = vadd.xlane.f32.xlu0 %v86
  %v88 = vpop.xlane.xlu0 %87
  %v89 = vmul.f32 %v76, %v58
  %v90 = vmul.f32 %v79, %v58
  %v91 = vmul.f32 %v82, %v58
  %v92 = vmul.f32 %v85, %v58
  %v93 = vmul.f32 %v88, %v58
  %v94 = vadd.f32 %v89, 1e-05
  %v95 = vadd.f32 %v90, 1e-05
  %v96 = vadd.f32 %v91, 1e-05
  %v97 = vadd.f32 %v92, 1e-05
  %v98 = vadd.f32 %v93, 1e-05
  %v99 = vrsqrt.pop %v94
  %v100 = vmul.f32 %v99, %v94
  %v101 = vmul.f32 %v100, %v99
  %v102 = vmul.f32 0.5, %v101
  %v103 = vsub.f32 1.5, %v102
  %v104 = vmul.f32 %v99, %v103
  %vm105 = vweird.f32 %v94
  %vm106 = vweird.f32 %v99
  %vm107 = vmor %vm105, %vm106
  %v108 = vsel %vm107, %v99, %v104
  %v109 = vrsqrt.pop %v95
  %v110 = vmul.f32 %v109, %v95
  %v111 = vmul.f32 %v110, %v109
  %v112 = vmul.f32 0.5, %v111
  %v113 = vsub.f32 1.5, %v112
  %v114 = vmul.f32 %v109, %v113
  %vm115 = vweird.f32 %v95
  %vm116 = vweird.f32 %v109
  %vm117 = vmor %vm115, %vm116
  %v118 = vsel %vm117, %v109, %v114
  %v119 = vrsqrt.pop %v96
  %v120 = vmul.f32 %v119, %v96
  %v121 = vmul.f32 %v120, %v119
  %v122 = vmul.f32 0.5, %v121
  %v123 = vsub.f32 1.5, %v122
  %v124 = vmul.f32 %v119, %v123
  %vm125 = vweird.f32 %v96
  %vm126 = vweird.f32 %v119
  %vm127 = vmor %vm125, %vm126
  %v128 = vsel %vm127, %v119, %v124
  %v129 = vrsqrt.pop %v97
  %v130 = vmul.f32 %v129, %v97
  %v131 = vmul.f32 %v130, %v129
  %v132 = vmul.f32 0.5, %v131
  %v133 = vsub.f32 1.5, %v132
  %v134 = vmul.f32 %v129, %v133
  %vm135 = vweird.f32 %v97
  %vm136 = vweird.f32 %v129
  %vm137 = vmor %vm135, %vm136
  %v138 = vsel %vm137, %v129, %v134
  %v139 = vrsqrt.pop %v98
  %v140 = vmul.f32 %v139, %v98
  %v141 = vmul.f32 %v140, %v139
  %v142 = vmul.f32 0.5, %v141
  %v143 = vsub.f32 1.5, %v142
  %v144 = vmul.f32 %v139, %v143
  %vm145 = vweird.f32 %v98
  %vm146 = vweird.f32 %v139
  %vm147 = vmor %vm145, %vm146
  %v148 = vsel %vm147, %v139, %v144
  %v149 = vmul.f32 %v64, %v108
  %v150 = vmul.f32 %v65, %v118
  %v151 = vmul.f32 %v66, %v128
  %v152 = vmul.f32 %v67, %v138
  %v153 = vmul.f32 %v68, %v148
  %v154 = vld [vmem:[%s3] sm:$0x1]
  %v156 = vperm.slane %v154, 0
  %v158 = vmul.f32 %v149, %v156
  %v159 = vmul.f32 %v150, %v156
  %v160 = vmul.f32 %v151, %v156
  %v161 = vmul.f32 %v152, %v156
  %v162 = vmul.f32 %v153, %v156
  %v163 = vld [vmem:[%s4] sm:$0x1]
  %v165 = vperm.slane %v163, 0
  %v167 = vadd.f32 %v158, %v165
  %v168 = vadd.f32 %v159, %v165
  %v169 = vadd.f32 %v160, %v165
  %v170 = vadd.f32 %v161, %v165
  %v171 = vadd.f32 %v162, %v165
  %v172 = vld [vmem:[#allocation2] sm:$0xff]
  %v173 = vld [vmem:[#allocation2 + $0x8] sm:$0xff]
  %v174 = vld [vmem:[#allocation2 + $0x10] sm:$0xff]
  %v175 = vld [vmem:[#allocation2 + $0x18] sm:$0xff]
  %v176 = vld [vmem:[#allocation2 + $0x20] sm:$0x3]
  %v177 = vpack.c.bf16 %v168, %v167
  %v178 = vpack.c.bf16 %v170, %v169
  %v179 = vpack.c.bf16 %v171, %v171
  %v180 = vld [vmem:[%s1] sm:$0xf]
  %v181 = vld [vmem:[%s1 + $0x4] sm:$0xf]
  %v182 = vld [vmem:[%s1 + $0x8] sm:$0xf]
  %v183 = vld [vmem:[%s1 + $0xc] sm:$0xf]
  %v188 = vunpack.c.l.b16 %v180
  %v189 = vunpack.c.l.b16 %v181
  %v190 = vunpack.c.l.b16 %v182
  %v191 = vunpack.c.l.b16 %v183
  %v192 = vpack.c.b16 %v189, %v188
  %v193 = vpack.c.b16 %v191, %v190
  %v197 = vsel %vm35, %v177, 0
  %v200 = vsel %vm35, %v178, 0
  %v203 = vsel %vm35, %v179, 0
  %205 = vmatpush.bf16.msra.mxu0 0
  %206 = vmatpush.bf16.msra.mxu0 0
  %207 = vmatpush.bf16.msra.mxu0 0
  %208 = vmatpush.bf16.msra.mxu0 0
  %209 = vmatpush.bf16.msra.mxu0 0
  %210 = vmatpush.bf16.msra.mxu0 0
  %211 = vmatpush.bf16.msra.mxu0 %v193
  %212 = vmatpush.bf16.msra.mxu0 %v192
  %213 = vmatmul.bf16.gmra.mxu0 %v197
  %v214 = vpop.f32.mrf.mxu0
  %v215 = vadd.f32 0.0, %v214
  %v216 = vpop.f32.mrf.mxu0
  %v217 = vadd.f32 0.0, %v216
  %218 = vmatmul.bf16.gmra.mxu0 %v200
  %v219 = vpop.f32.mrf.mxu0
  %v220 = vadd.f32 0.0, %v219
  %v221 = vpop.f32.mrf.mxu0
  %v222 = vadd.f32 0.0, %v221
  %223 = vmatmul.bf16.gmra.mxu0 %v203
  %v224 = vpop.f32.mrf.mxu0
  %v225 = vadd.f32 0.0, %v224
  %v226 = vpop.f32.mrf.mxu0
  %227 = vdwg.mxu0
  %v228 = vadd.f32 %v172, %v215
  %v229 = vadd.f32 %v173, %v217
  %v230 = vadd.f32 %v174, %v220
  %v231 = vadd.f32 %v175, %v222
  %v232 = vadd.f32 %v176, %v225
  %233 = vst [vmem:[#allocation2] sm:$0xff] %v228
  %234 = vst [vmem:[#allocation2 + $0x8] sm:$0xff] %v229
  %235 = vst [vmem:[#allocation2 + $0x10] sm:$0xff] %v230
  %236 = vst [vmem:[#allocation2 + $0x18] sm:$0xff] %v231
  %237 = vst [vmem:[#allocation2 + $0x20] sm:$0x3] %v232
  // Predicated region
  $region26: #{_lambda_.54} parent=0 // pred_check
    %p238 = pneg %p21
  $region27: #{_lambda_.54} parent=0 // pred_check_branch
    %240 = sbr.rel (%p238) target = $region29
  $region28: #{_lambda_.54} parent=0 // pred_region
    %v241 = vld [vmem:[#allocation2] sm:$0xff]
    %v242 = vld [vmem:[#allocation2 + $0x8] sm:$0xff]
    %v243 = vld [vmem:[#allocation2 + $0x10] sm:$0xff]
    %v244 = vld [vmem:[#allocation2 + $0x18] sm:$0xff]
    %v245 = vld [vmem:[#allocation2 + $0x20] sm:$0x3]
    %v246 = vld [vmem:[%s2] sm:$0x1]
    %v248 = vperm.slane %v246, 0
    %v250 = vadd.f32 %v241, %v248
    %v251 = vadd.f32 %v242, %v248
    %v252 = vadd.f32 %v243, %v248
    %v253 = vadd.f32 %v244, %v248
    %v254 = vadd.f32 %v245, %v248
    %v255 = vmul.f32 %v250, %v250
    %v256 = vmul.f32 %v251, %v251
    %v257 = vmul.f32 %v252, %v252
    %v258 = vmul.f32 %v253, %v253
    %v259 = vmul.f32 %v254, %v254
    %v260 = vmul.f32 %v250, %v255
    %v261 = vmul.f32 %v251, %v256
    %v262 = vmul.f32 %v252, %v257
    %v263 = vmul.f32 %v253, %v258
    %v264 = vmul.f32 %v254, %v259
    %v265 = vmul.f32 %v260, 0.044715
    %v266 = vmul.f32 %v261, 0.044715
    %v267 = vmul.f32 %v262, 0.044715
    %v268 = vmul.f32 %v263, 0.044715
    %v269 = vmul.f32 %v264, 0.044715
    %v270 = vadd.f32 %v250, %v265
    %v271 = vadd.f32 %v251, %v266
    %v272 = vadd.f32 %v252, %v267
    %v273 = vadd.f32 %v253, %v268
    %v274 = vadd.f32 %v254, %v269
    %v275 = vmul.f32 %v270, 0.7978846
    %v276 = vmul.f32 %v271, 0.7978846
    %v277 = vmul.f32 %v272, 0.7978846
    %v278 = vmul.f32 %v273, 0.7978846
    %v279 = vmul.f32 %v274, 0.7978846
    %v280 = vtanh.pop %v275
    %v281 = vtanh.pop %v276
    %v282 = vtanh.pop %v277
    %v283 = vtanh.pop %v278
    %v284 = vtanh.pop %v279
    %v285 = vadd.f32 %v280, 1.0
    %v286 = vadd.f32 %v281, 1.0
    %v287 = vadd.f32 %v282, 1.0
    %v288 = vadd.f32 %v283, 1.0
    %v289 = vadd.f32 %v284, 1.0
    %v290 = vmul.f32 %v285, 0.5
    %v291 = vmul.f32 %v286, 0.5
    %v292 = vmul.f32 %v287, 0.5
    %v293 = vmul.f32 %v288, 0.5
    %v294 = vmul.f32 %v289, 0.5
    %v295 = vmul.f32 %v250, %v290
    %v296 = vmul.f32 %v251, %v291
    %v297 = vmul.f32 %v252, %v292
    %v298 = vmul.f32 %v253, %v293
    %v299 = vmul.f32 %v254, %v294
    %300 = vst [vmem:[%s5] sm:$0xff] %v295
    %301 = vst [vmem:[%s5 + $0x8] sm:$0xff] %v296
    %302 = vst [vmem:[%s5 + $0x10] sm:$0xff] %v297
    %303 = vst [vmem:[%s5 + $0x18] sm:$0xff] %v298
    %304 = vst [vmem:[%s5 + $0x20] sm:$0x3] %v299
  $region29: #{_lambda_.54} parent=0 // pred_fallthru
    _
  // Predicated region
  $region30: #{_lambda_.54} parent=0 // pred_check
    _
  $region31: #{_lambda_.54} parent=0 // pred_check_branch
    %306 = sbr.rel (0) target = $region33
  $region32: #{_lambda_.54} parent=0 // pred_region
    _
  $region33: #{_lambda_.54} parent=0 // pred_fallthru
    _
  // Predicated region
  $region34: #{_lambda_.54} parent=0 // pred_check
    _
  $region35: #{_lambda_.54} parent=0 // pred_check_branch
    %308 = sbr.rel (0) target = $region37
  $region36: #{_lambda_.54} parent=0 // pred_region
    _
  $region37: #{_lambda_.54} parent=0 // pred_fallthru
    _

// kernel: _lambda_.62
$region0: #{_lambda_.62}
  #allocation0 [shape = 'u32[]', space=smem, size = 0x4, offset = 0x4, fixed_abs, tag = 'smem constant byte address 0x4 - core index']
  #allocation1 [shape = 'u32[72,128]{1,0:T(1,128)}', space=vmem, size = 0x9000, scoped, tag = 'internal scratch']
  #allocation2 [shape = 'f32[4,96]{1,0:T(4,128)}', space=vmem, size = 0x800, scoped, tag = 'scratch operand']
  %s0 = inlined_call_operand.vmem [shape: f32[4,32], index: 0, kind: input, shape index: {}]
  %s1 = inlined_call_operand.vmem [shape: bf16[32,96], index: 1, kind: input, shape index: {}]
  %s2 = inlined_call_operand.vmem [shape: f32[1,96], index: 2, kind: input, shape index: {}]
  %s3 = inlined_call_operand.vmem [shape: f32[4,96], index: 3, kind: output, shape index: {}]
  %s4 = sld [smem:[#allocation0]]
  $region30: #{_lambda_.62} parent=0
    _
  %s6 = ssub.s32 1, %s4
  %s7 = scalar_select 0, %s6, %s4
  // Predicated region
  $region2: #{_lambda_.62} parent=0 // pred_check
    _
  $region3: #{_lambda_.62} parent=0 // pred_check_branch
    %9 = sbr.rel (0) target = $region5
  $region4: #{_lambda_.62} parent=0 // pred_region
    _
  $region5: #{_lambda_.62} parent=0 // pred_fallthru
    _
  // Predicated region
  $region6: #{_lambda_.62} parent=0 // pred_check
    _
  $region7: #{_lambda_.62} parent=0 // pred_check_branch
    %11 = sbr.rel (0) target = $region9
  $region8: #{_lambda_.62} parent=0 // pred_region
    _
  $region9: #{_lambda_.62} parent=0 // pred_fallthru
    _
  // Predicated region
  $region10: #{_lambda_.62} parent=0 // pred_check
    _
  $region11: #{_lambda_.62} parent=0 // pred_check_branch
    %13 = sbr.rel (0) target = $region13
  $region12: #{_lambda_.62} parent=0 // pred_region
    _
  $region13: #{_lambda_.62} parent=0 // pred_fallthru
    _
  %p15 = scmp.eq.s32.totalorder 0, 0
  // Predicated region
  $region14: #{_lambda_.62} parent=0 // pred_check
    %p16 = pneg %p15
  $region15: #{_lambda_.62} parent=0 // pred_check_branch
    %18 = sbr.rel (%p16) target = $region17
  $region16: #{_lambda_.62} parent=0 // pred_region
    %vm19 = vcmask 781312
    %20 = vst.msk [vmem:[#allocation2] sm:$0xf] %vm19, 0.0
  $region17: #{_lambda_.62} parent=0 // pred_fallthru
    _
  %v21 = vld [vmem:[%s0] sm:$0xf]
  %v22 = vld [vmem:[#allocation2] sm:$0xf]
  %v23 = vpack.c.bf16 %v21, %v21
  %v24 = vld [vmem:[%s1] sm:$0xf]
  %v25 = vld [vmem:[%s1 + $0x4] sm:$0xf]
  %v26 = vld [vmem:[%s1 + $0x8] sm:$0xf]
  %v27 = vld [vmem:[%s1 + $0xc] sm:$0xf]
  %v32 = vunpack.c.l.b16 %v24
  %v33 = vunpack.c.l.b16 %v25
  %v34 = vunpack.c.l.b16 %v26
  %v35 = vunpack.c.l.b16 %v27
  %v36 = vpack.c.b16 %v33, %v32
  %v37 = vpack.c.b16 %v35, %v34
  %vm40 = vcmask 261120
  %v42 = vsel %vm40, %v23, 0
  %44 = vmatpush.bf16.msra.mxu0 0
  %45 = vmatpush.bf16.msra.mxu0 0
  %46 = vmatpush.bf16.msra.mxu0 0
  %47 = vmatpush.bf16.msra.mxu0 0
  %48 = vmatpush.bf16.msra.mxu0 0
  %49 = vmatpush.bf16.msra.mxu0 0
  %50 = vmatpush.bf16.msra.mxu0 %v37
  %51 = vmatpush.bf16.msra.mxu0 %v36
  %52 = vmatmul.bf16.gmra.mxu0 %v42
  %v53 = vpop.f32.mrf.mxu0
  %v54 = vadd.f32 0.0, %v53
  %v55 = vpop.f32.mrf.mxu0
  %56 = vdwg.mxu0
  %v57 = vadd.f32 %v22, %v54
  %vm58 = vcmask 781312
  %59 = vst.msk [vmem:[#allocation2] sm:$0xf] %vm58, %v57
  // Predicated region
  $region18: #{_lambda_.62} parent=0 // pred_check
    %p60 = pneg %p15
  $region19: #{_lambda_.62} parent=0 // pred_check_branch
    %62 = sbr.rel (%p60) target = $region21
  $region20: #{_lambda_.62} parent=0 // pred_region
    %v63 = vld [vmem:[#allocation2] sm:$0xf]
    %v64 = vld [vmem:[%s2] sm:$0x1]
    %v66 = vperm.slane %v64, 0
    %v68 = vadd.f32 %v63, %v66
    %69 = vst.msk [vmem:[%s3] sm:$0xf] %vm58, %v68
  $region21: #{_lambda_.62} parent=0 // pred_fallthru
    _
  // Predicated region
  $region22: #{_lambda_.62} parent=0 // pred_check
    _
  $region23: #{_lambda_.62} parent=0 // pred_check_branch
    %71 = sbr.rel (0) target = $region25
  $region24: #{_lambda_.62} parent=0 // pred_region
    _
  $region25: #{_lambda_.62} parent=0 // pred_fallthru
    _
  // Predicated region
  $region26: #{_lambda_.62} parent=0 // pred_check
    _
  $region27: #{_lambda_.62} parent=0 // pred_check_branch
    %73 = sbr.rel (0) target = $region29
  $region28: #{_lambda_.62} parent=0 // pred_region
    _
  $region29: #{_lambda_.62} parent=0 // pred_fallthru
    _

// kernel: _lambda_.55
$region0: #{_lambda_.55}
  #allocation0 [shape = 'u32[]', space=smem, size = 0x4, offset = 0x4, fixed_abs, tag = 'smem constant byte address 0x4 - core index']
  #allocation1 [shape = 'u32[72,128]{1,0:T(1,128)}', space=vmem, size = 0x9000, scoped, tag = 'internal scratch']
  #allocation2 [shape = 'f32[34,32]{1,0:T(8,128)}', space=vmem, size = 0x5000, scoped, tag = 'scratch operand']
  %s0 = inlined_call_operand.vmem [shape: f32[34,128], index: 0, kind: input, shape index: {}]
  %s1 = inlined_call_operand.vmem [shape: bf16[128,32], index: 1, kind: input, shape index: {}]
  %s2 = inlined_call_operand.vmem [shape: f32[1,32], index: 2, kind: input, shape index: {}]
  %s3 = inlined_call_operand.vmem [shape: f32[34,32], index: 3, kind: input, shape index: {}]
  %s4 = inlined_call_operand.vmem [shape: f32[34,32], index: 4, kind: output, shape index: {}]
  %s5 = sld [smem:[#allocation0]]
  $region34: #{_lambda_.55} parent=0
    _
  %s7 = ssub.s32 1, %s5
  %s8 = scalar_select 0, %s7, %s5
  // Predicated region
  $region2: #{_lambda_.55} parent=0 // pred_check
    _
  $region3: #{_lambda_.55} parent=0 // pred_check_branch
    %10 = sbr.rel (0) target = $region5
  $region4: #{_lambda_.55} parent=0 // pred_region
    _
  $region5: #{_lambda_.55} parent=0 // pred_fallthru
    _
  // Predicated region
  $region6: #{_lambda_.55} parent=0 // pred_check
    _
  $region7: #{_lambda_.55} parent=0 // pred_check_branch
    %12 = sbr.rel (0) target = $region9
  $region8: #{_lambda_.55} parent=0 // pred_region
    _
  $region9: #{_lambda_.55} parent=0 // pred_fallthru
    _
  // Predicated region
  $region10: #{_lambda_.55} parent=0 // pred_check
    _
  $region11: #{_lambda_.55} parent=0 // pred_check_branch
    %14 = sbr.rel (0) target = $region13
  $region12: #{_lambda_.55} parent=0 // pred_region
    _
  $region13: #{_lambda_.55} parent=0 // pred_fallthru
    _
  // Predicated region
  $region14: #{_lambda_.55} parent=0 // pred_check
    _
  $region15: #{_lambda_.55} parent=0 // pred_check_branch
    %16 = sbr.rel (0) target = $region17
  $region16: #{_lambda_.55} parent=0 // pred_region
    _
  $region17: #{_lambda_.55} parent=0 // pred_fallthru
    _
  %p17 = scmp.eq.s32.totalorder 0, 0
  // Predicated region
  $region18: #{_lambda_.55} parent=0 // pred_check
    %p18 = pneg %p17
  $region19: #{_lambda_.55} parent=0 // pred_check_branch
    %20 = sbr.rel (%p18) target = $region21
  $region20: #{_lambda_.55} parent=0 // pred_region
    %vm21 = vcmask 261120
    %22 = vst.msk [vmem:[#allocation2] sm:$0xff] %vm21, 0.0
    %23 = vst.msk [vmem:[#allocation2 + $0x8] sm:$0xff] %vm21, 0.0
    %24 = vst.msk [vmem:[#allocation2 + $0x10] sm:$0xff] %vm21, 0.0
    %25 = vst.msk [vmem:[#allocation2 + $0x18] sm:$0xff] %vm21, 0.0
    %vm26 = vcmask 254976
    %27 = vst.msk [vmem:[#allocation2 + $0x20] sm:$0x3] %vm26, 0.0
  $region21: #{_lambda_.55} parent=0 // pred_fallthru
    _
  %v28 = vld [vmem:[%s0] sm:$0xff]
  %v29 = vld [vmem:[%s0 + $0x8] sm:$0xff]
  %v30 = vld [vmem:[%s0 + $0x10] sm:$0xff]
  %v31 = vld [vmem:[%s0 + $0x18] sm:$0xff]
  %v32 = vld [vmem:[%s0 + $0x20] sm:$0x3]
  %v33 = vld [vmem:[#allocation2] sm:$0xff]
  %v34 = vld [vmem:[#allocation2 + $0x8] sm:$0xff]
  %v35 = vld [vmem:[#allocation2 + $0x10] sm:$0xff]
  %v36 = vld [vmem:[#allocation2 + $0x18] sm:$0xff]
  %v37 = vld [vmem:[#allocation2 + $0x20] sm:$0x3]
  %v38 = vpack.c.bf16 %v29, %v28
  %v39 = vpack.c.bf16 %v31, %v30
  %v40 = vpack.c.bf16 %v32, %v32
  %v41 = vld [vmem:[%s1] sm:$0xf]
  %v42 = vld [vmem:[%s1 + $0x4] sm:$0xf]
  %v43 = vld [vmem:[%s1 + $0x8] sm:$0xf]
  %v44 = vld [vmem:[%s1 + $0xc] sm:$0xf]
  %v45 = vld [vmem:[%s1 + $0x10] sm:$0xf]
  %v46 = vld [vmem:[%s1 + $0x14] sm:$0xf]
  %v47 = vld [vmem:[%s1 + $0x18] sm:$0xf]
  %v48 = vld [vmem:[%s1 + $0x1c] sm:$0xf]
  %v49 = vld [vmem:[%s1 + $0x20] sm:$0xf]
  %v50 = vld [vmem:[%s1 + $0x24] sm:$0xf]
  %v51 = vld [vmem:[%s1 + $0x28] sm:$0xf]
  %v52 = vld [vmem:[%s1 + $0x2c] sm:$0xf]
  %v53 = vld [vmem:[%s1 + $0x30] sm:$0xf]
  %v54 = vld [vmem:[%s1 + $0x34] sm:$0xf]
  %v55 = vld [vmem:[%s1 + $0x38] sm:$0xf]
  %v56 = vld [vmem:[%s1 + $0x3c] sm:$0xf]
  %v73 = vunpack.c.l.b16 %v41
  %v74 = vunpack.c.l.b16 %v42
  %v75 = vunpack.c.l.b16 %v43
  %v76 = vunpack.c.l.b16 %v44
  %v77 = vunpack.c.l.b16 %v45
  %v78 = vunpack.c.l.b16 %v46
  %v79 = vunpack.c.l.b16 %v47
  %v80 = vunpack.c.l.b16 %v48
  %v81 = vunpack.c.l.b16 %v49
  %v82 = vunpack.c.l.b16 %v50
  %v83 = vunpack.c.l.b16 %v51
  %v84 = vunpack.c.l.b16 %v52
  %v85 = vunpack.c.l.b16 %v53
  %v86 = vunpack.c.l.b16 %v54
  %v87 = vunpack.c.l.b16 %v55
  %v88 = vunpack.c.l.b16 %v56
  %v89 = vpack.c.b16 %v74, %v73
  %v90 = vpack.c.b16 %v76, %v75
  %v91 = vpack.c.b16 %v78, %v77
  %v92 = vpack.c.b16 %v80, %v79
  %v93 = vpack.c.b16 %v82, %v81
  %v94 = vpack.c.b16 %v84, %v83
  %v95 = vpack.c.b16 %v86, %v85
  %v96 = vpack.c.b16 %v88, %v87
  %105 = vmatpush.bf16.msra.mxu0 %v96
  %106 = vmatpush.bf16.msra.mxu0 %v95
  %107 = vmatpush.bf16.msra.mxu0 %v94
  %108 = vmatpush.bf16.msra.mxu0 %v93
  %109 = vmatpush.bf16.msra.mxu0 %v92
  %110 = vmatpush.bf16.msra.mxu0 %v91
  %111 = vmatpush.bf16.msra.mxu0 %v90
  %112 = vmatpush.bf16.msra.mxu0 %v89
  %113 = vmatmul.bf16.gmra.mxu0 %v38
  %v114 = vpop.f32.mrf.mxu0
  %v115 = vadd.f32 0.0, %v114
  %v116 = vpop.f32.mrf.mxu0
  %v117 = vadd.f32 0.0, %v116
  %118 = vmatmul.bf16.gmra.mxu0 %v39
  %v119 = vpop.f32.mrf.mxu0
  %v120 = vadd.f32 0.0, %v119
  %v121 = vpop.f32.mrf.mxu0
  %v122 = vadd.f32 0.0, %v121
  %123 = vmatmul.bf16.gmra.mxu0 %v40
  %v124 = vpop.f32.mrf.mxu0
  %v125 = vadd.f32 0.0, %v124
  %v126 = vpop.f32.mrf.mxu0
  %127 = vdwg.mxu0
  %v128 = vadd.f32 %v33, %v115
  %v129 = vadd.f32 %v34, %v117
  %v130 = vadd.f32 %v35, %v120
  %v131 = vadd.f32 %v36, %v122
  %v132 = vadd.f32 %v37, %v125
  %vm133 = vcmask 261120
  %134 = vst.msk [vmem:[#allocation2] sm:$0xff] %vm133, %v128
  %135 = vst.msk [vmem:[#allocation2 + $0x8] sm:$0xff] %vm133, %v129
  %136 = vst.msk [vmem:[#allocation2 + $0x10] sm:$0xff] %vm133, %v130
  %137 = vst.msk [vmem:[#allocation2 + $0x18] sm:$0xff] %vm133, %v131
  %vm138 = vcmask 254976
  %139 = vst.msk [vmem:[#allocation2 + $0x20] sm:$0x3] %vm138, %v132
  // Predicated region
  $region22: #{_lambda_.55} parent=0 // pred_check
    %p140 = pneg %p17
  $region23: #{_lambda_.55} parent=0 // pred_check_branch
    %142 = sbr.rel (%p140) target = $region25
  $region24: #{_lambda_.55} parent=0 // pred_region
    %v143 = vld [vmem:[#allocation2] sm:$0xff]
    %v144 = vld [vmem:[#allocation2 + $0x8] sm:$0xff]
    %v145 = vld [vmem:[#allocation2 + $0x10] sm:$0xff]
    %v146 = vld [vmem:[#allocation2 + $0x18] sm:$0xff]
    %v147 = vld [vmem:[#allocation2 + $0x20] sm:$0x3]
    %v148 = vld [vmem:[%s2] sm:$0x1]
    %v150 = vperm.slane %v148, 0
    %v152 = vadd.f32 %v143, %v150
    %v153 = vadd.f32 %v144, %v150
    %v154 = vadd.f32 %v145, %v150
    %v155 = vadd.f32 %v146, %v150
    %v156 = vadd.f32 %v147, %v150
    %v157 = vld [vmem:[%s3] sm:$0xff]
    %v158 = vld [vmem:[%s3 + $0x8] sm:$0xff]
    %v159 = vld [vmem:[%s3 + $0x10] sm:$0xff]
    %v160 = vld [vmem:[%s3 + $0x18] sm:$0xff]
    %v161 = vld [vmem:[%s3 + $0x20] sm:$0x3]
    %v162 = vadd.f32 %v152, %v157
    %v163 = vadd.f32 %v153, %v158
    %v164 = vadd.f32 %v154, %v159
    %v165 = vadd.f32 %v155, %v160
    %v166 = vadd.f32 %v156, %v161
    %167 = vst.msk [vmem:[%s4] sm:$0xff] %vm133, %v162
    %168 = vst.msk [vmem:[%s4 + $0x8] sm:$0xff] %vm133, %v163
    %169 = vst.msk [vmem:[%s4 + $0x10] sm:$0xff] %vm133, %v164
    %170 = vst.msk [vmem:[%s4 + $0x18] sm:$0xff] %vm133, %v165
    %171 = vst.msk [vmem:[%s4 + $0x20] sm:$0x3] %vm138, %v166
  $region25: #{_lambda_.55} parent=0 // pred_fallthru
    _
  // Predicated region
  $region26: #{_lambda_.55} parent=0 // pred_check
    _
  $region27: #{_lambda_.55} parent=0 // pred_check_branch
    %173 = sbr.rel (0) target = $region29
  $region28: #{_lambda_.55} parent=0 // pred_region
    _
  $region29: #{_lambda_.55} parent=0 // pred_fallthru
    _
  // Predicated region
  $region30: #{_lambda_.55} parent=0 // pred_check
    _
  $region31: #{_lambda_.55} parent=0 // pred_check_branch
    %175 = sbr.rel (0) target = $region33
  $region32: #{_lambda_.55} parent=0 // pred_region
    _
  $region33: #{_lambda_.55} parent=0 // pred_fallthru
    _

// kernel: _lambda_.63
$region0: #{_lambda_.63}
  #allocation0 [shape = 'u32[]', space=smem, size = 0x4, offset = 0x4, fixed_abs, tag = 'smem constant byte address 0x4 - core index']
  #allocation1 [shape = 'u32[72,128]{1,0:T(1,128)}', space=vmem, size = 0x9000, scoped, tag = 'internal scratch']
  %s0 = inlined_call_operand.vmem [shape: f32[2,2,96], index: 0, kind: input, shape index: {}]
  %s1 = inlined_call_operand.vmem [shape: f32[2,2,32], index: 1, kind: output, shape index: {}]
  %s2 = sld [smem:[#allocation0]]
  $region37: #{_lambda_.63} parent=0
    _
  %s4 = ssub.s32 1, %s2
  %s5 = scalar_select 0, %s4, %s2
  loop: start=0, step=1, limit=4
  $region2: #{_lambda_.63} parent=0 // loop_pre_header
    _
  $region3: #{_lambda_.63} parent=0 // loop_header
    %s7 = sphi 0, %s11
    %p8 = scmp.ge.s32.totalorder %s7, 4
    %s17 = sphi 0, %s19
    %s20 = sphi 0, %s17
    %s21 = sphi 0, %s20
    %s37 = sphi 0, %s21
    %s43 = sphi 0, %s45
    %s46 = sphi 0, %s43
    %s47 = sphi 0, %s46
    %s63 = sphi 0, %s47
  $region4: #{_lambda_.63} parent=0 // loop_header_branch
    %10 = sbr.rel (%p8) target = $region8
  $region5: #{_lambda_.63} parent=0 // loop_body
    %s12 = ssub.s32 %s7, 1
    %s13 = ssub.s32 %s7, 2
    %s14 = sadd.s32 %s7, 1
    %s15 = ssub.s32 %s7, %s14
    %p16 = scmp.eq.s32.totalorder %s15, 0
    %s18 = sadd.s32 %s17, 1
    %s19 = scalar_select %p16, %s17, %s18
    %p22 = pneg %p16
    %p23 = scmp.eq.s32.totalorder %s7, 1
    %p24 = por %p22, %p23
    %p25 = scmp.ne.s32.totalorder %s17, %s20
    %p26 = scmp.eq.s32.totalorder %s7, 0
    %p27 = por %p25, %p26
    %p28 = scmp.ne.s32.totalorder %s17, %s20
    %p29 = scmp.eq.s32.totalorder %s12, 1
    %p30 = por %p28, %p29
    %p31 = scmp.ne.s32.totalorder %s20, %s21
    %p32 = scmp.eq.s32.totalorder %s12, 0
    %p33 = por %p31, %p32
    %p34 = scmp.ne.s32.totalorder %s20, %s21
    %p35 = scmp.eq.s32.totalorder %s13, 1
    %p36 = por %p34, %p35
    %p38 = scmp.ne.s32.totalorder %s21, %s37
    %p39 = scmp.eq.s32.totalorder %s13, 0
    %p40 = por %p38, %p39
    %s41 = ssub.s32 %s7, %s14
    %p42 = scmp.eq.s32.totalorder %s41, 0
    %s44 = sadd.s32 %s43, 1
    %s45 = scalar_select %p42, %s43, %s44
    %p48 = pneg %p42
    %p49 = scmp.eq.s32.totalorder %s7, 1
    %p50 = por %p48, %p49
    %p51 = scmp.ne.s32.totalorder %s43, %s46
    %p52 = scmp.eq.s32.totalorder %s7, 0
    %p53 = por %p51, %p52
    %p54 = scmp.ne.s32.totalorder %s43, %s46
    %p55 = scmp.eq.s32.totalorder %s12, 1
    %p56 = por %p54, %p55
    %p57 = scmp.ne.s32.totalorder %s46, %s47
    %p58 = scmp.eq.s32.totalorder %s12, 0
    %p59 = por %p57, %p58
    %p60 = scmp.ne.s32.totalorder %s46, %s47
    %p61 = scmp.eq.s32.totalorder %s13, 1
    %p62 = por %p60, %p61
    %p64 = scmp.ne.s32.totalorder %s47, %s63
    %p65 = scmp.eq.s32.totalorder %s13, 0
    %p66 = por %p64, %p65
    %p67 = scmp.le.s32.totalorder 1, %s7
    %p68 = scmp.lt.s32.totalorder %s7, 3
    %p69 = pnand %p67, %p68
    %p70 = pneg %p69
    // Predicated region
    $region9: #{_lambda_.63} parent=5 // pred_check
      _
    $region10: #{_lambda_.63} parent=5 // pred_check_branch
      %72 = sbr.rel (%p69) target = $region12
    $region11: #{_lambda_.63} parent=5 // pred_region
      %s73 = ssub.s32 %s7, 1
    $region12: #{_lambda_.63} parent=5 // pred_fallthru
      _
    %p74 = scmp.lt.s32.totalorder %s7, 2
    // Predicated region
    $region13: #{_lambda_.63} parent=5 // pred_check
      %p75 = pneg %p74
    $region14: #{_lambda_.63} parent=5 // pred_check_branch
      %77 = sbr.rel (%p75) target = $region16
    $region15: #{_lambda_.63} parent=5 // pred_region
      // Predicated region
      $region17: #{_lambda_.63} parent=15 // pred_check
        %p78 = pneg %p27
      $region18: #{_lambda_.63} parent=15 // pred_check_branch
        %80 = sbr.rel (%p78) target = $region20
      $region19: #{_lambda_.63} parent=15 // pred_region
        %p81 = scmp.lt.s32.totalorder %s7, 1
        %s82 = scalar_select %p81, %s7, 1
        %s83 = smul.addr %s82, 2
        %s84 = scalar_lea.vmem %s0, %s83
      $region20: #{_lambda_.63} parent=15 // pred_fallthru
        _
    $region16: #{_lambda_.63} parent=5 // pred_fallthru
      _
    %p85 = scmp.le.s32.totalorder 1, %s7
    %p86 = scmp.lt.s32.totalorder %s7, 3
    %p87 = pnand %p85, %p86
    %p88 = pneg %p87
    // Predicated region
    $region21: #{_lambda_.63} parent=5 // pred_check
      _
    $region22: #{_lambda_.63} parent=5 // pred_check_branch
      %90 = sbr.rel (%p87) target = $region24
    $region23: #{_lambda_.63} parent=5 // pred_region
      %s91 = ssub.s32 %s7, 1
      %p92 = scmp.lt.s32.totalorder %s12, 1
      %s93 = scalar_select %p92, %s12, 1
      %s94 = smul.addr %s93, 2
      %s95 = scalar_lea.vmem %s0, %s94
      %p96 = pneg %p33
      %p97 = pneg %p30
      %p98 = pneg %p59
      %p99 = pneg %p56
      %p100 = scmp.lt.s32.totalorder %s12, 1
      %s101 = scalar_select %p100, %s12, 1
      %s102 = smul.addr %s101, 2
      %s103 = scalar_lea.vmem %s1, %s102
      %p104 = scmp.lt.s32.totalorder %s12, 1
      %s105 = scalar_select %p104, %s12, 1
      %s106 = smul.addr %s105, 2
      %s107 = scalar_lea.vmem %s0, %s106
      %p108 = scmp.lt.s32.totalorder %s12, 1
      %s109 = scalar_select %p108, %s12, 1
      %s110 = smul.addr %s109, 2
      %s111 = scalar_lea.vmem %s1, %s110
      %v113 = vld [vmem:[%s107] sm:$0x3]
      %v114 = vpack.c.bf16 %v113, %v113
      %116 = vrot.lane.b32.xlu0 %v114, 96
      %v117 = vpop.permute.xlu0 %116
      %vm118 = vcmask 64512
      %v120 = vsel %vm118, %v114, 0
      %v123 = vsel %vm118, %v117, 0
      %125 = vmatpush.bf16.xpose.msra.mxu0 0
      %126 = vmatpush.bf16.xpose.msra.mxu0 0
      %127 = vmatpush.bf16.xpose.msra.mxu0 0
      %128 = vmatpush.bf16.xpose.msra.mxu0 0
      %129 = vmatpush.bf16.xpose.msra.mxu0 0
      %130 = vmatpush.bf16.xpose.msra.mxu0 0
      %131 = vmatpush.bf16.xpose.msra.mxu0 0
      %132 = vmatpush.bf16.xpose.msra.mxu0 %v123
      %133 = vmatmul.bf16.gmra.mxu0 %v120
      %v134 = vpop.f32.mrf.mxu0
      %v135 = vadd.f32 0.0, %v134
      %v136 = vpop.f32.mrf.mxu0
      %137 = vdwg.mxu0
      %v138 = vmul.f32 %v135, 0.35355338
      %vm139 = vcmask 9216
      %v140 = vsel %vm139, %v138, -inf
      %141 = vmax.xlane.f32.xlu0 %v140
      %v142 = vpop.xlane.xlu0 %141
      %v143 = vsub.f32 %v138, %v142
      %v144 = vmul.f32 %v143, 1.442695
      %v145 = vpow.pop %v144
      %v146 = vsel %vm139, %v145, 0.0
      %147 = vadd.xlane.f32.xlu0 %v146
      %v148 = vpop.xlane.xlu0 %147
      %v149 = vrcp.pop %v148
      %v150 = vmul.f32 %v145, %v149
      %v151 = vpack.c.bf16 %v150, %v150
      %152 = vrot.lane.b32.xlu0 %v114, 64
      %v153 = vpop.permute.xlu0 %152
      %vm154 = vcmask 15360
      %v156 = vsel %vm154, %v151, 0
      %vm158 = vcmask 1040384
      %v160 = vsel %vm158, %v153, 0
      %162 = vmatpush.bf16.msra.mxu0 0
      %163 = vmatpush.bf16.msra.mxu0 0
      %164 = vmatpush.bf16.msra.mxu0 0
      %165 = vmatpush.bf16.msra.mxu0 0
      %166 = vmatpush.bf16.msra.mxu0 0
      %167 = vmatpush.bf16.msra.mxu0 0
      %168 = vmatpush.bf16.msra.mxu0 0
      %169 = vmatpush.bf16.msra.mxu0 %v160
      %170 = vmatmul.bf16.gmra.mxu0 %v156
      %v171 = vpop.f32.mrf.mxu0
      %v172 = vadd.f32 0.0, %v171
      %v173 = vpop.f32.mrf.mxu0
      %174 = vdwg.mxu0
      %175 = vrot.lane.b32.xlu0 %v114, 120
      %v176 = vpop.permute.xlu0 %175
      %177 = vrot.lane.b32.xlu0 %v114, 88
      %v178 = vpop.permute.xlu0 %177
      %v180 = vsel %vm118, %v176, 0
      %v183 = vsel %vm118, %v178, 0
      %185 = vmatpush.bf16.xpose.msra.mxu0 0
      %186 = vmatpush.bf16.xpose.msra.mxu0 0
      %187 = vmatpush.bf16.xpose.msra.mxu0 0
      %188 = vmatpush.bf16.xpose.msra.mxu0 0
      %189 = vmatpush.bf16.xpose.msra.mxu0 0
      %190 = vmatpush.bf16.xpose.msra.mxu0 0
      %191 = vmatpush.bf16.xpose.msra.mxu0 0
      %192 = vmatpush.bf16.xpose.msra.mxu0 %v183
      %193 = vmatmul.bf16.gmra.mxu0 %v180
      %v194 = vpop.f32.mrf.mxu0
      %v195 = vadd.f32 0.0, %v194
      %v196 = vpop.f32.mrf.mxu0
      %197 = vdwg.mxu0
      %v198 = vmul.f32 %v195, 0.35355338
      %v199 = vsel %vm139, %v198, -inf
      %200 = vmax.xlane.f32.xlu0 %v199
      %v201 = vpop.xlane.xlu0 %200
      %v202 = vsub.f32 %v198, %v201
      %v203 = vmul.f32 %v202, 1.442695
      %v204 = vpow.pop %v203
      %v205 = vsel %vm139, %v204, 0.0
      %206 = vadd.xlane.f32.xlu0 %v205
      %v207 = vpop.xlane.xlu0 %206
      %v208 = vrcp.pop %v207
      %v209 = vmul.f32 %v204, %v208
      %v210 = vpack.c.bf16 %v209, %v209
      %211 = vrot.lane.b32.xlu0 %v114, 56
      %v212 = vpop.permute.xlu0 %211
      %v214 = vsel %vm154, %v210, 0
      %v217 = vsel %vm158, %v212, 0
      %219 = vmatpush.bf16.msra.mxu0 0
      %220 = vmatpush.bf16.msra.mxu0 0
      %221 = vmatpush.bf16.msra.mxu0 0
      %222 = vmatpush.bf16.msra.mxu0 0
      %223 = vmatpush.bf16.msra.mxu0 0
      %224 = vmatpush.bf16.msra.mxu0 0
      %225 = vmatpush.bf16.msra.mxu0 0
      %226 = vmatpush.bf16.msra.mxu0 %v217
      %227 = vmatmul.bf16.gmra.mxu0 %v214
      %v228 = vpop.f32.mrf.mxu0
      %v229 = vadd.f32 0.0, %v228
      %v230 = vpop.f32.mrf.mxu0
      %231 = vdwg.mxu0
      %232 = vrot.lane.b32.xlu0 %v114, 112
      %v233 = vpop.permute.xlu0 %232
      %234 = vrot.lane.b32.xlu0 %v114, 80
      %v235 = vpop.permute.xlu0 %234
      %v237 = vsel %vm118, %v233, 0
      %v240 = vsel %vm118, %v235, 0
      %242 = vmatpush.bf16.xpose.msra.mxu0 0
      %243 = vmatpush.bf16.xpose.msra.mxu0 0
      %244 = vmatpush.bf16.xpose.msra.mxu0 0
      %245 = vmatpush.bf16.xpose.msra.mxu0 0
      %246 = vmatpush.bf16.xpose.msra.mxu0 0
      %247 = vmatpush.bf16.xpose.msra.mxu0 0
      %248 = vmatpush.bf16.xpose.msra.mxu0 0
      %249 = vmatpush.bf16.xpose.msra.mxu0 %v240
      %250 = vmatmul.bf16.gmra.mxu0 %v237
      %v251 = vpop.f32.mrf.mxu0
      %v252 = vadd.f32 0.0, %v251
      %v253 = vpop.f32.mrf.mxu0
      %254 = vdwg.mxu0
      %v255 = vmul.f32 %v252, 0.35355338
      %v256 = vsel %vm139, %v255, -inf
      %257 = vmax.xlane.f32.xlu0 %v256
      %v258 = vpop.xlane.xlu0 %257
      %v259 = vsub.f32 %v255, %v258
      %v260 = vmul.f32 %v259, 1.442695
      %v261 = vpow.pop %v260
      %v262 = vsel %vm139, %v261, 0.0
      %263 = vadd.xlane.f32.xlu0 %v262
      %v264 = vpop.xlane.xlu0 %263
      %v265 = vrcp.pop %v264
      %v266 = vmul.f32 %v261, %v265
      %v267 = vpack.c.bf16 %v266, %v266
      %268 = vrot.lane.b32.xlu0 %v114, 48
      %v269 = vpop.permute.xlu0 %268
      %v271 = vsel %vm154, %v267, 0
      %v274 = vsel %vm158, %v269, 0
      %276 = vmatpush.bf16.msra.mxu0 0
      %277 = vmatpush.bf16.msra.mxu0 0
      %278 = vmatpush.bf16.msra.mxu0 0
      %279 = vmatpush.bf16.msra.mxu0 0
      %280 = vmatpush.bf16.msra.mxu0 0
      %281 = vmatpush.bf16.msra.mxu0 0
      %282 = vmatpush.bf16.msra.mxu0 0
      %283 = vmatpush.bf16.msra.mxu0 %v274
      %284 = vmatmul.bf16.gmra.mxu0 %v271
      %v285 = vpop.f32.mrf.mxu0
      %v286 = vadd.f32 0.0, %v285
      %v287 = vpop.f32.mrf.mxu0
      %288 = vdwg.mxu0
      %289 = vrot.lane.b32.xlu0 %v114, 104
      %v290 = vpop.permute.xlu0 %289
      %291 = vrot.lane.b32.xlu0 %v114, 72
      %v292 = vpop.permute.xlu0 %291
      %v294 = vsel %vm118, %v290, 0
      %v297 = vsel %vm118, %v292, 0
      %299 = vmatpush.bf16.xpose.msra.mxu0 0
      %300 = vmatpush.bf16.xpose.msra.mxu0 0
      %301 = vmatpush.bf16.xpose.msra.mxu0 0
      %302 = vmatpush.bf16.xpose.msra.mxu0 0
      %303 = vmatpush.bf16.xpose.msra.mxu0 0
      %304 = vmatpush.bf16.xpose.msra.mxu0 0
      %305 = vmatpush.bf16.xpose.msra.mxu0 0
      %306 = vmatpush.bf16.xpose.msra.mxu0 %v297
      %307 = vmatmul.bf16.gmra.mxu0 %v294
      %v308 = vpop.f32.mrf.mxu0
      %v309 = vadd.f32 0.0, %v308
      %v310 = vpop.f32.mrf.mxu0
      %311 = vdwg.mxu0
      %v312 = vmul.f32 %v309, 0.35355338
      %v313 = vsel %vm139, %v312, -inf
      %314 = vmax.xlane.f32.xlu0 %v313
      %v315 = vpop.xlane.xlu0 %314
      %v316 = vsub.f32 %v312, %v315
      %v317 = vmul.f32 %v316, 1.442695
      %v318 = vpow.pop %v317
      %v319 = vsel %vm139, %v318, 0.0
      %320 = vadd.xlane.f32.xlu0 %v319
      %v321 = vpop.xlane.xlu0 %320
      %v322 = vrcp.pop %v321
      %v323 = vmul.f32 %v318, %v322
      %v324 = vpack.c.bf16 %v323, %v323
      %325 = vrot.lane.b32.xlu0 %v114, 40
      %v326 = vpop.permute.xlu0 %325
      %v328 = vsel %vm154, %v324, 0
      %v331 = vsel %vm158, %v326, 0
      %333 = vmatpush.bf16.msra.mxu0 0
      %334 = vmatpush.bf16.msra.mxu0 0
      %335 = vmatpush.bf16.msra.mxu0 0
      %336 = vmatpush.bf16.msra.mxu0 0
      %337 = vmatpush.bf16.msra.mxu0 0
      %338 = vmatpush.bf16.msra.mxu0 0
      %339 = vmatpush.bf16.msra.mxu0 0
      %340 = vmatpush.bf16.msra.mxu0 %v331
      %341 = vmatmul.bf16.gmra.mxu0 %v328
      %v342 = vpop.f32.mrf.mxu0
      %v343 = vadd.f32 0.0, %v342
      %v344 = vpop.f32.mrf.mxu0
      %345 = vdwg.mxu0
      %347 = vrot.lane.b32.xlu0 %v229, 8
      %v348 = vpop.permute.xlu0 %347
      %351 = vrot.lane.b32.xlu0 %v286, 16
      %v352 = vpop.permute.xlu0 %351
      %355 = vrot.lane.b32.xlu0 %v343, 24
      %v356 = vpop.permute.xlu0 %355
      %v358 = vsel %vm118, %v172, %v348
      %vm359 = vcmask 130048
      %v360 = vsel %vm359, %v358, %v352
      %vm361 = vcmask 195584
      %v362 = vsel %vm361, %v360, %v356
      %vm363 = vcmask 254976
      %364 = vst.msk [vmem:[%s111] sm:$0x3] %vm363, %v362
      %p365 = scmp.lt.s32.totalorder %s12, 1
      %s366 = scalar_select %p365, %s12, 1
      %s367 = smul.addr %s366, 2
      %s368 = scalar_lea.vmem %s1, %s367
      // Predicated region
      $region25: #{_lambda_.63} parent=23 // pred_check
        %p369 = pneg %p56
      $region26: #{_lambda_.63} parent=23 // pred_check_branch
        %371 = sbr.rel (%p369) target = $region28
      $region27: #{_lambda_.63} parent=23 // pred_region
        _
      $region28: #{_lambda_.63} parent=23 // pred_fallthru
        _
    $region24: #{_lambda_.63} parent=5 // pred_fallthru
      _
    %p372 = scmp.le.s32.totalorder 2, %s7
    // Predicated region
    $region29: #{_lambda_.63} parent=5 // pred_check
      %p373 = pneg %p372
    $region30: #{_lambda_.63} parent=5 // pred_check_branch
      %375 = sbr.rel (%p373) target = $region32
    $region31: #{_lambda_.63} parent=5 // pred_region
      %s376 = ssub.s32 %s7, 2
      // Predicated region
      $region33: #{_lambda_.63} parent=31 // pred_check
        %p377 = pneg %p62
      $region34: #{_lambda_.63} parent=31 // pred_check_branch
        %379 = sbr.rel (%p377) target = $region36
      $region35: #{_lambda_.63} parent=31 // pred_region
        %p380 = scmp.lt.s32.totalorder %s13, 1
        %s381 = scalar_select %p380, %s13, 1
        %s382 = smul.addr %s381, 2
        %s383 = scalar_lea.vmem %s1, %s382
      $region36: #{_lambda_.63} parent=31 // pred_fallthru
        _
    $region32: #{_lambda_.63} parent=5 // pred_fallthru
      _
  $region6: #{_lambda_.63} parent=0 // loop_footer
    %s11 = sadd.s32 1, %s7
  $region7: #{_lambda_.63} parent=0 // loop_footer_branch
    %6 = sbr.rel target = $region3
  $region8: #{_lambda_.63} parent=0 // loop_exit
    _

// kernel: _lambda_.65
$region0: #{_lambda_.65}
  #allocation0 [shape = 'u32[]', space=smem, size = 0x4, offset = 0x4, fixed_abs, tag = 'smem constant byte address 0x4 - core index']
  #allocation1 [shape = 'u32[72,128]{1,0:T(1,128)}', space=vmem, size = 0x9000, scoped, tag = 'internal scratch']
  #allocation2 [shape = 'f32[4,32]{1,0:T(4,128)}', space=vmem, size = 0x800, scoped, tag = 'scratch operand']
  %s0 = inlined_call_operand.vmem [shape: f32[4,32], index: 0, kind: input, shape index: {}]
  %s1 = inlined_call_operand.vmem [shape: bf16[32,32], index: 1, kind: input, shape index: {}]
  %s2 = inlined_call_operand.vmem [shape: f32[1,32], index: 2, kind: input, shape index: {}]
  %s3 = inlined_call_operand.vmem [shape: f32[4,32], index: 3, kind: output, shape index: {}]
  %s4 = sld [smem:[#allocation0]]
  $region30: #{_lambda_.65} parent=0
    _
  %s6 = ssub.s32 1, %s4
  %s7 = scalar_select 0, %s6, %s4
  // Predicated region
  $region2: #{_lambda_.65} parent=0 // pred_check
    _
  $region3: #{_lambda_.65} parent=0 // pred_check_branch
    %9 = sbr.rel (0) target = $region5
  $region4: #{_lambda_.65} parent=0 // pred_region
    _
  $region5: #{_lambda_.65} parent=0 // pred_fallthru
    _
  // Predicated region
  $region6: #{_lambda_.65} parent=0 // pred_check
    _
  $region7: #{_lambda_.65} parent=0 // pred_check_branch
    %11 = sbr.rel (0) target = $region9
  $region8: #{_lambda_.65} parent=0 // pred_region
    _
  $region9: #{_lambda_.65} parent=0 // pred_fallthru
    _
  // Predicated region
  $region10: #{_lambda_.65} parent=0 // pred_check
    _
  $region11: #{_lambda_.65} parent=0 // pred_check_branch
    %13 = sbr.rel (0) target = $region13
  $region12: #{_lambda_.65} parent=0 // pred_region
    _
  $region13: #{_lambda_.65} parent=0 // pred_fallthru
    _
  %p15 = scmp.eq.s32.totalorder 0, 0
  // Predicated region
  $region14: #{_lambda_.65} parent=0 // pred_check
    %p16 = pneg %p15
  $region15: #{_lambda_.65} parent=0 // pred_check_branch
    %18 = sbr.rel (%p16) target = $region17
  $region16: #{_lambda_.65} parent=0 // pred_region
    %vm19 = vcmask 257024
    %20 = vst.msk [vmem:[#allocation2] sm:$0xf] %vm19, 0.0
  $region17: #{_lambda_.65} parent=0 // pred_fallthru
    _
  %v21 = vld [vmem:[%s0] sm:$0xf]
  %v22 = vld [vmem:[#allocation2] sm:$0xf]
  %v23 = vpack.c.bf16 %v21, %v21
  %v24 = vld [vmem:[%s1] sm:$0xf]
  %v25 = vld [vmem:[%s1 + $0x4] sm:$0xf]
  %v26 = vld [vmem:[%s1 + $0x8] sm:$0xf]
  %v27 = vld [vmem:[%s1 + $0xc] sm:$0xf]
  %v32 = vunpack.c.l.b16 %v24
  %v33 = vunpack.c.l.b16 %v25
  %v34 = vunpack.c.l.b16 %v26
  %v35 = vunpack.c.l.b16 %v27
  %v36 = vpack.c.b16 %v33, %v32
  %v37 = vpack.c.b16 %v35, %v34
  %vm40 = vcmask 261120
  %v42 = vsel %vm40, %v23, 0
  %44 = vmatpush.bf16.msra.mxu0 0
  %45 = vmatpush.bf16.msra.mxu0 0
  %46 = vmatpush.bf16.msra.mxu0 0
  %47 = vmatpush.bf16.msra.mxu0 0
  %48 = vmatpush.bf16.msra.mxu0 0
  %49 = vmatpush.bf16.msra.mxu0 0
  %50 = vmatpush.bf16.msra.mxu0 %v37
  %51 = vmatpush.bf16.msra.mxu0 %v36
  %52 = vmatmul.bf16.gmra.mxu0 %v42
  %v53 = vpop.f32.mrf.mxu0
  %v54 = vadd.f32 0.0, %v53
  %v55 = vpop.f32.mrf.mxu0
  %56 = vdwg.mxu0
  %v57 = vadd.f32 %v22, %v54
  %vm58 = vcmask 257024
  %59 = vst.msk [vmem:[#allocation2] sm:$0xf] %vm58, %v57
  // Predicated region
  $region18: #{_lambda_.65} parent=0 // pred_check
    %p60 = pneg %p15
  $region19: #{_lambda_.65} parent=0 // pred_check_branch
    %62 = sbr.rel (%p60) target = $region21
  $region20: #{_lambda_.65} parent=0 // pred_region
    %v63 = vld [vmem:[#allocation2] sm:$0xf]
    %v64 = vld [vmem:[%s2] sm:$0x1]
    %v66 = vperm.slane %v64, 0
    %v68 = vadd.f32 %v63, %v66
    %69 = vst.msk [vmem:[%s3] sm:$0xf] %vm58, %v68
  $region21: #{_lambda_.65} parent=0 // pred_fallthru
    _
  // Predicated region
  $region22: #{_lambda_.65} parent=0 // pred_check
    _
  $region23: #{_lambda_.65} parent=0 // pred_check_branch
    %71 = sbr.rel (0) target = $region25
  $region24: #{_lambda_.65} parent=0 // pred_region
    _
  $region25: #{_lambda_.65} parent=0 // pred_fallthru
    _
  // Predicated region
  $region26: #{_lambda_.65} parent=0 // pred_check
    _
  $region27: #{_lambda_.65} parent=0 // pred_check_branch
    %73 = sbr.rel (0) target = $region29
  $region28: #{_lambda_.65} parent=0 // pred_region
    _
  $region29: #{_lambda_.65} parent=0 // pred_fallthru
    _

// kernel: _lambda_.64
$region0: #{_lambda_.64}
  #allocation0 [shape = 'u32[]', space=smem, size = 0x4, offset = 0x4, fixed_abs, tag = 'smem constant byte address 0x4 - core index']
  #allocation1 [shape = 'u32[72,128]{1,0:T(1,128)}', space=vmem, size = 0x9000, scoped, tag = 'internal scratch']
  #allocation2 [shape = 'f32[4,32]{1,0:T(4,128)}', space=vmem, size = 0x800, scoped, tag = 'scratch operand']
  %s0 = inlined_call_operand.vmem [shape: f32[4,32], index: 0, kind: input, shape index: {}]
  %s1 = inlined_call_operand.vmem [shape: bf16[32,32], index: 1, kind: input, shape index: {}]
  %s2 = inlined_call_operand.vmem [shape: f32[1,32], index: 2, kind: input, shape index: {}]
  %s3 = inlined_call_operand.vmem [shape: f32[4,32], index: 3, kind: input, shape index: {}]
  %s4 = inlined_call_operand.vmem [shape: f32[1,32], index: 4, kind: input, shape index: {}]
  %s5 = inlined_call_operand.vmem [shape: f32[1,32], index: 5, kind: input, shape index: {}]
  %s6 = inlined_call_operand.vmem [shape: f32[4,32], index: 6, kind: output, shape index: {}]
  %s7 = sld [smem:[#allocation0]]
  $region42: #{_lambda_.64} parent=0
    _
  %s9 = ssub.s32 1, %s7
  %s10 = scalar_select 0, %s9, %s7
  // Predicated region
  $region2: #{_lambda_.64} parent=0 // pred_check
    _
  $region3: #{_lambda_.64} parent=0 // pred_check_branch
    %12 = sbr.rel (0) target = $region5
  $region4: #{_lambda_.64} parent=0 // pred_region
    _
  $region5: #{_lambda_.64} parent=0 // pred_fallthru
    _
  // Predicated region
  $region6: #{_lambda_.64} parent=0 // pred_check
    _
  $region7: #{_lambda_.64} parent=0 // pred_check_branch
    %14 = sbr.rel (0) target = $region9
  $region8: #{_lambda_.64} parent=0 // pred_region
    _
  $region9: #{_lambda_.64} parent=0 // pred_fallthru
    _
  // Predicated region
  $region10: #{_lambda_.64} parent=0 // pred_check
    _
  $region11: #{_lambda_.64} parent=0 // pred_check_branch
    %16 = sbr.rel (0) target = $region13
  $region12: #{_lambda_.64} parent=0 // pred_region
    _
  $region13: #{_lambda_.64} parent=0 // pred_fallthru
    _
  // Predicated region
  $region14: #{_lambda_.64} parent=0 // pred_check
    _
  $region15: #{_lambda_.64} parent=0 // pred_check_branch
    %18 = sbr.rel (0) target = $region17
  $region16: #{_lambda_.64} parent=0 // pred_region
    _
  $region17: #{_lambda_.64} parent=0 // pred_fallthru
    _
  // Predicated region
  $region18: #{_lambda_.64} parent=0 // pred_check
    _
  $region19: #{_lambda_.64} parent=0 // pred_check_branch
    %20 = sbr.rel (0) target = $region21
  $region20: #{_lambda_.64} parent=0 // pred_region
    _
  $region21: #{_lambda_.64} parent=0 // pred_fallthru
    _
  // Predicated region
  $region22: #{_lambda_.64} parent=0 // pred_check
    _
  $region23: #{_lambda_.64} parent=0 // pred_check_branch
    %22 = sbr.rel (0) target = $region25
  $region24: #{_lambda_.64} parent=0 // pred_region
    _
  $region25: #{_lambda_.64} parent=0 // pred_fallthru
    _
  %p24 = scmp.eq.s32.totalorder 0, 0
  // Predicated region
  $region26: #{_lambda_.64} parent=0 // pred_check
    %p25 = pneg %p24
  $region27: #{_lambda_.64} parent=0 // pred_check_branch
    %27 = sbr.rel (%p25) target = $region29
  $region28: #{_lambda_.64} parent=0 // pred_region
    %vm28 = vcmask 257024
    %29 = vst.msk [vmem:[#allocation2] sm:$0xf] %vm28, 0.0
  $region29: #{_lambda_.64} parent=0 // pred_fallthru
    _
  %v30 = vld [vmem:[%s0] sm:$0xf]
  %v31 = vld [vmem:[#allocation2] sm:$0xf]
  %v32 = vpack.c.bf16 %v30, %v30
  %v33 = vld [vmem:[%s1] sm:$0xf]
  %v34 = vld [vmem:[%s1 + $0x4] sm:$0xf]
  %v35 = vld [vmem:[%s1 + $0x8] sm:$0xf]
  %v36 = vld [vmem:[%s1 + $0xc] sm:$0xf]
  %v41 = vunpack.c.l.b16 %v33
  %v42 = vunpack.c.l.b16 %v34
  %v43 = vunpack.c.l.b16 %v35
  %v44 = vunpack.c.l.b16 %v36
  %v45 = vpack.c.b16 %v42, %v41
  %v46 = vpack.c.b16 %v44, %v43
  %vm49 = vcmask 261120
  %v51 = vsel %vm49, %v32, 0
  %53 = vmatpush.bf16.msra.mxu0 0
  %54 = vmatpush.bf16.msra.mxu0 0
  %55 = vmatpush.bf16.msra.mxu0 0
  %56 = vmatpush.bf16.msra.mxu0 0
  %57 = vmatpush.bf16.msra.mxu0 0
  %58 = vmatpush.bf16.msra.mxu0 0
  %59 = vmatpush.bf16.msra.mxu0 %v46
  %60 = vmatpush.bf16.msra.mxu0 %v45
  %61 = vmatmul.bf16.gmra.mxu0 %v51
  %v62 = vpop.f32.mrf.mxu0
  %v63 = vadd.f32 0.0, %v62
  %v64 = vpop.f32.mrf.mxu0
  %65 = vdwg.mxu0
  %v66 = vadd.f32 %v31, %v63
  %vm67 = vcmask 257024
  %68 = vst.msk [vmem:[#allocation2] sm:$0xf] %vm67, %v66
  // Predicated region
  $region30: #{_lambda_.64} parent=0 // pred_check
    %p69 = pneg %p24
  $region31: #{_lambda_.64} parent=0 // pred_check_branch
    %71 = sbr.rel (%p69) target = $region33
  $region32: #{_lambda_.64} parent=0 // pred_region
    %v72 = vld [vmem:[#allocation2] sm:$0xf]
    %v73 = vld [vmem:[%s2] sm:$0x1]
    %v75 = vperm.slane %v73, 0
    %v77 = vadd.f32 %v72, %v75
    %v78 = vld [vmem:[%s3] sm:$0xf]
    %v79 = vadd.f32 %v77, %v78
    %v80 = vsel %vm67, %v79, 0.0
    %81 = vadd.xlane.f32.xlu0 %v80
    %v82 = vpop.xlane.xlu0 %81
    %v83 = vrcp.pop 32.0
    %v84 = vmul.f32 32.0, %v83
    %v85 = vsub.f32 1.0, %v84
    %v86 = vmul.f32 %v83, %v85
    %v87 = vadd.f32 %v83, %v86
    %vm88 = vweird.f32 %v83
    %v89 = vsel %vm88, %v83, %v87
    %v90 = vmul.f32 %v82, %v89
    %v91 = vsub.f32 %v79, %v90
    %v92 = vmul.f32 %v91, %v91
    %v93 = vsel %vm67, %v92, 0.0
    %94 = vadd.xlane.f32.xlu0 %v93
    %v95 = vpop.xlane.xlu0 %94
    %v96 = vmul.f32 %v95, %v89
    %v97 = vadd.f32 %v96, 1e-05
    %v98 = vrsqrt.pop %v97
    %v99 = vmul.f32 %v98, %v97
    %v100 = vmul.f32 %v99, %v98
    %v101 = vmul.f32 0.5, %v100
    %v102 = vsub.f32 1.5, %v101
    %v103 = vmul.f32 %v98, %v102
    %vm104 = vweird.f32 %v97
    %vm105 = vweird.f32 %v98
    %vm106 = vmor %vm104, %vm105
    %v107 = vsel %vm106, %v98, %v103
    %v108 = vmul.f32 %v91, %v107
    %v109 = vld [vmem:[%s4] sm:$0x1]
    %v111 = vperm.slane %v109, 0
    %v113 = vmul.f32 %v108, %v111
    %v114 = vld [vmem:[%s5] sm:$0x1]
    %v116 = vperm.slane %v114, 0
    %v118 = vadd.f32 %v113, %v116
    %119 = vst.msk [vmem:[%s6] sm:$0xf] %vm67, %v118
  $region33: #{_lambda_.64} parent=0 // pred_fallthru
    _
  // Predicated region
  $region34: #{_lambda_.64} parent=0 // pred_check
    _
  $region35: #{_lambda_.64} parent=0 // pred_check_branch
    %121 = sbr.rel (0) target = $region37
  $region36: #{_lambda_.64} parent=0 // pred_region
    _
  $region37: #{_lambda_.64} parent=0 // pred_fallthru
    _
  // Predicated region
  $region38: #{_lambda_.64} parent=0 // pred_check
    _
  $region39: #{_lambda_.64} parent=0 // pred_check_branch
    %123 = sbr.rel (0) target = $region41
  $region40: #{_lambda_.64} parent=0 // pred_region
    _
  $region41: #{_lambda_.64} parent=0 // pred_fallthru
    _

// kernel: _lambda_.71
$region0: #{_lambda_.71}
  #allocation0 [shape = 'u32[]', space=smem, size = 0x4, offset = 0x4, fixed_abs, tag = 'smem constant byte address 0x4 - core index']
  #allocation1 [shape = 'u32[72,128]{1,0:T(1,128)}', space=vmem, size = 0x9000, scoped, tag = 'internal scratch']
  #allocation2 [shape = 'f32[32,32]{1,0:T(8,128)}', space=vmem, size = 0x4000, scoped, tag = 'scratch operand']
  %s0 = inlined_call_operand.vmem [shape: f32[32,32], index: 0, kind: input, shape index: {}]
  %s1 = inlined_call_operand.vmem [shape: bf16[32,32], index: 1, kind: input, shape index: {}]
  %s2 = inlined_call_operand.vmem [shape: f32[1,32], index: 2, kind: input, shape index: {}]
  %s3 = inlined_call_operand.vmem [shape: f32[32,32], index: 3, kind: output, shape index: {}]
  %s4 = sld [smem:[#allocation0]]
  $region30: #{_lambda_.71} parent=0
    _
  %s6 = ssub.s32 1, %s4
  %s7 = scalar_select 0, %s6, %s4
  // Predicated region
  $region2: #{_lambda_.71} parent=0 // pred_check
    _
  $region3: #{_lambda_.71} parent=0 // pred_check_branch
    %9 = sbr.rel (0) target = $region5
  $region4: #{_lambda_.71} parent=0 // pred_region
    _
  $region5: #{_lambda_.71} parent=0 // pred_fallthru
    _
  // Predicated region
  $region6: #{_lambda_.71} parent=0 // pred_check
    _
  $region7: #{_lambda_.71} parent=0 // pred_check_branch
    %11 = sbr.rel (0) target = $region9
  $region8: #{_lambda_.71} parent=0 // pred_region
    _
  $region9: #{_lambda_.71} parent=0 // pred_fallthru
    _
  // Predicated region
  $region10: #{_lambda_.71} parent=0 // pred_check
    _
  $region11: #{_lambda_.71} parent=0 // pred_check_branch
    %13 = sbr.rel (0) target = $region13
  $region12: #{_lambda_.71} parent=0 // pred_region
    _
  $region13: #{_lambda_.71} parent=0 // pred_fallthru
    _
  %p15 = scmp.eq.s32.totalorder 0, 0
  // Predicated region
  $region14: #{_lambda_.71} parent=0 // pred_check
    %p16 = pneg %p15
  $region15: #{_lambda_.71} parent=0 // pred_check_branch
    %18 = sbr.rel (%p16) target = $region17
  $region16: #{_lambda_.71} parent=0 // pred_region
    %vm19 = vcmask 261120
    %20 = vst.msk [vmem:[#allocation2] sm:$0xff] %vm19, 0.0
    %21 = vst.msk [vmem:[#allocation2 + $0x8] sm:$0xff] %vm19, 0.0
    %22 = vst.msk [vmem:[#allocation2 + $0x10] sm:$0xff] %vm19, 0.0
    %23 = vst.msk [vmem:[#allocation2 + $0x18] sm:$0xff] %vm19, 0.0
  $region17: #{_lambda_.71} parent=0 // pred_fallthru
    _
  %v24 = vld [vmem:[%s0] sm:$0xff]
  %v25 = vld [vmem:[%s0 + $0x8] sm:$0xff]
  %v26 = vld [vmem:[%s0 + $0x10] sm:$0xff]
  %v27 = vld [vmem:[%s0 + $0x18] sm:$0xff]
  %v28 = vld [vmem:[#allocation2] sm:$0xff]
  %v29 = vld [vmem:[#allocation2 + $0x8] sm:$0xff]
  %v30 = vld [vmem:[#allocation2 + $0x10] sm:$0xff]
  %v31 = vld [vmem:[#allocation2 + $0x18] sm:$0xff]
  %v32 = vpack.c.bf16 %v25, %v24
  %v33 = vpack.c.bf16 %v27, %v26
  %v34 = vld [vmem:[%s1] sm:$0xf]
  %v35 = vld [vmem:[%s1 + $0x4] sm:$0xf]
  %v36 = vld [vmem:[%s1 + $0x8] sm:$0xf]
  %v37 = vld [vmem:[%s1 + $0xc] sm:$0xf]
  %v42 = vunpack.c.l.b16 %v34
  %v43 = vunpack.c.l.b16 %v35
  %v44 = vunpack.c.l.b16 %v36
  %v45 = vunpack.c.l.b16 %v37
  %v46 = vpack.c.b16 %v43, %v42
  %v47 = vpack.c.b16 %v45, %v44
  %vm50 = vcmask 261120
  %v52 = vsel %vm50, %v32, 0
  %v55 = vsel %vm50, %v33, 0
  %57 = vmatpush.bf16.msra.mxu0 0
  %58 = vmatpush.bf16.msra.mxu0 0
  %59 = vmatpush.bf16.msra.mxu0 0
  %60 = vmatpush.bf16.msra.mxu0 0
  %61 = vmatpush.bf16.msra.mxu0 0
  %62 = vmatpush.bf16.msra.mxu0 0
  %63 = vmatpush.bf16.msra.mxu0 %v47
  %64 = vmatpush.bf16.msra.mxu0 %v46
  %65 = vmatmul.bf16.gmra.mxu0 %v52
  %v66 = vpop.f32.mrf.mxu0
  %v67 = vadd.f32 0.0, %v66
  %v68 = vpop.f32.mrf.mxu0
  %v69 = vadd.f32 0.0, %v68
  %70 = vmatmul.bf16.gmra.mxu0 %v55
  %v71 = vpop.f32.mrf.mxu0
  %v72 = vadd.f32 0.0, %v71
  %v73 = vpop.f32.mrf.mxu0
  %v74 = vadd.f32 0.0, %v73
  %75 = vdwg.mxu0
  %v76 = vadd.f32 %v28, %v67
  %v77 = vadd.f32 %v29, %v69
  %v78 = vadd.f32 %v30, %v72
  %v79 = vadd.f32 %v31, %v74
  %80 = vst.msk [vmem:[#allocation2] sm:$0xff] %vm50, %v76
  %81 = vst.msk [vmem:[#allocation2 + $0x8] sm:$0xff] %vm50, %v77
  %82 = vst.msk [vmem:[#allocation2 + $0x10] sm:$0xff] %vm50, %v78
  %83 = vst.msk [vmem:[#allocation2 + $0x18] sm:$0xff] %vm50, %v79
  // Predicated region
  $region18: #{_lambda_.71} parent=0 // pred_check
    %p84 = pneg %p15
  $region19: #{_lambda_.71} parent=0 // pred_check_branch
    %86 = sbr.rel (%p84) target = $region21
  $region20: #{_lambda_.71} parent=0 // pred_region
    %v87 = vld [vmem:[#allocation2] sm:$0xff]
    %v88 = vld [vmem:[#allocation2 + $0x8] sm:$0xff]
    %v89 = vld [vmem:[#allocation2 + $0x10] sm:$0xff]
    %v90 = vld [vmem:[#allocation2 + $0x18] sm:$0xff]
    %v91 = vld [vmem:[%s2] sm:$0x1]
    %v93 = vperm.slane %v91, 0
    %v95 = vadd.f32 %v87, %v93
    %v96 = vadd.f32 %v88, %v93
    %v97 = vadd.f32 %v89, %v93
    %v98 = vadd.f32 %v90, %v93
    %99 = vst.msk [vmem:[%s3] sm:$0xff] %vm50, %v95
    %100 = vst.msk [vmem:[%s3 + $0x8] sm:$0xff] %vm50, %v96
    %101 = vst.msk [vmem:[%s3 + $0x10] sm:$0xff] %vm50, %v97
    %102 = vst.msk [vmem:[%s3 + $0x18] sm:$0xff] %vm50, %v98
  $region21: #{_lambda_.71} parent=0 // pred_fallthru
    _
  // Predicated region
  $region22: #{_lambda_.71} parent=0 // pred_check
    _
  $region23: #{_lambda_.71} parent=0 // pred_check_branch
    %104 = sbr.rel (0) target = $region25
  $region24: #{_lambda_.71} parent=0 // pred_region
    _
  $region25: #{_lambda_.71} parent=0 // pred_fallthru
    _
  // Predicated region
  $region26: #{_lambda_.71} parent=0 // pred_check
    _
  $region27: #{_lambda_.71} parent=0 // pred_check_branch
    %106 = sbr.rel (0) target = $region29
  $region28: #{_lambda_.71} parent=0 // pred_region
    _
  $region29: #{_lambda_.71} parent=0 // pred_fallthru
    _

// kernel: _lambda_.66
$region0: #{_lambda_.66}
  #allocation0 [shape = 'u32[]', space=smem, size = 0x4, offset = 0x4, fixed_abs, tag = 'smem constant byte address 0x4 - core index']
  #allocation1 [shape = 'u32[72,128]{1,0:T(1,128)}', space=vmem, size = 0x9000, scoped, tag = 'internal scratch']
  #allocation2 [shape = 'f32[32,64]{1,0:T(8,128)}', space=vmem, size = 0x4000, scoped, tag = 'scratch operand']
  %s0 = inlined_call_operand.vmem [shape: f32[32,32], index: 0, kind: input, shape index: {}]
  %s1 = inlined_call_operand.vmem [shape: bf16[32,64], index: 1, kind: input, shape index: {}]
  %s2 = inlined_call_operand.vmem [shape: f32[1,64], index: 2, kind: input, shape index: {}]
  %s3 = inlined_call_operand.vmem [shape: f32[32,64], index: 3, kind: output, shape index: {}]
  %s4 = sld [smem:[#allocation0]]
  $region30: #{_lambda_.66} parent=0
    _
  %s6 = ssub.s32 1, %s4
  %s7 = scalar_select 0, %s6, %s4
  // Predicated region
  $region2: #{_lambda_.66} parent=0 // pred_check
    _
  $region3: #{_lambda_.66} parent=0 // pred_check_branch
    %9 = sbr.rel (0) target = $region5
  $region4: #{_lambda_.66} parent=0 // pred_region
    _
  $region5: #{_lambda_.66} parent=0 // pred_fallthru
    _
  // Predicated region
  $region6: #{_lambda_.66} parent=0 // pred_check
    _
  $region7: #{_lambda_.66} parent=0 // pred_check_branch
    %11 = sbr.rel (0) target = $region9
  $region8: #{_lambda_.66} parent=0 // pred_region
    _
  $region9: #{_lambda_.66} parent=0 // pred_fallthru
    _
  // Predicated region
  $region10: #{_lambda_.66} parent=0 // pred_check
    _
  $region11: #{_lambda_.66} parent=0 // pred_check_branch
    %13 = sbr.rel (0) target = $region13
  $region12: #{_lambda_.66} parent=0 // pred_region
    _
  $region13: #{_lambda_.66} parent=0 // pred_fallthru
    _
  %p15 = scmp.eq.s32.totalorder 0, 0
  // Predicated region
  $region14: #{_lambda_.66} parent=0 // pred_check
    %p16 = pneg %p15
  $region15: #{_lambda_.66} parent=0 // pred_check_branch
    %18 = sbr.rel (%p16) target = $region17
  $region16: #{_lambda_.66} parent=0 // pred_region
    %vm19 = vcmask 523264
    %20 = vst.msk [vmem:[#allocation2] sm:$0xff] %vm19, 0.0
    %21 = vst.msk [vmem:[#allocation2 + $0x8] sm:$0xff] %vm19, 0.0
    %22 = vst.msk [vmem:[#allocation2 + $0x10] sm:$0xff] %vm19, 0.0
    %23 = vst.msk [vmem:[#allocation2 + $0x18] sm:$0xff] %vm19, 0.0
  $region17: #{_lambda_.66} parent=0 // pred_fallthru
    _
  %v24 = vld [vmem:[%s0] sm:$0xff]
  %v25 = vld [vmem:[%s0 + $0x8] sm:$0xff]
  %v26 = vld [vmem:[%s0 + $0x10] sm:$0xff]
  %v27 = vld [vmem:[%s0 + $0x18] sm:$0xff]
  %v28 = vld [vmem:[#allocation2] sm:$0xff]
  %v29 = vld [vmem:[#allocation2 + $0x8] sm:$0xff]
  %v30 = vld [vmem:[#allocation2 + $0x10] sm:$0xff]
  %v31 = vld [vmem:[#allocation2 + $0x18] sm:$0xff]
  %v32 = vpack.c.bf16 %v25, %v24
  %v33 = vpack.c.bf16 %v27, %v26
  %v34 = vld [vmem:[%s1] sm:$0xf]
  %v35 = vld [vmem:[%s1 + $0x4] sm:$0xf]
  %v36 = vld [vmem:[%s1 + $0x8] sm:$0xf]
  %v37 = vld [vmem:[%s1 + $0xc] sm:$0xf]
  %v42 = vunpack.c.l.b16 %v34
  %v43 = vunpack.c.l.b16 %v35
  %v44 = vunpack.c.l.b16 %v36
  %v45 = vunpack.c.l.b16 %v37
  %v46 = vpack.c.b16 %v43, %v42
  %v47 = vpack.c.b16 %v45, %v44
  %vm50 = vcmask 261120
  %v52 = vsel %vm50, %v32, 0
  %v55 = vsel %vm50, %v33, 0
  %57 = vmatpush.bf16.msra.mxu0 0
  %58 = vmatpush.bf16.msra.mxu0 0
  %59 = vmatpush.bf16.msra.mxu0 0
  %60 = vmatpush.bf16.msra.mxu0 0
  %61 = vmatpush.bf16.msra.mxu0 0
  %62 = vmatpush.bf16.msra.mxu0 0
  %63 = vmatpush.bf16.msra.mxu0 %v47
  %64 = vmatpush.bf16.msra.mxu0 %v46
  %65 = vmatmul.bf16.gmra.mxu0 %v52
  %v66 = vpop.f32.mrf.mxu0
  %v67 = vadd.f32 0.0, %v66
  %v68 = vpop.f32.mrf.mxu0
  %v69 = vadd.f32 0.0, %v68
  %70 = vmatmul.bf16.gmra.mxu0 %v55
  %v71 = vpop.f32.mrf.mxu0
  %v72 = vadd.f32 0.0, %v71
  %v73 = vpop.f32.mrf.mxu0
  %v74 = vadd.f32 0.0, %v73
  %75 = vdwg.mxu0
  %v76 = vadd.f32 %v28, %v67
  %v77 = vadd.f32 %v29, %v69
  %v78 = vadd.f32 %v30, %v72
  %v79 = vadd.f32 %v31, %v74
  %vm80 = vcmask 523264
  %81 = vst.msk [vmem:[#allocation2] sm:$0xff] %vm80, %v76
  %82 = vst.msk [vmem:[#allocation2 + $0x8] sm:$0xff] %vm80, %v77
  %83 = vst.msk [vmem:[#allocation2 + $0x10] sm:$0xff] %vm80, %v78
  %84 = vst.msk [vmem:[#allocation2 + $0x18] sm:$0xff] %vm80, %v79
  // Predicated region
  $region18: #{_lambda_.66} parent=0 // pred_check
    %p85 = pneg %p15
  $region19: #{_lambda_.66} parent=0 // pred_check_branch
    %87 = sbr.rel (%p85) target = $region21
  $region20: #{_lambda_.66} parent=0 // pred_region
    %v88 = vld [vmem:[#allocation2] sm:$0xff]
    %v89 = vld [vmem:[#allocation2 + $0x8] sm:$0xff]
    %v90 = vld [vmem:[#allocation2 + $0x10] sm:$0xff]
    %v91 = vld [vmem:[#allocation2 + $0x18] sm:$0xff]
    %v92 = vld [vmem:[%s2] sm:$0x1]
    %v94 = vperm.slane %v92, 0
    %v96 = vadd.f32 %v88, %v94
    %v97 = vadd.f32 %v89, %v94
    %v98 = vadd.f32 %v90, %v94
    %v99 = vadd.f32 %v91, %v94
    %100 = vst.msk [vmem:[%s3] sm:$0xff] %vm80, %v96
    %101 = vst.msk [vmem:[%s3 + $0x8] sm:$0xff] %vm80, %v97
    %102 = vst.msk [vmem:[%s3 + $0x10] sm:$0xff] %vm80, %v98
    %103 = vst.msk [vmem:[%s3 + $0x18] sm:$0xff] %vm80, %v99
  $region21: #{_lambda_.66} parent=0 // pred_fallthru
    _
  // Predicated region
  $region22: #{_lambda_.66} parent=0 // pred_check
    _
  $region23: #{_lambda_.66} parent=0 // pred_check_branch
    %105 = sbr.rel (0) target = $region25
  $region24: #{_lambda_.66} parent=0 // pred_region
    _
  $region25: #{_lambda_.66} parent=0 // pred_fallthru
    _
  // Predicated region
  $region26: #{_lambda_.66} parent=0 // pred_check
    _
  $region27: #{_lambda_.66} parent=0 // pred_check_branch
    %107 = sbr.rel (0) target = $region29
  $region28: #{_lambda_.66} parent=0 // pred_region
    _
  $region29: #{_lambda_.66} parent=0 // pred_fallthru
    _

// kernel: _lambda_.67
$region0: #{_lambda_.67}
  #allocation0 [shape = 'u32[]', space=smem, size = 0x4, offset = 0x4, fixed_abs, tag = 'smem constant byte address 0x4 - core index']
  #allocation1 [shape = 'u32[72,128]{1,0:T(1,128)}', space=vmem, size = 0x9000, scoped, tag = 'internal scratch']
  %s0 = inlined_call_operand.vmem [shape: f32[2,2,32], index: 0, kind: input, shape index: {}]
  %s1 = inlined_call_operand.vmem [shape: f32[2,16,64], index: 1, kind: input, shape index: {}]
  %s2 = inlined_call_operand.vmem [shape: f32[2,2,32], index: 2, kind: output, shape index: {}]
  %s3 = sld [smem:[#allocation0]]
  $region41: #{_lambda_.67} parent=0
    _
  %s5 = ssub.s32 1, %s3
  %s6 = scalar_select 0, %s5, %s3
  loop: start=0, step=1, limit=4
  $region2: #{_lambda_.67} parent=0 // loop_pre_header
    _
  $region3: #{_lambda_.67} parent=0 // loop_header
    %s8 = sphi 0, %s12
    %p9 = scmp.ge.s32.totalorder %s8, 4
    %s18 = sphi 0, %s20
    %s21 = sphi 0, %s18
    %s22 = sphi 0, %s21
    %s38 = sphi 0, %s22
    %s44 = sphi 0, %s46
    %s47 = sphi 0, %s44
    %s48 = sphi 0, %s47
    %s64 = sphi 0, %s48
    %s70 = sphi 0, %s72
    %s73 = sphi 0, %s70
    %s74 = sphi 0, %s73
    %s90 = sphi 0, %s74
  $region4: #{_lambda_.67} parent=0 // loop_header_branch
    %11 = sbr.rel (%p9) target = $region8
  $region5: #{_lambda_.67} parent=0 // loop_body
    %s13 = ssub.s32 %s8, 1
    %s14 = ssub.s32 %s8, 2
    %s15 = sadd.s32 %s8, 1
    %s16 = ssub.s32 %s8, %s15
    %p17 = scmp.eq.s32.totalorder %s16, 0
    %s19 = sadd.s32 %s18, 1
    %s20 = scalar_select %p17, %s18, %s19
    %p23 = pneg %p17
    %p24 = scmp.eq.s32.totalorder %s8, 1
    %p25 = por %p23, %p24
    %p26 = scmp.ne.s32.totalorder %s18, %s21
    %p27 = scmp.eq.s32.totalorder %s8, 0
    %p28 = por %p26, %p27
    %p29 = scmp.ne.s32.totalorder %s18, %s21
    %p30 = scmp.eq.s32.totalorder %s13, 1
    %p31 = por %p29, %p30
    %p32 = scmp.ne.s32.totalorder %s21, %s22
    %p33 = scmp.eq.s32.totalorder %s13, 0
    %p34 = por %p32, %p33
    %p35 = scmp.ne.s32.totalorder %s21, %s22
    %p36 = scmp.eq.s32.totalorder %s14, 1
    %p37 = por %p35, %p36
    %p39 = scmp.ne.s32.totalorder %s22, %s38
    %p40 = scmp.eq.s32.totalorder %s14, 0
    %p41 = por %p39, %p40
    %s42 = ssub.s32 %s8, %s15
    %p43 = scmp.eq.s32.totalorder %s42, 0
    %s45 = sadd.s32 %s44, 1
    %s46 = scalar_select %p43, %s44, %s45
    %p49 = pneg %p43
    %p50 = scmp.eq.s32.totalorder %s8, 1
    %p51 = por %p49, %p50
    %p52 = scmp.ne.s32.totalorder %s44, %s47
    %p53 = scmp.eq.s32.totalorder %s8, 0
    %p54 = por %p52, %p53
    %p55 = scmp.ne.s32.totalorder %s44, %s47
    %p56 = scmp.eq.s32.totalorder %s13, 1
    %p57 = por %p55, %p56
    %p58 = scmp.ne.s32.totalorder %s47, %s48
    %p59 = scmp.eq.s32.totalorder %s13, 0
    %p60 = por %p58, %p59
    %p61 = scmp.ne.s32.totalorder %s47, %s48
    %p62 = scmp.eq.s32.totalorder %s14, 1
    %p63 = por %p61, %p62
    %p65 = scmp.ne.s32.totalorder %s48, %s64
    %p66 = scmp.eq.s32.totalorder %s14, 0
    %p67 = por %p65, %p66
    %s68 = ssub.s32 %s8, %s15
    %p69 = scmp.eq.s32.totalorder %s68, 0
    %s71 = sadd.s32 %s70, 1
    %s72 = scalar_select %p69, %s70, %s71
    %p75 = pneg %p69
    %p76 = scmp.eq.s32.totalorder %s8, 1
    %p77 = por %p75, %p76
    %p78 = scmp.ne.s32.totalorder %s70, %s73
    %p79 = scmp.eq.s32.totalorder %s8, 0
    %p80 = por %p78, %p79
    %p81 = scmp.ne.s32.totalorder %s70, %s73
    %p82 = scmp.eq.s32.totalorder %s13, 1
    %p83 = por %p81, %p82
    %p84 = scmp.ne.s32.totalorder %s73, %s74
    %p85 = scmp.eq.s32.totalorder %s13, 0
    %p86 = por %p84, %p85
    %p87 = scmp.ne.s32.totalorder %s73, %s74
    %p88 = scmp.eq.s32.totalorder %s14, 1
    %p89 = por %p87, %p88
    %p91 = scmp.ne.s32.totalorder %s74, %s90
    %p92 = scmp.eq.s32.totalorder %s14, 0
    %p93 = por %p91, %p92
    %p94 = scmp.le.s32.totalorder 1, %s8
    %p95 = scmp.lt.s32.totalorder %s8, 3
    %p96 = pnand %p94, %p95
    %p97 = pneg %p96
    // Predicated region
    $region9: #{_lambda_.67} parent=5 // pred_check
      _
    $region10: #{_lambda_.67} parent=5 // pred_check_branch
      %99 = sbr.rel (%p96) target = $region12
    $region11: #{_lambda_.67} parent=5 // pred_region
      %s100 = ssub.s32 %s8, 1
    $region12: #{_lambda_.67} parent=5 // pred_fallthru
      _
    %p101 = scmp.lt.s32.totalorder %s8, 2
    // Predicated region
    $region13: #{_lambda_.67} parent=5 // pred_check
      %p102 = pneg %p101
    $region14: #{_lambda_.67} parent=5 // pred_check_branch
      %104 = sbr.rel (%p102) target = $region16
    $region15: #{_lambda_.67} parent=5 // pred_region
      // Predicated region
      $region17: #{_lambda_.67} parent=15 // pred_check
        %p105 = pneg %p28
      $region18: #{_lambda_.67} parent=15 // pred_check_branch
        %107 = sbr.rel (%p105) target = $region20
      $region19: #{_lambda_.67} parent=15 // pred_region
        %p108 = scmp.lt.s32.totalorder %s8, 1
        %s109 = scalar_select %p108, %s8, 1
        %s110 = smul.addr %s109, 2
        %s111 = scalar_lea.vmem %s0, %s110
      $region20: #{_lambda_.67} parent=15 // pred_fallthru
        _
      // Predicated region
      $region21: #{_lambda_.67} parent=15 // pred_check
        %p112 = pneg %p54
      $region22: #{_lambda_.67} parent=15 // pred_check_branch
        %114 = sbr.rel (%p112) target = $region24
      $region23: #{_lambda_.67} parent=15 // pred_region
        %p115 = scmp.lt.s32.totalorder %s8, 1
        %s116 = scalar_select %p115, %s8, 1
        %s117 = smul.addr %s116, 2
        %s118 = smul.addr %s117, 8
        %s119 = scalar_lea.vmem %s1, %s118
      $region24: #{_lambda_.67} parent=15 // pred_fallthru
        _
    $region16: #{_lambda_.67} parent=5 // pred_fallthru
      _
    %p120 = scmp.le.s32.totalorder 1, %s8
    %p121 = scmp.lt.s32.totalorder %s8, 3
    %p122 = pnand %p120, %p121
    %p123 = pneg %p122
    // Predicated region
    $region25: #{_lambda_.67} parent=5 // pred_check
      _
    $region26: #{_lambda_.67} parent=5 // pred_check_branch
      %125 = sbr.rel (%p122) target = $region28
    $region27: #{_lambda_.67} parent=5 // pred_region
      %s126 = ssub.s32 %s8, 1
      %p127 = scmp.lt.s32.totalorder %s13, 1
      %s128 = scalar_select %p127, %s13, 1
      %s129 = smul.addr %s128, 2
      %s130 = scalar_lea.vmem %s0, %s129
      %p131 = pneg %p34
      %p132 = pneg %p31
      %p133 = scmp.lt.s32.totalorder %s13, 1
      %s134 = scalar_select %p133, %s13, 1
      %s135 = smul.addr %s134, 2
      %s136 = smul.addr %s135, 8
      %s137 = scalar_lea.vmem %s1, %s136
      %p138 = pneg %p60
      %p139 = pneg %p57
      %p140 = pneg %p86
      %p141 = pneg %p83
      %p142 = scmp.lt.s32.totalorder %s13, 1
      %s143 = scalar_select %p142, %s13, 1
      %s144 = smul.addr %s143, 2
      %s145 = scalar_lea.vmem %s2, %s144
      %p146 = scmp.lt.s32.totalorder %s13, 1
      %s147 = scalar_select %p146, %s13, 1
      %s148 = smul.addr %s147, 2
      %s149 = scalar_lea.vmem %s0, %s148
      %p150 = scmp.lt.s32.totalorder %s13, 1
      %s151 = scalar_select %p150, %s13, 1
      %s152 = smul.addr %s151, 2
      %s153 = smul.addr %s152, 8
      %s154 = scalar_lea.vmem %s1, %s153
      %p155 = scmp.lt.s32.totalorder %s13, 1
      %s156 = scalar_select %p155, %s13, 1
      %s157 = smul.addr %s156, 2
      %s158 = scalar_lea.vmem %s2, %s157
      %v160 = vld [vmem:[%s154] sm:$0xff]
      %v161 = vld [vmem:[%s154 + $0x8] sm:$0xff]
      %v162 = vld [vmem:[%s149] sm:$0x3]
      %v163 = vpack.c.bf16 %v162, %v162
      %v164 = vpack.c.bf16 %v161, %v160
      %vm165 = vcmask 64512
      %v167 = vsel %vm165, %v163, 0
      %v170 = vsel %vm165, %v164, 0
      %172 = vmatpush.bf16.xpose.msra.mxu0 0
      %173 = vmatpush.bf16.xpose.msra.mxu0 0
      %174 = vmatpush.bf16.xpose.msra.mxu0 0
      %175 = vmatpush.bf16.xpose.msra.mxu0 0
      %176 = vmatpush.bf16.xpose.msra.mxu0 0
      %177 = vmatpush.bf16.xpose.msra.mxu0 0
      %178 = vmatpush.bf16.xpose.msra.mxu0 0
      %179 = vmatpush.bf16.xpose.msra.mxu0 %v170
      %180 = vmatmul.bf16.gmra.mxu0 %v167
      %v181 = vpop.f32.mrf.mxu0
      %v182 = vadd.f32 0.0, %v181
      %v183 = vpop.f32.mrf.mxu0
      %184 = vdwg.mxu0
      %v185 = vmul.f32 %v182, 0.35355338
      %vm186 = vcmask 123904
      %v187 = vsel %vm186, %v185, -inf
      %188 = vmax.xlane.f32.xlu0 %v187
      %v189 = vpop.xlane.xlu0 %188
      %v190 = vsub.f32 %v185, %v189
      %v191 = vmul.f32 %v190, 1.442695
      %v192 = vpow.pop %v191
      %v193 = vsel %vm186, %v192, 0.0
      %194 = vadd.xlane.f32.xlu0 %v193
      %v195 = vpop.xlane.xlu0 %194
      %v196 = vrcp.pop %v195
      %v197 = vmul.f32 %v192, %v196
      %v198 = vpack.c.bf16 %v197, %v197
      %200 = vrot.lane.b32.xlu0 %v164, 96
      %v201 = vpop.permute.xlu0 %200
      %vm203 = vcmask 130048
      %v205 = vsel %vm203, %v198, 0
      %207 = vmatpush.bf16.msra.mxu0 0
      %208 = vmatpush.bf16.msra.mxu0 0
      %209 = vmatpush.bf16.msra.mxu0 0
      %210 = vmatpush.bf16.msra.mxu0 0
      %211 = vmatpush.bf16.msra.mxu0 0
      %212 = vmatpush.bf16.msra.mxu0 0
      %213 = vmatpush.bf16.msra.mxu0 0
      %214 = vmatpush.bf16.msra.mxu0 %v201
      %215 = vmatmul.bf16.gmra.mxu0 %v205
      %v216 = vpop.f32.mrf.mxu0
      %v217 = vadd.f32 0.0, %v216
      %v218 = vpop.f32.mrf.mxu0
      %219 = vdwg.mxu0
      %221 = vrot.lane.b32.xlu0 %v163, 120
      %v222 = vpop.permute.xlu0 %221
      %223 = vrot.lane.b32.xlu0 %v164, 120
      %v224 = vpop.permute.xlu0 %223
      %v226 = vsel %vm165, %v222, 0
      %v229 = vsel %vm165, %v224, 0
      %231 = vmatpush.bf16.xpose.msra.mxu0 0
      %232 = vmatpush.bf16.xpose.msra.mxu0 0
      %233 = vmatpush.bf16.xpose.msra.mxu0 0
      %234 = vmatpush.bf16.xpose.msra.mxu0 0
      %235 = vmatpush.bf16.xpose.msra.mxu0 0
      %236 = vmatpush.bf16.xpose.msra.mxu0 0
      %237 = vmatpush.bf16.xpose.msra.mxu0 0
      %238 = vmatpush.bf16.xpose.msra.mxu0 %v229
      %239 = vmatmul.bf16.gmra.mxu0 %v226
      %v240 = vpop.f32.mrf.mxu0
      %v241 = vadd.f32 0.0, %v240
      %v242 = vpop.f32.mrf.mxu0
      %243 = vdwg.mxu0
      %v244 = vmul.f32 %v241, 0.35355338
      %v245 = vsel %vm186, %v244, -inf
      %246 = vmax.xlane.f32.xlu0 %v245
      %v247 = vpop.xlane.xlu0 %246
      %v248 = vsub.f32 %v244, %v247
      %v249 = vmul.f32 %v248, 1.442695
      %v250 = vpow.pop %v249
      %v251 = vsel %vm186, %v250, 0.0
      %252 = vadd.xlane.f32.xlu0 %v251
      %v253 = vpop.xlane.xlu0 %252
      %v254 = vrcp.pop %v253
      %v255 = vmul.f32 %v250, %v254
      %v256 = vpack.c.bf16 %v255, %v255
      %257 = vrot.lane.b32.xlu0 %v164, 88
      %v258 = vpop.permute.xlu0 %257
      %v261 = vsel %vm203, %v256, 0
      %263 = vmatpush.bf16.msra.mxu0 0
      %264 = vmatpush.bf16.msra.mxu0 0
      %265 = vmatpush.bf16.msra.mxu0 0
      %266 = vmatpush.bf16.msra.mxu0 0
      %267 = vmatpush.bf16.msra.mxu0 0
      %268 = vmatpush.bf16.msra.mxu0 0
      %269 = vmatpush.bf16.msra.mxu0 0
      %270 = vmatpush.bf16.msra.mxu0 %v258
      %271 = vmatmul.bf16.gmra.mxu0 %v261
      %v272 = vpop.f32.mrf.mxu0
      %v273 = vadd.f32 0.0, %v272
      %v274 = vpop.f32.mrf.mxu0
      %275 = vdwg.mxu0
      %276 = vrot.lane.b32.xlu0 %v163, 112
      %v277 = vpop.permute.xlu0 %276
      %278 = vrot.lane.b32.xlu0 %v164, 112
      %v279 = vpop.permute.xlu0 %278
      %v281 = vsel %vm165, %v277, 0
      %v284 = vsel %vm165, %v279, 0
      %286 = vmatpush.bf16.xpose.msra.mxu0 0
      %287 = vmatpush.bf16.xpose.msra.mxu0 0
      %288 = vmatpush.bf16.xpose.msra.mxu0 0
      %289 = vmatpush.bf16.xpose.msra.mxu0 0
      %290 = vmatpush.bf16.xpose.msra.mxu0 0
      %291 = vmatpush.bf16.xpose.msra.mxu0 0
      %292 = vmatpush.bf16.xpose.msra.mxu0 0
      %293 = vmatpush.bf16.xpose.msra.mxu0 %v284
      %294 = vmatmul.bf16.gmra.mxu0 %v281
      %v295 = vpop.f32.mrf.mxu0
      %v296 = vadd.f32 0.0, %v295
      %v297 = vpop.f32.mrf.mxu0
      %298 = vdwg.mxu0
      %v299 = vmul.f32 %v296, 0.35355338
      %v300 = vsel %vm186, %v299, -inf
      %301 = vmax.xlane.f32.xlu0 %v300
      %v302 = vpop.xlane.xlu0 %301
      %v303 = vsub.f32 %v299, %v302
      %v304 = vmul.f32 %v303, 1.442695
      %v305 = vpow.pop %v304
      %v306 = vsel %vm186, %v305, 0.0
      %307 = vadd.xlane.f32.xlu0 %v306
      %v308 = vpop.xlane.xlu0 %307
      %v309 = vrcp.pop %v308
      %v310 = vmul.f32 %v305, %v309
      %v311 = vpack.c.bf16 %v310, %v310
      %312 = vrot.lane.b32.xlu0 %v164, 80
      %v313 = vpop.permute.xlu0 %312
      %v316 = vsel %vm203, %v311, 0
      %318 = vmatpush.bf16.msra.mxu0 0
      %319 = vmatpush.bf16.msra.mxu0 0
      %320 = vmatpush.bf16.msra.mxu0 0
      %321 = vmatpush.bf16.msra.mxu0 0
      %322 = vmatpush.bf16.msra.mxu0 0
      %323 = vmatpush.bf16.msra.mxu0 0
      %324 = vmatpush.bf16.msra.mxu0 0
      %325 = vmatpush.bf16.msra.mxu0 %v313
      %326 = vmatmul.bf16.gmra.mxu0 %v316
      %v327 = vpop.f32.mrf.mxu0
      %v328 = vadd.f32 0.0, %v327
      %v329 = vpop.f32.mrf.mxu0
      %330 = vdwg.mxu0
      %331 = vrot.lane.b32.xlu0 %v163, 104
      %v332 = vpop.permute.xlu0 %331
      %333 = vrot.lane.b32.xlu0 %v164, 104
      %v334 = vpop.permute.xlu0 %333
      %v336 = vsel %vm165, %v332, 0
      %v339 = vsel %vm165, %v334, 0
      %341 = vmatpush.bf16.xpose.msra.mxu0 0
      %342 = vmatpush.bf16.xpose.msra.mxu0 0
      %343 = vmatpush.bf16.xpose.msra.mxu0 0
      %344 = vmatpush.bf16.xpose.msra.mxu0 0
      %345 = vmatpush.bf16.xpose.msra.mxu0 0
      %346 = vmatpush.bf16.xpose.msra.mxu0 0
      %347 = vmatpush.bf16.xpose.msra.mxu0 0
      %348 = vmatpush.bf16.xpose.msra.mxu0 %v339
      %349 = vmatmul.bf16.gmra.mxu0 %v336
      %v350 = vpop.f32.mrf.mxu0
      %v351 = vadd.f32 0.0, %v350
      %v352 = vpop.f32.mrf.mxu0
      %353 = vdwg.mxu0
      %v354 = vmul.f32 %v351, 0.35355338
      %v355 = vsel %vm186, %v354, -inf
      %356 = vmax.xlane.f32.xlu0 %v355
      %v357 = vpop.xlane.xlu0 %356
      %v358 = vsub.f32 %v354, %v357
      %v359 = vmul.f32 %v358, 1.442695
      %v360 = vpow.pop %v359
      %v361 = vsel %vm186, %v360, 0.0
      %362 = vadd.xlane.f32.xlu0 %v361
      %v363 = vpop.xlane.xlu0 %362
      %v364 = vrcp.pop %v363
      %v365 = vmul.f32 %v360, %v364
      %v366 = vpack.c.bf16 %v365, %v365
      %367 = vrot.lane.b32.xlu0 %v164, 72
      %v368 = vpop.permute.xlu0 %367
      %v371 = vsel %vm203, %v366, 0
      %373 = vmatpush.bf16.msra.mxu0 0
      %374 = vmatpush.bf16.msra.mxu0 0
      %375 = vmatpush.bf16.msra.mxu0 0
      %376 = vmatpush.bf16.msra.mxu0 0
      %377 = vmatpush.bf16.msra.mxu0 0
      %378 = vmatpush.bf16.msra.mxu0 0
      %379 = vmatpush.bf16.msra.mxu0 0
      %380 = vmatpush.bf16.msra.mxu0 %v368
      %381 = vmatmul.bf16.gmra.mxu0 %v371
      %v382 = vpop.f32.mrf.mxu0
      %v383 = vadd.f32 0.0, %v382
      %v384 = vpop.f32.mrf.mxu0
      %385 = vdwg.mxu0
      %387 = vrot.lane.b32.xlu0 %v273, 8
      %v388 = vpop.permute.xlu0 %387
      %391 = vrot.lane.b32.xlu0 %v328, 16
      %v392 = vpop.permute.xlu0 %391
      %395 = vrot.lane.b32.xlu0 %v383, 24
      %v396 = vpop.permute.xlu0 %395
      %v398 = vsel %vm165, %v217, %v388
      %v399 = vsel %vm203, %v398, %v392
      %vm400 = vcmask 195584
      %v401 = vsel %vm400, %v399, %v396
      %vm402 = vcmask 254976
      %403 = vst.msk [vmem:[%s158] sm:$0x3] %vm402, %v401
      %p404 = scmp.lt.s32.totalorder %s13, 1
      %s405 = scalar_select %p404, %s13, 1
      %s406 = smul.addr %s405, 2
      %s407 = scalar_lea.vmem %s2, %s406
      // Predicated region
      $region29: #{_lambda_.67} parent=27 // pred_check
        %p408 = pneg %p83
      $region30: #{_lambda_.67} parent=27 // pred_check_branch
        %410 = sbr.rel (%p408) target = $region32
      $region31: #{_lambda_.67} parent=27 // pred_region
        _
      $region32: #{_lambda_.67} parent=27 // pred_fallthru
        _
    $region28: #{_lambda_.67} parent=5 // pred_fallthru
      _
    %p411 = scmp.le.s32.totalorder 2, %s8
    // Predicated region
    $region33: #{_lambda_.67} parent=5 // pred_check
      %p412 = pneg %p411
    $region34: #{_lambda_.67} parent=5 // pred_check_branch
      %414 = sbr.rel (%p412) target = $region36
    $region35: #{_lambda_.67} parent=5 // pred_region
      %s415 = ssub.s32 %s8, 2
      // Predicated region
      $region37: #{_lambda_.67} parent=35 // pred_check
        %p416 = pneg %p89
      $region38: #{_lambda_.67} parent=35 // pred_check_branch
        %418 = sbr.rel (%p416) target = $region40
      $region39: #{_lambda_.67} parent=35 // pred_region
        %p419 = scmp.lt.s32.totalorder %s14, 1
        %s420 = scalar_select %p419, %s14, 1
        %s421 = smul.addr %s420, 2
        %s422 = scalar_lea.vmem %s2, %s421
      $region40: #{_lambda_.67} parent=35 // pred_fallthru
        _
    $region36: #{_lambda_.67} parent=5 // pred_fallthru
      _
  $region6: #{_lambda_.67} parent=0 // loop_footer
    %s12 = sadd.s32 1, %s8
  $region7: #{_lambda_.67} parent=0 // loop_footer_branch
    %7 = sbr.rel target = $region3
  $region8: #{_lambda_.67} parent=0 // loop_exit
    _

// kernel: _lambda_.69
$region0: #{_lambda_.69}
  #allocation0 [shape = 'u32[]', space=smem, size = 0x4, offset = 0x4, fixed_abs, tag = 'smem constant byte address 0x4 - core index']
  #allocation1 [shape = 'u32[72,128]{1,0:T(1,128)}', space=vmem, size = 0x9000, scoped, tag = 'internal scratch']
  #allocation2 [shape = 'f32[4,64]{1,0:T(4,128)}', space=vmem, size = 0x800, scoped, tag = 'scratch operand']
  %s0 = inlined_call_operand.vmem [shape: f32[4,32], index: 0, kind: input, shape index: {}]
  %s1 = inlined_call_operand.vmem [shape: bf16[32,64], index: 1, kind: input, shape index: {}]
  %s2 = inlined_call_operand.vmem [shape: f32[1,64], index: 2, kind: input, shape index: {}]
  %s3 = inlined_call_operand.vmem [shape: f32[4,64], index: 3, kind: output, shape index: {}]
  %s4 = sld [smem:[#allocation0]]
  $region30: #{_lambda_.69} parent=0
    _
  %s6 = ssub.s32 1, %s4
  %s7 = scalar_select 0, %s6, %s4
  // Predicated region
  $region2: #{_lambda_.69} parent=0 // pred_check
    _
  $region3: #{_lambda_.69} parent=0 // pred_check_branch
    %9 = sbr.rel (0) target = $region5
  $region4: #{_lambda_.69} parent=0 // pred_region
    _
  $region5: #{_lambda_.69} parent=0 // pred_fallthru
    _
  // Predicated region
  $region6: #{_lambda_.69} parent=0 // pred_check
    _
  $region7: #{_lambda_.69} parent=0 // pred_check_branch
    %11 = sbr.rel (0) target = $region9
  $region8: #{_lambda_.69} parent=0 // pred_region
    _
  $region9: #{_lambda_.69} parent=0 // pred_fallthru
    _
  // Predicated region
  $region10: #{_lambda_.69} parent=0 // pred_check
    _
  $region11: #{_lambda_.69} parent=0 // pred_check_branch
    %13 = sbr.rel (0) target = $region13
  $region12: #{_lambda_.69} parent=0 // pred_region
    _
  $region13: #{_lambda_.69} parent=0 // pred_fallthru
    _
  %p15 = scmp.eq.s32.totalorder 0, 0
  // Predicated region
  $region14: #{_lambda_.69} parent=0 // pred_check
    %p16 = pneg %p15
  $region15: #{_lambda_.69} parent=0 // pred_check_branch
    %18 = sbr.rel (%p16) target = $region17
  $region16: #{_lambda_.69} parent=0 // pred_region
    %vm19 = vcmask 519168
    %20 = vst.msk [vmem:[#allocation2] sm:$0xf] %vm19, 0.0
  $region17: #{_lambda_.69} parent=0 // pred_fallthru
    _
  %v21 = vld [vmem:[%s0] sm:$0xf]
  %v22 = vld [vmem:[#allocation2] sm:$0xf]
  %v23 = vpack.c.bf16 %v21, %v21
  %v24 = vld [vmem:[%s1] sm:$0xf]
  %v25 = vld [vmem:[%s1 + $0x4] sm:$0xf]
  %v26 = vld [vmem:[%s1 + $0x8] sm:$0xf]
  %v27 = vld [vmem:[%s1 + $0xc] sm:$0xf]
  %v32 = vunpack.c.l.b16 %v24
  %v33 = vunpack.c.l.b16 %v25
  %v34 = vunpack.c.l.b16 %v26
  %v35 = vunpack.c.l.b16 %v27
  %v36 = vpack.c.b16 %v33, %v32
  %v37 = vpack.c.b16 %v35, %v34
  %vm40 = vcmask 261120
  %v42 = vsel %vm40, %v23, 0
  %44 = vmatpush.bf16.msra.mxu0 0
  %45 = vmatpush.bf16.msra.mxu0 0
  %46 = vmatpush.bf16.msra.mxu0 0
  %47 = vmatpush.bf16.msra.mxu0 0
  %48 = vmatpush.bf16.msra.mxu0 0
  %49 = vmatpush.bf16.msra.mxu0 0
  %50 = vmatpush.bf16.msra.mxu0 %v37
  %51 = vmatpush.bf16.msra.mxu0 %v36
  %52 = vmatmul.bf16.gmra.mxu0 %v42
  %v53 = vpop.f32.mrf.mxu0
  %v54 = vadd.f32 0.0, %v53
  %v55 = vpop.f32.mrf.mxu0
  %56 = vdwg.mxu0
  %v57 = vadd.f32 %v22, %v54
  %vm58 = vcmask 519168
  %59 = vst.msk [vmem:[#allocation2] sm:$0xf] %vm58, %v57
  // Predicated region
  $region18: #{_lambda_.69} parent=0 // pred_check
    %p60 = pneg %p15
  $region19: #{_lambda_.69} parent=0 // pred_check_branch
    %62 = sbr.rel (%p60) target = $region21
  $region20: #{_lambda_.69} parent=0 // pred_region
    %v63 = vld [vmem:[#allocation2] sm:$0xf]
    %v64 = vld [vmem:[%s2] sm:$0x1]
    %v66 = vperm.slane %v64, 0
    %v68 = vadd.f32 %v63, %v66
    %v69 = vmul.f32 %v68, %v68
    %v70 = vmul.f32 %v68, %v69
    %v71 = vmul.f32 %v70, 0.044715
    %v72 = vadd.f32 %v68, %v71
    %v73 = vmul.f32 %v72, 0.7978846
    %v74 = vtanh.pop %v73
    %v75 = vadd.f32 %v74, 1.0
    %v76 = vmul.f32 %v75, 0.5
    %v77 = vmul.f32 %v68, %v76
    %78 = vst.msk [vmem:[%s3] sm:$0xf] %vm58, %v77
  $region21: #{_lambda_.69} parent=0 // pred_fallthru
    _
  // Predicated region
  $region22: #{_lambda_.69} parent=0 // pred_check
    _
  $region23: #{_lambda_.69} parent=0 // pred_check_branch
    %80 = sbr.rel (0) target = $region25
  $region24: #{_lambda_.69} parent=0 // pred_region
    _
  $region25: #{_lambda_.69} parent=0 // pred_fallthru
    _
  // Predicated region
  $region26: #{_lambda_.69} parent=0 // pred_check
    _
  $region27: #{_lambda_.69} parent=0 // pred_check_branch
    %82 = sbr.rel (0) target = $region29
  $region28: #{_lambda_.69} parent=0 // pred_region
    _
  $region29: #{_lambda_.69} parent=0 // pred_fallthru
    _

// kernel: _lambda_.70
$region0: #{_lambda_.70}
  #allocation0 [shape = 'u32[]', space=smem, size = 0x4, offset = 0x4, fixed_abs, tag = 'smem constant byte address 0x4 - core index']
  #allocation1 [shape = 'u32[72,128]{1,0:T(1,128)}', space=vmem, size = 0x9000, scoped, tag = 'internal scratch']
  #allocation2 [shape = 'f32[4,32]{1,0:T(4,128)}', space=vmem, size = 0x800, scoped, tag = 'scratch operand']
  %s0 = inlined_call_operand.vmem [shape: f32[4,64], index: 0, kind: input, shape index: {}]
  %s1 = inlined_call_operand.vmem [shape: bf16[64,32], index: 1, kind: input, shape index: {}]
  %s2 = inlined_call_operand.vmem [shape: f32[1,32], index: 2, kind: input, shape index: {}]
  %s3 = inlined_call_operand.vmem [shape: f32[4,32], index: 3, kind: input, shape index: {}]
  %s4 = inlined_call_operand.vmem [shape: f32[1,32], index: 4, kind: input, shape index: {}]
  %s5 = inlined_call_operand.vmem [shape: f32[1,32], index: 5, kind: input, shape index: {}]
  %s6 = inlined_call_operand.vmem [shape: f32[4,32], index: 6, kind: output, shape index: {}]
  %s7 = sld [smem:[#allocation0]]
  $region42: #{_lambda_.70} parent=0
    _
  %s9 = ssub.s32 1, %s7
  %s10 = scalar_select 0, %s9, %s7
  // Predicated region
  $region2: #{_lambda_.70} parent=0 // pred_check
    _
  $region3: #{_lambda_.70} parent=0 // pred_check_branch
    %12 = sbr.rel (0) target = $region5
  $region4: #{_lambda_.70} parent=0 // pred_region
    _
  $region5: #{_lambda_.70} parent=0 // pred_fallthru
    _
  // Predicated region
  $region6: #{_lambda_.70} parent=0 // pred_check
    _
  $region7: #{_lambda_.70} parent=0 // pred_check_branch
    %14 = sbr.rel (0) target = $region9
  $region8: #{_lambda_.70} parent=0 // pred_region
    _
  $region9: #{_lambda_.70} parent=0 // pred_fallthru
    _
  // Predicated region
  $region10: #{_lambda_.70} parent=0 // pred_check
    _
  $region11: #{_lambda_.70} parent=0 // pred_check_branch
    %16 = sbr.rel (0) target = $region13
  $region12: #{_lambda_.70} parent=0 // pred_region
    _
  $region13: #{_lambda_.70} parent=0 // pred_fallthru
    _
  // Predicated region
  $region14: #{_lambda_.70} parent=0 // pred_check
    _
  $region15: #{_lambda_.70} parent=0 // pred_check_branch
    %18 = sbr.rel (0) target = $region17
  $region16: #{_lambda_.70} parent=0 // pred_region
    _
  $region17: #{_lambda_.70} parent=0 // pred_fallthru
    _
  // Predicated region
  $region18: #{_lambda_.70} parent=0 // pred_check
    _
  $region19: #{_lambda_.70} parent=0 // pred_check_branch
    %20 = sbr.rel (0) target = $region21
  $region20: #{_lambda_.70} parent=0 // pred_region
    _
  $region21: #{_lambda_.70} parent=0 // pred_fallthru
    _
  // Predicated region
  $region22: #{_lambda_.70} parent=0 // pred_check
    _
  $region23: #{_lambda_.70} parent=0 // pred_check_branch
    %22 = sbr.rel (0) target = $region25
  $region24: #{_lambda_.70} parent=0 // pred_region
    _
  $region25: #{_lambda_.70} parent=0 // pred_fallthru
    _
  %p24 = scmp.eq.s32.totalorder 0, 0
  // Predicated region
  $region26: #{_lambda_.70} parent=0 // pred_check
    %p25 = pneg %p24
  $region27: #{_lambda_.70} parent=0 // pred_check_branch
    %27 = sbr.rel (%p25) target = $region29
  $region28: #{_lambda_.70} parent=0 // pred_region
    %vm28 = vcmask 257024
    %29 = vst.msk [vmem:[#allocation2] sm:$0xf] %vm28, 0.0
  $region29: #{_lambda_.70} parent=0 // pred_fallthru
    _
  %v30 = vld [vmem:[%s0] sm:$0xf]
  %v31 = vld [vmem:[#allocation2] sm:$0xf]
  %v32 = vpack.c.bf16 %v30, %v30
  %v33 = vld [vmem:[%s1] sm:$0xf]
  %v34 = vld [vmem:[%s1 + $0x4] sm:$0xf]
  %v35 = vld [vmem:[%s1 + $0x8] sm:$0xf]
  %v36 = vld [vmem:[%s1 + $0xc] sm:$0xf]
  %v37 = vld [vmem:[%s1 + $0x10] sm:$0xf]
  %v38 = vld [vmem:[%s1 + $0x14] sm:$0xf]
  %v39 = vld [vmem:[%s1 + $0x18] sm:$0xf]
  %v40 = vld [vmem:[%s1 + $0x1c] sm:$0xf]
  %v49 = vunpack.c.l.b16 %v33
  %v50 = vunpack.c.l.b16 %v34
  %v51 = vunpack.c.l.b16 %v35
  %v52 = vunpack.c.l.b16 %v36
  %v53 = vunpack.c.l.b16 %v37
  %v54 = vunpack.c.l.b16 %v38
  %v55 = vunpack.c.l.b16 %v39
  %v56 = vunpack.c.l.b16 %v40
  %v57 = vpack.c.b16 %v50, %v49
  %v58 = vpack.c.b16 %v52, %v51
  %v59 = vpack.c.b16 %v54, %v53
  %v60 = vpack.c.b16 %v56, %v55
  %vm65 = vcmask 523264
  %v67 = vsel %vm65, %v32, 0
  %69 = vmatpush.bf16.msra.mxu0 0
  %70 = vmatpush.bf16.msra.mxu0 0
  %71 = vmatpush.bf16.msra.mxu0 0
  %72 = vmatpush.bf16.msra.mxu0 0
  %73 = vmatpush.bf16.msra.mxu0 %v60
  %74 = vmatpush.bf16.msra.mxu0 %v59
  %75 = vmatpush.bf16.msra.mxu0 %v58
  %76 = vmatpush.bf16.msra.mxu0 %v57
  %77 = vmatmul.bf16.gmra.mxu0 %v67
  %v78 = vpop.f32.mrf.mxu0
  %v79 = vadd.f32 0.0, %v78
  %v80 = vpop.f32.mrf.mxu0
  %81 = vdwg.mxu0
  %v82 = vadd.f32 %v31, %v79
  %vm83 = vcmask 257024
  %84 = vst.msk [vmem:[#allocation2] sm:$0xf] %vm83, %v82
  // Predicated region
  $region30: #{_lambda_.70} parent=0 // pred_check
    %p85 = pneg %p24
  $region31: #{_lambda_.70} parent=0 // pred_check_branch
    %87 = sbr.rel (%p85) target = $region33
  $region32: #{_lambda_.70} parent=0 // pred_region
    %v88 = vld [vmem:[#allocation2] sm:$0xf]
    %v89 = vld [vmem:[%s2] sm:$0x1]
    %v91 = vperm.slane %v89, 0
    %v93 = vadd.f32 %v88, %v91
    %v94 = vld [vmem:[%s3] sm:$0xf]
    %v95 = vadd.f32 %v93, %v94
    %v96 = vsel %vm83, %v95, 0.0
    %97 = vadd.xlane.f32.xlu0 %v96
    %v98 = vpop.xlane.xlu0 %97
    %v99 = vrcp.pop 32.0
    %v100 = vmul.f32 32.0, %v99
    %v101 = vsub.f32 1.0, %v100
    %v102 = vmul.f32 %v99, %v101
    %v103 = vadd.f32 %v99, %v102
    %vm104 = vweird.f32 %v99
    %v105 = vsel %vm104, %v99, %v103
    %v106 = vmul.f32 %v98, %v105
    %v107 = vsub.f32 %v95, %v106
    %v108 = vmul.f32 %v107, %v107
    %v109 = vsel %vm83, %v108, 0.0
    %110 = vadd.xlane.f32.xlu0 %v109
    %v111 = vpop.xlane.xlu0 %110
    %v112 = vmul.f32 %v111, %v105
    %v113 = vadd.f32 %v112, 1e-05
    %v114 = vrsqrt.pop %v113
    %v115 = vmul.f32 %v114, %v113
    %v116 = vmul.f32 %v115, %v114
    %v117 = vmul.f32 0.5, %v116
    %v118 = vsub.f32 1.5, %v117
    %v119 = vmul.f32 %v114, %v118
    %vm120 = vweird.f32 %v113
    %vm121 = vweird.f32 %v114
    %vm122 = vmor %vm120, %vm121
    %v123 = vsel %vm122, %v114, %v119
    %v124 = vmul.f32 %v107, %v123
    %v125 = vld [vmem:[%s4] sm:$0x1]
    %v127 = vperm.slane %v125, 0
    %v129 = vmul.f32 %v124, %v127
    %v130 = vld [vmem:[%s5] sm:$0x1]
    %v132 = vperm.slane %v130, 0
    %v134 = vadd.f32 %v129, %v132
    %135 = vst.msk [vmem:[%s6] sm:$0xf] %vm83, %v134
  $region33: #{_lambda_.70} parent=0 // pred_fallthru
    _
  // Predicated region
  $region34: #{_lambda_.70} parent=0 // pred_check
    _
  $region35: #{_lambda_.70} parent=0 // pred_check_branch
    %137 = sbr.rel (0) target = $region37
  $region36: #{_lambda_.70} parent=0 // pred_region
    _
  $region37: #{_lambda_.70} parent=0 // pred_fallthru
    _
  // Predicated region
  $region38: #{_lambda_.70} parent=0 // pred_check
    _
  $region39: #{_lambda_.70} parent=0 // pred_check_branch
    %139 = sbr.rel (0) target = $region41
  $region40: #{_lambda_.70} parent=0 // pred_region
    _
  $region41: #{_lambda_.70} parent=0 // pred_fallthru
    _

// kernel: _lambda_.72
$region0: #{_lambda_.72}
  #allocation0 [shape = 'u32[]', space=smem, size = 0x4, offset = 0x4, fixed_abs, tag = 'smem constant byte address 0x4 - core index']
  #allocation1 [shape = 'u32[72,128]{1,0:T(1,128)}', space=vmem, size = 0x9000, scoped, tag = 'internal scratch']
  #allocation2 [shape = 'f32[4,64]{1,0:T(4,128)}', space=vmem, size = 0x800, scoped, tag = 'scratch operand']
  %s0 = inlined_call_operand.vmem [shape: f32[4,32], index: 0, kind: input, shape index: {}]
  %s1 = inlined_call_operand.vmem [shape: bf16[32,64], index: 1, kind: input, shape index: {}]
  %s2 = inlined_call_operand.vmem [shape: f32[1,64], index: 2, kind: input, shape index: {}]
  %s3 = inlined_call_operand.vmem [shape: f32[4,64], index: 3, kind: output, shape index: {}]
  %s4 = sld [smem:[#allocation0]]
  $region30: #{_lambda_.72} parent=0
    _
  %s6 = ssub.s32 1, %s4
  %s7 = scalar_select 0, %s6, %s4
  // Predicated region
  $region2: #{_lambda_.72} parent=0 // pred_check
    _
  $region3: #{_lambda_.72} parent=0 // pred_check_branch
    %9 = sbr.rel (0) target = $region5
  $region4: #{_lambda_.72} parent=0 // pred_region
    _
  $region5: #{_lambda_.72} parent=0 // pred_fallthru
    _
  // Predicated region
  $region6: #{_lambda_.72} parent=0 // pred_check
    _
  $region7: #{_lambda_.72} parent=0 // pred_check_branch
    %11 = sbr.rel (0) target = $region9
  $region8: #{_lambda_.72} parent=0 // pred_region
    _
  $region9: #{_lambda_.72} parent=0 // pred_fallthru
    _
  // Predicated region
  $region10: #{_lambda_.72} parent=0 // pred_check
    _
  $region11: #{_lambda_.72} parent=0 // pred_check_branch
    %13 = sbr.rel (0) target = $region13
  $region12: #{_lambda_.72} parent=0 // pred_region
    _
  $region13: #{_lambda_.72} parent=0 // pred_fallthru
    _
  %p15 = scmp.eq.s32.totalorder 0, 0
  // Predicated region
  $region14: #{_lambda_.72} parent=0 // pred_check
    %p16 = pneg %p15
  $region15: #{_lambda_.72} parent=0 // pred_check_branch
    %18 = sbr.rel (%p16) target = $region17
  $region16: #{_lambda_.72} parent=0 // pred_region
    %vm19 = vcmask 519168
    %20 = vst.msk [vmem:[#allocation2] sm:$0xf] %vm19, 0.0
  $region17: #{_lambda_.72} parent=0 // pred_fallthru
    _
  %v21 = vld [vmem:[%s0] sm:$0xf]
  %v22 = vld [vmem:[#allocation2] sm:$0xf]
  %v23 = vpack.c.bf16 %v21, %v21
  %v24 = vld [vmem:[%s1] sm:$0xf]
  %v25 = vld [vmem:[%s1 + $0x4] sm:$0xf]
  %v26 = vld [vmem:[%s1 + $0x8] sm:$0xf]
  %v27 = vld [vmem:[%s1 + $0xc] sm:$0xf]
  %v32 = vunpack.c.l.b16 %v24
  %v33 = vunpack.c.l.b16 %v25
  %v34 = vunpack.c.l.b16 %v26
  %v35 = vunpack.c.l.b16 %v27
  %v36 = vpack.c.b16 %v33, %v32
  %v37 = vpack.c.b16 %v35, %v34
  %vm40 = vcmask 261120
  %v42 = vsel %vm40, %v23, 0
  %44 = vmatpush.bf16.msra.mxu0 0
  %45 = vmatpush.bf16.msra.mxu0 0
  %46 = vmatpush.bf16.msra.mxu0 0
  %47 = vmatpush.bf16.msra.mxu0 0
  %48 = vmatpush.bf16.msra.mxu0 0
  %49 = vmatpush.bf16.msra.mxu0 0
  %50 = vmatpush.bf16.msra.mxu0 %v37
  %51 = vmatpush.bf16.msra.mxu0 %v36
  %52 = vmatmul.bf16.gmra.mxu0 %v42
  %v53 = vpop.f32.mrf.mxu0
  %v54 = vadd.f32 0.0, %v53
  %v55 = vpop.f32.mrf.mxu0
  %56 = vdwg.mxu0
  %v57 = vadd.f32 %v22, %v54
  %vm58 = vcmask 519168
  %59 = vst.msk [vmem:[#allocation2] sm:$0xf] %vm58, %v57
  // Predicated region
  $region18: #{_lambda_.72} parent=0 // pred_check
    %p60 = pneg %p15
  $region19: #{_lambda_.72} parent=0 // pred_check_branch
    %62 = sbr.rel (%p60) target = $region21
  $region20: #{_lambda_.72} parent=0 // pred_region
    %v63 = vld [vmem:[#allocation2] sm:$0xf]
    %v64 = vld [vmem:[%s2] sm:$0x1]
    %v66 = vperm.slane %v64, 0
    %v68 = vadd.f32 %v63, %v66
    %69 = vst.msk [vmem:[%s3] sm:$0xf] %vm58, %v68
  $region21: #{_lambda_.72} parent=0 // pred_fallthru
    _
  // Predicated region
  $region22: #{_lambda_.72} parent=0 // pred_check
    _
  $region23: #{_lambda_.72} parent=0 // pred_check_branch
    %71 = sbr.rel (0) target = $region25
  $region24: #{_lambda_.72} parent=0 // pred_region
    _
  $region25: #{_lambda_.72} parent=0 // pred_fallthru
    _
  // Predicated region
  $region26: #{_lambda_.72} parent=0 // pred_check
    _
  $region27: #{_lambda_.72} parent=0 // pred_check_branch
    %73 = sbr.rel (0) target = $region29
  $region28: #{_lambda_.72} parent=0 // pred_region
    _
  $region29: #{_lambda_.72} parent=0 // pred_fallthru
    _

// kernel: _lambda_.73
$region0: #{_lambda_.73}
  #allocation0 [shape = 'u32[]', space=smem, size = 0x4, offset = 0x4, fixed_abs, tag = 'smem constant byte address 0x4 - core index']
  #allocation1 [shape = 'u32[72,128]{1,0:T(1,128)}', space=vmem, size = 0x9000, scoped, tag = 'internal scratch']
  %s0 = inlined_call_operand.vmem [shape: f32[2,16,32], index: 0, kind: input, shape index: {}]
  %s1 = inlined_call_operand.vmem [shape: f32[2,2,64], index: 1, kind: input, shape index: {}]
  %s2 = inlined_call_operand.vmem [shape: f32[2,16,32], index: 2, kind: output, shape index: {}]
  %s3 = sld [smem:[#allocation0]]
  $region41: #{_lambda_.73} parent=0
    _
  %s5 = ssub.s32 1, %s3
  %s6 = scalar_select 0, %s5, %s3
  loop: start=0, step=1, limit=4
  $region2: #{_lambda_.73} parent=0 // loop_pre_header
    _
  $region3: #{_lambda_.73} parent=0 // loop_header
    %s8 = sphi 0, %s12
    %p9 = scmp.ge.s32.totalorder %s8, 4
    %s18 = sphi 0, %s20
    %s21 = sphi 0, %s18
    %s22 = sphi 0, %s21
    %s38 = sphi 0, %s22
    %s44 = sphi 0, %s46
    %s47 = sphi 0, %s44
    %s48 = sphi 0, %s47
    %s64 = sphi 0, %s48
    %s70 = sphi 0, %s72
    %s73 = sphi 0, %s70
    %s74 = sphi 0, %s73
    %s90 = sphi 0, %s74
  $region4: #{_lambda_.73} parent=0 // loop_header_branch
    %11 = sbr.rel (%p9) target = $region8
  $region5: #{_lambda_.73} parent=0 // loop_body
    %s13 = ssub.s32 %s8, 1
    %s14 = ssub.s32 %s8, 2
    %s15 = sadd.s32 %s8, 1
    %s16 = ssub.s32 %s8, %s15
    %p17 = scmp.eq.s32.totalorder %s16, 0
    %s19 = sadd.s32 %s18, 1
    %s20 = scalar_select %p17, %s18, %s19
    %p23 = pneg %p17
    %p24 = scmp.eq.s32.totalorder %s8, 1
    %p25 = por %p23, %p24
    %p26 = scmp.ne.s32.totalorder %s18, %s21
    %p27 = scmp.eq.s32.totalorder %s8, 0
    %p28 = por %p26, %p27
    %p29 = scmp.ne.s32.totalorder %s18, %s21
    %p30 = scmp.eq.s32.totalorder %s13, 1
    %p31 = por %p29, %p30
    %p32 = scmp.ne.s32.totalorder %s21, %s22
    %p33 = scmp.eq.s32.totalorder %s13, 0
    %p34 = por %p32, %p33
    %p35 = scmp.ne.s32.totalorder %s21, %s22
    %p36 = scmp.eq.s32.totalorder %s14, 1
    %p37 = por %p35, %p36
    %p39 = scmp.ne.s32.totalorder %s22, %s38
    %p40 = scmp.eq.s32.totalorder %s14, 0
    %p41 = por %p39, %p40
    %s42 = ssub.s32 %s8, %s15
    %p43 = scmp.eq.s32.totalorder %s42, 0
    %s45 = sadd.s32 %s44, 1
    %s46 = scalar_select %p43, %s44, %s45
    %p49 = pneg %p43
    %p50 = scmp.eq.s32.totalorder %s8, 1
    %p51 = por %p49, %p50
    %p52 = scmp.ne.s32.totalorder %s44, %s47
    %p53 = scmp.eq.s32.totalorder %s8, 0
    %p54 = por %p52, %p53
    %p55 = scmp.ne.s32.totalorder %s44, %s47
    %p56 = scmp.eq.s32.totalorder %s13, 1
    %p57 = por %p55, %p56
    %p58 = scmp.ne.s32.totalorder %s47, %s48
    %p59 = scmp.eq.s32.totalorder %s13, 0
    %p60 = por %p58, %p59
    %p61 = scmp.ne.s32.totalorder %s47, %s48
    %p62 = scmp.eq.s32.totalorder %s14, 1
    %p63 = por %p61, %p62
    %p65 = scmp.ne.s32.totalorder %s48, %s64
    %p66 = scmp.eq.s32.totalorder %s14, 0
    %p67 = por %p65, %p66
    %s68 = ssub.s32 %s8, %s15
    %p69 = scmp.eq.s32.totalorder %s68, 0
    %s71 = sadd.s32 %s70, 1
    %s72 = scalar_select %p69, %s70, %s71
    %p75 = pneg %p69
    %p76 = scmp.eq.s32.totalorder %s8, 1
    %p77 = por %p75, %p76
    %p78 = scmp.ne.s32.totalorder %s70, %s73
    %p79 = scmp.eq.s32.totalorder %s8, 0
    %p80 = por %p78, %p79
    %p81 = scmp.ne.s32.totalorder %s70, %s73
    %p82 = scmp.eq.s32.totalorder %s13, 1
    %p83 = por %p81, %p82
    %p84 = scmp.ne.s32.totalorder %s73, %s74
    %p85 = scmp.eq.s32.totalorder %s13, 0
    %p86 = por %p84, %p85
    %p87 = scmp.ne.s32.totalorder %s73, %s74
    %p88 = scmp.eq.s32.totalorder %s14, 1
    %p89 = por %p87, %p88
    %p91 = scmp.ne.s32.totalorder %s74, %s90
    %p92 = scmp.eq.s32.totalorder %s14, 0
    %p93 = por %p91, %p92
    %p94 = scmp.le.s32.totalorder 1, %s8
    %p95 = scmp.lt.s32.totalorder %s8, 3
    %p96 = pnand %p94, %p95
    %p97 = pneg %p96
    // Predicated region
    $region9: #{_lambda_.73} parent=5 // pred_check
      _
    $region10: #{_lambda_.73} parent=5 // pred_check_branch
      %99 = sbr.rel (%p96) target = $region12
    $region11: #{_lambda_.73} parent=5 // pred_region
      %s100 = ssub.s32 %s8, 1
    $region12: #{_lambda_.73} parent=5 // pred_fallthru
      _
    %p101 = scmp.lt.s32.totalorder %s8, 2
    // Predicated region
    $region13: #{_lambda_.73} parent=5 // pred_check
      %p102 = pneg %p101
    $region14: #{_lambda_.73} parent=5 // pred_check_branch
      %104 = sbr.rel (%p102) target = $region16
    $region15: #{_lambda_.73} parent=5 // pred_region
      // Predicated region
      $region17: #{_lambda_.73} parent=15 // pred_check
        %p105 = pneg %p28
      $region18: #{_lambda_.73} parent=15 // pred_check_branch
        %107 = sbr.rel (%p105) target = $region20
      $region19: #{_lambda_.73} parent=15 // pred_region
        %p108 = scmp.lt.s32.totalorder %s8, 1
        %s109 = scalar_select %p108, %s8, 1
        %s110 = smul.addr %s109, 2
        %s111 = smul.addr %s110, 8
        %s112 = scalar_lea.vmem %s0, %s111
      $region20: #{_lambda_.73} parent=15 // pred_fallthru
        _
      // Predicated region
      $region21: #{_lambda_.73} parent=15 // pred_check
        %p113 = pneg %p54
      $region22: #{_lambda_.73} parent=15 // pred_check_branch
        %115 = sbr.rel (%p113) target = $region24
      $region23: #{_lambda_.73} parent=15 // pred_region
        %p116 = scmp.lt.s32.totalorder %s8, 1
        %s117 = scalar_select %p116, %s8, 1
        %s118 = smul.addr %s117, 2
        %s119 = scalar_lea.vmem %s1, %s118
      $region24: #{_lambda_.73} parent=15 // pred_fallthru
        _
    $region16: #{_lambda_.73} parent=5 // pred_fallthru
      _
    %p120 = scmp.le.s32.totalorder 1, %s8
    %p121 = scmp.lt.s32.totalorder %s8, 3
    %p122 = pnand %p120, %p121
    %p123 = pneg %p122
    // Predicated region
    $region25: #{_lambda_.73} parent=5 // pred_check
      _
    $region26: #{_lambda_.73} parent=5 // pred_check_branch
      %125 = sbr.rel (%p122) target = $region28
    $region27: #{_lambda_.73} parent=5 // pred_region
      %s126 = ssub.s32 %s8, 1
      %p127 = scmp.lt.s32.totalorder %s13, 1
      %s128 = scalar_select %p127, %s13, 1
      %s129 = smul.addr %s128, 2
      %s130 = smul.addr %s129, 8
      %s131 = scalar_lea.vmem %s0, %s130
      %p132 = pneg %p34
      %p133 = pneg %p31
      %p134 = scmp.lt.s32.totalorder %s13, 1
      %s135 = scalar_select %p134, %s13, 1
      %s136 = smul.addr %s135, 2
      %s137 = scalar_lea.vmem %s1, %s136
      %p138 = pneg %p60
      %p139 = pneg %p57
      %p140 = pneg %p86
      %p141 = pneg %p83
      %p142 = scmp.lt.s32.totalorder %s13, 1
      %s143 = scalar_select %p142, %s13, 1
      %s144 = smul.addr %s143, 2
      %s145 = smul.addr %s144, 8
      %s146 = scalar_lea.vmem %s2, %s145
      %p147 = scmp.lt.s32.totalorder %s13, 1
      %s148 = scalar_select %p147, %s13, 1
      %s149 = smul.addr %s148, 2
      %s150 = smul.addr %s149, 8
      %s151 = scalar_lea.vmem %s0, %s150
      %p152 = scmp.lt.s32.totalorder %s13, 1
      %s153 = scalar_select %p152, %s13, 1
      %s154 = smul.addr %s153, 2
      %s155 = scalar_lea.vmem %s1, %s154
      %p156 = scmp.lt.s32.totalorder %s13, 1
      %s157 = scalar_select %p156, %s13, 1
      %s158 = smul.addr %s157, 2
      %s159 = smul.addr %s158, 8
      %s160 = scalar_lea.vmem %s2, %s159
      %v162 = vld [vmem:[%s155] sm:$0x3]
      %v163 = vld [vmem:[%s151] sm:$0xff]
      %v164 = vld [vmem:[%s151 + $0x8] sm:$0xff]
      %v165 = vpack.c.bf16 %v164, %v163
      %v166 = vpack.c.bf16 %v162, %v162
      %vm167 = vcmask 64512
      %v169 = vsel %vm167, %v165, 0
      %v172 = vsel %vm167, %v166, 0
      %174 = vmatpush.bf16.xpose.msra.mxu0 0
      %175 = vmatpush.bf16.xpose.msra.mxu0 0
      %176 = vmatpush.bf16.xpose.msra.mxu0 0
      %177 = vmatpush.bf16.xpose.msra.mxu0 0
      %178 = vmatpush.bf16.xpose.msra.mxu0 0
      %179 = vmatpush.bf16.xpose.msra.mxu0 0
      %180 = vmatpush.bf16.xpose.msra.mxu0 0
      %181 = vmatpush.bf16.xpose.msra.mxu0 %v172
      %182 = vmatmul.bf16.gmra.mxu0 %v169
      %v183 = vpop.f32.mrf.mxu0
      %v184 = vadd.f32 0.0, %v183
      %v185 = vpop.f32.mrf.mxu0
      %v186 = vadd.f32 0.0, %v185
      %187 = vdwg.mxu0
      %v188 = vmul.f32 %v184, 0.35355338
      %v189 = vmul.f32 %v186, 0.35355338
      %vm190 = vcmask 15360
      %v191 = vsel %vm190, %v188, -inf
      %192 = vmax.xlane.f32.xlu0 %v191
      %v193 = vpop.xlane.xlu0 %192
      %v194 = vsel %vm190, %v189, -inf
      %195 = vmax.xlane.f32.xlu0 %v194
      %v196 = vpop.xlane.xlu0 %195
      %v197 = vsub.f32 %v188, %v193
      %v198 = vsub.f32 %v189, %v196
      %v199 = vmul.f32 %v197, 1.442695
      %v200 = vpow.pop %v199
      %v201 = vmul.f32 %v198, 1.442695
      %v202 = vpow.pop %v201
      %v203 = vsel %vm190, %v200, 0.0
      %204 = vadd.xlane.f32.xlu0 %v203
      %v205 = vpop.xlane.xlu0 %204
      %v206 = vsel %vm190, %v202, 0.0
      %207 = vadd.xlane.f32.xlu0 %v206
      %v208 = vpop.xlane.xlu0 %207
      %v209 = vrcp.pop %v205
      %v210 = vrcp.pop %v208
      %v211 = vmul.f32 %v200, %v209
      %v212 = vmul.f32 %v202, %v210
      %v213 = vpack.c.bf16 %v212, %v211
      %215 = vrot.lane.b32.xlu0 %v166, 96
      %v216 = vpop.permute.xlu0 %215
      %v218 = vsel %vm190, %v213, 0
      %vm220 = vcmask 1040384
      %v222 = vsel %vm220, %v216, 0
      %224 = vmatpush.bf16.msra.mxu0 0
      %225 = vmatpush.bf16.msra.mxu0 0
      %226 = vmatpush.bf16.msra.mxu0 0
      %227 = vmatpush.bf16.msra.mxu0 0
      %228 = vmatpush.bf16.msra.mxu0 0
      %229 = vmatpush.bf16.msra.mxu0 0
      %230 = vmatpush.bf16.msra.mxu0 0
      %231 = vmatpush.bf16.msra.mxu0 %v222
      %232 = vmatmul.bf16.gmra.mxu0 %v218
      %v233 = vpop.f32.mrf.mxu0
      %v234 = vadd.f32 0.0, %v233
      %v235 = vpop.f32.mrf.mxu0
      %v236 = vadd.f32 0.0, %v235
      %237 = vdwg.mxu0
      %239 = vrot.lane.b32.xlu0 %v165, 120
      %v240 = vpop.permute.xlu0 %239
      %241 = vrot.lane.b32.xlu0 %v166, 120
      %v242 = vpop.permute.xlu0 %241
      %v244 = vsel %vm167, %v240, 0
      %v247 = vsel %vm167, %v242, 0
      %249 = vmatpush.bf16.xpose.msra.mxu0 0
      %250 = vmatpush.bf16.xpose.msra.mxu0 0
      %251 = vmatpush.bf16.xpose.msra.mxu0 0
      %252 = vmatpush.bf16.xpose.msra.mxu0 0
      %253 = vmatpush.bf16.xpose.msra.mxu0 0
      %254 = vmatpush.bf16.xpose.msra.mxu0 0
      %255 = vmatpush.bf16.xpose.msra.mxu0 0
      %256 = vmatpush.bf16.xpose.msra.mxu0 %v247
      %257 = vmatmul.bf16.gmra.mxu0 %v244
      %v258 = vpop.f32.mrf.mxu0
      %v259 = vadd.f32 0.0, %v258
      %v260 = vpop.f32.mrf.mxu0
      %v261 = vadd.f32 0.0, %v260
      %262 = vdwg.mxu0
      %v263 = vmul.f32 %v259, 0.35355338
      %v264 = vmul.f32 %v261, 0.35355338
      %v265 = vsel %vm190, %v263, -inf
      %266 = vmax.xlane.f32.xlu0 %v265
      %v267 = vpop.xlane.xlu0 %266
      %v268 = vsel %vm190, %v264, -inf
      %269 = vmax.xlane.f32.xlu0 %v268
      %v270 = vpop.xlane.xlu0 %269
      %v271 = vsub.f32 %v263, %v267
      %v272 = vsub.f32 %v264, %v270
      %v273 = vmul.f32 %v271, 1.442695
      %v274 = vpow.pop %v273
      %v275 = vmul.f32 %v272, 1.442695
      %v276 = vpow.pop %v275
      %v277 = vsel %vm190, %v274, 0.0
      %278 = vadd.xlane.f32.xlu0 %v277
      %v279 = vpop.xlane.xlu0 %278
      %v280 = vsel %vm190, %v276, 0.0
      %281 = vadd.xlane.f32.xlu0 %v280
      %v282 = vpop.xlane.xlu0 %281
      %v283 = vrcp.pop %v279
      %v284 = vrcp.pop %v282
      %v285 = vmul.f32 %v274, %v283
      %v286 = vmul.f32 %v276, %v284
      %v287 = vpack.c.bf16 %v286, %v285
      %288 = vrot.lane.b32.xlu0 %v166, 88
      %v289 = vpop.permute.xlu0 %288
      %v291 = vsel %vm190, %v287, 0
      %v294 = vsel %vm220, %v289, 0
      %296 = vmatpush.bf16.msra.mxu0 0
      %297 = vmatpush.bf16.msra.mxu0 0
      %298 = vmatpush.bf16.msra.mxu0 0
      %299 = vmatpush.bf16.msra.mxu0 0
      %300 = vmatpush.bf16.msra.mxu0 0
      %301 = vmatpush.bf16.msra.mxu0 0
      %302 = vmatpush.bf16.msra.mxu0 0
      %303 = vmatpush.bf16.msra.mxu0 %v294
      %304 = vmatmul.bf16.gmra.mxu0 %v291
      %v305 = vpop.f32.mrf.mxu0
      %v306 = vadd.f32 0.0, %v305
      %v307 = vpop.f32.mrf.mxu0
      %v308 = vadd.f32 0.0, %v307
      %309 = vdwg.mxu0
      %310 = vrot.lane.b32.xlu0 %v165, 112
      %v311 = vpop.permute.xlu0 %310
      %312 = vrot.lane.b32.xlu0 %v166, 112
      %v313 = vpop.permute.xlu0 %312
      %v315 = vsel %vm167, %v311, 0
      %v318 = vsel %vm167, %v313, 0
      %320 = vmatpush.bf16.xpose.msra.mxu0 0
      %321 = vmatpush.bf16.xpose.msra.mxu0 0
      %322 = vmatpush.bf16.xpose.msra.mxu0 0
      %323 = vmatpush.bf16.xpose.msra.mxu0 0
      %324 = vmatpush.bf16.xpose.msra.mxu0 0
      %325 = vmatpush.bf16.xpose.msra.mxu0 0
      %326 = vmatpush.bf16.xpose.msra.mxu0 0
      %327 = vmatpush.bf16.xpose.msra.mxu0 %v318
      %328 = vmatmul.bf16.gmra.mxu0 %v315
      %v329 = vpop.f32.mrf.mxu0
      %v330 = vadd.f32 0.0, %v329
      %v331 = vpop.f32.mrf.mxu0
      %v332 = vadd.f32 0.0, %v331
      %333 = vdwg.mxu0
      %v334 = vmul.f32 %v330, 0.35355338
      %v335 = vmul.f32 %v332, 0.35355338
      %v336 = vsel %vm190, %v334, -inf
      %337 = vmax.xlane.f32.xlu0 %v336
      %v338 = vpop.xlane.xlu0 %337
      %v339 = vsel %vm190, %v335, -inf
      %340 = vmax.xlane.f32.xlu0 %v339
      %v341 = vpop.xlane.xlu0 %340
      %v342 = vsub.f32 %v334, %v338
      %v343 = vsub.f32 %v335, %v341
      %v344 = vmul.f32 %v342, 1.442695
      %v345 = vpow.pop %v344
      %v346 = vmul.f32 %v343, 1.442695
      %v347 = vpow.pop %v346
      %v348 = vsel %vm190, %v345, 0.0
      %349 = vadd.xlane.f32.xlu0 %v348
      %v350 = vpop.xlane.xlu0 %349
      %v351 = vsel %vm190, %v347, 0.0
      %352 = vadd.xlane.f32.xlu0 %v351
      %v353 = vpop.xlane.xlu0 %352
      %v354 = vrcp.pop %v350
      %v355 = vrcp.pop %v353
      %v356 = vmul.f32 %v345, %v354
      %v357 = vmul.f32 %v347, %v355
      %v358 = vpack.c.bf16 %v357, %v356
      %359 = vrot.lane.b32.xlu0 %v166, 80
      %v360 = vpop.permute.xlu0 %359
      %v362 = vsel %vm190, %v358, 0
      %v365 = vsel %vm220, %v360, 0
      %367 = vmatpush.bf16.msra.mxu0 0
      %368 = vmatpush.bf16.msra.mxu0 0
      %369 = vmatpush.bf16.msra.mxu0 0
      %370 = vmatpush.bf16.msra.mxu0 0
      %371 = vmatpush.bf16.msra.mxu0 0
      %372 = vmatpush.bf16.msra.mxu0 0
      %373 = vmatpush.bf16.msra.mxu0 0
      %374 = vmatpush.bf16.msra.mxu0 %v365
      %375 = vmatmul.bf16.gmra.mxu0 %v362
      %v376 = vpop.f32.mrf.mxu0
      %v377 = vadd.f32 0.0, %v376
      %v378 = vpop.f32.mrf.mxu0
      %v379 = vadd.f32 0.0, %v378
      %380 = vdwg.mxu0
      %381 = vrot.lane.b32.xlu0 %v165, 104
      %v382 = vpop.permute.xlu0 %381
      %383 = vrot.lane.b32.xlu0 %v166, 104
      %v384 = vpop.permute.xlu0 %383
      %v386 = vsel %vm167, %v382, 0
      %v389 = vsel %vm167, %v384, 0
      %391 = vmatpush.bf16.xpose.msra.mxu0 0
      %392 = vmatpush.bf16.xpose.msra.mxu0 0
      %393 = vmatpush.bf16.xpose.msra.mxu0 0
      %394 = vmatpush.bf16.xpose.msra.mxu0 0
      %395 = vmatpush.bf16.xpose.msra.mxu0 0
      %396 = vmatpush.bf16.xpose.msra.mxu0 0
      %397 = vmatpush.bf16.xpose.msra.mxu0 0
      %398 = vmatpush.bf16.xpose.msra.mxu0 %v389
      %399 = vmatmul.bf16.gmra.mxu0 %v386
      %v400 = vpop.f32.mrf.mxu0
      %v401 = vadd.f32 0.0, %v400
      %v402 = vpop.f32.mrf.mxu0
      %v403 = vadd.f32 0.0, %v402
      %404 = vdwg.mxu0
      %v405 = vmul.f32 %v401, 0.35355338
      %v406 = vmul.f32 %v403, 0.35355338
      %v407 = vsel %vm190, %v405, -inf
      %408 = vmax.xlane.f32.xlu0 %v407
      %v409 = vpop.xlane.xlu0 %408
      %v410 = vsel %vm190, %v406, -inf
      %411 = vmax.xlane.f32.xlu0 %v410
      %v412 = vpop.xlane.xlu0 %411
      %v413 = vsub.f32 %v405, %v409
      %v414 = vsub.f32 %v406, %v412
      %v415 = vmul.f32 %v413, 1.442695
      %v416 = vpow.pop %v415
      %v417 = vmul.f32 %v414, 1.442695
      %v418 = vpow.pop %v417
      %v419 = vsel %vm190, %v416, 0.0
      %420 = vadd.xlane.f32.xlu0 %v419
      %v421 = vpop.xlane.xlu0 %420
      %v422 = vsel %vm190, %v418, 0.0
      %423 = vadd.xlane.f32.xlu0 %v422
      %v424 = vpop.xlane.xlu0 %423
      %v425 = vrcp.pop %v421
      %v426 = vrcp.pop %v424
      %v427 = vmul.f32 %v416, %v425
      %v428 = vmul.f32 %v418, %v426
      %v429 = vpack.c.bf16 %v428, %v427
      %430 = vrot.lane.b32.xlu0 %v166, 72
      %v431 = vpop.permute.xlu0 %430
      %v433 = vsel %vm190, %v429, 0
      %v436 = vsel %vm220, %v431, 0
      %438 = vmatpush.bf16.msra.mxu0 0
      %439 = vmatpush.bf16.msra.mxu0 0
      %440 = vmatpush.bf16.msra.mxu0 0
      %441 = vmatpush.bf16.msra.mxu0 0
      %442 = vmatpush.bf16.msra.mxu0 0
      %443 = vmatpush.bf16.msra.mxu0 0
      %444 = vmatpush.bf16.msra.mxu0 0
      %445 = vmatpush.bf16.msra.mxu0 %v436
      %446 = vmatmul.bf16.gmra.mxu0 %v433
      %v447 = vpop.f32.mrf.mxu0
      %v448 = vadd.f32 0.0, %v447
      %v449 = vpop.f32.mrf.mxu0
      %v450 = vadd.f32 0.0, %v449
      %451 = vdwg.mxu0
      %454 = vrot.lane.b32.xlu0 %v306, 8
      %v455 = vpop.permute.xlu0 %454
      %456 = vrot.lane.b32.xlu0 %v308, 8
      %v457 = vpop.permute.xlu0 %456
      %462 = vrot.lane.b32.xlu0 %v377, 16
      %v463 = vpop.permute.xlu0 %462
      %464 = vrot.lane.b32.xlu0 %v379, 16
      %v465 = vpop.permute.xlu0 %464
      %470 = vrot.lane.b32.xlu0 %v448, 24
      %v471 = vpop.permute.xlu0 %470
      %472 = vrot.lane.b32.xlu0 %v450, 24
      %v473 = vpop.permute.xlu0 %472
      %v476 = vsel %vm167, %v234, %v455
      %v477 = vsel %vm167, %v236, %v457
      %vm478 = vcmask 130048
      %v479 = vsel %vm478, %v476, %v463
      %v480 = vsel %vm478, %v477, %v465
      %vm481 = vcmask 195584
      %v482 = vsel %vm481, %v479, %v471
      %v483 = vsel %vm481, %v480, %v473
      %vm484 = vcmask 261120
      %485 = vst.msk [vmem:[%s160] sm:$0xff] %vm484, %v482
      %486 = vst.msk [vmem:[%s160 + $0x8] sm:$0xff] %vm484, %v483
      %p487 = scmp.lt.s32.totalorder %s13, 1
      %s488 = scalar_select %p487, %s13, 1
      %s489 = smul.addr %s488, 2
      %s490 = smul.addr %s489, 8
      %s491 = scalar_lea.vmem %s2, %s490
      // Predicated region
      $region29: #{_lambda_.73} parent=27 // pred_check
        %p492 = pneg %p83
      $region30: #{_lambda_.73} parent=27 // pred_check_branch
        %494 = sbr.rel (%p492) target = $region32
      $region31: #{_lambda_.73} parent=27 // pred_region
        _
      $region32: #{_lambda_.73} parent=27 // pred_fallthru
        _
    $region28: #{_lambda_.73} parent=5 // pred_fallthru
      _
    %p495 = scmp.le.s32.totalorder 2, %s8
    // Predicated region
    $region33: #{_lambda_.73} parent=5 // pred_check
      %p496 = pneg %p495
    $region34: #{_lambda_.73} parent=5 // pred_check_branch
      %498 = sbr.rel (%p496) target = $region36
    $region35: #{_lambda_.73} parent=5 // pred_region
      %s499 = ssub.s32 %s8, 2
      // Predicated region
      $region37: #{_lambda_.73} parent=35 // pred_check
        %p500 = pneg %p89
      $region38: #{_lambda_.73} parent=35 // pred_check_branch
        %502 = sbr.rel (%p500) target = $region40
      $region39: #{_lambda_.73} parent=35 // pred_region
        %p503 = scmp.lt.s32.totalorder %s14, 1
        %s504 = scalar_select %p503, %s14, 1
        %s505 = smul.addr %s504, 2
        %s506 = smul.addr %s505, 8
        %s507 = scalar_lea.vmem %s2, %s506
      $region40: #{_lambda_.73} parent=35 // pred_fallthru
        _
    $region36: #{_lambda_.73} parent=5 // pred_fallthru
      _
  $region6: #{_lambda_.73} parent=0 // loop_footer
    %s12 = sadd.s32 1, %s8
  $region7: #{_lambda_.73} parent=0 // loop_footer_branch
    %7 = sbr.rel target = $region3
  $region8: #{_lambda_.73} parent=0 // loop_exit
    _

// kernel: _lambda_.74
$region0: #{_lambda_.74}
  #allocation0 [shape = 'u32[]', space=smem, size = 0x4, offset = 0x4, fixed_abs, tag = 'smem constant byte address 0x4 - core index']
  #allocation1 [shape = 'u32[72,128]{1,0:T(1,128)}', space=vmem, size = 0x9000, scoped, tag = 'internal scratch']
  #allocation2 [shape = 'f32[32,32]{1,0:T(8,128)}', space=vmem, size = 0x4000, scoped, tag = 'scratch operand']
  %s0 = inlined_call_operand.vmem [shape: f32[32,32], index: 0, kind: input, shape index: {}]
  %s1 = inlined_call_operand.vmem [shape: bf16[32,32], index: 1, kind: input, shape index: {}]
  %s2 = inlined_call_operand.vmem [shape: f32[1,32], index: 2, kind: input, shape index: {}]
  %s3 = inlined_call_operand.vmem [shape: f32[32,32], index: 3, kind: input, shape index: {}]
  %s4 = inlined_call_operand.vmem [shape: f32[1,32], index: 4, kind: input, shape index: {}]
  %s5 = inlined_call_operand.vmem [shape: f32[1,32], index: 5, kind: input, shape index: {}]
  %s6 = inlined_call_operand.vmem [shape: f32[32,32], index: 6, kind: output, shape index: {}]
  %s7 = sld [smem:[#allocation0]]
  $region42: #{_lambda_.74} parent=0
    _
  %s9 = ssub.s32 1, %s7
  %s10 = scalar_select 0, %s9, %s7
  // Predicated region
  $region2: #{_lambda_.74} parent=0 // pred_check
    _
  $region3: #{_lambda_.74} parent=0 // pred_check_branch
    %12 = sbr.rel (0) target = $region5
  $region4: #{_lambda_.74} parent=0 // pred_region
    _
  $region5: #{_lambda_.74} parent=0 // pred_fallthru
    _
  // Predicated region
  $region6: #{_lambda_.74} parent=0 // pred_check
    _
  $region7: #{_lambda_.74} parent=0 // pred_check_branch
    %14 = sbr.rel (0) target = $region9
  $region8: #{_lambda_.74} parent=0 // pred_region
    _
  $region9: #{_lambda_.74} parent=0 // pred_fallthru
    _
  // Predicated region
  $region10: #{_lambda_.74} parent=0 // pred_check
    _
  $region11: #{_lambda_.74} parent=0 // pred_check_branch
    %16 = sbr.rel (0) target = $region13
  $region12: #{_lambda_.74} parent=0 // pred_region
    _
  $region13: #{_lambda_.74} parent=0 // pred_fallthru
    _
  // Predicated region
  $region14: #{_lambda_.74} parent=0 // pred_check
    _
  $region15: #{_lambda_.74} parent=0 // pred_check_branch
    %18 = sbr.rel (0) target = $region17
  $region16: #{_lambda_.74} parent=0 // pred_region
    _
  $region17: #{_lambda_.74} parent=0 // pred_fallthru
    _
  // Predicated region
  $region18: #{_lambda_.74} parent=0 // pred_check
    _
  $region19: #{_lambda_.74} parent=0 // pred_check_branch
    %20 = sbr.rel (0) target = $region21
  $region20: #{_lambda_.74} parent=0 // pred_region
    _
  $region21: #{_lambda_.74} parent=0 // pred_fallthru
    _
  // Predicated region
  $region22: #{_lambda_.74} parent=0 // pred_check
    _
  $region23: #{_lambda_.74} parent=0 // pred_check_branch
    %22 = sbr.rel (0) target = $region25
  $region24: #{_lambda_.74} parent=0 // pred_region
    _
  $region25: #{_lambda_.74} parent=0 // pred_fallthru
    _
  %p24 = scmp.eq.s32.totalorder 0, 0
  // Predicated region
  $region26: #{_lambda_.74} parent=0 // pred_check
    %p25 = pneg %p24
  $region27: #{_lambda_.74} parent=0 // pred_check_branch
    %27 = sbr.rel (%p25) target = $region29
  $region28: #{_lambda_.74} parent=0 // pred_region
    %vm28 = vcmask 261120
    %29 = vst.msk [vmem:[#allocation2] sm:$0xff] %vm28, 0.0
    %30 = vst.msk [vmem:[#allocation2 + $0x8] sm:$0xff] %vm28, 0.0
    %31 = vst.msk [vmem:[#allocation2 + $0x10] sm:$0xff] %vm28, 0.0
    %32 = vst.msk [vmem:[#allocation2 + $0x18] sm:$0xff] %vm28, 0.0
  $region29: #{_lambda_.74} parent=0 // pred_fallthru
    _
  %v33 = vld [vmem:[%s0] sm:$0xff]
  %v34 = vld [vmem:[%s0 + $0x8] sm:$0xff]
  %v35 = vld [vmem:[%s0 + $0x10] sm:$0xff]
  %v36 = vld [vmem:[%s0 + $0x18] sm:$0xff]
  %v37 = vld [vmem:[#allocation2] sm:$0xff]
  %v38 = vld [vmem:[#allocation2 + $0x8] sm:$0xff]
  %v39 = vld [vmem:[#allocation2 + $0x10] sm:$0xff]
  %v40 = vld [vmem:[#allocation2 + $0x18] sm:$0xff]
  %v41 = vpack.c.bf16 %v34, %v33
  %v42 = vpack.c.bf16 %v36, %v35
  %v43 = vld [vmem:[%s1] sm:$0xf]
  %v44 = vld [vmem:[%s1 + $0x4] sm:$0xf]
  %v45 = vld [vmem:[%s1 + $0x8] sm:$0xf]
  %v46 = vld [vmem:[%s1 + $0xc] sm:$0xf]
  %v51 = vunpack.c.l.b16 %v43
  %v52 = vunpack.c.l.b16 %v44
  %v53 = vunpack.c.l.b16 %v45
  %v54 = vunpack.c.l.b16 %v46
  %v55 = vpack.c.b16 %v52, %v51
  %v56 = vpack.c.b16 %v54, %v53
  %vm59 = vcmask 261120
  %v61 = vsel %vm59, %v41, 0
  %v64 = vsel %vm59, %v42, 0
  %66 = vmatpush.bf16.msra.mxu0 0
  %67 = vmatpush.bf16.msra.mxu0 0
  %68 = vmatpush.bf16.msra.mxu0 0
  %69 = vmatpush.bf16.msra.mxu0 0
  %70 = vmatpush.bf16.msra.mxu0 0
  %71 = vmatpush.bf16.msra.mxu0 0
  %72 = vmatpush.bf16.msra.mxu0 %v56
  %73 = vmatpush.bf16.msra.mxu0 %v55
  %74 = vmatmul.bf16.gmra.mxu0 %v61
  %v75 = vpop.f32.mrf.mxu0
  %v76 = vadd.f32 0.0, %v75
  %v77 = vpop.f32.mrf.mxu0
  %v78 = vadd.f32 0.0, %v77
  %79 = vmatmul.bf16.gmra.mxu0 %v64
  %v80 = vpop.f32.mrf.mxu0
  %v81 = vadd.f32 0.0, %v80
  %v82 = vpop.f32.mrf.mxu0
  %v83 = vadd.f32 0.0, %v82
  %84 = vdwg.mxu0
  %v85 = vadd.f32 %v37, %v76
  %v86 = vadd.f32 %v38, %v78
  %v87 = vadd.f32 %v39, %v81
  %v88 = vadd.f32 %v40, %v83
  %89 = vst.msk [vmem:[#allocation2] sm:$0xff] %vm59, %v85
  %90 = vst.msk [vmem:[#allocation2 + $0x8] sm:$0xff] %vm59, %v86
  %91 = vst.msk [vmem:[#allocation2 + $0x10] sm:$0xff] %vm59, %v87
  %92 = vst.msk [vmem:[#allocation2 + $0x18] sm:$0xff] %vm59, %v88
  // Predicated region
  $region30: #{_lambda_.74} parent=0 // pred_check
    %p93 = pneg %p24
  $region31: #{_lambda_.74} parent=0 // pred_check_branch
    %95 = sbr.rel (%p93) target = $region33
  $region32: #{_lambda_.74} parent=0 // pred_region
    %v96 = vld [vmem:[#allocation2] sm:$0xff]
    %v97 = vld [vmem:[#allocation2 + $0x8] sm:$0xff]
    %v98 = vld [vmem:[#allocation2 + $0x10] sm:$0xff]
    %v99 = vld [vmem:[#allocation2 + $0x18] sm:$0xff]
    %v100 = vld [vmem:[%s2] sm:$0x1]
    %v102 = vperm.slane %v100, 0
    %v104 = vadd.f32 %v96, %v102
    %v105 = vadd.f32 %v97, %v102
    %v106 = vadd.f32 %v98, %v102
    %v107 = vadd.f32 %v99, %v102
    %v108 = vld [vmem:[%s3] sm:$0xff]
    %v109 = vld [vmem:[%s3 + $0x8] sm:$0xff]
    %v110 = vld [vmem:[%s3 + $0x10] sm:$0xff]
    %v111 = vld [vmem:[%s3 + $0x18] sm:$0xff]
    %v112 = vadd.f32 %v104, %v108
    %v113 = vadd.f32 %v105, %v109
    %v114 = vadd.f32 %v106, %v110
    %v115 = vadd.f32 %v107, %v111
    %v116 = vsel %vm59, %v112, 0.0
    %117 = vadd.xlane.f32.xlu0 %v116
    %v118 = vpop.xlane.xlu0 %117
    %v119 = vsel %vm59, %v113, 0.0
    %120 = vadd.xlane.f32.xlu0 %v119
    %v121 = vpop.xlane.xlu0 %120
    %v122 = vsel %vm59, %v114, 0.0
    %123 = vadd.xlane.f32.xlu0 %v122
    %v124 = vpop.xlane.xlu0 %123
    %v125 = vsel %vm59, %v115, 0.0
    %126 = vadd.xlane.f32.xlu0 %v125
    %v127 = vpop.xlane.xlu0 %126
    %v128 = vrcp.pop 32.0
    %v129 = vmul.f32 32.0, %v128
    %v130 = vsub.f32 1.0, %v129
    %v131 = vmul.f32 %v128, %v130
    %v132 = vadd.f32 %v128, %v131
    %vm133 = vweird.f32 %v128
    %v134 = vsel %vm133, %v128, %v132
    %v135 = vmul.f32 %v118, %v134
    %v136 = vmul.f32 %v121, %v134
    %v137 = vmul.f32 %v124, %v134
    %v138 = vmul.f32 %v127, %v134
    %v139 = vsub.f32 %v112, %v135
    %v140 = vsub.f32 %v113, %v136
    %v141 = vsub.f32 %v114, %v137
    %v142 = vsub.f32 %v115, %v138
    %v143 = vmul.f32 %v139, %v139
    %v144 = vmul.f32 %v140, %v140
    %v145 = vmul.f32 %v141, %v141
    %v146 = vmul.f32 %v142, %v142
    %v147 = vsel %vm59, %v143, 0.0
    %148 = vadd.xlane.f32.xlu0 %v147
    %v149 = vpop.xlane.xlu0 %148
    %v150 = vsel %vm59, %v144, 0.0
    %151 = vadd.xlane.f32.xlu0 %v150
    %v152 = vpop.xlane.xlu0 %151
    %v153 = vsel %vm59, %v145, 0.0
    %154 = vadd.xlane.f32.xlu0 %v153
    %v155 = vpop.xlane.xlu0 %154
    %v156 = vsel %vm59, %v146, 0.0
    %157 = vadd.xlane.f32.xlu0 %v156
    %v158 = vpop.xlane.xlu0 %157
    %v159 = vmul.f32 %v149, %v134
    %v160 = vmul.f32 %v152, %v134
    %v161 = vmul.f32 %v155, %v134
    %v162 = vmul.f32 %v158, %v134
    %v163 = vadd.f32 %v159, 1e-05
    %v164 = vadd.f32 %v160, 1e-05
    %v165 = vadd.f32 %v161, 1e-05
    %v166 = vadd.f32 %v162, 1e-05
    %v167 = vrsqrt.pop %v163
    %v168 = vmul.f32 %v167, %v163
    %v169 = vmul.f32 %v168, %v167
    %v170 = vmul.f32 0.5, %v169
    %v171 = vsub.f32 1.5, %v170
    %v172 = vmul.f32 %v167, %v171
    %vm173 = vweird.f32 %v163
    %vm174 = vweird.f32 %v167
    %vm175 = vmor %vm173, %vm174
    %v176 = vsel %vm175, %v167, %v172
    %v177 = vrsqrt.pop %v164
    %v178 = vmul.f32 %v177, %v164
    %v179 = vmul.f32 %v178, %v177
    %v180 = vmul.f32 0.5, %v179
    %v181 = vsub.f32 1.5, %v180
    %v182 = vmul.f32 %v177, %v181
    %vm183 = vweird.f32 %v164
    %vm184 = vweird.f32 %v177
    %vm185 = vmor %vm183, %vm184
    %v186 = vsel %vm185, %v177, %v182
    %v187 = vrsqrt.pop %v165
    %v188 = vmul.f32 %v187, %v165
    %v189 = vmul.f32 %v188, %v187
    %v190 = vmul.f32 0.5, %v189
    %v191 = vsub.f32 1.5, %v190
    %v192 = vmul.f32 %v187, %v191
    %vm193 = vweird.f32 %v165
    %vm194 = vweird.f32 %v187
    %vm195 = vmor %vm193, %vm194
    %v196 = vsel %vm195, %v187, %v192
    %v197 = vrsqrt.pop %v166
    %v198 = vmul.f32 %v197, %v166
    %v199 = vmul.f32 %v198, %v197
    %v200 = vmul.f32 0.5, %v199
    %v201 = vsub.f32 1.5, %v200
    %v202 = vmul.f32 %v197, %v201
    %vm203 = vweird.f32 %v166
    %vm204 = vweird.f32 %v197
    %vm205 = vmor %vm203, %vm204
    %v206 = vsel %vm205, %v197, %v202
    %v207 = vmul.f32 %v139, %v176
    %v208 = vmul.f32 %v140, %v186
    %v209 = vmul.f32 %v141, %v196
    %v210 = vmul.f32 %v142, %v206
    %v211 = vld [vmem:[%s4] sm:$0x1]
    %v213 = vperm.slane %v211, 0
    %v215 = vmul.f32 %v207, %v213
    %v216 = vmul.f32 %v208, %v213
    %v217 = vmul.f32 %v209, %v213
    %v218 = vmul.f32 %v210, %v213
    %v219 = vld [vmem:[%s5] sm:$0x1]
    %v221 = vperm.slane %v219, 0
    %v223 = vadd.f32 %v215, %v221
    %v224 = vadd.f32 %v216, %v221
    %v225 = vadd.f32 %v217, %v221
    %v226 = vadd.f32 %v218, %v221
    %227 = vst.msk [vmem:[%s6] sm:$0xff] %vm59, %v223
    %228 = vst.msk [vmem:[%s6 + $0x8] sm:$0xff] %vm59, %v224
    %229 = vst.msk [vmem:[%s6 + $0x10] sm:$0xff] %vm59, %v225
    %230 = vst.msk [vmem:[%s6 + $0x18] sm:$0xff] %vm59, %v226
  $region33: #{_lambda_.74} parent=0 // pred_fallthru
    _
  // Predicated region
  $region34: #{_lambda_.74} parent=0 // pred_check
    _
  $region35: #{_lambda_.74} parent=0 // pred_check_branch
    %232 = sbr.rel (0) target = $region37
  $region36: #{_lambda_.74} parent=0 // pred_region
    _
  $region37: #{_lambda_.74} parent=0 // pred_fallthru
    _
  // Predicated region
  $region38: #{_lambda_.74} parent=0 // pred_check
    _
  $region39: #{_lambda_.74} parent=0 // pred_check_branch
    %234 = sbr.rel (0) target = $region41
  $region40: #{_lambda_.74} parent=0 // pred_region
    _
  $region41: #{_lambda_.74} parent=0 // pred_fallthru
    _

// kernel: _lambda_.94
$region0: #{_lambda_.94}
  #allocation0 [shape = 'u32[]', space=smem, size = 0x4, offset = 0x4, fixed_abs, tag = 'smem constant byte address 0x4 - core index']
  #allocation1 [shape = 'u32[72,128]{1,0:T(1,128)}', space=vmem, size = 0x9000, scoped, tag = 'internal scratch']
  #allocation2 [shape = 'f32[2,32]{1,0:T(2,128)}', space=vmem, size = 0x400, scoped, tag = 'scratch operand']
  %s0 = inlined_call_operand.vmem [shape: f32[2,32], index: 0, kind: input, shape index: {}]
  %s1 = inlined_call_operand.vmem [shape: bf16[32,32], index: 1, kind: input, shape index: {}]
  %s2 = inlined_call_operand.vmem [shape: f32[1,32], index: 2, kind: input, shape index: {}]
  %s3 = inlined_call_operand.vmem [shape: f32[2,32], index: 3, kind: output, shape index: {}]
  %s4 = sld [smem:[#allocation0]]
  $region30: #{_lambda_.94} parent=0
    _
  %s6 = ssub.s32 1, %s4
  %s7 = scalar_select 0, %s6, %s4
  // Predicated region
  $region2: #{_lambda_.94} parent=0 // pred_check
    _
  $region3: #{_lambda_.94} parent=0 // pred_check_branch
    %9 = sbr.rel (0) target = $region5
  $region4: #{_lambda_.94} parent=0 // pred_region
    _
  $region5: #{_lambda_.94} parent=0 // pred_fallthru
    _
  // Predicated region
  $region6: #{_lambda_.94} parent=0 // pred_check
    _
  $region7: #{_lambda_.94} parent=0 // pred_check_branch
    %11 = sbr.rel (0) target = $region9
  $region8: #{_lambda_.94} parent=0 // pred_region
    _
  $region9: #{_lambda_.94} parent=0 // pred_fallthru
    _
  // Predicated region
  $region10: #{_lambda_.94} parent=0 // pred_check
    _
  $region11: #{_lambda_.94} parent=0 // pred_check_branch
    %13 = sbr.rel (0) target = $region13
  $region12: #{_lambda_.94} parent=0 // pred_region
    _
  $region13: #{_lambda_.94} parent=0 // pred_fallthru
    _
  %p15 = scmp.eq.s32.totalorder 0, 0
  // Predicated region
  $region14: #{_lambda_.94} parent=0 // pred_check
    %p16 = pneg %p15
  $region15: #{_lambda_.94} parent=0 // pred_check_branch
    %18 = sbr.rel (%p16) target = $region17
  $region16: #{_lambda_.94} parent=0 // pred_region
    %vm19 = vcmask 254976
    %20 = vst.msk [vmem:[#allocation2] sm:$0x3] %vm19, 0.0
  $region17: #{_lambda_.94} parent=0 // pred_fallthru
    _
  %v21 = vld [vmem:[%s0] sm:$0x3]
  %v22 = vld [vmem:[#allocation2] sm:$0x3]
  %v23 = vpack.c.bf16 %v21, %v21
  %v24 = vld [vmem:[%s1] sm:$0xf]
  %v25 = vld [vmem:[%s1 + $0x4] sm:$0xf]
  %v26 = vld [vmem:[%s1 + $0x8] sm:$0xf]
  %v27 = vld [vmem:[%s1 + $0xc] sm:$0xf]
  %v32 = vunpack.c.l.b16 %v24
  %v33 = vunpack.c.l.b16 %v25
  %v34 = vunpack.c.l.b16 %v26
  %v35 = vunpack.c.l.b16 %v27
  %v36 = vpack.c.b16 %v33, %v32
  %v37 = vpack.c.b16 %v35, %v34
  %vm40 = vcmask 261120
  %v42 = vsel %vm40, %v23, 0
  %44 = vmatpush.bf16.msra.mxu0 0
  %45 = vmatpush.bf16.msra.mxu0 0
  %46 = vmatpush.bf16.msra.mxu0 0
  %47 = vmatpush.bf16.msra.mxu0 0
  %48 = vmatpush.bf16.msra.mxu0 0
  %49 = vmatpush.bf16.msra.mxu0 0
  %50 = vmatpush.bf16.msra.mxu0 %v37
  %51 = vmatpush.bf16.msra.mxu0 %v36
  %52 = vmatmul.bf16.gmra.mxu0 %v42
  %v53 = vpop.f32.mrf.mxu0
  %v54 = vadd.f32 0.0, %v53
  %v55 = vpop.f32.mrf.mxu0
  %56 = vdwg.mxu0
  %v57 = vadd.f32 %v22, %v54
  %vm58 = vcmask 254976
  %59 = vst.msk [vmem:[#allocation2] sm:$0x3] %vm58, %v57
  // Predicated region
  $region18: #{_lambda_.94} parent=0 // pred_check
    %p60 = pneg %p15
  $region19: #{_lambda_.94} parent=0 // pred_check_branch
    %62 = sbr.rel (%p60) target = $region21
  $region20: #{_lambda_.94} parent=0 // pred_region
    %v63 = vld [vmem:[#allocation2] sm:$0x3]
    %v64 = vld [vmem:[%s2] sm:$0x1]
    %v66 = vperm.slane %v64, 0
    %v68 = vadd.f32 %v63, %v66
    %v69 = vmul.f32 %v68, %v68
    %v70 = vmul.f32 %v68, %v69
    %v71 = vmul.f32 %v70, 0.044715
    %v72 = vadd.f32 %v68, %v71
    %v73 = vmul.f32 %v72, 0.7978846
    %v74 = vtanh.pop %v73
    %v75 = vadd.f32 %v74, 1.0
    %v76 = vmul.f32 %v75, 0.5
    %v77 = vmul.f32 %v68, %v76
    %78 = vst.msk [vmem:[%s3] sm:$0x3] %vm58, %v77
  $region21: #{_lambda_.94} parent=0 // pred_fallthru
    _
  // Predicated region
  $region22: #{_lambda_.94} parent=0 // pred_check
    _
  $region23: #{_lambda_.94} parent=0 // pred_check_branch
    %80 = sbr.rel (0) target = $region25
  $region24: #{_lambda_.94} parent=0 // pred_region
    _
  $region25: #{_lambda_.94} parent=0 // pred_fallthru
    _
  // Predicated region
  $region26: #{_lambda_.94} parent=0 // pred_check
    _
  $region27: #{_lambda_.94} parent=0 // pred_check_branch
    %82 = sbr.rel (0) target = $region29
  $region28: #{_lambda_.94} parent=0 // pred_region
    _
  $region29: #{_lambda_.94} parent=0 // pred_fallthru
    _

// kernel: _lambda_.96
$region0: #{_lambda_.96}
  #allocation0 [shape = 'u32[]', space=smem, size = 0x4, offset = 0x4, fixed_abs, tag = 'smem constant byte address 0x4 - core index']
  #allocation1 [shape = 'u32[72,128]{1,0:T(1,128)}', space=vmem, size = 0x9000, scoped, tag = 'internal scratch']
  #allocation2 [shape = 'f32[2,8]{1,0:T(2,128)}', space=vmem, size = 0x400, scoped, tag = 'scratch operand']
  %s0 = inlined_call_operand.vmem [shape: f32[2,32], index: 0, kind: input, shape index: {}]
  %s1 = inlined_call_operand.vmem [shape: bf16[32,8], index: 1, kind: input, shape index: {}]
  %s2 = inlined_call_operand.vmem [shape: f32[1,8], index: 2, kind: input, shape index: {}]
  %s3 = inlined_call_operand.vmem [shape: f32[2,8], index: 3, kind: output, shape index: {}]
  %s4 = sld [smem:[#allocation0]]
  $region30: #{_lambda_.96} parent=0
    _
  %s6 = ssub.s32 1, %s4
  %s7 = scalar_select 0, %s6, %s4
  // Predicated region
  $region2: #{_lambda_.96} parent=0 // pred_check
    _
  $region3: #{_lambda_.96} parent=0 // pred_check_branch
    %9 = sbr.rel (0) target = $region5
  $region4: #{_lambda_.96} parent=0 // pred_region
    _
  $region5: #{_lambda_.96} parent=0 // pred_fallthru
    _
  // Predicated region
  $region6: #{_lambda_.96} parent=0 // pred_check
    _
  $region7: #{_lambda_.96} parent=0 // pred_check_branch
    %11 = sbr.rel (0) target = $region9
  $region8: #{_lambda_.96} parent=0 // pred_region
    _
  $region9: #{_lambda_.96} parent=0 // pred_fallthru
    _
  // Predicated region
  $region10: #{_lambda_.96} parent=0 // pred_check
    _
  $region11: #{_lambda_.96} parent=0 // pred_check_branch
    %13 = sbr.rel (0) target = $region13
  $region12: #{_lambda_.96} parent=0 // pred_region
    _
  $region13: #{_lambda_.96} parent=0 // pred_fallthru
    _
  %p15 = scmp.eq.s32.totalorder 0, 0
  // Predicated region
  $region14: #{_lambda_.96} parent=0 // pred_check
    %p16 = pneg %p15
  $region15: #{_lambda_.96} parent=0 // pred_check_branch
    %18 = sbr.rel (%p16) target = $region17
  $region16: #{_lambda_.96} parent=0 // pred_region
    %vm19 = vcmask 58368
    %20 = vst.msk [vmem:[#allocation2] sm:$0x3] %vm19, 0.0
  $region17: #{_lambda_.96} parent=0 // pred_fallthru
    _
  %v21 = vld [vmem:[%s0] sm:$0x3]
  %v22 = vld [vmem:[#allocation2] sm:$0x3]
  %v23 = vpack.c.bf16 %v21, %v21
  %v24 = vld [vmem:[%s1] sm:$0xf]
  %v25 = vld [vmem:[%s1 + $0x4] sm:$0xf]
  %v26 = vld [vmem:[%s1 + $0x8] sm:$0xf]
  %v27 = vld [vmem:[%s1 + $0xc] sm:$0xf]
  %v32 = vunpack.c.l.b16 %v24
  %v33 = vunpack.c.l.b16 %v25
  %v34 = vunpack.c.l.b16 %v26
  %v35 = vunpack.c.l.b16 %v27
  %v36 = vpack.c.b16 %v33, %v32
  %v37 = vpack.c.b16 %v35, %v34
  %vm40 = vcmask 261120
  %v42 = vsel %vm40, %v23, 0
  %44 = vmatpush.bf16.msra.mxu0 0
  %45 = vmatpush.bf16.msra.mxu0 0
  %46 = vmatpush.bf16.msra.mxu0 0
  %47 = vmatpush.bf16.msra.mxu0 0
  %48 = vmatpush.bf16.msra.mxu0 0
  %49 = vmatpush.bf16.msra.mxu0 0
  %50 = vmatpush.bf16.msra.mxu0 %v37
  %51 = vmatpush.bf16.msra.mxu0 %v36
  %52 = vmatmul.bf16.gmra.mxu0 %v42
  %v53 = vpop.f32.mrf.mxu0
  %v54 = vadd.f32 0.0, %v53
  %v55 = vpop.f32.mrf.mxu0
  %56 = vdwg.mxu0
  %v57 = vadd.f32 %v22, %v54
  %vm58 = vcmask 58368
  %59 = vst.msk [vmem:[#allocation2] sm:$0x3] %vm58, %v57
  // Predicated region
  $region18: #{_lambda_.96} parent=0 // pred_check
    %p60 = pneg %p15
  $region19: #{_lambda_.96} parent=0 // pred_check_branch
    %62 = sbr.rel (%p60) target = $region21
  $region20: #{_lambda_.96} parent=0 // pred_region
    %v63 = vld [vmem:[#allocation2] sm:$0x3]
    %v64 = vld [vmem:[%s2] sm:$0x1]
    %v66 = vperm.slane %v64, 0
    %v68 = vadd.f32 %v63, %v66
    %69 = vst.msk [vmem:[%s3] sm:$0x3] %vm58, %v68
  $region21: #{_lambda_.96} parent=0 // pred_fallthru
    _
  // Predicated region
  $region22: #{_lambda_.96} parent=0 // pred_check
    _
  $region23: #{_lambda_.96} parent=0 // pred_check_branch
    %71 = sbr.rel (0) target = $region25
  $region24: #{_lambda_.96} parent=0 // pred_region
    _
  $region25: #{_lambda_.96} parent=0 // pred_fallthru
    _
  // Predicated region
  $region26: #{_lambda_.96} parent=0 // pred_check
    _
  $region27: #{_lambda_.96} parent=0 // pred_check_branch
    %73 = sbr.rel (0) target = $region29
  $region28: #{_lambda_.96} parent=0 // pred_region
    _
  $region29: #{_lambda_.96} parent=0 // pred_fallthru
    _

// kernel: _lambda_.97
$region0: #{_lambda_.97}
  #allocation0 [shape = 'u32[]', space=smem, size = 0x4, offset = 0x4, fixed_abs, tag = 'smem constant byte address 0x4 - core index']
  #allocation1 [shape = 'u32[72,128]{1,0:T(1,128)}', space=vmem, size = 0x9000, scoped, tag = 'internal scratch']
  %s0 = inlined_call_operand.vmem [shape: f32[2,1,8], index: 0, kind: input, shape index: {}]
  %s1 = inlined_call_operand.vmem [shape: f32[2,256,8], index: 1, kind: input, shape index: {}]
  %s2 = inlined_call_operand.vmem [shape: f32[2,1,256], index: 2, kind: output, shape index: {}]
  %s3 = sld [smem:[#allocation0]]
  $region41: #{_lambda_.97} parent=0
    _
  %s5 = ssub.s32 1, %s3
  %s6 = scalar_select 0, %s5, %s3
  loop: start=0, step=1, limit=4
  $region2: #{_lambda_.97} parent=0 // loop_pre_header
    _
  $region3: #{_lambda_.97} parent=0 // loop_header
    %s8 = sphi 0, %s12
    %p9 = scmp.ge.s32.totalorder %s8, 4
    %s18 = sphi 0, %s20
    %s21 = sphi 0, %s18
    %s22 = sphi 0, %s21
    %s38 = sphi 0, %s22
    %s44 = sphi 0, %s46
    %s47 = sphi 0, %s44
    %s48 = sphi 0, %s47
    %s64 = sphi 0, %s48
    %s70 = sphi 0, %s72
    %s73 = sphi 0, %s70
    %s74 = sphi 0, %s73
    %s90 = sphi 0, %s74
  $region4: #{_lambda_.97} parent=0 // loop_header_branch
    %11 = sbr.rel (%p9) target = $region8
  $region5: #{_lambda_.97} parent=0 // loop_body
    %s13 = ssub.s32 %s8, 1
    %s14 = ssub.s32 %s8, 2
    %s15 = sadd.s32 %s8, 1
    %s16 = ssub.s32 %s8, %s15
    %p17 = scmp.eq.s32.totalorder %s16, 0
    %s19 = sadd.s32 %s18, 1
    %s20 = scalar_select %p17, %s18, %s19
    %p23 = pneg %p17
    %p24 = scmp.eq.s32.totalorder %s8, 1
    %p25 = por %p23, %p24
    %p26 = scmp.ne.s32.totalorder %s18, %s21
    %p27 = scmp.eq.s32.totalorder %s8, 0
    %p28 = por %p26, %p27
    %p29 = scmp.ne.s32.totalorder %s18, %s21
    %p30 = scmp.eq.s32.totalorder %s13, 1
    %p31 = por %p29, %p30
    %p32 = scmp.ne.s32.totalorder %s21, %s22
    %p33 = scmp.eq.s32.totalorder %s13, 0
    %p34 = por %p32, %p33
    %p35 = scmp.ne.s32.totalorder %s21, %s22
    %p36 = scmp.eq.s32.totalorder %s14, 1
    %p37 = por %p35, %p36
    %p39 = scmp.ne.s32.totalorder %s22, %s38
    %p40 = scmp.eq.s32.totalorder %s14, 0
    %p41 = por %p39, %p40
    %s42 = ssub.s32 %s8, %s15
    %p43 = scmp.eq.s32.totalorder %s42, 0
    %s45 = sadd.s32 %s44, 1
    %s46 = scalar_select %p43, %s44, %s45
    %p49 = pneg %p43
    %p50 = scmp.eq.s32.totalorder %s8, 1
    %p51 = por %p49, %p50
    %p52 = scmp.ne.s32.totalorder %s44, %s47
    %p53 = scmp.eq.s32.totalorder %s8, 0
    %p54 = por %p52, %p53
    %p55 = scmp.ne.s32.totalorder %s44, %s47
    %p56 = scmp.eq.s32.totalorder %s13, 1
    %p57 = por %p55, %p56
    %p58 = scmp.ne.s32.totalorder %s47, %s48
    %p59 = scmp.eq.s32.totalorder %s13, 0
    %p60 = por %p58, %p59
    %p61 = scmp.ne.s32.totalorder %s47, %s48
    %p62 = scmp.eq.s32.totalorder %s14, 1
    %p63 = por %p61, %p62
    %p65 = scmp.ne.s32.totalorder %s48, %s64
    %p66 = scmp.eq.s32.totalorder %s14, 0
    %p67 = por %p65, %p66
    %s68 = ssub.s32 %s8, %s15
    %p69 = scmp.eq.s32.totalorder %s68, 0
    %s71 = sadd.s32 %s70, 1
    %s72 = scalar_select %p69, %s70, %s71
    %p75 = pneg %p69
    %p76 = scmp.eq.s32.totalorder %s8, 1
    %p77 = por %p75, %p76
    %p78 = scmp.ne.s32.totalorder %s70, %s73
    %p79 = scmp.eq.s32.totalorder %s8, 0
    %p80 = por %p78, %p79
    %p81 = scmp.ne.s32.totalorder %s70, %s73
    %p82 = scmp.eq.s32.totalorder %s13, 1
    %p83 = por %p81, %p82
    %p84 = scmp.ne.s32.totalorder %s73, %s74
    %p85 = scmp.eq.s32.totalorder %s13, 0
    %p86 = por %p84, %p85
    %p87 = scmp.ne.s32.totalorder %s73, %s74
    %p88 = scmp.eq.s32.totalorder %s14, 1
    %p89 = por %p87, %p88
    %p91 = scmp.ne.s32.totalorder %s74, %s90
    %p92 = scmp.eq.s32.totalorder %s14, 0
    %p93 = por %p91, %p92
    %p94 = scmp.le.s32.totalorder 1, %s8
    %p95 = scmp.lt.s32.totalorder %s8, 3
    %p96 = pnand %p94, %p95
    %p97 = pneg %p96
    // Predicated region
    $region9: #{_lambda_.97} parent=5 // pred_check
      _
    $region10: #{_lambda_.97} parent=5 // pred_check_branch
      %99 = sbr.rel (%p96) target = $region12
    $region11: #{_lambda_.97} parent=5 // pred_region
      %s100 = ssub.s32 %s8, 1
    $region12: #{_lambda_.97} parent=5 // pred_fallthru
      _
    %p101 = scmp.lt.s32.totalorder %s8, 2
    // Predicated region
    $region13: #{_lambda_.97} parent=5 // pred_check
      %p102 = pneg %p101
    $region14: #{_lambda_.97} parent=5 // pred_check_branch
      %104 = sbr.rel (%p102) target = $region16
    $region15: #{_lambda_.97} parent=5 // pred_region
      // Predicated region
      $region17: #{_lambda_.97} parent=15 // pred_check
        %p105 = pneg %p28
      $region18: #{_lambda_.97} parent=15 // pred_check_branch
        %107 = sbr.rel (%p105) target = $region20
      $region19: #{_lambda_.97} parent=15 // pred_region
        %p108 = scmp.lt.s32.totalorder %s8, 1
        %s109 = scalar_select %p108, %s8, 1
        %s110 = scalar_lea.vmem %s0, %s109
      $region20: #{_lambda_.97} parent=15 // pred_fallthru
        _
      // Predicated region
      $region21: #{_lambda_.97} parent=15 // pred_check
        %p111 = pneg %p54
      $region22: #{_lambda_.97} parent=15 // pred_check_branch
        %113 = sbr.rel (%p111) target = $region24
      $region23: #{_lambda_.97} parent=15 // pred_region
        %p114 = scmp.lt.s32.totalorder %s8, 1
        %s115 = scalar_select %p114, %s8, 1
        %s116 = smul.addr %s115, 32
        %s117 = smul.addr %s116, 8
        %s118 = scalar_lea.vmem %s1, %s117
      $region24: #{_lambda_.97} parent=15 // pred_fallthru
        _
    $region16: #{_lambda_.97} parent=5 // pred_fallthru
      _
    %p119 = scmp.le.s32.totalorder 1, %s8
    %p120 = scmp.lt.s32.totalorder %s8, 3
    %p121 = pnand %p119, %p120
    %p122 = pneg %p121
    // Predicated region
    $region25: #{_lambda_.97} parent=5 // pred_check
      _
    $region26: #{_lambda_.97} parent=5 // pred_check_branch
      %124 = sbr.rel (%p121) target = $region28
    $region27: #{_lambda_.97} parent=5 // pred_region
      %s125 = ssub.s32 %s8, 1
      %p126 = scmp.lt.s32.totalorder %s13, 1
      %s127 = scalar_select %p126, %s13, 1
      %s128 = scalar_lea.vmem %s0, %s127
      %p129 = pneg %p34
      %p130 = pneg %p31
      %p131 = scmp.lt.s32.totalorder %s13, 1
      %s132 = scalar_select %p131, %s13, 1
      %s133 = smul.addr %s132, 32
      %s134 = smul.addr %s133, 8
      %s135 = scalar_lea.vmem %s1, %s134
      %p136 = pneg %p60
      %p137 = pneg %p57
      %p138 = pneg %p86
      %p139 = pneg %p83
      %p140 = scmp.lt.s32.totalorder %s13, 1
      %s141 = scalar_select %p140, %s13, 1
      %s142 = smul.addr %s141, 2
      %s143 = scalar_lea.vmem %s2, %s142
      %p144 = scmp.lt.s32.totalorder %s13, 1
      %s145 = scalar_select %p144, %s13, 1
      %s146 = scalar_lea.vmem %s0, %s145
      %p147 = scmp.lt.s32.totalorder %s13, 1
      %s148 = scalar_select %p147, %s13, 1
      %s149 = smul.addr %s148, 32
      %s150 = smul.addr %s149, 8
      %s151 = scalar_lea.vmem %s1, %s150
      %p152 = scmp.lt.s32.totalorder %s13, 1
      %s153 = scalar_select %p152, %s13, 1
      %s154 = smul.addr %s153, 2
      %s155 = scalar_lea.vmem %s2, %s154
      %v156 = vld [vmem:[%s146] sm:$0x1]
      %v157 = vpack.c.bf16 %v156, %v156
      %v158 = vld [vmem:[%s151] sm:$0xff]
      %v159 = vld [vmem:[%s151 + $0x8] sm:$0xff]
      %v160 = vld [vmem:[%s151 + $0x10] sm:$0xff]
      %v161 = vld [vmem:[%s151 + $0x18] sm:$0xff]
      %v162 = vld [vmem:[%s151 + $0x20] sm:$0xff]
      %v163 = vld [vmem:[%s151 + $0x28] sm:$0xff]
      %v164 = vld [vmem:[%s151 + $0x30] sm:$0xff]
      %v165 = vld [vmem:[%s151 + $0x38] sm:$0xff]
      %v166 = vld [vmem:[%s151 + $0x40] sm:$0xff]
      %v167 = vld [vmem:[%s151 + $0x48] sm:$0xff]
      %v168 = vld [vmem:[%s151 + $0x50] sm:$0xff]
      %v169 = vld [vmem:[%s151 + $0x58] sm:$0xff]
      %v170 = vld [vmem:[%s151 + $0x60] sm:$0xff]
      %v171 = vld [vmem:[%s151 + $0x68] sm:$0xff]
      %v172 = vld [vmem:[%s151 + $0x70] sm:$0xff]
      %v173 = vld [vmem:[%s151 + $0x78] sm:$0xff]
      %v174 = vld [vmem:[%s151 + $0x80] sm:$0xff]
      %v175 = vld [vmem:[%s151 + $0x88] sm:$0xff]
      %v176 = vld [vmem:[%s151 + $0x90] sm:$0xff]
      %v177 = vld [vmem:[%s151 + $0x98] sm:$0xff]
      %v178 = vld [vmem:[%s151 + $0xa0] sm:$0xff]
      %v179 = vld [vmem:[%s151 + $0xa8] sm:$0xff]
      %v180 = vld [vmem:[%s151 + $0xb0] sm:$0xff]
      %v181 = vld [vmem:[%s151 + $0xb8] sm:$0xff]
      %v182 = vld [vmem:[%s151 + $0xc0] sm:$0xff]
      %v183 = vld [vmem:[%s151 + $0xc8] sm:$0xff]
      %v184 = vld [vmem:[%s151 + $0xd0] sm:$0xff]
      %v185 = vld [vmem:[%s151 + $0xd8] sm:$0xff]
      %v186 = vld [vmem:[%s151 + $0xe0] sm:$0xff]
      %v187 = vld [vmem:[%s151 + $0xe8] sm:$0xff]
      %v188 = vld [vmem:[%s151 + $0xf0] sm:$0xff]
      %v189 = vld [vmem:[%s151 + $0xf8] sm:$0xff]
      %v190 = vpack.c.bf16 %v159, %v158
      %v191 = vpack.c.bf16 %v161, %v160
      %v192 = vpack.c.bf16 %v163, %v162
      %v193 = vpack.c.bf16 %v165, %v164
      %v194 = vpack.c.bf16 %v167, %v166
      %v195 = vpack.c.bf16 %v169, %v168
      %v196 = vpack.c.bf16 %v171, %v170
      %v197 = vpack.c.bf16 %v173, %v172
      %v198 = vpack.c.bf16 %v175, %v174
      %v199 = vpack.c.bf16 %v177, %v176
      %v200 = vpack.c.bf16 %v179, %v178
      %v201 = vpack.c.bf16 %v181, %v180
      %v202 = vpack.c.bf16 %v183, %v182
      %v203 = vpack.c.bf16 %v185, %v184
      %v204 = vpack.c.bf16 %v187, %v186
      %v205 = vpack.c.bf16 %v189, %v188
      %vm206 = vcmask 64512
      %v208 = vsel %vm206, %v157, 0
      %v211 = vsel %vm206, %v190, 0
      %v214 = vsel %vm206, %v191, 0
      %v217 = vsel %vm206, %v192, 0
      %v220 = vsel %vm206, %v193, 0
      %v223 = vsel %vm206, %v194, 0
      %v226 = vsel %vm206, %v195, 0
      %v229 = vsel %vm206, %v196, 0
      %v232 = vsel %vm206, %v197, 0
      %v235 = vsel %vm206, %v198, 0
      %v238 = vsel %vm206, %v199, 0
      %v241 = vsel %vm206, %v200, 0
      %v244 = vsel %vm206, %v201, 0
      %v247 = vsel %vm206, %v202, 0
      %v250 = vsel %vm206, %v203, 0
      %v253 = vsel %vm206, %v204, 0
      %v256 = vsel %vm206, %v205, 0
      %258 = vmatpush.bf16.xpose.msra.mxu0 %v232
      %259 = vmatpush.bf16.xpose.msra.mxu0 %v229
      %260 = vmatpush.bf16.xpose.msra.mxu0 %v226
      %261 = vmatpush.bf16.xpose.msra.mxu0 %v223
      %262 = vmatpush.bf16.xpose.msra.mxu0 %v220
      %263 = vmatpush.bf16.xpose.msra.mxu0 %v217
      %264 = vmatpush.bf16.xpose.msra.mxu0 %v214
      %265 = vmatpush.bf16.xpose.msra.mxu0 %v211
      %266 = vmatmul.bf16.gmra.mxu0 %v208
      %v267 = vpop.f32.mrf.mxu0
      %v268 = vadd.f32 0.0, %v267
      %v269 = vpop.f32.mrf.mxu0
      %270 = vdwg.mxu0
      %271 = vmatpush.bf16.xpose.msra.mxu0 %v256
      %272 = vmatpush.bf16.xpose.msra.mxu0 %v253
      %273 = vmatpush.bf16.xpose.msra.mxu0 %v250
      %274 = vmatpush.bf16.xpose.msra.mxu0 %v247
      %275 = vmatpush.bf16.xpose.msra.mxu0 %v244
      %276 = vmatpush.bf16.xpose.msra.mxu0 %v241
      %277 = vmatpush.bf16.xpose.msra.mxu0 %v238
      %278 = vmatpush.bf16.xpose.msra.mxu0 %v235
      %279 = vmatmul.bf16.gmra.mxu0 %v208
      %v280 = vpop.f32.mrf.mxu0
      %v281 = vadd.f32 0.0, %v280
      %v282 = vpop.f32.mrf.mxu0
      %283 = vdwg.mxu0
      %v286 = vrot.slane %v281, 7
      %vm287 = vcmask 1040384
      %v288 = vsel %vm287, %v268, %v286
      %v290 = vlaneseq
      %vm291 = vcmp.ge.s32.totalorder %v290, 0
      %vm292 = vcmp.lt.s32.totalorder %v290, 256
      %vm293 = vmand %vm291, %vm292
      %294 = vst.msk [vmem:[%s155] sm:$0x3] %vm293, %v288
      %p295 = scmp.lt.s32.totalorder %s13, 1
      %s296 = scalar_select %p295, %s13, 1
      %s297 = smul.addr %s296, 2
      %s298 = scalar_lea.vmem %s2, %s297
      // Predicated region
      $region29: #{_lambda_.97} parent=27 // pred_check
        %p299 = pneg %p83
      $region30: #{_lambda_.97} parent=27 // pred_check_branch
        %301 = sbr.rel (%p299) target = $region32
      $region31: #{_lambda_.97} parent=27 // pred_region
        _
      $region32: #{_lambda_.97} parent=27 // pred_fallthru
        _
    $region28: #{_lambda_.97} parent=5 // pred_fallthru
      _
    %p302 = scmp.le.s32.totalorder 2, %s8
    // Predicated region
    $region33: #{_lambda_.97} parent=5 // pred_check
      %p303 = pneg %p302
    $region34: #{_lambda_.97} parent=5 // pred_check_branch
      %305 = sbr.rel (%p303) target = $region36
    $region35: #{_lambda_.97} parent=5 // pred_region
      %s306 = ssub.s32 %s8, 2
      // Predicated region
      $region37: #{_lambda_.97} parent=35 // pred_check
        %p307 = pneg %p89
      $region38: #{_lambda_.97} parent=35 // pred_check_branch
        %309 = sbr.rel (%p307) target = $region40
      $region39: #{_lambda_.97} parent=35 // pred_region
        %p310 = scmp.lt.s32.totalorder %s14, 1
        %s311 = scalar_select %p310, %s14, 1
        %s312 = smul.addr %s311, 2
        %s313 = scalar_lea.vmem %s2, %s312
      $region40: #{_lambda_.97} parent=35 // pred_fallthru
        _
    $region36: #{_lambda_.97} parent=5 // pred_fallthru
      _
  $region6: #{_lambda_.97} parent=0 // loop_footer
    %s12 = sadd.s32 1, %s8
  $region7: #{_lambda_.97} parent=0 // loop_footer_branch
    %7 = sbr.rel target = $region3
  $region8: #{_lambda_.97} parent=0 // loop_exit
    _

// kernel: _lambda_.93
$region0: #{_lambda_.93}
  #allocation0 [shape = 'u32[]', space=smem, size = 0x4, offset = 0x4, fixed_abs, tag = 'smem constant byte address 0x4 - core index']
  #allocation1 [shape = 'u32[72,128]{1,0:T(1,128)}', space=vmem, size = 0x9000, scoped, tag = 'internal scratch']
  #allocation2 [shape = 'f32[128,32]{1,0:T(8,128)}', space=vmem, size = 0x10000, scoped, tag = 'scratch operand']
  %s0 = inlined_call_operand.vmem [shape: f32[128,16], index: 0, kind: input, shape index: {}]
  %s1 = inlined_call_operand.vmem [shape: bf16[16,32], index: 1, kind: input, shape index: {}]
  %s2 = inlined_call_operand.vmem [shape: f32[1,32], index: 2, kind: input, shape index: {}]
  %s3 = inlined_call_operand.vmem [shape: f32[1,16], index: 3, kind: input, shape index: {}]
  %s4 = inlined_call_operand.vmem [shape: f32[1,16], index: 4, kind: input, shape index: {}]
  %s5 = inlined_call_operand.vmem [shape: f32[128,32], index: 5, kind: output, shape index: {}]
  %s6 = sld [smem:[#allocation0]]
  $region38: #{_lambda_.93} parent=0
    _
  %s8 = ssub.s32 1, %s6
  %s9 = scalar_select 0, %s8, %s6
  // Predicated region
  $region2: #{_lambda_.93} parent=0 // pred_check
    _
  $region3: #{_lambda_.93} parent=0 // pred_check_branch
    %11 = sbr.rel (0) target = $region5
  $region4: #{_lambda_.93} parent=0 // pred_region
    _
  $region5: #{_lambda_.93} parent=0 // pred_fallthru
    _
  // Predicated region
  $region6: #{_lambda_.93} parent=0 // pred_check
    _
  $region7: #{_lambda_.93} parent=0 // pred_check_branch
    %13 = sbr.rel (0) target = $region9
  $region8: #{_lambda_.93} parent=0 // pred_region
    _
  $region9: #{_lambda_.93} parent=0 // pred_fallthru
    _
  // Predicated region
  $region10: #{_lambda_.93} parent=0 // pred_check
    _
  $region11: #{_lambda_.93} parent=0 // pred_check_branch
    %15 = sbr.rel (0) target = $region13
  $region12: #{_lambda_.93} parent=0 // pred_region
    _
  $region13: #{_lambda_.93} parent=0 // pred_fallthru
    _
  // Predicated region
  $region14: #{_lambda_.93} parent=0 // pred_check
    _
  $region15: #{_lambda_.93} parent=0 // pred_check_branch
    %17 = sbr.rel (0) target = $region17
  $region16: #{_lambda_.93} parent=0 // pred_region
    _
  $region17: #{_lambda_.93} parent=0 // pred_fallthru
    _
  // Predicated region
  $region18: #{_lambda_.93} parent=0 // pred_check
    _
  $region19: #{_lambda_.93} parent=0 // pred_check_branch
    %19 = sbr.rel (0) target = $region21
  $region20: #{_lambda_.93} parent=0 // pred_region
    _
  $region21: #{_lambda_.93} parent=0 // pred_fallthru
    _
  %p21 = scmp.eq.s32.totalorder 0, 0
  // Predicated region
  $region22: #{_lambda_.93} parent=0 // pred_check
    %p22 = pneg %p21
  $region23: #{_lambda_.93} parent=0 // pred_check_branch
    %24 = sbr.rel (%p22) target = $region25
  $region24: #{_lambda_.93} parent=0 // pred_region
    %vm25 = vcmask 261120
    %26 = vst.msk [vmem:[#allocation2] sm:$0xff] %vm25, 0.0
    %27 = vst.msk [vmem:[#allocation2 + $0x8] sm:$0xff] %vm25, 0.0
    %28 = vst.msk [vmem:[#allocation2 + $0x10] sm:$0xff] %vm25, 0.0
    %29 = vst.msk [vmem:[#allocation2 + $0x18] sm:$0xff] %vm25, 0.0
    %30 = vst.msk [vmem:[#allocation2 + $0x20] sm:$0xff] %vm25, 0.0
    %31 = vst.msk [vmem:[#allocation2 + $0x28] sm:$0xff] %vm25, 0.0
    %32 = vst.msk [vmem:[#allocation2 + $0x30] sm:$0xff] %vm25, 0.0
    %33 = vst.msk [vmem:[#allocation2 + $0x38] sm:$0xff] %vm25, 0.0
    %34 = vst.msk [vmem:[#allocation2 + $0x40] sm:$0xff] %vm25, 0.0
    %35 = vst.msk [vmem:[#allocation2 + $0x48] sm:$0xff] %vm25, 0.0
    %36 = vst.msk [vmem:[#allocation2 + $0x50] sm:$0xff] %vm25, 0.0
    %37 = vst.msk [vmem:[#allocation2 + $0x58] sm:$0xff] %vm25, 0.0
    %38 = vst.msk [vmem:[#allocation2 + $0x60] sm:$0xff] %vm25, 0.0
    %39 = vst.msk [vmem:[#allocation2 + $0x68] sm:$0xff] %vm25, 0.0
    %40 = vst.msk [vmem:[#allocation2 + $0x70] sm:$0xff] %vm25, 0.0
    %41 = vst.msk [vmem:[#allocation2 + $0x78] sm:$0xff] %vm25, 0.0
  $region25: #{_lambda_.93} parent=0 // pred_fallthru
    _
  %v42 = vld [vmem:[%s0] sm:$0xff]
  %v43 = vld [vmem:[%s0 + $0x8] sm:$0xff]
  %v44 = vld [vmem:[%s0 + $0x10] sm:$0xff]
  %v45 = vld [vmem:[%s0 + $0x18] sm:$0xff]
  %v46 = vld [vmem:[%s0 + $0x20] sm:$0xff]
  %v47 = vld [vmem:[%s0 + $0x28] sm:$0xff]
  %v48 = vld [vmem:[%s0 + $0x30] sm:$0xff]
  %v49 = vld [vmem:[%s0 + $0x38] sm:$0xff]
  %v50 = vld [vmem:[%s0 + $0x40] sm:$0xff]
  %v51 = vld [vmem:[%s0 + $0x48] sm:$0xff]
  %v52 = vld [vmem:[%s0 + $0x50] sm:$0xff]
  %v53 = vld [vmem:[%s0 + $0x58] sm:$0xff]
  %v54 = vld [vmem:[%s0 + $0x60] sm:$0xff]
  %v55 = vld [vmem:[%s0 + $0x68] sm:$0xff]
  %v56 = vld [vmem:[%s0 + $0x70] sm:$0xff]
  %v57 = vld [vmem:[%s0 + $0x78] sm:$0xff]
  %vm58 = vcmask 130048
  %v59 = vsel %vm58, %v42, 0.0
  %60 = vadd.xlane.f32.xlu0 %v59
  %v61 = vpop.xlane.xlu0 %60
  %v62 = vsel %vm58, %v43, 0.0
  %63 = vadd.xlane.f32.xlu0 %v62
  %v64 = vpop.xlane.xlu0 %63
  %v65 = vsel %vm58, %v44, 0.0
  %66 = vadd.xlane.f32.xlu0 %v65
  %v67 = vpop.xlane.xlu0 %66
  %v68 = vsel %vm58, %v45, 0.0
  %69 = vadd.xlane.f32.xlu0 %v68
  %v70 = vpop.xlane.xlu0 %69
  %v71 = vsel %vm58, %v46, 0.0
  %72 = vadd.xlane.f32.xlu0 %v71
  %v73 = vpop.xlane.xlu0 %72
  %v74 = vsel %vm58, %v47, 0.0
  %75 = vadd.xlane.f32.xlu0 %v74
  %v76 = vpop.xlane.xlu0 %75
  %v77 = vsel %vm58, %v48, 0.0
  %78 = vadd.xlane.f32.xlu0 %v77
  %v79 = vpop.xlane.xlu0 %78
  %v80 = vsel %vm58, %v49, 0.0
  %81 = vadd.xlane.f32.xlu0 %v80
  %v82 = vpop.xlane.xlu0 %81
  %v83 = vsel %vm58, %v50, 0.0
  %84 = vadd.xlane.f32.xlu0 %v83
  %v85 = vpop.xlane.xlu0 %84
  %v86 = vsel %vm58, %v51, 0.0
  %87 = vadd.xlane.f32.xlu0 %v86
  %v88 = vpop.xlane.xlu0 %87
  %v89 = vsel %vm58, %v52, 0.0
  %90 = vadd.xlane.f32.xlu0 %v89
  %v91 = vpop.xlane.xlu0 %90
  %v92 = vsel %vm58, %v53, 0.0
  %93 = vadd.xlane.f32.xlu0 %v92
  %v94 = vpop.xlane.xlu0 %93
  %v95 = vsel %vm58, %v54, 0.0
  %96 = vadd.xlane.f32.xlu0 %v95
  %v97 = vpop.xlane.xlu0 %96
  %v98 = vsel %vm58, %v55, 0.0
  %99 = vadd.xlane.f32.xlu0 %v98
  %v100 = vpop.xlane.xlu0 %99
  %v101 = vsel %vm58, %v56, 0.0
  %102 = vadd.xlane.f32.xlu0 %v101
  %v103 = vpop.xlane.xlu0 %102
  %v104 = vsel %vm58, %v57, 0.0
  %105 = vadd.xlane.f32.xlu0 %v104
  %v106 = vpop.xlane.xlu0 %105
  %v107 = vrcp.pop 16.0
  %v108 = vmul.f32 16.0, %v107
  %v109 = vsub.f32 1.0, %v108
  %v110 = vmul.f32 %v107, %v109
  %v111 = vadd.f32 %v107, %v110
  %vm112 = vweird.f32 %v107
  %v113 = vsel %vm112, %v107, %v111
  %v114 = vmul.f32 %v61, %v113
  %v115 = vmul.f32 %v64, %v113
  %v116 = vmul.f32 %v67, %v113
  %v117 = vmul.f32 %v70, %v113
  %v118 = vmul.f32 %v73, %v113
  %v119 = vmul.f32 %v76, %v113
  %v120 = vmul.f32 %v79, %v113
  %v121 = vmul.f32 %v82, %v113
  %v122 = vmul.f32 %v85, %v113
  %v123 = vmul.f32 %v88, %v113
  %v124 = vmul.f32 %v91, %v113
  %v125 = vmul.f32 %v94, %v113
  %v126 = vmul.f32 %v97, %v113
  %v127 = vmul.f32 %v100, %v113
  %v128 = vmul.f32 %v103, %v113
  %v129 = vmul.f32 %v106, %v113
  %v130 = vsub.f32 %v42, %v114
  %v131 = vsub.f32 %v43, %v115
  %v132 = vsub.f32 %v44, %v116
  %v133 = vsub.f32 %v45, %v117
  %v134 = vsub.f32 %v46, %v118
  %v135 = vsub.f32 %v47, %v119
  %v136 = vsub.f32 %v48, %v120
  %v137 = vsub.f32 %v49, %v121
  %v138 = vsub.f32 %v50, %v122
  %v139 = vsub.f32 %v51, %v123
  %v140 = vsub.f32 %v52, %v124
  %v141 = vsub.f32 %v53, %v125
  %v142 = vsub.f32 %v54, %v126
  %v143 = vsub.f32 %v55, %v127
  %v144 = vsub.f32 %v56, %v128
  %v145 = vsub.f32 %v57, %v129
  %v146 = vmul.f32 %v130, %v130
  %v147 = vmul.f32 %v131, %v131
  %v148 = vmul.f32 %v132, %v132
  %v149 = vmul.f32 %v133, %v133
  %v150 = vmul.f32 %v134, %v134
  %v151 = vmul.f32 %v135, %v135
  %v152 = vmul.f32 %v136, %v136
  %v153 = vmul.f32 %v137, %v137
  %v154 = vmul.f32 %v138, %v138
  %v155 = vmul.f32 %v139, %v139
  %v156 = vmul.f32 %v140, %v140
  %v157 = vmul.f32 %v141, %v141
  %v158 = vmul.f32 %v142, %v142
  %v159 = vmul.f32 %v143, %v143
  %v160 = vmul.f32 %v144, %v144
  %v161 = vmul.f32 %v145, %v145
  %v162 = vsel %vm58, %v146, 0.0
  %163 = vadd.xlane.f32.xlu0 %v162
  %v164 = vpop.xlane.xlu0 %163
  %v165 = vsel %vm58, %v147, 0.0
  %166 = vadd.xlane.f32.xlu0 %v165
  %v167 = vpop.xlane.xlu0 %166
  %v168 = vsel %vm58, %v148, 0.0
  %169 = vadd.xlane.f32.xlu0 %v168
  %v170 = vpop.xlane.xlu0 %169
  %v171 = vsel %vm58, %v149, 0.0
  %172 = vadd.xlane.f32.xlu0 %v171
  %v173 = vpop.xlane.xlu0 %172
  %v174 = vsel %vm58, %v150, 0.0
  %175 = vadd.xlane.f32.xlu0 %v174
  %v176 = vpop.xlane.xlu0 %175
  %v177 = vsel %vm58, %v151, 0.0
  %178 = vadd.xlane.f32.xlu0 %v177
  %v179 = vpop.xlane.xlu0 %178
  %v180 = vsel %vm58, %v152, 0.0
  %181 = vadd.xlane.f32.xlu0 %v180
  %v182 = vpop.xlane.xlu0 %181
  %v183 = vsel %vm58, %v153, 0.0
  %184 = vadd.xlane.f32.xlu0 %v183
  %v185 = vpop.xlane.xlu0 %184
  %v186 = vsel %vm58, %v154, 0.0
  %187 = vadd.xlane.f32.xlu0 %v186
  %v188 = vpop.xlane.xlu0 %187
  %v189 = vsel %vm58, %v155, 0.0
  %190 = vadd.xlane.f32.xlu0 %v189
  %v191 = vpop.xlane.xlu0 %190
  %v192 = vsel %vm58, %v156, 0.0
  %193 = vadd.xlane.f32.xlu0 %v192
  %v194 = vpop.xlane.xlu0 %193
  %v195 = vsel %vm58, %v157, 0.0
  %196 = vadd.xlane.f32.xlu0 %v195
  %v197 = vpop.xlane.xlu0 %196
  %v198 = vsel %vm58, %v158, 0.0
  %199 = vadd.xlane.f32.xlu0 %v198
  %v200 = vpop.xlane.xlu0 %199
  %v201 = vsel %vm58, %v159, 0.0
  %202 = vadd.xlane.f32.xlu0 %v201
  %v203 = vpop.xlane.xlu0 %202
  %v204 = vsel %vm58, %v160, 0.0
  %205 = vadd.xlane.f32.xlu0 %v204
  %v206 = vpop.xlane.xlu0 %205
  %v207 = vsel %vm58, %v161, 0.0
  %208 = vadd.xlane.f32.xlu0 %v207
  %v209 = vpop.xlane.xlu0 %208
  %v210 = vmul.f32 %v164, %v113
  %v211 = vmul.f32 %v167, %v113
  %v212 = vmul.f32 %v170, %v113
  %v213 = vmul.f32 %v173, %v113
  %v214 = vmul.f32 %v176, %v113
  %v215 = vmul.f32 %v179, %v113
  %v216 = vmul.f32 %v182, %v113
  %v217 = vmul.f32 %v185, %v113
  %v218 = vmul.f32 %v188, %v113
  %v219 = vmul.f32 %v191, %v113
  %v220 = vmul.f32 %v194, %v113
  %v221 = vmul.f32 %v197, %v113
  %v222 = vmul.f32 %v200, %v113
  %v223 = vmul.f32 %v203, %v113
  %v224 = vmul.f32 %v206, %v113
  %v225 = vmul.f32 %v209, %v113
  %v226 = vadd.f32 %v210, 1e-05
  %v227 = vadd.f32 %v211, 1e-05
  %v228 = vadd.f32 %v212, 1e-05
  %v229 = vadd.f32 %v213, 1e-05
  %v230 = vadd.f32 %v214, 1e-05
  %v231 = vadd.f32 %v215, 1e-05
  %v232 = vadd.f32 %v216, 1e-05
  %v233 = vadd.f32 %v217, 1e-05
  %v234 = vadd.f32 %v218, 1e-05
  %v235 = vadd.f32 %v219, 1e-05
  %v236 = vadd.f32 %v220, 1e-05
  %v237 = vadd.f32 %v221, 1e-05
  %v238 = vadd.f32 %v222, 1e-05
  %v239 = vadd.f32 %v223, 1e-05
  %v240 = vadd.f32 %v224, 1e-05
  %v241 = vadd.f32 %v225, 1e-05
  %v242 = vrsqrt.pop %v226
  %v243 = vmul.f32 %v242, %v226
  %v244 = vmul.f32 %v243, %v242
  %v245 = vmul.f32 0.5, %v244
  %v246 = vsub.f32 1.5, %v245
  %v247 = vmul.f32 %v242, %v246
  %vm248 = vweird.f32 %v226
  %vm249 = vweird.f32 %v242
  %vm250 = vmor %vm248, %vm249
  %v251 = vsel %vm250, %v242, %v247
  %v252 = vrsqrt.pop %v227
  %v253 = vmul.f32 %v252, %v227
  %v254 = vmul.f32 %v253, %v252
  %v255 = vmul.f32 0.5, %v254
  %v256 = vsub.f32 1.5, %v255
  %v257 = vmul.f32 %v252, %v256
  %vm258 = vweird.f32 %v227
  %vm259 = vweird.f32 %v252
  %vm260 = vmor %vm258, %vm259
  %v261 = vsel %vm260, %v252, %v257
  %v262 = vrsqrt.pop %v228
  %v263 = vmul.f32 %v262, %v228
  %v264 = vmul.f32 %v263, %v262
  %v265 = vmul.f32 0.5, %v264
  %v266 = vsub.f32 1.5, %v265
  %v267 = vmul.f32 %v262, %v266
  %vm268 = vweird.f32 %v228
  %vm269 = vweird.f32 %v262
  %vm270 = vmor %vm268, %vm269
  %v271 = vsel %vm270, %v262, %v267
  %v272 = vrsqrt.pop %v229
  %v273 = vmul.f32 %v272, %v229
  %v274 = vmul.f32 %v273, %v272
  %v275 = vmul.f32 0.5, %v274
  %v276 = vsub.f32 1.5, %v275
  %v277 = vmul.f32 %v272, %v276
  %vm278 = vweird.f32 %v229
  %vm279 = vweird.f32 %v272
  %vm280 = vmor %vm278, %vm279
  %v281 = vsel %vm280, %v272, %v277
  %v282 = vrsqrt.pop %v230
  %v283 = vmul.f32 %v282, %v230
  %v284 = vmul.f32 %v283, %v282
  %v285 = vmul.f32 0.5, %v284
  %v286 = vsub.f32 1.5, %v285
  %v287 = vmul.f32 %v282, %v286
  %vm288 = vweird.f32 %v230
  %vm289 = vweird.f32 %v282
  %vm290 = vmor %vm288, %vm289
  %v291 = vsel %vm290, %v282, %v287
  %v292 = vrsqrt.pop %v231
  %v293 = vmul.f32 %v292, %v231
  %v294 = vmul.f32 %v293, %v292
  %v295 = vmul.f32 0.5, %v294
  %v296 = vsub.f32 1.5, %v295
  %v297 = vmul.f32 %v292, %v296
  %vm298 = vweird.f32 %v231
  %vm299 = vweird.f32 %v292
  %vm300 = vmor %vm298, %vm299
  %v301 = vsel %vm300, %v292, %v297
  %v302 = vrsqrt.pop %v232
  %v303 = vmul.f32 %v302, %v232
  %v304 = vmul.f32 %v303, %v302
  %v305 = vmul.f32 0.5, %v304
  %v306 = vsub.f32 1.5, %v305
  %v307 = vmul.f32 %v302, %v306
  %vm308 = vweird.f32 %v232
  %vm309 = vweird.f32 %v302
  %vm310 = vmor %vm308, %vm309
  %v311 = vsel %vm310, %v302, %v307
  %v312 = vrsqrt.pop %v233
  %v313 = vmul.f32 %v312, %v233
  %v314 = vmul.f32 %v313, %v312
  %v315 = vmul.f32 0.5, %v314
  %v316 = vsub.f32 1.5, %v315
  %v317 = vmul.f32 %v312, %v316
  %vm318 = vweird.f32 %v233
  %vm319 = vweird.f32 %v312
  %vm320 = vmor %vm318, %vm319
  %v321 = vsel %vm320, %v312, %v317
  %v322 = vrsqrt.pop %v234
  %v323 = vmul.f32 %v322, %v234
  %v324 = vmul.f32 %v323, %v322
  %v325 = vmul.f32 0.5, %v324
  %v326 = vsub.f32 1.5, %v325
  %v327 = vmul.f32 %v322, %v326
  %vm328 = vweird.f32 %v234
  %vm329 = vweird.f32 %v322
  %vm330 = vmor %vm328, %vm329
  %v331 = vsel %vm330, %v322, %v327
  %v332 = vrsqrt.pop %v235
  %v333 = vmul.f32 %v332, %v235
  %v334 = vmul.f32 %v333, %v332
  %v335 = vmul.f32 0.5, %v334
  %v336 = vsub.f32 1.5, %v335
  %v337 = vmul.f32 %v332, %v336
  %vm338 = vweird.f32 %v235
  %vm339 = vweird.f32 %v332
  %vm340 = vmor %vm338, %vm339
  %v341 = vsel %vm340, %v332, %v337
  %v342 = vrsqrt.pop %v236
  %v343 = vmul.f32 %v342, %v236
  %v344 = vmul.f32 %v343, %v342
  %v345 = vmul.f32 0.5, %v344
  %v346 = vsub.f32 1.5, %v345
  %v347 = vmul.f32 %v342, %v346
  %vm348 = vweird.f32 %v236
  %vm349 = vweird.f32 %v342
  %vm350 = vmor %vm348, %vm349
  %v351 = vsel %vm350, %v342, %v347
  %v352 = vrsqrt.pop %v237
  %v353 = vmul.f32 %v352, %v237
  %v354 = vmul.f32 %v353, %v352
  %v355 = vmul.f32 0.5, %v354
  %v356 = vsub.f32 1.5, %v355
  %v357 = vmul.f32 %v352, %v356
  %vm358 = vweird.f32 %v237
  %vm359 = vweird.f32 %v352
  %vm360 = vmor %vm358, %vm359
  %v361 = vsel %vm360, %v352, %v357
  %v362 = vrsqrt.pop %v238
  %v363 = vmul.f32 %v362, %v238
  %v364 = vmul.f32 %v363, %v362
  %v365 = vmul.f32 0.5, %v364
  %v366 = vsub.f32 1.5, %v365
  %v367 = vmul.f32 %v362, %v366
  %vm368 = vweird.f32 %v238
  %vm369 = vweird.f32 %v362
  %vm370 = vmor %vm368, %vm369
  %v371 = vsel %vm370, %v362, %v367
  %v372 = vrsqrt.pop %v239
  %v373 = vmul.f32 %v372, %v239
  %v374 = vmul.f32 %v373, %v372
  %v375 = vmul.f32 0.5, %v374
  %v376 = vsub.f32 1.5, %v375
  %v377 = vmul.f32 %v372, %v376
  %vm378 = vweird.f32 %v239
  %vm379 = vweird.f32 %v372
  %vm380 = vmor %vm378, %vm379
  %v381 = vsel %vm380, %v372, %v377
  %v382 = vrsqrt.pop %v240
  %v383 = vmul.f32 %v382, %v240
  %v384 = vmul.f32 %v383, %v382
  %v385 = vmul.f32 0.5, %v384
  %v386 = vsub.f32 1.5, %v385
  %v387 = vmul.f32 %v382, %v386
  %vm388 = vweird.f32 %v240
  %vm389 = vweird.f32 %v382
  %vm390 = vmor %vm388, %vm389
  %v391 = vsel %vm390, %v382, %v387
  %v392 = vrsqrt.pop %v241
  %v393 = vmul.f32 %v392, %v241
  %v394 = vmul.f32 %v393, %v392
  %v395 = vmul.f32 0.5, %v394
  %v396 = vsub.f32 1.5, %v395
  %v397 = vmul.f32 %v392, %v396
  %vm398 = vweird.f32 %v241
  %vm399 = vweird.f32 %v392
  %vm400 = vmor %vm398, %vm399
  %v401 = vsel %vm400, %v392, %v397
  %v402 = vmul.f32 %v130, %v251
  %v403 = vmul.f32 %v131, %v261
  %v404 = vmul.f32 %v132, %v271
  %v405 = vmul.f32 %v133, %v281
  %v406 = vmul.f32 %v134, %v291
  %v407 = vmul.f32 %v135, %v301
  %v408 = vmul.f32 %v136, %v311
  %v409 = vmul.f32 %v137, %v321
  %v410 = vmul.f32 %v138, %v331
  %v411 = vmul.f32 %v139, %v341
  %v412 = vmul.f32 %v140, %v351
  %v413 = vmul.f32 %v141, %v361
  %v414 = vmul.f32 %v142, %v371
  %v415 = vmul.f32 %v143, %v381
  %v416 = vmul.f32 %v144, %v391
  %v417 = vmul.f32 %v145, %v401
  %v418 = vld [vmem:[%s3] sm:$0x1]
  %v420 = vperm.slane %v418, 0
  %v422 = vmul.f32 %v402, %v420
  %v423 = vmul.f32 %v403, %v420
  %v424 = vmul.f32 %v404, %v420
  %v425 = vmul.f32 %v405, %v420
  %v426 = vmul.f32 %v406, %v420
  %v427 = vmul.f32 %v407, %v420
  %v428 = vmul.f32 %v408, %v420
  %v429 = vmul.f32 %v409, %v420
  %v430 = vmul.f32 %v410, %v420
  %v431 = vmul.f32 %v411, %v420
  %v432 = vmul.f32 %v412, %v420
  %v433 = vmul.f32 %v413, %v420
  %v434 = vmul.f32 %v414, %v420
  %v435 = vmul.f32 %v415, %v420
  %v436 = vmul.f32 %v416, %v420
  %v437 = vmul.f32 %v417, %v420
  %v438 = vld [vmem:[%s4] sm:$0x1]
  %v440 = vperm.slane %v438, 0
  %v442 = vadd.f32 %v422, %v440
  %v443 = vadd.f32 %v423, %v440
  %v444 = vadd.f32 %v424, %v440
  %v445 = vadd.f32 %v425, %v440
  %v446 = vadd.f32 %v426, %v440
  %v447 = vadd.f32 %v427, %v440
  %v448 = vadd.f32 %v428, %v440
  %v449 = vadd.f32 %v429, %v440
  %v450 = vadd.f32 %v430, %v440
  %v451 = vadd.f32 %v431, %v440
  %v452 = vadd.f32 %v432, %v440
  %v453 = vadd.f32 %v433, %v440
  %v454 = vadd.f32 %v434, %v440
  %v455 = vadd.f32 %v435, %v440
  %v456 = vadd.f32 %v436, %v440
  %v457 = vadd.f32 %v437, %v440
  %v458 = vmul.f32 %v442, %v442
  %v459 = vmul.f32 %v443, %v443
  %v460 = vmul.f32 %v444, %v444
  %v461 = vmul.f32 %v445, %v445
  %v462 = vmul.f32 %v446, %v446
  %v463 = vmul.f32 %v447, %v447
  %v464 = vmul.f32 %v448, %v448
  %v465 = vmul.f32 %v449, %v449
  %v466 = vmul.f32 %v450, %v450
  %v467 = vmul.f32 %v451, %v451
  %v468 = vmul.f32 %v452, %v452
  %v469 = vmul.f32 %v453, %v453
  %v470 = vmul.f32 %v454, %v454
  %v471 = vmul.f32 %v455, %v455
  %v472 = vmul.f32 %v456, %v456
  %v473 = vmul.f32 %v457, %v457
  %v474 = vmul.f32 %v442, %v458
  %v475 = vmul.f32 %v443, %v459
  %v476 = vmul.f32 %v444, %v460
  %v477 = vmul.f32 %v445, %v461
  %v478 = vmul.f32 %v446, %v462
  %v479 = vmul.f32 %v447, %v463
  %v480 = vmul.f32 %v448, %v464
  %v481 = vmul.f32 %v449, %v465
  %v482 = vmul.f32 %v450, %v466
  %v483 = vmul.f32 %v451, %v467
  %v484 = vmul.f32 %v452, %v468
  %v485 = vmul.f32 %v453, %v469
  %v486 = vmul.f32 %v454, %v470
  %v487 = vmul.f32 %v455, %v471
  %v488 = vmul.f32 %v456, %v472
  %v489 = vmul.f32 %v457, %v473
  %v490 = vmul.f32 %v474, 0.044715
  %v491 = vmul.f32 %v475, 0.044715
  %v492 = vmul.f32 %v476, 0.044715
  %v493 = vmul.f32 %v477, 0.044715
  %v494 = vmul.f32 %v478, 0.044715
  %v495 = vmul.f32 %v479, 0.044715
  %v496 = vmul.f32 %v480, 0.044715
  %v497 = vmul.f32 %v481, 0.044715
  %v498 = vmul.f32 %v482, 0.044715
  %v499 = vmul.f32 %v483, 0.044715
  %v500 = vmul.f32 %v484, 0.044715
  %v501 = vmul.f32 %v485, 0.044715
  %v502 = vmul.f32 %v486, 0.044715
  %v503 = vmul.f32 %v487, 0.044715
  %v504 = vmul.f32 %v488, 0.044715
  %v505 = vmul.f32 %v489, 0.044715
  %v506 = vadd.f32 %v442, %v490
  %v507 = vadd.f32 %v443, %v491
  %v508 = vadd.f32 %v444, %v492
  %v509 = vadd.f32 %v445, %v493
  %v510 = vadd.f32 %v446, %v494
  %v511 = vadd.f32 %v447, %v495
  %v512 = vadd.f32 %v448, %v496
  %v513 = vadd.f32 %v449, %v497
  %v514 = vadd.f32 %v450, %v498
  %v515 = vadd.f32 %v451, %v499
  %v516 = vadd.f32 %v452, %v500
  %v517 = vadd.f32 %v453, %v501
  %v518 = vadd.f32 %v454, %v502
  %v519 = vadd.f32 %v455, %v503
  %v520 = vadd.f32 %v456, %v504
  %v521 = vadd.f32 %v457, %v505
  %v522 = vmul.f32 %v506, 0.7978846
  %v523 = vmul.f32 %v507, 0.7978846
  %v524 = vmul.f32 %v508, 0.7978846
  %v525 = vmul.f32 %v509, 0.7978846
  %v526 = vmul.f32 %v510, 0.7978846
  %v527 = vmul.f32 %v511, 0.7978846
  %v528 = vmul.f32 %v512, 0.7978846
  %v529 = vmul.f32 %v513, 0.7978846
  %v530 = vmul.f32 %v514, 0.7978846
  %v531 = vmul.f32 %v515, 0.7978846
  %v532 = vmul.f32 %v516, 0.7978846
  %v533 = vmul.f32 %v517, 0.7978846
  %v534 = vmul.f32 %v518, 0.7978846
  %v535 = vmul.f32 %v519, 0.7978846
  %v536 = vmul.f32 %v520, 0.7978846
  %v537 = vmul.f32 %v521, 0.7978846
  %v538 = vtanh.pop %v522
  %v539 = vtanh.pop %v523
  %v540 = vtanh.pop %v524
  %v541 = vtanh.pop %v525
  %v542 = vtanh.pop %v526
  %v543 = vtanh.pop %v527
  %v544 = vtanh.pop %v528
  %v545 = vtanh.pop %v529
  %v546 = vtanh.pop %v530
  %v547 = vtanh.pop %v531
  %v548 = vtanh.pop %v532
  %v549 = vtanh.pop %v533
  %v550 = vtanh.pop %v534
  %v551 = vtanh.pop %v535
  %v552 = vtanh.pop %v536
  %v553 = vtanh.pop %v537
  %v554 = vadd.f32 %v538, 1.0
  %v555 = vadd.f32 %v539, 1.0
  %v556 = vadd.f32 %v540, 1.0
  %v557 = vadd.f32 %v541, 1.0
  %v558 = vadd.f32 %v542, 1.0
  %v559 = vadd.f32 %v543, 1.0
  %v560 = vadd.f32 %v544, 1.0
  %v561 = vadd.f32 %v545, 1.0
  %v562 = vadd.f32 %v546, 1.0
  %v563 = vadd.f32 %v547, 1.0
  %v564 = vadd.f32 %v548, 1.0
  %v565 = vadd.f32 %v549, 1.0
  %v566 = vadd.f32 %v550, 1.0
  %v567 = vadd.f32 %v551, 1.0
  %v568 = vadd.f32 %v552, 1.0
  %v569 = vadd.f32 %v553, 1.0
  %v570 = vmul.f32 %v554, 0.5
  %v571 = vmul.f32 %v555, 0.5
  %v572 = vmul.f32 %v556, 0.5
  %v573 = vmul.f32 %v557, 0.5
  %v574 = vmul.f32 %v558, 0.5
  %v575 = vmul.f32 %v559, 0.5
  %v576 = vmul.f32 %v560, 0.5
  %v577 = vmul.f32 %v561, 0.5
  %v578 = vmul.f32 %v562, 0.5
  %v579 = vmul.f32 %v563, 0.5
  %v580 = vmul.f32 %v564, 0.5
  %v581 = vmul.f32 %v565, 0.5
  %v582 = vmul.f32 %v566, 0.5
  %v583 = vmul.f32 %v567, 0.5
  %v584 = vmul.f32 %v568, 0.5
  %v585 = vmul.f32 %v569, 0.5
  %v586 = vmul.f32 %v442, %v570
  %v587 = vmul.f32 %v443, %v571
  %v588 = vmul.f32 %v444, %v572
  %v589 = vmul.f32 %v445, %v573
  %v590 = vmul.f32 %v446, %v574
  %v591 = vmul.f32 %v447, %v575
  %v592 = vmul.f32 %v448, %v576
  %v593 = vmul.f32 %v449, %v577
  %v594 = vmul.f32 %v450, %v578
  %v595 = vmul.f32 %v451, %v579
  %v596 = vmul.f32 %v452, %v580
  %v597 = vmul.f32 %v453, %v581
  %v598 = vmul.f32 %v454, %v582
  %v599 = vmul.f32 %v455, %v583
  %v600 = vmul.f32 %v456, %v584
  %v601 = vmul.f32 %v457, %v585
  %v602 = vld [vmem:[#allocation2] sm:$0xff]
  %v603 = vld [vmem:[#allocation2 + $0x8] sm:$0xff]
  %v604 = vld [vmem:[#allocation2 + $0x10] sm:$0xff]
  %v605 = vld [vmem:[#allocation2 + $0x18] sm:$0xff]
  %v606 = vld [vmem:[#allocation2 + $0x20] sm:$0xff]
  %v607 = vld [vmem:[#allocation2 + $0x28] sm:$0xff]
  %v608 = vld [vmem:[#allocation2 + $0x30] sm:$0xff]
  %v609 = vld [vmem:[#allocation2 + $0x38] sm:$0xff]
  %v610 = vld [vmem:[#allocation2 + $0x40] sm:$0xff]
  %v611 = vld [vmem:[#allocation2 + $0x48] sm:$0xff]
  %v612 = vld [vmem:[#allocation2 + $0x50] sm:$0xff]
  %v613 = vld [vmem:[#allocation2 + $0x58] sm:$0xff]
  %v614 = vld [vmem:[#allocation2 + $0x60] sm:$0xff]
  %v615 = vld [vmem:[#allocation2 + $0x68] sm:$0xff]
  %v616 = vld [vmem:[#allocation2 + $0x70] sm:$0xff]
  %v617 = vld [vmem:[#allocation2 + $0x78] sm:$0xff]
  %v618 = vpack.c.bf16 %v587, %v586
  %v619 = vpack.c.bf16 %v589, %v588
  %v620 = vpack.c.bf16 %v591, %v590
  %v621 = vpack.c.bf16 %v593, %v592
  %v622 = vpack.c.bf16 %v595, %v594
  %v623 = vpack.c.bf16 %v597, %v596
  %v624 = vpack.c.bf16 %v599, %v598
  %v625 = vpack.c.bf16 %v601, %v600
  %v626 = vld [vmem:[%s1] sm:$0xf]
  %v627 = vld [vmem:[%s1 + $0x4] sm:$0xf]
  %v630 = vunpack.c.l.b16 %v626
  %v631 = vunpack.c.l.b16 %v627
  %v632 = vpack.c.b16 %v631, %v630
  %v635 = vsel %vm58, %v618, 0
  %v638 = vsel %vm58, %v619, 0
  %v641 = vsel %vm58, %v620, 0
  %v644 = vsel %vm58, %v621, 0
  %v647 = vsel %vm58, %v622, 0
  %v650 = vsel %vm58, %v623, 0
  %v653 = vsel %vm58, %v624, 0
  %v656 = vsel %vm58, %v625, 0
  %658 = vmatpush.bf16.msra.mxu0 0
  %659 = vmatpush.bf16.msra.mxu0 0
  %660 = vmatpush.bf16.msra.mxu0 0
  %661 = vmatpush.bf16.msra.mxu0 0
  %662 = vmatpush.bf16.msra.mxu0 0
  %663 = vmatpush.bf16.msra.mxu0 0
  %664 = vmatpush.bf16.msra.mxu0 0
  %665 = vmatpush.bf16.msra.mxu0 %v632
  %666 = vmatmul.bf16.gmra.mxu0 %v635
  %v667 = vpop.f32.mrf.mxu0
  %v668 = vadd.f32 0.0, %v667
  %v669 = vpop.f32.mrf.mxu0
  %v670 = vadd.f32 0.0, %v669
  %671 = vmatmul.bf16.gmra.mxu0 %v638
  %v672 = vpop.f32.mrf.mxu0
  %v673 = vadd.f32 0.0, %v672
  %v674 = vpop.f32.mrf.mxu0
  %v675 = vadd.f32 0.0, %v674
  %676 = vmatmul.bf16.gmra.mxu0 %v641
  %v677 = vpop.f32.mrf.mxu0
  %v678 = vadd.f32 0.0, %v677
  %v679 = vpop.f32.mrf.mxu0
  %v680 = vadd.f32 0.0, %v679
  %681 = vmatmul.bf16.gmra.mxu0 %v644
  %v682 = vpop.f32.mrf.mxu0
  %v683 = vadd.f32 0.0, %v682
  %v684 = vpop.f32.mrf.mxu0
  %v685 = vadd.f32 0.0, %v684
  %686 = vmatmul.bf16.gmra.mxu0 %v647
  %v687 = vpop.f32.mrf.mxu0
  %v688 = vadd.f32 0.0, %v687
  %v689 = vpop.f32.mrf.mxu0
  %v690 = vadd.f32 0.0, %v689
  %691 = vmatmul.bf16.gmra.mxu0 %v650
  %v692 = vpop.f32.mrf.mxu0
  %v693 = vadd.f32 0.0, %v692
  %v694 = vpop.f32.mrf.mxu0
  %v695 = vadd.f32 0.0, %v694
  %696 = vmatmul.bf16.gmra.mxu0 %v653
  %v697 = vpop.f32.mrf.mxu0
  %v698 = vadd.f32 0.0, %v697
  %v699 = vpop.f32.mrf.mxu0
  %v700 = vadd.f32 0.0, %v699
  %701 = vmatmul.bf16.gmra.mxu0 %v656
  %v702 = vpop.f32.mrf.mxu0
  %v703 = vadd.f32 0.0, %v702
  %v704 = vpop.f32.mrf.mxu0
  %v705 = vadd.f32 0.0, %v704
  %706 = vdwg.mxu0
  %v707 = vadd.f32 %v602, %v668
  %v708 = vadd.f32 %v603, %v670
  %v709 = vadd.f32 %v604, %v673
  %v710 = vadd.f32 %v605, %v675
  %v711 = vadd.f32 %v606, %v678
  %v712 = vadd.f32 %v607, %v680
  %v713 = vadd.f32 %v608, %v683
  %v714 = vadd.f32 %v609, %v685
  %v715 = vadd.f32 %v610, %v688
  %v716 = vadd.f32 %v611, %v690
  %v717 = vadd.f32 %v612, %v693
  %v718 = vadd.f32 %v613, %v695
  %v719 = vadd.f32 %v614, %v698
  %v720 = vadd.f32 %v615, %v700
  %v721 = vadd.f32 %v616, %v703
  %v722 = vadd.f32 %v617, %v705
  %vm723 = vcmask 261120
  %724 = vst.msk [vmem:[#allocation2] sm:$0xff] %vm723, %v707
  %725 = vst.msk [vmem:[#allocation2 + $0x8] sm:$0xff] %vm723, %v708
  %726 = vst.msk [vmem:[#allocation2 + $0x10] sm:$0xff] %vm723, %v709
  %727 = vst.msk [vmem:[#allocation2 + $0x18] sm:$0xff] %vm723, %v710
  %728 = vst.msk [vmem:[#allocation2 + $0x20] sm:$0xff] %vm723, %v711
  %729 = vst.msk [vmem:[#allocation2 + $0x28] sm:$0xff] %vm723, %v712
  %730 = vst.msk [vmem:[#allocation2 + $0x30] sm:$0xff] %vm723, %v713
  %731 = vst.msk [vmem:[#allocation2 + $0x38] sm:$0xff] %vm723, %v714
  %732 = vst.msk [vmem:[#allocation2 + $0x40] sm:$0xff] %vm723, %v715
  %733 = vst.msk [vmem:[#allocation2 + $0x48] sm:$0xff] %vm723, %v716
  %734 = vst.msk [vmem:[#allocation2 + $0x50] sm:$0xff] %vm723, %v717
  %735 = vst.msk [vmem:[#allocation2 + $0x58] sm:$0xff] %vm723, %v718
  %736 = vst.msk [vmem:[#allocation2 + $0x60] sm:$0xff] %vm723, %v719
  %737 = vst.msk [vmem:[#allocation2 + $0x68] sm:$0xff] %vm723, %v720
  %738 = vst.msk [vmem:[#allocation2 + $0x70] sm:$0xff] %vm723, %v721
  %739 = vst.msk [vmem:[#allocation2 + $0x78] sm:$0xff] %vm723, %v722
  // Predicated region
  $region26: #{_lambda_.93} parent=0 // pred_check
    %p740 = pneg %p21
  $region27: #{_lambda_.93} parent=0 // pred_check_branch
    %742 = sbr.rel (%p740) target = $region29
  $region28: #{_lambda_.93} parent=0 // pred_region
    %v743 = vld [vmem:[#allocation2] sm:$0xff]
    %v744 = vld [vmem:[#allocation2 + $0x8] sm:$0xff]
    %v745 = vld [vmem:[#allocation2 + $0x10] sm:$0xff]
    %v746 = vld [vmem:[#allocation2 + $0x18] sm:$0xff]
    %v747 = vld [vmem:[#allocation2 + $0x20] sm:$0xff]
    %v748 = vld [vmem:[#allocation2 + $0x28] sm:$0xff]
    %v749 = vld [vmem:[#allocation2 + $0x30] sm:$0xff]
    %v750 = vld [vmem:[#allocation2 + $0x38] sm:$0xff]
    %v751 = vld [vmem:[#allocation2 + $0x40] sm:$0xff]
    %v752 = vld [vmem:[#allocation2 + $0x48] sm:$0xff]
    %v753 = vld [vmem:[#allocation2 + $0x50] sm:$0xff]
    %v754 = vld [vmem:[#allocation2 + $0x58] sm:$0xff]
    %v755 = vld [vmem:[#allocation2 + $0x60] sm:$0xff]
    %v756 = vld [vmem:[#allocation2 + $0x68] sm:$0xff]
    %v757 = vld [vmem:[#allocation2 + $0x70] sm:$0xff]
    %v758 = vld [vmem:[#allocation2 + $0x78] sm:$0xff]
    %v759 = vld [vmem:[%s2] sm:$0x1]
    %v761 = vperm.slane %v759, 0
    %v763 = vadd.f32 %v743, %v761
    %v764 = vadd.f32 %v744, %v761
    %v765 = vadd.f32 %v745, %v761
    %v766 = vadd.f32 %v746, %v761
    %v767 = vadd.f32 %v747, %v761
    %v768 = vadd.f32 %v748, %v761
    %v769 = vadd.f32 %v749, %v761
    %v770 = vadd.f32 %v750, %v761
    %v771 = vadd.f32 %v751, %v761
    %v772 = vadd.f32 %v752, %v761
    %v773 = vadd.f32 %v753, %v761
    %v774 = vadd.f32 %v754, %v761
    %v775 = vadd.f32 %v755, %v761
    %v776 = vadd.f32 %v756, %v761
    %v777 = vadd.f32 %v757, %v761
    %v778 = vadd.f32 %v758, %v761
    %v779 = vmul.f32 %v763, %v763
    %v780 = vmul.f32 %v764, %v764
    %v781 = vmul.f32 %v765, %v765
    %v782 = vmul.f32 %v766, %v766
    %v783 = vmul.f32 %v767, %v767
    %v784 = vmul.f32 %v768, %v768
    %v785 = vmul.f32 %v769, %v769
    %v786 = vmul.f32 %v770, %v770
    %v787 = vmul.f32 %v771, %v771
    %v788 = vmul.f32 %v772, %v772
    %v789 = vmul.f32 %v773, %v773
    %v790 = vmul.f32 %v774, %v774
    %v791 = vmul.f32 %v775, %v775
    %v792 = vmul.f32 %v776, %v776
    %v793 = vmul.f32 %v777, %v777
    %v794 = vmul.f32 %v778, %v778
    %v795 = vmul.f32 %v763, %v779
    %v796 = vmul.f32 %v764, %v780
    %v797 = vmul.f32 %v765, %v781
    %v798 = vmul.f32 %v766, %v782
    %v799 = vmul.f32 %v767, %v783
    %v800 = vmul.f32 %v768, %v784
    %v801 = vmul.f32 %v769, %v785
    %v802 = vmul.f32 %v770, %v786
    %v803 = vmul.f32 %v771, %v787
    %v804 = vmul.f32 %v772, %v788
    %v805 = vmul.f32 %v773, %v789
    %v806 = vmul.f32 %v774, %v790
    %v807 = vmul.f32 %v775, %v791
    %v808 = vmul.f32 %v776, %v792
    %v809 = vmul.f32 %v777, %v793
    %v810 = vmul.f32 %v778, %v794
    %v811 = vmul.f32 %v795, 0.044715
    %v812 = vmul.f32 %v796, 0.044715
    %v813 = vmul.f32 %v797, 0.044715
    %v814 = vmul.f32 %v798, 0.044715
    %v815 = vmul.f32 %v799, 0.044715
    %v816 = vmul.f32 %v800, 0.044715
    %v817 = vmul.f32 %v801, 0.044715
    %v818 = vmul.f32 %v802, 0.044715
    %v819 = vmul.f32 %v803, 0.044715
    %v820 = vmul.f32 %v804, 0.044715
    %v821 = vmul.f32 %v805, 0.044715
    %v822 = vmul.f32 %v806, 0.044715
    %v823 = vmul.f32 %v807, 0.044715
    %v824 = vmul.f32 %v808, 0.044715
    %v825 = vmul.f32 %v809, 0.044715
    %v826 = vmul.f32 %v810, 0.044715
    %v827 = vadd.f32 %v763, %v811
    %v828 = vadd.f32 %v764, %v812
    %v829 = vadd.f32 %v765, %v813
    %v830 = vadd.f32 %v766, %v814
    %v831 = vadd.f32 %v767, %v815
    %v832 = vadd.f32 %v768, %v816
    %v833 = vadd.f32 %v769, %v817
    %v834 = vadd.f32 %v770, %v818
    %v835 = vadd.f32 %v771, %v819
    %v836 = vadd.f32 %v772, %v820
    %v837 = vadd.f32 %v773, %v821
    %v838 = vadd.f32 %v774, %v822
    %v839 = vadd.f32 %v775, %v823
    %v840 = vadd.f32 %v776, %v824
    %v841 = vadd.f32 %v777, %v825
    %v842 = vadd.f32 %v778, %v826
    %v843 = vmul.f32 %v827, 0.7978846
    %v844 = vmul.f32 %v828, 0.7978846
    %v845 = vmul.f32 %v829, 0.7978846
    %v846 = vmul.f32 %v830, 0.7978846
    %v847 = vmul.f32 %v831, 0.7978846
    %v848 = vmul.f32 %v832, 0.7978846
    %v849 = vmul.f32 %v833, 0.7978846
    %v850 = vmul.f32 %v834, 0.7978846
    %v851 = vmul.f32 %v835, 0.7978846
    %v852 = vmul.f32 %v836, 0.7978846
    %v853 = vmul.f32 %v837, 0.7978846
    %v854 = vmul.f32 %v838, 0.7978846
    %v855 = vmul.f32 %v839, 0.7978846
    %v856 = vmul.f32 %v840, 0.7978846
    %v857 = vmul.f32 %v841, 0.7978846
    %v858 = vmul.f32 %v842, 0.7978846
    %v859 = vtanh.pop %v843
    %v860 = vtanh.pop %v844
    %v861 = vtanh.pop %v845
    %v862 = vtanh.pop %v846
    %v863 = vtanh.pop %v847
    %v864 = vtanh.pop %v848
    %v865 = vtanh.pop %v849
    %v866 = vtanh.pop %v850
    %v867 = vtanh.pop %v851
    %v868 = vtanh.pop %v852
    %v869 = vtanh.pop %v853
    %v870 = vtanh.pop %v854
    %v871 = vtanh.pop %v855
    %v872 = vtanh.pop %v856
    %v873 = vtanh.pop %v857
    %v874 = vtanh.pop %v858
    %v875 = vadd.f32 %v859, 1.0
    %v876 = vadd.f32 %v860, 1.0
    %v877 = vadd.f32 %v861, 1.0
    %v878 = vadd.f32 %v862, 1.0
    %v879 = vadd.f32 %v863, 1.0
    %v880 = vadd.f32 %v864, 1.0
    %v881 = vadd.f32 %v865, 1.0
    %v882 = vadd.f32 %v866, 1.0
    %v883 = vadd.f32 %v867, 1.0
    %v884 = vadd.f32 %v868, 1.0
    %v885 = vadd.f32 %v869, 1.0
    %v886 = vadd.f32 %v870, 1.0
    %v887 = vadd.f32 %v871, 1.0
    %v888 = vadd.f32 %v872, 1.0
    %v889 = vadd.f32 %v873, 1.0
    %v890 = vadd.f32 %v874, 1.0
    %v891 = vmul.f32 %v875, 0.5
    %v892 = vmul.f32 %v876, 0.5
    %v893 = vmul.f32 %v877, 0.5
    %v894 = vmul.f32 %v878, 0.5
    %v895 = vmul.f32 %v879, 0.5
    %v896 = vmul.f32 %v880, 0.5
    %v897 = vmul.f32 %v881, 0.5
    %v898 = vmul.f32 %v882, 0.5
    %v899 = vmul.f32 %v883, 0.5
    %v900 = vmul.f32 %v884, 0.5
    %v901 = vmul.f32 %v885, 0.5
    %v902 = vmul.f32 %v886, 0.5
    %v903 = vmul.f32 %v887, 0.5
    %v904 = vmul.f32 %v888, 0.5
    %v905 = vmul.f32 %v889, 0.5
    %v906 = vmul.f32 %v890, 0.5
    %v907 = vmul.f32 %v763, %v891
    %v908 = vmul.f32 %v764, %v892
    %v909 = vmul.f32 %v765, %v893
    %v910 = vmul.f32 %v766, %v894
    %v911 = vmul.f32 %v767, %v895
    %v912 = vmul.f32 %v768, %v896
    %v913 = vmul.f32 %v769, %v897
    %v914 = vmul.f32 %v770, %v898
    %v915 = vmul.f32 %v771, %v899
    %v916 = vmul.f32 %v772, %v900
    %v917 = vmul.f32 %v773, %v901
    %v918 = vmul.f32 %v774, %v902
    %v919 = vmul.f32 %v775, %v903
    %v920 = vmul.f32 %v776, %v904
    %v921 = vmul.f32 %v777, %v905
    %v922 = vmul.f32 %v778, %v906
    %923 = vst.msk [vmem:[%s5] sm:$0xff] %vm723, %v907
    %924 = vst.msk [vmem:[%s5 + $0x8] sm:$0xff] %vm723, %v908
    %925 = vst.msk [vmem:[%s5 + $0x10] sm:$0xff] %vm723, %v909
    %926 = vst.msk [vmem:[%s5 + $0x18] sm:$0xff] %vm723, %v910
    %927 = vst.msk [vmem:[%s5 + $0x20] sm:$0xff] %vm723, %v911
    %928 = vst.msk [vmem:[%s5 + $0x28] sm:$0xff] %vm723, %v912
    %929 = vst.msk [vmem:[%s5 + $0x30] sm:$0xff] %vm723, %v913
    %930 = vst.msk [vmem:[%s5 + $0x38] sm:$0xff] %vm723, %v914
    %931 = vst.msk [vmem:[%s5 + $0x40] sm:$0xff] %vm723, %v915
    %932 = vst.msk [vmem:[%s5 + $0x48] sm:$0xff] %vm723, %v916
    %933 = vst.msk [vmem:[%s5 + $0x50] sm:$0xff] %vm723, %v917
    %934 = vst.msk [vmem:[%s5 + $0x58] sm:$0xff] %vm723, %v918
    %935 = vst.msk [vmem:[%s5 + $0x60] sm:$0xff] %vm723, %v919
    %936 = vst.msk [vmem:[%s5 + $0x68] sm:$0xff] %vm723, %v920
    %937 = vst.msk [vmem:[%s5 + $0x70] sm:$0xff] %vm723, %v921
    %938 = vst.msk [vmem:[%s5 + $0x78] sm:$0xff] %vm723, %v922
  $region29: #{_lambda_.93} parent=0 // pred_fallthru
    _
  // Predicated region
  $region30: #{_lambda_.93} parent=0 // pred_check
    _
  $region31: #{_lambda_.93} parent=0 // pred_check_branch
    %940 = sbr.rel (0) target = $region33
  $region32: #{_lambda_.93} parent=0 // pred_region
    _
  $region33: #{_lambda_.93} parent=0 // pred_fallthru
    _
  // Predicated region
  $region34: #{_lambda_.93} parent=0 // pred_check
    _
  $region35: #{_lambda_.93} parent=0 // pred_check_branch
    %942 = sbr.rel (0) target = $region37
  $region36: #{_lambda_.93} parent=0 // pred_region
    _
  $region37: #{_lambda_.93} parent=0 // pred_fallthru
    _

</llo_original>
